<compile_context>
chip_gen: v5e
topology: v5e:2x2
jax: 0.10.0
libtpu: 0.0.40
codegen_flags: <defaults>
</compile_context>

<pallas_src>
import math
import jax
import jax.numpy as jnp
from jax.experimental import pallas as pl
from jax.experimental.pallas import tpu as pltpu


_LANE = 128
_VMEM_LIMIT = 32 * 1024 * 1024  # safe on v5e/v6e/v7x scoped-VMEM budgets
_BN_EPS = 1e-5

# (in_channels, out_channels, stride, has_batchnorm) -- static config
_LAYER_CFG = [
    (3,   16, 2, False),
    (16,  32, 1, True),
    (32,  64, 2, True),
    (64, 128, 1, True),
    (128, 256, 2, True),
    (256, 512, 1, True),
]


def _round_up(n, m):
    return ((n + m - 1) // m) * m


# ----------------------------- Pallas kernels ------------------------------

def _conv_block_kernel(p_ref, w_ref, shift_ref, o_ref):
    """Fused conv-as-matmul (bf16 in, f32 acc) + BN shift + LeakyReLU(0.2)."""
    y = jnp.dot(p_ref[...], w_ref[...], preferred_element_type=jnp.float32)
    y = y + shift_ref[...]
    y = jnp.maximum(y, 0.2 * y)          # LeakyReLU(0.2)
    o_ref[...] = y.astype(o_ref.dtype)


def _head_kernel(x_ref, w_ref, b_ref, dis_ref, cla_ref, acc_ref):
    """K-tiled fc_dis + fc_cla matmul, then sigmoid / softmax on the last step."""
    k = pl.program_id(0)

    @pl.when(k == 0)
    def _():
        acc_ref[...] = jnp.zeros_like(acc_ref)

    acc_ref[...] += jnp.dot(x_ref[...], w_ref[...],
                            preferred_element_type=jnp.float32)

    @pl.when(k == pl.num_programs(0) - 1)
    def _():
        y = acc_ref[...] + b_ref[...]
        logit = y[:, 0:1]                          # fc_dis column
        dis_ref[...] = 1.0 / (1.0 + jnp.exp(-logit))
        cls = y[:, 1:11]                           # fc_cla columns
        m = jnp.max(cls, axis=-1, keepdims=True)
        e = jnp.exp(cls - m)
        cla_ref[...] = e / jnp.sum(e, axis=-1, keepdims=True)


# ------------------------------- wrappers -----------------------------------

def conv_block(patches, w_mat, shift):
    """patches (M, K) bf16 @ w (K, Npad) bf16 -> bf16 (M, Npad) activations."""
    M, K = patches.shape
    n_pad = w_mat.shape[1]
    # M tile: multiple of 8, large enough to amortize per-step overhead, and
    # small enough that 2x(double-buffered) patch+output tiles + the resident
    # weight block stay far below v7x's 64 MiB VMEM even at large batch.
    m_tile = M if M <= 512 else 512
    grid_m = pl.cdiv(M, m_tile)
    cost = pl.CostEstimate(
        flops=2 * M * K * n_pad,
        transcendentals=0,
        bytes_accessed=(M * K + K * n_pad + M * n_pad) * 2,
    )
    return pl.pallas_call(
        _conv_block_kernel,
        out_shape=jax.ShapeDtypeStruct((M, n_pad), jnp.bfloat16),
        grid_spec=pltpu.PrefetchScalarGridSpec(
            num_scalar_prefetch=0,
            grid=(grid_m,),
            in_specs=[
                pl.BlockSpec((m_tile, K), lambda i: (i, 0)),
                pl.BlockSpec((K, n_pad), lambda i: (0, 0)),
                pl.BlockSpec((1, n_pad), lambda i: (0, 0)),
            ],
            out_specs=pl.BlockSpec((m_tile, n_pad), lambda i: (i, 0)),
        ),
        compiler_params=pltpu.CompilerParams(
            dimension_semantics=("parallel",),
            vmem_limit_bytes=_VMEM_LIMIT,
        ),
        cost_estimate=cost,
    )(patches, w_mat, shift)


def heads(x_flat, w_all, b_all, k_tile=2048):
    """Fused fc_dis/fc_cla (+bias) + sigmoid + softmax with K-tiled contraction."""
    B, K = x_flat.shape
    n_pad = w_all.shape[1]
    grid_k = K // k_tile
    return pl.pallas_call(
        _head_kernel,
        out_shape=(jax.ShapeDtypeStruct((B, 1), jnp.float32),
                   jax.ShapeDtypeStruct((B, 10), jnp.float32)),
        grid_spec=pltpu.PrefetchScalarGridSpec(
            num_scalar_prefetch=0,
            grid=(grid_k,),
            in_specs=[
                pl.BlockSpec((B, k_tile), lambda k: (0, k)),
                pl.BlockSpec((k_tile, n_pad), lambda k: (k, 0)),
                pl.BlockSpec((1, n_pad), lambda k: (0, 0)),
            ],
            out_specs=(pl.BlockSpec((B, 1), lambda k: (0, 0)),
                       pl.BlockSpec((B, 10), lambda k: (0, 0))),
            scratch_shapes=[pltpu.VMEM((B, n_pad), jnp.float32)],
        ),
        compiler_params=pltpu.CompilerParams(
            dimension_semantics=("arbitrary",),
            vmem_limit_bytes=_VMEM_LIMIT,
        ),
        cost_estimate=pl.CostEstimate(
            flops=2 * B * K * n_pad,
            transcendentals=2 * B * 16,
            bytes_accessed=(B * K + K * n_pad) * 2 + B * 11 * 4,
        ),
    )(x_flat, w_all, b_all)


def extract_patches(x_nhwc, stride):
    """im2col for a 3x3 conv with padding=1 (plain-JAX glue; stride is static)."""
    x = jnp.pad(x_nhwc, ((0, 0), (1, 1), (1, 1), (0, 0)))
    B, Hp, Wp, C = x.shape
    Ho = (Hp - 3) // stride + 1
    Wo = (Wp - 3) // stride + 1
    cols = []
    for kh in range(3):
        for kw in range(3):
            cols.append(x[:, kh:kh + (Ho - 1) * stride + 1:stride,
                            kw:kw + (Wo - 1) * stride + 1:stride, :])
    p = jnp.concatenate(cols, axis=-1)      # (B, Ho, Wo, 9*C), [kh, kw, cin]
    return p.reshape(B * Ho * Wo, 9 * C), (B, Ho, Wo)


# ---------------------------- parameter setup --------------------------------

def init_params(key):
    params = {"convs": []}
    keys = jax.random.split(key, len(_LAYER_CFG) + 2)
    for (cin, cout, stride, bn), k in zip(_LAYER_CFG, keys[:len(_LAYER_CFG)]):
        fan_in = 9 * cin
        # weight stored as (kh*kw*cin, cout) == HWIO flattened, matching im2col order
        w = jax.random.normal(k, (fan_in, cout), jnp.float32) * math.sqrt(2.0 / fan_in)
        if bn:
            gamma = jnp.ones((cout,), jnp.float32)
            beta = jnp.zeros((cout,), jnp.float32)
            running_mean = jnp.zeros((cout,), jnp.float32)
            running_var = jnp.ones((cout,), jnp.float32)
            scale = gamma / jnp.sqrt(running_var + _BN_EPS)
            shift = beta - running_mean * scale
        else:
            scale = jnp.ones((cout,), jnp.float32)
            shift = jnp.zeros((cout,), jnp.float32)
        # Fold BN(eval) scale into the weight columns; keep only the shift.
        w = w * scale[None, :]
        # Lane-dense padding of the output-channel dim to a multiple of 128.
        n_pad = _round_up(cout, _LANE)
        w_p = jnp.zeros((fan_in, n_pad), jnp.float32).at[:, :cout].set(w)
        shift_p = jnp.zeros((1, n_pad), jnp.float32).at[:, :cout].set(shift[None, :])
        params["convs"].append({"w": w_p.astype(jnp.bfloat16), "shift": shift_p})

    # fc_dis (8192->1) + fc_cla (8192->10) packed lane-dense into (8192, 128):
    # column 0 = dis, columns 1..10 = cla, rest zero.
    w_dis = jax.random.normal(keys[-2], (8192, 1), jnp.float32) / math.sqrt(8192.0)
    w_cla = jax.random.normal(keys[-1], (8192, 10), jnp.float32) / math.sqrt(8192.0)
    w_heads = jnp.zeros((8192, _LANE), jnp.float32)
    w_heads = w_heads.at[:, 0:1].set(w_dis).at[:, 1:11].set(w_cla)
    params["w_heads"] = w_heads.astype(jnp.bfloat16)
    params["b_heads"] = jnp.zeros((1, _LANE), jnp.float32)
    return params


# ------------------------------ forward pass ---------------------------------

def discriminator_forward(x_nchw, params):
    # NCHW -> NHWC, bf16 for the MXU path
    x = jnp.transpose(x_nchw, (0, 2, 3, 1)).astype(jnp.bfloat16)
    for (cin, cout, stride, _bn), layer in zip(_LAYER_CFG, params["convs"]):
        p, (B, Ho, Wo) = extract_patches(x, stride)          # stride is static
        y = conv_block(p, layer["w"], layer["shift"])        # (M, Npad) bf16
        x = y[:, :cout].reshape(B, Ho, Wo, cout)             # drop lane padding
    B, H, W, C = x.shape
    # match PyTorch x.view(-1, 8192) on an NCHW tensor: flatten in (C, H, W) order
    feat = jnp.transpose(x, (0, 3, 1, 2)).reshape(B, C * H * W)
    real_or_fake, predict_classes = heads(feat, params["w_heads"], params["b_heads"])
    return real_or_fake, predict_classes


# ---------------------------------- main --------------------------------------

if __name__ == "__main__":
    key = jax.random.PRNGKey(0)
    k_param, k_input = jax.random.split(key)
    params = init_params(k_param)

    # The fc layers require 512*4*4 == 8192 features, so spatial input is 32x32.
    x = jax.random.normal(k_input, (2, 3, 32, 32), jnp.float32)  # NCHW like PyTorch

    fwd = jax.jit(discriminator_forward)
    real_or_fake, predict_classes = fwd(x, params)
    jax.block_until_ready((real_or_fake, predict_classes))

    assert real_or_fake.shape == (2, 1)
    assert predict_classes.shape == (2, 10)
    # softmax rows sum to 1, sigmoid in (0, 1)
    assert bool(jnp.all(jnp.abs(jnp.sum(predict_classes, axis=1) - 1.0) < 1e-3))
    assert bool(jnp.all((real_or_fake > 0.0) & (real_or_fake < 1.0)))
    print("KERNEL_OK")
</pallas_src>

<mosaic_0001>
module attributes {stable_mosaic.version = 11 : i64} {
  func.func @_conv_block_kernel(%arg0: i32, %arg1: memref<512x27xbf16, #tpu.memory_space<vmem>>, %arg2: memref<27x128xbf16, #tpu.memory_space<vmem>>, %arg3: memref<1x128xf32, #tpu.memory_space<vmem>>, %arg4: memref<512x128xbf16, #tpu.memory_space<vmem>>) attributes {dimension_semantics = [#tpu.dimension_semantics<parallel>], iteration_bounds = array<i64: 1>, scalar_prefetch = 0 : i64, scratch_operands = 0 : i64, tpu.core_type = #tpu.core_type<tc>, window_params = [{transform_indices = @transform_0, window_bounds = array<i64: 512, 27>}, {pipeline_mode = #tpu.pipeline_mode<synchronous>, transform_indices = @transform_1, window_bounds = array<i64: 27, 128>}, {pipeline_mode = #tpu.pipeline_mode<synchronous>, transform_indices = @transform_2, window_bounds = array<i64: 1, 128>}, {transform_indices = @transform_3, window_bounds = array<i64: 512, 128>}]} {
    %c0 = arith.constant 0 : index
    %c0_0 = arith.constant 0 : index
    %0 = vector.load %arg1[%c0, %c0_0] : memref<512x27xbf16, #tpu.memory_space<vmem>>, vector<512x27xbf16>
    %c0_1 = arith.constant 0 : index
    %c0_2 = arith.constant 0 : index
    %1 = vector.load %arg2[%c0_1, %c0_2] : memref<27x128xbf16, #tpu.memory_space<vmem>>, vector<27x128xbf16>
    %cst = arith.constant dense<0.000000e+00> : vector<512x128xf32>
    %2 = tpu.matmul %0, %1, %cst {dimension_numbers = #tpu.dot_dimension_numbers<[1], [0], [0], [1], [0, 0, 1, 1], [], []>} : vector<512x27xbf16>, vector<27x128xbf16>, vector<512x128xf32> -> vector<512x128xf32>
    %c0_3 = arith.constant 0 : index
    %c0_4 = arith.constant 0 : index
    %3 = vector.load %arg3[%c0_3, %c0_4] : memref<1x128xf32, #tpu.memory_space<vmem>>, vector<1x128xf32>
    %4 = vector.broadcast %3 : vector<1x128xf32> to vector<512x128xf32>
    %5 = arith.addf %2, %4 : vector<512x128xf32>
    %cst_5 = arith.constant 2.000000e-01 : f32
    %6 = vector.broadcast %cst_5 : f32 to vector<512x128xf32>
    %7 = arith.mulf %6, %5 : vector<512x128xf32>
    %8 = arith.maximumf %5, %7 : vector<512x128xf32>
    %9 = arith.truncf %8 : vector<512x128xf32> to vector<512x128xbf16>
    %c0_6 = arith.constant 0 : index
    %c0_7 = arith.constant 0 : index
    %10 = vector.load %arg4[%c0_6, %c0_7] : memref<512x128xbf16, #tpu.memory_space<vmem>>, vector<512x128xbf16>
    tpu.vector_store %arg4[%c0_6, %c0_7], %9 {strides = array<i32>} : memref<512x128xbf16, #tpu.memory_space<vmem>>, vector<512x128xbf16>,
    return
  }
  func.func @transform_0(%arg0: i32) -> (i32, i32) {
    %c0_i32 = arith.constant 0 : i32
    %c0_i32_0 = arith.constant 0 : i32
    return %arg0, %c0_i32 : i32, i32
  }
  func.func @transform_1(%arg0: i32) -> (i32, i32) {
    %c0_i32 = arith.constant 0 : i32
    %c0_i32_0 = arith.constant 0 : i32
    %c0_i32_1 = arith.constant 0 : i32
    return %c0_i32, %c0_i32_0 : i32, i32
  }
  func.func @transform_2(%arg0: i32) -> (i32, i32) {
    %c0_i32 = arith.constant 0 : i32
    %c0_i32_0 = arith.constant 0 : i32
    %c0_i32_1 = arith.constant 0 : i32
    return %c0_i32, %c0_i32_0 : i32, i32
  }
  func.func @transform_3(%arg0: i32) -> (i32, i32) {
    %c0_i32 = arith.constant 0 : i32
    %c0_i32_0 = arith.constant 0 : i32
    return %arg0, %c0_i32 : i32, i32
  }
}

module attributes {stable_mosaic.version = 11 : i64} {
  func.func @_conv_block_kernel(%arg0: i32, %arg1: memref<512x144xbf16, #tpu.memory_space<vmem>>, %arg2: memref<144x128xbf16, #tpu.memory_space<vmem>>, %arg3: memref<1x128xf32, #tpu.memory_space<vmem>>, %arg4: memref<512x128xbf16, #tpu.memory_space<vmem>>) attributes {dimension_semantics = [#tpu.dimension_semantics<parallel>], iteration_bounds = array<i64: 1>, scalar_prefetch = 0 : i64, scratch_operands = 0 : i64, tpu.core_type = #tpu.core_type<tc>, window_params = [{transform_indices = @transform_0, window_bounds = array<i64: 512, 144>}, {pipeline_mode = #tpu.pipeline_mode<synchronous>, transform_indices = @transform_1, window_bounds = array<i64: 144, 128>}, {pipeline_mode = #tpu.pipeline_mode<synchronous>, transform_indices = @transform_2, window_bounds = array<i64: 1, 128>}, {transform_indices = @transform_3, window_bounds = array<i64: 512, 128>}]} {
    %c0 = arith.constant 0 : index
    %c0_0 = arith.constant 0 : index
    %0 = vector.load %arg1[%c0, %c0_0] : memref<512x144xbf16, #tpu.memory_space<vmem>>, vector<512x144xbf16>
    %c0_1 = arith.constant 0 : index
    %c0_2 = arith.constant 0 : index
    %1 = vector.load %arg2[%c0_1, %c0_2] : memref<144x128xbf16, #tpu.memory_space<vmem>>, vector<144x128xbf16>
    %cst = arith.constant dense<0.000000e+00> : vector<512x128xf32>
    %2 = tpu.matmul %0, %1, %cst {dimension_numbers = #tpu.dot_dimension_numbers<[1], [0], [0], [1], [0, 0, 1, 1], [], []>} : vector<512x144xbf16>, vector<144x128xbf16>, vector<512x128xf32> -> vector<512x128xf32>
    %c0_3 = arith.constant 0 : index
    %c0_4 = arith.constant 0 : index
    %3 = vector.load %arg3[%c0_3, %c0_4] : memref<1x128xf32, #tpu.memory_space<vmem>>, vector<1x128xf32>
    %4 = vector.broadcast %3 : vector<1x128xf32> to vector<512x128xf32>
    %5 = arith.addf %2, %4 : vector<512x128xf32>
    %cst_5 = arith.constant 2.000000e-01 : f32
    %6 = vector.broadcast %cst_5 : f32 to vector<512x128xf32>
    %7 = arith.mulf %6, %5 : vector<512x128xf32>
    %8 = arith.maximumf %5, %7 : vector<512x128xf32>
    %9 = arith.truncf %8 : vector<512x128xf32> to vector<512x128xbf16>
    %c0_6 = arith.constant 0 : index
    %c0_7 = arith.constant 0 : index
    %10 = vector.load %arg4[%c0_6, %c0_7] : memref<512x128xbf16, #tpu.memory_space<vmem>>, vector<512x128xbf16>
    tpu.vector_store %arg4[%c0_6, %c0_7], %9 {strides = array<i32>} : memref<512x128xbf16, #tpu.memory_space<vmem>>, vector<512x128xbf16>,
    return
  }
  func.func @transform_0(%arg0: i32) -> (i32, i32) {
    %c0_i32 = arith.constant 0 : i32
    %c0_i32_0 = arith.constant 0 : i32
    return %arg0, %c0_i32 : i32, i32
  }
  func.func @transform_1(%arg0: i32) -> (i32, i32) {
    %c0_i32 = arith.constant 0 : i32
    %c0_i32_0 = arith.constant 0 : i32
    %c0_i32_1 = arith.constant 0 : i32
    return %c0_i32, %c0_i32_0 : i32, i32
  }
  func.func @transform_2(%arg0: i32) -> (i32, i32) {
    %c0_i32 = arith.constant 0 : i32
    %c0_i32_0 = arith.constant 0 : i32
    %c0_i32_1 = arith.constant 0 : i32
    return %c0_i32, %c0_i32_0 : i32, i32
  }
  func.func @transform_3(%arg0: i32) -> (i32, i32) {
    %c0_i32 = arith.constant 0 : i32
    %c0_i32_0 = arith.constant 0 : i32
    return %arg0, %c0_i32 : i32, i32
  }
}

module attributes {stable_mosaic.version = 11 : i64} {
  func.func @_conv_block_kernel(%arg0: i32, %arg1: memref<128x288xbf16, #tpu.memory_space<vmem>>, %arg2: memref<288x128xbf16, #tpu.memory_space<vmem>>, %arg3: memref<1x128xf32, #tpu.memory_space<vmem>>, %arg4: memref<128x128xbf16, #tpu.memory_space<vmem>>) attributes {dimension_semantics = [#tpu.dimension_semantics<parallel>], iteration_bounds = array<i64: 1>, scalar_prefetch = 0 : i64, scratch_operands = 0 : i64, tpu.core_type = #tpu.core_type<tc>, window_params = [{transform_indices = @transform_0, window_bounds = array<i64: 128, 288>}, {pipeline_mode = #tpu.pipeline_mode<synchronous>, transform_indices = @transform_1, window_bounds = array<i64: 288, 128>}, {pipeline_mode = #tpu.pipeline_mode<synchronous>, transform_indices = @transform_2, window_bounds = array<i64: 1, 128>}, {transform_indices = @transform_3, window_bounds = array<i64: 128, 128>}]} {
    %c0 = arith.constant 0 : index
    %c0_0 = arith.constant 0 : index
    %0 = vector.load %arg1[%c0, %c0_0] : memref<128x288xbf16, #tpu.memory_space<vmem>>, vector<128x288xbf16>
    %c0_1 = arith.constant 0 : index
    %c0_2 = arith.constant 0 : index
    %1 = vector.load %arg2[%c0_1, %c0_2] : memref<288x128xbf16, #tpu.memory_space<vmem>>, vector<288x128xbf16>
    %cst = arith.constant dense<0.000000e+00> : vector<128x128xf32>
    %2 = tpu.matmul %0, %1, %cst {dimension_numbers = #tpu.dot_dimension_numbers<[1], [0], [0], [1], [0, 0, 1, 1], [], []>} : vector<128x288xbf16>, vector<288x128xbf16>, vector<128x128xf32> -> vector<128x128xf32>
    %c0_3 = arith.constant 0 : index
    %c0_4 = arith.constant 0 : index
    %3 = vector.load %arg3[%c0_3, %c0_4] : memref<1x128xf32, #tpu.memory_space<vmem>>, vector<1x128xf32>
    %4 = vector.broadcast %3 : vector<1x128xf32> to vector<128x128xf32>
    %5 = arith.addf %2, %4 : vector<128x128xf32>
    %cst_5 = arith.constant 2.000000e-01 : f32
    %6 = vector.broadcast %cst_5 : f32 to vector<128x128xf32>
    %7 = arith.mulf %6, %5 : vector<128x128xf32>
    %8 = arith.maximumf %5, %7 : vector<128x128xf32>
    %9 = arith.truncf %8 : vector<128x128xf32> to vector<128x128xbf16>
    %c0_6 = arith.constant 0 : index
    %c0_7 = arith.constant 0 : index
    %10 = vector.load %arg4[%c0_6, %c0_7] : memref<128x128xbf16, #tpu.memory_space<vmem>>, vector<128x128xbf16>
    tpu.vector_store %arg4[%c0_6, %c0_7], %9 {strides = array<i32>} : memref<128x128xbf16, #tpu.memory_space<vmem>>, vector<128x128xbf16>,
    return
  }
  func.func @transform_0(%arg0: i32) -> (i32, i32) {
    %c0_i32 = arith.constant 0 : i32
    %c0_i32_0 = arith.constant 0 : i32
    return %arg0, %c0_i32 : i32, i32
  }
  func.func @transform_1(%arg0: i32) -> (i32, i32) {
    %c0_i32 = arith.constant 0 : i32
    %c0_i32_0 = arith.constant 0 : i32
    %c0_i32_1 = arith.constant 0 : i32
    return %c0_i32, %c0_i32_0 : i32, i32
  }
  func.func @transform_2(%arg0: i32) -> (i32, i32) {
    %c0_i32 = arith.constant 0 : i32
    %c0_i32_0 = arith.constant 0 : i32
    %c0_i32_1 = arith.constant 0 : i32
    return %c0_i32, %c0_i32_0 : i32, i32
  }
  func.func @transform_3(%arg0: i32) -> (i32, i32) {
    %c0_i32 = arith.constant 0 : i32
    %c0_i32_0 = arith.constant 0 : i32
    return %arg0, %c0_i32 : i32, i32
  }
}

module attributes {stable_mosaic.version = 11 : i64} {
  func.func @_conv_block_kernel(%arg0: i32, %arg1: memref<128x576xbf16, #tpu.memory_space<vmem>>, %arg2: memref<576x128xbf16, #tpu.memory_space<vmem>>, %arg3: memref<1x128xf32, #tpu.memory_space<vmem>>, %arg4: memref<128x128xbf16, #tpu.memory_space<vmem>>) attributes {dimension_semantics = [#tpu.dimension_semantics<parallel>], iteration_bounds = array<i64: 1>, scalar_prefetch = 0 : i64, scratch_operands = 0 : i64, tpu.core_type = #tpu.core_type<tc>, window_params = [{transform_indices = @transform_0, window_bounds = array<i64: 128, 576>}, {pipeline_mode = #tpu.pipeline_mode<synchronous>, transform_indices = @transform_1, window_bounds = array<i64: 576, 128>}, {pipeline_mode = #tpu.pipeline_mode<synchronous>, transform_indices = @transform_2, window_bounds = array<i64: 1, 128>}, {transform_indices = @transform_3, window_bounds = array<i64: 128, 128>}]} {
    %c0 = arith.constant 0 : index
    %c0_0 = arith.constant 0 : index
    %0 = vector.load %arg1[%c0, %c0_0] : memref<128x576xbf16, #tpu.memory_space<vmem>>, vector<128x576xbf16>
    %c0_1 = arith.constant 0 : index
    %c0_2 = arith.constant 0 : index
    %1 = vector.load %arg2[%c0_1, %c0_2] : memref<576x128xbf16, #tpu.memory_space<vmem>>, vector<576x128xbf16>
    %cst = arith.constant dense<0.000000e+00> : vector<128x128xf32>
    %2 = tpu.matmul %0, %1, %cst {dimension_numbers = #tpu.dot_dimension_numbers<[1], [0], [0], [1], [0, 0, 1, 1], [], []>} : vector<128x576xbf16>, vector<576x128xbf16>, vector<128x128xf32> -> vector<128x128xf32>
    %c0_3 = arith.constant 0 : index
    %c0_4 = arith.constant 0 : index
    %3 = vector.load %arg3[%c0_3, %c0_4] : memref<1x128xf32, #tpu.memory_space<vmem>>, vector<1x128xf32>
    %4 = vector.broadcast %3 : vector<1x128xf32> to vector<128x128xf32>
    %5 = arith.addf %2, %4 : vector<128x128xf32>
    %cst_5 = arith.constant 2.000000e-01 : f32
    %6 = vector.broadcast %cst_5 : f32 to vector<128x128xf32>
    %7 = arith.mulf %6, %5 : vector<128x128xf32>
    %8 = arith.maximumf %5, %7 : vector<128x128xf32>
    %9 = arith.truncf %8 : vector<128x128xf32> to vector<128x128xbf16>
    %c0_6 = arith.constant 0 : index
    %c0_7 = arith.constant 0 : index
    %10 = vector.load %arg4[%c0_6, %c0_7] : memref<128x128xbf16, #tpu.memory_space<vmem>>, vector<128x128xbf16>
    tpu.vector_store %arg4[%c0_6, %c0_7], %9 {strides = array<i32>} : memref<128x128xbf16, #tpu.memory_space<vmem>>, vector<128x128xbf16>,
    return
  }
  func.func @transform_0(%arg0: i32) -> (i32, i32) {
    %c0_i32 = arith.constant 0 : i32
    %c0_i32_0 = arith.constant 0 : i32
    return %arg0, %c0_i32 : i32, i32
  }
  func.func @transform_1(%arg0: i32) -> (i32, i32) {
    %c0_i32 = arith.constant 0 : i32
    %c0_i32_0 = arith.constant 0 : i32
    %c0_i32_1 = arith.constant 0 : i32
    return %c0_i32, %c0_i32_0 : i32, i32
  }
  func.func @transform_2(%arg0: i32) -> (i32, i32) {
    %c0_i32 = arith.constant 0 : i32
    %c0_i32_0 = arith.constant 0 : i32
    %c0_i32_1 = arith.constant 0 : i32
    return %c0_i32, %c0_i32_0 : i32, i32
  }
  func.func @transform_3(%arg0: i32) -> (i32, i32) {
    %c0_i32 = arith.constant 0 : i32
    %c0_i32_0 = arith.constant 0 : i32
    return %arg0, %c0_i32 : i32, i32
  }
}

module attributes {stable_mosaic.version = 11 : i64} {
  func.func @_conv_block_kernel(%arg0: i32, %arg1: memref<32x1152xbf16, #tpu.memory_space<vmem>>, %arg2: memref<1152x256xbf16, #tpu.memory_space<vmem>>, %arg3: memref<1x256xf32, #tpu.memory_space<vmem>>, %arg4: memref<32x256xbf16, #tpu.memory_space<vmem>>) attributes {dimension_semantics = [#tpu.dimension_semantics<parallel>], iteration_bounds = array<i64: 1>, scalar_prefetch = 0 : i64, scratch_operands = 0 : i64, tpu.core_type = #tpu.core_type<tc>, window_params = [{transform_indices = @transform_0, window_bounds = array<i64: 32, 1152>}, {pipeline_mode = #tpu.pipeline_mode<synchronous>, transform_indices = @transform_1, window_bounds = array<i64: 1152, 256>}, {pipeline_mode = #tpu.pipeline_mode<synchronous>, transform_indices = @transform_2, window_bounds = array<i64: 1, 256>}, {transform_indices = @transform_3, window_bounds = array<i64: 32, 256>}]} {
    %c0 = arith.constant 0 : index
    %c0_0 = arith.constant 0 : index
    %0 = vector.load %arg1[%c0, %c0_0] : memref<32x1152xbf16, #tpu.memory_space<vmem>>, vector<32x1152xbf16>
    %c0_1 = arith.constant 0 : index
    %c0_2 = arith.constant 0 : index
    %1 = vector.load %arg2[%c0_1, %c0_2] : memref<1152x256xbf16, #tpu.memory_space<vmem>>, vector<1152x256xbf16>
    %cst = arith.constant dense<0.000000e+00> : vector<32x256xf32>
    %2 = tpu.matmul %0, %1, %cst {dimension_numbers = #tpu.dot_dimension_numbers<[1], [0], [0], [1], [0, 0, 1, 1], [], []>} : vector<32x1152xbf16>, vector<1152x256xbf16>, vector<32x256xf32> -> vector<32x256xf32>
    %c0_3 = arith.constant 0 : index
    %c0_4 = arith.constant 0 : index
    %3 = vector.load %arg3[%c0_3, %c0_4] : memref<1x256xf32, #tpu.memory_space<vmem>>, vector<1x256xf32>
    %4 = vector.broadcast %3 : vector<1x256xf32> to vector<32x256xf32>
    %5 = arith.addf %2, %4 : vector<32x256xf32>
    %cst_5 = arith.constant 2.000000e-01 : f32
    %6 = vector.broadcast %cst_5 : f32 to vector<32x256xf32>
    %7 = arith.mulf %6, %5 : vector<32x256xf32>
    %8 = arith.maximumf %5, %7 : vector<32x256xf32>
    %9 = arith.truncf %8 : vector<32x256xf32> to vector<32x256xbf16>
    %c0_6 = arith.constant 0 : index
    %c0_7 = arith.constant 0 : index
    %10 = vector.load %arg4[%c0_6, %c0_7] : memref<32x256xbf16, #tpu.memory_space<vmem>>, vector<32x256xbf16>
    tpu.vector_store %arg4[%c0_6, %c0_7], %9 {strides = array<i32>} : memref<32x256xbf16, #tpu.memory_space<vmem>>, vector<32x256xbf16>,
    return
  }
  func.func @transform_0(%arg0: i32) -> (i32, i32) {
    %c0_i32 = arith.constant 0 : i32
    %c0_i32_0 = arith.constant 0 : i32
    return %arg0, %c0_i32 : i32, i32
  }
  func.func @transform_1(%arg0: i32) -> (i32, i32) {
    %c0_i32 = arith.constant 0 : i32
    %c0_i32_0 = arith.constant 0 : i32
    %c0_i32_1 = arith.constant 0 : i32
    return %c0_i32, %c0_i32_0 : i32, i32
  }
  func.func @transform_2(%arg0: i32) -> (i32, i32) {
    %c0_i32 = arith.constant 0 : i32
    %c0_i32_0 = arith.constant 0 : i32
    %c0_i32_1 = arith.constant 0 : i32
    return %c0_i32, %c0_i32_0 : i32, i32
  }
  func.func @transform_3(%arg0: i32) -> (i32, i32) {
    %c0_i32 = arith.constant 0 : i32
    %c0_i32_0 = arith.constant 0 : i32
    return %arg0, %c0_i32 : i32, i32
  }
}

module attributes {stable_mosaic.version = 11 : i64} {
  func.func @_conv_block_kernel(%arg0: i32, %arg1: memref<32x2304xbf16, #tpu.memory_space<vmem>>, %arg2: memref<2304x512xbf16, #tpu.memory_space<vmem>>, %arg3: memref<1x512xf32, #tpu.memory_space<vmem>>, %arg4: memref<32x512xbf16, #tpu.memory_space<vmem>>) attributes {dimension_semantics = [#tpu.dimension_semantics<parallel>], iteration_bounds = array<i64: 1>, scalar_prefetch = 0 : i64, scratch_operands = 0 : i64, tpu.core_type = #tpu.core_type<tc>, window_params = [{transform_indices = @transform_0, window_bounds = array<i64: 32, 2304>}, {pipeline_mode = #tpu.pipeline_mode<synchronous>, transform_indices = @transform_1, window_bounds = array<i64: 2304, 512>}, {pipeline_mode = #tpu.pipeline_mode<synchronous>, transform_indices = @transform_2, window_bounds = array<i64: 1, 512>}, {transform_indices = @transform_3, window_bounds = array<i64: 32, 512>}]} {
    %c0 = arith.constant 0 : index
    %c0_0 = arith.constant 0 : index
    %0 = vector.load %arg1[%c0, %c0_0] : memref<32x2304xbf16, #tpu.memory_space<vmem>>, vector<32x2304xbf16>
    %c0_1 = arith.constant 0 : index
    %c0_2 = arith.constant 0 : index
    %1 = vector.load %arg2[%c0_1, %c0_2] : memref<2304x512xbf16, #tpu.memory_space<vmem>>, vector<2304x512xbf16>
    %cst = arith.constant dense<0.000000e+00> : vector<32x512xf32>
    %2 = tpu.matmul %0, %1, %cst {dimension_numbers = #tpu.dot_dimension_numbers<[1], [0], [0], [1], [0, 0, 1, 1], [], []>} : vector<32x2304xbf16>, vector<2304x512xbf16>, vector<32x512xf32> -> vector<32x512xf32>
    %c0_3 = arith.constant 0 : index
    %c0_4 = arith.constant 0 : index
    %3 = vector.load %arg3[%c0_3, %c0_4] : memref<1x512xf32, #tpu.memory_space<vmem>>, vector<1x512xf32>
    %4 = vector.broadcast %3 : vector<1x512xf32> to vector<32x512xf32>
    %5 = arith.addf %2, %4 : vector<32x512xf32>
    %cst_5 = arith.constant 2.000000e-01 : f32
    %6 = vector.broadcast %cst_5 : f32 to vector<32x512xf32>
    %7 = arith.mulf %6, %5 : vector<32x512xf32>
    %8 = arith.maximumf %5, %7 : vector<32x512xf32>
    %9 = arith.truncf %8 : vector<32x512xf32> to vector<32x512xbf16>
    %c0_6 = arith.constant 0 : index
    %c0_7 = arith.constant 0 : index
    %10 = vector.load %arg4[%c0_6, %c0_7] : memref<32x512xbf16, #tpu.memory_space<vmem>>, vector<32x512xbf16>
    tpu.vector_store %arg4[%c0_6, %c0_7], %9 {strides = array<i32>} : memref<32x512xbf16, #tpu.memory_space<vmem>>, vector<32x512xbf16>,
    return
  }
  func.func @transform_0(%arg0: i32) -> (i32, i32) {
    %c0_i32 = arith.constant 0 : i32
    %c0_i32_0 = arith.constant 0 : i32
    return %arg0, %c0_i32 : i32, i32
  }
  func.func @transform_1(%arg0: i32) -> (i32, i32) {
    %c0_i32 = arith.constant 0 : i32
    %c0_i32_0 = arith.constant 0 : i32
    %c0_i32_1 = arith.constant 0 : i32
    return %c0_i32, %c0_i32_0 : i32, i32
  }
  func.func @transform_2(%arg0: i32) -> (i32, i32) {
    %c0_i32 = arith.constant 0 : i32
    %c0_i32_0 = arith.constant 0 : i32
    %c0_i32_1 = arith.constant 0 : i32
    return %c0_i32, %c0_i32_0 : i32, i32
  }
  func.func @transform_3(%arg0: i32) -> (i32, i32) {
    %c0_i32 = arith.constant 0 : i32
    %c0_i32_0 = arith.constant 0 : i32
    return %arg0, %c0_i32 : i32, i32
  }
}

module attributes {stable_mosaic.version = 11 : i64} {
  func.func @_head_kernel(%arg0: i32, %arg1: memref<2x2048xbf16, #tpu.memory_space<vmem>>, %arg2: memref<2048x128xbf16, #tpu.memory_space<vmem>>, %arg3: memref<1x128xf32, #tpu.memory_space<vmem>>, %arg4: memref<2x1xf32, #tpu.memory_space<vmem>>, %arg5: memref<2x10xf32, #tpu.memory_space<vmem>>, %arg6: memref<2x128xf32, #tpu.memory_space<vmem>>) attributes {dimension_semantics = [#tpu.dimension_semantics<arbitrary>], iteration_bounds = array<i64: 4>, scalar_prefetch = 0 : i64, scratch_operands = 1 : i64, tpu.core_type = #tpu.core_type<tc>, window_params = [{transform_indices = @transform_0, window_bounds = array<i64: 2, 2048>}, {transform_indices = @transform_1, window_bounds = array<i64: 2048, 128>}, {pipeline_mode = #tpu.pipeline_mode<synchronous>, transform_indices = @transform_2, window_bounds = array<i64: 1, 128>}, {pipeline_mode = #tpu.pipeline_mode<synchronous>, transform_indices = @transform_3, window_bounds = array<i64: 2, 1>}, {pipeline_mode = #tpu.pipeline_mode<synchronous>, transform_indices = @transform_4, window_bounds = array<i64: 2, 10>}]} {
    %c0_i32 = arith.constant 0 : i32
    %0 = arith.cmpi eq, %arg0, %c0_i32 : i32
    %1 = arith.extui %0 : i1 to i32
    %c0_i32_0 = arith.constant 0 : i32
    %2 = arith.cmpi ne, %1, %c0_i32_0 : i32
    scf.if %2 {
      %cst_9 = arith.constant 0.000000e+00 : f32
      %12 = vector.broadcast %cst_9 : f32 to vector<2x128xf32>
      %c0_10 = arith.constant 0 : index
      %c0_11 = arith.constant 0 : index
      %13 = vector.load %arg6[%c0_10, %c0_11] : memref<2x128xf32, #tpu.memory_space<vmem>>, vector<2x128xf32>
      tpu.vector_store %arg6[%c0_10, %c0_11], %12 {strides = array<i32>} : memref<2x128xf32, #tpu.memory_space<vmem>>, vector<2x128xf32>,
    } else {
    }
    %c0 = arith.constant 0 : index
    %c0_1 = arith.constant 0 : index
    %3 = vector.load %arg6[%c0, %c0_1] : memref<2x128xf32, #tpu.memory_space<vmem>>, vector<2x128xf32>
    %c0_2 = arith.constant 0 : index
    %c0_3 = arith.constant 0 : index
    %4 = vector.load %arg1[%c0_2, %c0_3] : memref<2x2048xbf16, #tpu.memory_space<vmem>>, vector<2x2048xbf16>
    %c0_4 = arith.constant 0 : index
    %c0_5 = arith.constant 0 : index
    %5 = vector.load %arg2[%c0_4, %c0_5] : memref<2048x128xbf16, #tpu.memory_space<vmem>>, vector<2048x128xbf16>
    %cst = arith.constant dense<0.000000e+00> : vector<2x128xf32>
    %6 = tpu.matmul %4, %5, %cst {dimension_numbers = #tpu.dot_dimension_numbers<[1], [0], [0], [1], [0, 0, 1, 1], [], []>} : vector<2x2048xbf16>, vector<2048x128xbf16>, vector<2x128xf32> -> vector<2x128xf32>
    %7 = arith.addf %3, %6 : vector<2x128xf32>
    %c0_6 = arith.constant 0 : index
    %c0_7 = arith.constant 0 : index
    %8 = vector.load %arg6[%c0_6, %c0_7] : memref<2x128xf32, #tpu.memory_space<vmem>>, vector<2x128xf32>
    tpu.vector_store %arg6[%c0_6, %c0_7], %7 {strides = array<i32>} : memref<2x128xf32, #tpu.memory_space<vmem>>, vector<2x128xf32>,
    %c3_i32 = arith.constant 3 : i32
    %9 = arith.cmpi eq, %arg0, %c3_i32 : i32
    %10 = arith.extui %9 : i1 to i32
    %c0_i32_8 = arith.constant 0 : i32
    %11 = arith.cmpi ne, %10, %c0_i32_8 : i32
    scf.if %11 {
      %c0_9 = arith.constant 0 : index
      %c0_10 = arith.constant 0 : index
      %12 = vector.load %arg6[%c0_9, %c0_10] : memref<2x128xf32, #tpu.memory_space<vmem>>, vector<2x128xf32>
      %c0_11 = arith.constant 0 : index
      %c0_12 = arith.constant 0 : index
      %13 = vector.load %arg3[%c0_11, %c0_12] : memref<1x128xf32, #tpu.memory_space<vmem>>, vector<1x128xf32>
      %14 = vector.broadcast %13 : vector<1x128xf32> to vector<2x128xf32>
      %15 = arith.addf %12, %14 : vector<2x128xf32>
      %16 = vector.extract_strided_slice %15 {offsets = [0, 0], sizes = [2, 1], strides = [1, 1]} : vector<2x128xf32> to vector<2x1xf32>
      %cst_13 = arith.constant 0.000000e+00 : f32
      %17 = vector.broadcast %cst_13 : f32 to vector<2x1xf32>
      %18 = arith.subf %17, %16 : vector<2x1xf32>
      %19 = math.exp %18 : vector<2x1xf32>
      %cst_14 = arith.constant 1.000000e+00 : f32
      %20 = vector.broadcast %cst_14 : f32 to vector<2x1xf32>
      %21 = arith.addf %20, %19 : vector<2x1xf32>
      %cst_15 = arith.constant 1.000000e+00 : f32
      %22 = vector.broadcast %cst_15 : f32 to vector<2x1xf32>
      %23 = arith.divf %22, %21 : vector<2x1xf32>
      %c0_16 = arith.constant 0 : index
      %c0_17 = arith.constant 0 : index
      %24 = vector.load %arg4[%c0_16, %c0_17] : memref<2x1xf32, #tpu.memory_space<vmem>>, vector<2x1xf32>
      tpu.vector_store %arg4[%c0_16, %c0_17], %23 {strides = array<i32>} : memref<2x1xf32, #tpu.memory_space<vmem>>, vector<2x1xf32>,
      %25 = vector.extract_strided_slice %15 {offsets = [0, 1], sizes = [2, 10], strides = [1, 1]} : vector<2x128xf32> to vector<2x10xf32>
      %cst_18 = arith.constant dense<0xFF800000> : vector<2xf32>
      %26 = vector.multi_reduction <maximumf>, %25, %cst_18 [1] : vector<2x10xf32> to vector<2xf32>
      %27 = vector.shape_cast %26 : vector<2xf32> to vector<2x1xf32>
      %28 = vector.broadcast %27 : vector<2x1xf32> to vector<2x10xf32>
      %29 = arith.subf %25, %28 : vector<2x10xf32>
      %30 = math.exp %29 : vector<2x10xf32>
      %cst_19 = arith.constant dense<0.000000e+00> : vector<2xf32>
      %31 = vector.multi_reduction <add>, %30, %cst_19 [1] : vector<2x10xf32> to vector<2xf32>
      %32 = vector.shape_cast %31 : vector<2xf32> to vector<2x1xf32>
      %33 = vector.broadcast %32 : vector<2x1xf32> to vector<2x10xf32>
      %34 = arith.divf %30, %33 : vector<2x10xf32>
      %c0_20 = arith.constant 0 : index
      %c0_21 = arith.constant 0 : index
      %35 = vector.load %arg5[%c0_20, %c0_21] : memref<2x10xf32, #tpu.memory_space<vmem>>, vector<2x10xf32>
      tpu.vector_store %arg5[%c0_20, %c0_21], %34 {strides = array<i32>} : memref<2x10xf32, #tpu.memory_space<vmem>>, vector<2x10xf32>,
    } else {
    }
    return
  }
  func.func @transform_0(%arg0: i32) -> (i32, i32) {
    %c0_i32 = arith.constant 0 : i32
    %c0_i32_0 = arith.constant 0 : i32
    return %c0_i32, %arg0 : i32, i32
  }
  func.func @transform_1(%arg0: i32) -> (i32, i32) {
    %c0_i32 = arith.constant 0 : i32
    %c0_i32_0 = arith.constant 0 : i32
    return %arg0, %c0_i32 : i32, i32
  }
  func.func @transform_2(%arg0: i32) -> (i32, i32) {
    %c0_i32 = arith.constant 0 : i32
    %c0_i32_0 = arith.constant 0 : i32
    %c0_i32_1 = arith.constant 0 : i32
    return %c0_i32, %c0_i32_0 : i32, i32
  }
  func.func @transform_3(%arg0: i32) -> (i32, i32) {
    %c0_i32 = arith.constant 0 : i32
    %c0_i32_0 = arith.constant 0 : i32
    %c0_i32_1 = arith.constant 0 : i32
    return %c0_i32, %c0_i32_0 : i32, i32
  }
  func.func @transform_4(%arg0: i32) -> (i32, i32) {
    %c0_i32 = arith.constant 0 : i32
    %c0_i32_0 = arith.constant 0 : i32
    %c0_i32_1 = arith.constant 0 : i32
    return %c0_i32, %c0_i32_0 : i32, i32
  }
}

</mosaic_0001>

<llo_original>
// kernel: discriminator_forward.7
$region0: #{discriminator_forward.7}
  #allocation0 [shape = 'u32[]', space=smem, size = 0x4, offset = 0x4, fixed_abs, tag = 'smem constant byte address 0x4 - core index']
  #allocation1 [shape = 'u32[72,128]{1,0:T(1,128)}', space=vmem, size = 0x9000, scoped, tag = 'internal scratch']
  %s0 = inlined_call_operand.vmem [shape: bf16[512,27], index: 0, kind: input, shape index: {}]
  %s1 = inlined_call_operand.hbm [shape: bf16[27,128], index: 1, kind: input, shape index: {}]
  %s2 = inlined_call_operand.hbm [shape: f32[1,128], index: 2, kind: input, shape index: {}]
  %s3 = inlined_call_operand.vmem [shape: bf16[512,128], index: 3, kind: output, shape index: {}]
  %s4 = sld [smem:[#allocation0]]
  $region30: #{discriminator_forward.7} parent=0
    _
  %s6 = ssub.s32 1, %s4
  %s7 = scalar_select 0, %s6, %s4
  $region1: #{discriminator_forward.7} parent=0
    #allocation2 [shape = 'u8[8192]{0}', space=vmem, size = 0x2000, scoped, tag = 'input window, operand 1, single buffered']
    #allocation3 [shape = 's32[1]{0}', space=sflag, size = 0x4, scoped, tag = 'scoped memory for discriminator_forward.7']
    #allocation4 [shape = 'u8[512]{0}', space=vmem, size = 0x400, scoped, tag = 'input window, operand 2, single buffered']
    #allocation5 [shape = 's32[1]{0}', space=sflag, size = 0x4, scoped, tag = 'scoped memory for discriminator_forward.7']
    %8 = vsyncpa [#allocation3], 0
    %9 = vsyncpa [#allocation5], 0
    // Predicated region
    $region2: #{discriminator_forward.7} parent=1 // pred_check
      _
    $region3: #{discriminator_forward.7} parent=1 // pred_check_branch
      %11 = sbr.rel (0) target = $region5
    $region4: #{discriminator_forward.7} parent=1 // pred_region
      _
    $region5: #{discriminator_forward.7} parent=1 // pred_fallthru
      _
    // Predicated region
    $region6: #{discriminator_forward.7} parent=1 // pred_check
      _
    $region7: #{discriminator_forward.7} parent=1 // pred_check_branch
      %13 = sbr.rel (0) target = $region9
    $region8: #{discriminator_forward.7} parent=1 // pred_region
      %15 = vsyncadd [#allocation3], 0
      %s16 = sshll.u32 %s1, 4
      %s17 = int_to_ptr.hbm [resolvable:$true] %s16
      %s18 = sshll.u32 [#allocation2], 4
      %s19 = int_to_ptr.vmem [resolvable:$true] %s18
      %24 = dma.hbm_to_vmem [thread:$0]  %s17, 256, %s19, [#allocation3], 64, 64, 4
    $region9: #{discriminator_forward.7} parent=1 // pred_fallthru
      _
    // Predicated region
    $region10: #{discriminator_forward.7} parent=1 // pred_check
      _
    $region11: #{discriminator_forward.7} parent=1 // pred_check_branch
      %26 = sbr.rel (0) target = $region13
    $region12: #{discriminator_forward.7} parent=1 // pred_region
      %28 = vsyncadd [#allocation5], 0
      %s30 = sshll.u32 %s2, 4
      %s31 = int_to_ptr.hbm [resolvable:$true] %s30
      %s32 = sshll.u32 [#allocation4], 4
      %s33 = int_to_ptr.vmem [resolvable:$true] %s32
      %35 = dma.hbm_to_vmem [thread:$0]  %s31, 16, %s33, [#allocation5]
    $region13: #{discriminator_forward.7} parent=1 // pred_fallthru
      _
    // Predicated region
    $region14: #{discriminator_forward.7} parent=1 // pred_check
      _
    $region15: #{discriminator_forward.7} parent=1 // pred_check_branch
      %37 = sbr.rel (0) target = $region17
    $region16: #{discriminator_forward.7} parent=1 // pred_region
      %39 = dma.done [#allocation3], 256
    $region17: #{discriminator_forward.7} parent=1 // pred_fallthru
      _
    // Predicated region
    $region18: #{discriminator_forward.7} parent=1 // pred_check
      _
    $region19: #{discriminator_forward.7} parent=1 // pred_check_branch
      %41 = sbr.rel (0) target = $region21
    $region20: #{discriminator_forward.7} parent=1 // pred_region
      %43 = dma.done [#allocation5], 16
    $region21: #{discriminator_forward.7} parent=1 // pred_fallthru
      _
    %v45 = vld [vmem:[%s0] sm:$0xf]
    %v46 = vld [vmem:[%s0 + $0x4] sm:$0xf]
    %v47 = vld [vmem:[%s0 + $0x8] sm:$0xf]
    %v48 = vld [vmem:[%s0 + $0xc] sm:$0xf]
    %v49 = vld [vmem:[%s0 + $0x10] sm:$0xf]
    %v50 = vld [vmem:[%s0 + $0x14] sm:$0xf]
    %v51 = vld [vmem:[%s0 + $0x18] sm:$0xf]
    %v52 = vld [vmem:[%s0 + $0x1c] sm:$0xf]
    %v53 = vld [vmem:[%s0 + $0x20] sm:$0xf]
    %v54 = vld [vmem:[%s0 + $0x24] sm:$0xf]
    %v55 = vld [vmem:[%s0 + $0x28] sm:$0xf]
    %v56 = vld [vmem:[%s0 + $0x2c] sm:$0xf]
    %v57 = vld [vmem:[%s0 + $0x30] sm:$0xf]
    %v58 = vld [vmem:[%s0 + $0x34] sm:$0xf]
    %v59 = vld [vmem:[%s0 + $0x38] sm:$0xf]
    %v60 = vld [vmem:[%s0 + $0x3c] sm:$0xf]
    %v61 = vld [vmem:[%s0 + $0x40] sm:$0xf]
    %v62 = vld [vmem:[%s0 + $0x44] sm:$0xf]
    %v63 = vld [vmem:[%s0 + $0x48] sm:$0xf]
    %v64 = vld [vmem:[%s0 + $0x4c] sm:$0xf]
    %v65 = vld [vmem:[%s0 + $0x50] sm:$0xf]
    %v66 = vld [vmem:[%s0 + $0x54] sm:$0xf]
    %v67 = vld [vmem:[%s0 + $0x58] sm:$0xf]
    %v68 = vld [vmem:[%s0 + $0x5c] sm:$0xf]
    %v69 = vld [vmem:[%s0 + $0x60] sm:$0xf]
    %v70 = vld [vmem:[%s0 + $0x64] sm:$0xf]
    %v71 = vld [vmem:[%s0 + $0x68] sm:$0xf]
    %v72 = vld [vmem:[%s0 + $0x6c] sm:$0xf]
    %v73 = vld [vmem:[%s0 + $0x70] sm:$0xf]
    %v74 = vld [vmem:[%s0 + $0x74] sm:$0xf]
    %v75 = vld [vmem:[%s0 + $0x78] sm:$0xf]
    %v76 = vld [vmem:[%s0 + $0x7c] sm:$0xf]
    %v77 = vld [vmem:[%s0 + $0x80] sm:$0xf]
    %v78 = vld [vmem:[%s0 + $0x84] sm:$0xf]
    %v79 = vld [vmem:[%s0 + $0x88] sm:$0xf]
    %v80 = vld [vmem:[%s0 + $0x8c] sm:$0xf]
    %v81 = vld [vmem:[%s0 + $0x90] sm:$0xf]
    %v82 = vld [vmem:[%s0 + $0x94] sm:$0xf]
    %v83 = vld [vmem:[%s0 + $0x98] sm:$0xf]
    %v84 = vld [vmem:[%s0 + $0x9c] sm:$0xf]
    %v85 = vld [vmem:[%s0 + $0xa0] sm:$0xf]
    %v86 = vld [vmem:[%s0 + $0xa4] sm:$0xf]
    %v87 = vld [vmem:[%s0 + $0xa8] sm:$0xf]
    %v88 = vld [vmem:[%s0 + $0xac] sm:$0xf]
    %v89 = vld [vmem:[%s0 + $0xb0] sm:$0xf]
    %v90 = vld [vmem:[%s0 + $0xb4] sm:$0xf]
    %v91 = vld [vmem:[%s0 + $0xb8] sm:$0xf]
    %v92 = vld [vmem:[%s0 + $0xbc] sm:$0xf]
    %v93 = vld [vmem:[%s0 + $0xc0] sm:$0xf]
    %v94 = vld [vmem:[%s0 + $0xc4] sm:$0xf]
    %v95 = vld [vmem:[%s0 + $0xc8] sm:$0xf]
    %v96 = vld [vmem:[%s0 + $0xcc] sm:$0xf]
    %v97 = vld [vmem:[%s0 + $0xd0] sm:$0xf]
    %v98 = vld [vmem:[%s0 + $0xd4] sm:$0xf]
    %v99 = vld [vmem:[%s0 + $0xd8] sm:$0xf]
    %v100 = vld [vmem:[%s0 + $0xdc] sm:$0xf]
    %v101 = vld [vmem:[%s0 + $0xe0] sm:$0xf]
    %v102 = vld [vmem:[%s0 + $0xe4] sm:$0xf]
    %v103 = vld [vmem:[%s0 + $0xe8] sm:$0xf]
    %v104 = vld [vmem:[%s0 + $0xec] sm:$0xf]
    %v105 = vld [vmem:[%s0 + $0xf0] sm:$0xf]
    %v106 = vld [vmem:[%s0 + $0xf4] sm:$0xf]
    %v107 = vld [vmem:[%s0 + $0xf8] sm:$0xf]
    %v108 = vld [vmem:[%s0 + $0xfc] sm:$0xf]
    %v109 = vld [vmem:[#allocation2] sm:$0xf]
    %v110 = vld [vmem:[#allocation2 + $0x4] sm:$0xf]
    %v111 = vld [vmem:[#allocation2 + $0x8] sm:$0xf]
    %v112 = vld [vmem:[#allocation2 + $0xc] sm:$0x3]
    %v113 = vld [vmem:[#allocation4] sm:$0x1]
    %v115 = vperm.slane %v113, 0
    %v181 = vunpack.c.l.b16 %v45
    %v182 = vunpack.c.l.b16 %v46
    %v183 = vunpack.c.l.b16 %v47
    %v184 = vunpack.c.l.b16 %v48
    %v185 = vunpack.c.l.b16 %v49
    %v186 = vunpack.c.l.b16 %v50
    %v187 = vunpack.c.l.b16 %v51
    %v188 = vunpack.c.l.b16 %v52
    %v189 = vunpack.c.l.b16 %v53
    %v190 = vunpack.c.l.b16 %v54
    %v191 = vunpack.c.l.b16 %v55
    %v192 = vunpack.c.l.b16 %v56
    %v193 = vunpack.c.l.b16 %v57
    %v194 = vunpack.c.l.b16 %v58
    %v195 = vunpack.c.l.b16 %v59
    %v196 = vunpack.c.l.b16 %v60
    %v197 = vunpack.c.l.b16 %v61
    %v198 = vunpack.c.l.b16 %v62
    %v199 = vunpack.c.l.b16 %v63
    %v200 = vunpack.c.l.b16 %v64
    %v201 = vunpack.c.l.b16 %v65
    %v202 = vunpack.c.l.b16 %v66
    %v203 = vunpack.c.l.b16 %v67
    %v204 = vunpack.c.l.b16 %v68
    %v205 = vunpack.c.l.b16 %v69
    %v206 = vunpack.c.l.b16 %v70
    %v207 = vunpack.c.l.b16 %v71
    %v208 = vunpack.c.l.b16 %v72
    %v209 = vunpack.c.l.b16 %v73
    %v210 = vunpack.c.l.b16 %v74
    %v211 = vunpack.c.l.b16 %v75
    %v212 = vunpack.c.l.b16 %v76
    %v213 = vunpack.c.l.b16 %v77
    %v214 = vunpack.c.l.b16 %v78
    %v215 = vunpack.c.l.b16 %v79
    %v216 = vunpack.c.l.b16 %v80
    %v217 = vunpack.c.l.b16 %v81
    %v218 = vunpack.c.l.b16 %v82
    %v219 = vunpack.c.l.b16 %v83
    %v220 = vunpack.c.l.b16 %v84
    %v221 = vunpack.c.l.b16 %v85
    %v222 = vunpack.c.l.b16 %v86
    %v223 = vunpack.c.l.b16 %v87
    %v224 = vunpack.c.l.b16 %v88
    %v225 = vunpack.c.l.b16 %v89
    %v226 = vunpack.c.l.b16 %v90
    %v227 = vunpack.c.l.b16 %v91
    %v228 = vunpack.c.l.b16 %v92
    %v229 = vunpack.c.l.b16 %v93
    %v230 = vunpack.c.l.b16 %v94
    %v231 = vunpack.c.l.b16 %v95
    %v232 = vunpack.c.l.b16 %v96
    %v233 = vunpack.c.l.b16 %v97
    %v234 = vunpack.c.l.b16 %v98
    %v235 = vunpack.c.l.b16 %v99
    %v236 = vunpack.c.l.b16 %v100
    %v237 = vunpack.c.l.b16 %v101
    %v238 = vunpack.c.l.b16 %v102
    %v239 = vunpack.c.l.b16 %v103
    %v240 = vunpack.c.l.b16 %v104
    %v241 = vunpack.c.l.b16 %v105
    %v242 = vunpack.c.l.b16 %v106
    %v243 = vunpack.c.l.b16 %v107
    %v244 = vunpack.c.l.b16 %v108
    %v245 = vpack.c.b16 %v182, %v181
    %v246 = vpack.c.b16 %v184, %v183
    %v247 = vpack.c.b16 %v186, %v185
    %v248 = vpack.c.b16 %v188, %v187
    %v249 = vpack.c.b16 %v190, %v189
    %v250 = vpack.c.b16 %v192, %v191
    %v251 = vpack.c.b16 %v194, %v193
    %v252 = vpack.c.b16 %v196, %v195
    %v253 = vpack.c.b16 %v198, %v197
    %v254 = vpack.c.b16 %v200, %v199
    %v255 = vpack.c.b16 %v202, %v201
    %v256 = vpack.c.b16 %v204, %v203
    %v257 = vpack.c.b16 %v206, %v205
    %v258 = vpack.c.b16 %v208, %v207
    %v259 = vpack.c.b16 %v210, %v209
    %v260 = vpack.c.b16 %v212, %v211
    %v261 = vpack.c.b16 %v214, %v213
    %v262 = vpack.c.b16 %v216, %v215
    %v263 = vpack.c.b16 %v218, %v217
    %v264 = vpack.c.b16 %v220, %v219
    %v265 = vpack.c.b16 %v222, %v221
    %v266 = vpack.c.b16 %v224, %v223
    %v267 = vpack.c.b16 %v226, %v225
    %v268 = vpack.c.b16 %v228, %v227
    %v269 = vpack.c.b16 %v230, %v229
    %v270 = vpack.c.b16 %v232, %v231
    %v271 = vpack.c.b16 %v234, %v233
    %v272 = vpack.c.b16 %v236, %v235
    %v273 = vpack.c.b16 %v238, %v237
    %v274 = vpack.c.b16 %v240, %v239
    %v275 = vpack.c.b16 %v242, %v241
    %v276 = vpack.c.b16 %v244, %v243
    %v281 = vunpack.c.l.b16 %v109
    %v282 = vunpack.c.l.b16 %v110
    %v283 = vunpack.c.l.b16 %v111
    %v284 = vunpack.c.l.b16 %v112
    %v285 = vpack.c.b16 %v282, %v281
    %v286 = vpack.c.b16 %v284, %v283
    %vm288 = vcmask 220160
    %v290 = vsel %vm288, %v245, 0
    %v293 = vsel %vm288, %v246, 0
    %v296 = vsel %vm288, %v247, 0
    %v299 = vsel %vm288, %v248, 0
    %v302 = vsel %vm288, %v249, 0
    %v305 = vsel %vm288, %v250, 0
    %v308 = vsel %vm288, %v251, 0
    %v311 = vsel %vm288, %v252, 0
    %v314 = vsel %vm288, %v253, 0
    %v317 = vsel %vm288, %v254, 0
    %v320 = vsel %vm288, %v255, 0
    %v323 = vsel %vm288, %v256, 0
    %v326 = vsel %vm288, %v257, 0
    %v329 = vsel %vm288, %v258, 0
    %v332 = vsel %vm288, %v259, 0
    %v335 = vsel %vm288, %v260, 0
    %v338 = vsel %vm288, %v261, 0
    %v341 = vsel %vm288, %v262, 0
    %v344 = vsel %vm288, %v263, 0
    %v347 = vsel %vm288, %v264, 0
    %v350 = vsel %vm288, %v265, 0
    %v353 = vsel %vm288, %v266, 0
    %v356 = vsel %vm288, %v267, 0
    %v359 = vsel %vm288, %v268, 0
    %v362 = vsel %vm288, %v269, 0
    %v365 = vsel %vm288, %v270, 0
    %v368 = vsel %vm288, %v271, 0
    %v371 = vsel %vm288, %v272, 0
    %v374 = vsel %vm288, %v273, 0
    %v377 = vsel %vm288, %v274, 0
    %v380 = vsel %vm288, %v275, 0
    %v383 = vsel %vm288, %v276, 0
    %vm385 = vcmask 1044480
    %vm386 = vcmask 1045504
    %v387 = vsel %vm385, 4294967295, 65535
    %v388 = vsel %vm386, %v387, 0
    %v390 = vand.u32 %v286, %v388
    %392 = vmatpush.bf16.msra.mxu0 0
    %393 = vmatpush.bf16.msra.mxu0 0
    %394 = vmatpush.bf16.msra.mxu0 0
    %395 = vmatpush.bf16.msra.mxu0 0
    %396 = vmatpush.bf16.msra.mxu0 0
    %397 = vmatpush.bf16.msra.mxu0 0
    %398 = vmatpush.bf16.msra.mxu0 %v390
    %399 = vmatpush.bf16.msra.mxu0 %v285
    %400 = vmatmul.bf16.gmra.mxu0 %v290
    %v401 = vpop.f32.mrf.mxu0
    %v402 = vadd.f32 %v115, %v401
    %v403 = vpop.f32.mrf.mxu0
    %v404 = vadd.f32 %v115, %v403
    %405 = vmatmul.bf16.gmra.mxu0 %v293
    %v406 = vpop.f32.mrf.mxu0
    %v407 = vadd.f32 %v115, %v406
    %v408 = vpop.f32.mrf.mxu0
    %v409 = vadd.f32 %v115, %v408
    %410 = vmatmul.bf16.gmra.mxu0 %v296
    %v411 = vpop.f32.mrf.mxu0
    %v412 = vadd.f32 %v115, %v411
    %v413 = vpop.f32.mrf.mxu0
    %v414 = vadd.f32 %v115, %v413
    %415 = vmatmul.bf16.gmra.mxu0 %v299
    %v416 = vpop.f32.mrf.mxu0
    %v417 = vadd.f32 %v115, %v416
    %v418 = vpop.f32.mrf.mxu0
    %v419 = vadd.f32 %v115, %v418
    %420 = vmatmul.bf16.gmra.mxu0 %v302
    %v421 = vpop.f32.mrf.mxu0
    %v422 = vadd.f32 %v115, %v421
    %v423 = vpop.f32.mrf.mxu0
    %v424 = vadd.f32 %v115, %v423
    %425 = vmatmul.bf16.gmra.mxu0 %v305
    %v426 = vpop.f32.mrf.mxu0
    %v427 = vadd.f32 %v115, %v426
    %v428 = vpop.f32.mrf.mxu0
    %v429 = vadd.f32 %v115, %v428
    %430 = vmatmul.bf16.gmra.mxu0 %v308
    %v431 = vpop.f32.mrf.mxu0
    %v432 = vadd.f32 %v115, %v431
    %v433 = vpop.f32.mrf.mxu0
    %v434 = vadd.f32 %v115, %v433
    %435 = vmatmul.bf16.gmra.mxu0 %v311
    %v436 = vpop.f32.mrf.mxu0
    %v437 = vadd.f32 %v115, %v436
    %v438 = vpop.f32.mrf.mxu0
    %v439 = vadd.f32 %v115, %v438
    %440 = vmatmul.bf16.gmra.mxu0 %v314
    %v441 = vpop.f32.mrf.mxu0
    %v442 = vadd.f32 %v115, %v441
    %v443 = vpop.f32.mrf.mxu0
    %v444 = vadd.f32 %v115, %v443
    %445 = vmatmul.bf16.gmra.mxu0 %v317
    %v446 = vpop.f32.mrf.mxu0
    %v447 = vadd.f32 %v115, %v446
    %v448 = vpop.f32.mrf.mxu0
    %v449 = vadd.f32 %v115, %v448
    %450 = vmatmul.bf16.gmra.mxu0 %v320
    %v451 = vpop.f32.mrf.mxu0
    %v452 = vadd.f32 %v115, %v451
    %v453 = vpop.f32.mrf.mxu0
    %v454 = vadd.f32 %v115, %v453
    %455 = vmatmul.bf16.gmra.mxu0 %v323
    %v456 = vpop.f32.mrf.mxu0
    %v457 = vadd.f32 %v115, %v456
    %v458 = vpop.f32.mrf.mxu0
    %v459 = vadd.f32 %v115, %v458
    %460 = vmatmul.bf16.gmra.mxu0 %v326
    %v461 = vpop.f32.mrf.mxu0
    %v462 = vadd.f32 %v115, %v461
    %v463 = vpop.f32.mrf.mxu0
    %v464 = vadd.f32 %v115, %v463
    %465 = vmatmul.bf16.gmra.mxu0 %v329
    %v466 = vpop.f32.mrf.mxu0
    %v467 = vadd.f32 %v115, %v466
    %v468 = vpop.f32.mrf.mxu0
    %v469 = vadd.f32 %v115, %v468
    %470 = vmatmul.bf16.gmra.mxu0 %v332
    %v471 = vpop.f32.mrf.mxu0
    %v472 = vadd.f32 %v115, %v471
    %v473 = vpop.f32.mrf.mxu0
    %v474 = vadd.f32 %v115, %v473
    %475 = vmatmul.bf16.gmra.mxu0 %v335
    %v476 = vpop.f32.mrf.mxu0
    %v477 = vadd.f32 %v115, %v476
    %v478 = vpop.f32.mrf.mxu0
    %v479 = vadd.f32 %v115, %v478
    %480 = vmatmul.bf16.gmra.mxu0 %v338
    %v481 = vpop.f32.mrf.mxu0
    %v482 = vadd.f32 %v115, %v481
    %v483 = vpop.f32.mrf.mxu0
    %v484 = vadd.f32 %v115, %v483
    %485 = vmatmul.bf16.gmra.mxu0 %v341
    %v486 = vpop.f32.mrf.mxu0
    %v487 = vadd.f32 %v115, %v486
    %v488 = vpop.f32.mrf.mxu0
    %v489 = vadd.f32 %v115, %v488
    %490 = vmatmul.bf16.gmra.mxu0 %v344
    %v491 = vpop.f32.mrf.mxu0
    %v492 = vadd.f32 %v115, %v491
    %v493 = vpop.f32.mrf.mxu0
    %v494 = vadd.f32 %v115, %v493
    %495 = vmatmul.bf16.gmra.mxu0 %v347
    %v496 = vpop.f32.mrf.mxu0
    %v497 = vadd.f32 %v115, %v496
    %v498 = vpop.f32.mrf.mxu0
    %v499 = vadd.f32 %v115, %v498
    %500 = vmatmul.bf16.gmra.mxu0 %v350
    %v501 = vpop.f32.mrf.mxu0
    %v502 = vadd.f32 %v115, %v501
    %v503 = vpop.f32.mrf.mxu0
    %v504 = vadd.f32 %v115, %v503
    %505 = vmatmul.bf16.gmra.mxu0 %v353
    %v506 = vpop.f32.mrf.mxu0
    %v507 = vadd.f32 %v115, %v506
    %v508 = vpop.f32.mrf.mxu0
    %v509 = vadd.f32 %v115, %v508
    %510 = vmatmul.bf16.gmra.mxu0 %v356
    %v511 = vpop.f32.mrf.mxu0
    %v512 = vadd.f32 %v115, %v511
    %v513 = vpop.f32.mrf.mxu0
    %v514 = vadd.f32 %v115, %v513
    %515 = vmatmul.bf16.gmra.mxu0 %v359
    %v516 = vpop.f32.mrf.mxu0
    %v517 = vadd.f32 %v115, %v516
    %v518 = vpop.f32.mrf.mxu0
    %v519 = vadd.f32 %v115, %v518
    %520 = vmatmul.bf16.gmra.mxu0 %v362
    %v521 = vpop.f32.mrf.mxu0
    %v522 = vadd.f32 %v115, %v521
    %v523 = vpop.f32.mrf.mxu0
    %v524 = vadd.f32 %v115, %v523
    %525 = vmatmul.bf16.gmra.mxu0 %v365
    %v526 = vpop.f32.mrf.mxu0
    %v527 = vadd.f32 %v115, %v526
    %v528 = vpop.f32.mrf.mxu0
    %v529 = vadd.f32 %v115, %v528
    %530 = vmatmul.bf16.gmra.mxu0 %v368
    %v531 = vpop.f32.mrf.mxu0
    %v532 = vadd.f32 %v115, %v531
    %v533 = vpop.f32.mrf.mxu0
    %v534 = vadd.f32 %v115, %v533
    %535 = vmatmul.bf16.gmra.mxu0 %v371
    %v536 = vpop.f32.mrf.mxu0
    %v537 = vadd.f32 %v115, %v536
    %v538 = vpop.f32.mrf.mxu0
    %v539 = vadd.f32 %v115, %v538
    %540 = vmatmul.bf16.gmra.mxu0 %v374
    %v541 = vpop.f32.mrf.mxu0
    %v542 = vadd.f32 %v115, %v541
    %v543 = vpop.f32.mrf.mxu0
    %v544 = vadd.f32 %v115, %v543
    %545 = vmatmul.bf16.gmra.mxu0 %v377
    %v546 = vpop.f32.mrf.mxu0
    %v547 = vadd.f32 %v115, %v546
    %v548 = vpop.f32.mrf.mxu0
    %v549 = vadd.f32 %v115, %v548
    %550 = vmatmul.bf16.gmra.mxu0 %v380
    %v551 = vpop.f32.mrf.mxu0
    %v552 = vadd.f32 %v115, %v551
    %v553 = vpop.f32.mrf.mxu0
    %v554 = vadd.f32 %v115, %v553
    %555 = vmatmul.bf16.gmra.mxu0 %v383
    %v556 = vpop.f32.mrf.mxu0
    %v557 = vadd.f32 %v115, %v556
    %v558 = vpop.f32.mrf.mxu0
    %v559 = vadd.f32 %v115, %v558
    %560 = vdwg.mxu0
    %v561 = vmul.f32 %v402, 0.2
    %v562 = vmul.f32 %v404, 0.2
    %v563 = vmul.f32 %v407, 0.2
    %v564 = vmul.f32 %v409, 0.2
    %v565 = vmul.f32 %v412, 0.2
    %v566 = vmul.f32 %v414, 0.2
    %v567 = vmul.f32 %v417, 0.2
    %v568 = vmul.f32 %v419, 0.2
    %v569 = vmul.f32 %v422, 0.2
    %v570 = vmul.f32 %v424, 0.2
    %v571 = vmul.f32 %v427, 0.2
    %v572 = vmul.f32 %v429, 0.2
    %v573 = vmul.f32 %v432, 0.2
    %v574 = vmul.f32 %v434, 0.2
    %v575 = vmul.f32 %v437, 0.2
    %v576 = vmul.f32 %v439, 0.2
    %v577 = vmul.f32 %v442, 0.2
    %v578 = vmul.f32 %v444, 0.2
    %v579 = vmul.f32 %v447, 0.2
    %v580 = vmul.f32 %v449, 0.2
    %v581 = vmul.f32 %v452, 0.2
    %v582 = vmul.f32 %v454, 0.2
    %v583 = vmul.f32 %v457, 0.2
    %v584 = vmul.f32 %v459, 0.2
    %v585 = vmul.f32 %v462, 0.2
    %v586 = vmul.f32 %v464, 0.2
    %v587 = vmul.f32 %v467, 0.2
    %v588 = vmul.f32 %v469, 0.2
    %v589 = vmul.f32 %v472, 0.2
    %v590 = vmul.f32 %v474, 0.2
    %v591 = vmul.f32 %v477, 0.2
    %v592 = vmul.f32 %v479, 0.2
    %v593 = vmul.f32 %v482, 0.2
    %v594 = vmul.f32 %v484, 0.2
    %v595 = vmul.f32 %v487, 0.2
    %v596 = vmul.f32 %v489, 0.2
    %v597 = vmul.f32 %v492, 0.2
    %v598 = vmul.f32 %v494, 0.2
    %v599 = vmul.f32 %v497, 0.2
    %v600 = vmul.f32 %v499, 0.2
    %v601 = vmul.f32 %v502, 0.2
    %v602 = vmul.f32 %v504, 0.2
    %v603 = vmul.f32 %v507, 0.2
    %v604 = vmul.f32 %v509, 0.2
    %v605 = vmul.f32 %v512, 0.2
    %v606 = vmul.f32 %v514, 0.2
    %v607 = vmul.f32 %v517, 0.2
    %v608 = vmul.f32 %v519, 0.2
    %v609 = vmul.f32 %v522, 0.2
    %v610 = vmul.f32 %v524, 0.2
    %v611 = vmul.f32 %v527, 0.2
    %v612 = vmul.f32 %v529, 0.2
    %v613 = vmul.f32 %v532, 0.2
    %v614 = vmul.f32 %v534, 0.2
    %v615 = vmul.f32 %v537, 0.2
    %v616 = vmul.f32 %v539, 0.2
    %v617 = vmul.f32 %v542, 0.2
    %v618 = vmul.f32 %v544, 0.2
    %v619 = vmul.f32 %v547, 0.2
    %v620 = vmul.f32 %v549, 0.2
    %v621 = vmul.f32 %v552, 0.2
    %v622 = vmul.f32 %v554, 0.2
    %v623 = vmul.f32 %v557, 0.2
    %v624 = vmul.f32 %v559, 0.2
    %v625 = vmax.f32 %v402, %v561
    %v626 = vmax.f32 %v404, %v562
    %v627 = vmax.f32 %v407, %v563
    %v628 = vmax.f32 %v409, %v564
    %v629 = vmax.f32 %v412, %v565
    %v630 = vmax.f32 %v414, %v566
    %v631 = vmax.f32 %v417, %v567
    %v632 = vmax.f32 %v419, %v568
    %v633 = vmax.f32 %v422, %v569
    %v634 = vmax.f32 %v424, %v570
    %v635 = vmax.f32 %v427, %v571
    %v636 = vmax.f32 %v429, %v572
    %v637 = vmax.f32 %v432, %v573
    %v638 = vmax.f32 %v434, %v574
    %v639 = vmax.f32 %v437, %v575
    %v640 = vmax.f32 %v439, %v576
    %v641 = vmax.f32 %v442, %v577
    %v642 = vmax.f32 %v444, %v578
    %v643 = vmax.f32 %v447, %v579
    %v644 = vmax.f32 %v449, %v580
    %v645 = vmax.f32 %v452, %v581
    %v646 = vmax.f32 %v454, %v582
    %v647 = vmax.f32 %v457, %v583
    %v648 = vmax.f32 %v459, %v584
    %v649 = vmax.f32 %v462, %v585
    %v650 = vmax.f32 %v464, %v586
    %v651 = vmax.f32 %v467, %v587
    %v652 = vmax.f32 %v469, %v588
    %v653 = vmax.f32 %v472, %v589
    %v654 = vmax.f32 %v474, %v590
    %v655 = vmax.f32 %v477, %v591
    %v656 = vmax.f32 %v479, %v592
    %v657 = vmax.f32 %v482, %v593
    %v658 = vmax.f32 %v484, %v594
    %v659 = vmax.f32 %v487, %v595
    %v660 = vmax.f32 %v489, %v596
    %v661 = vmax.f32 %v492, %v597
    %v662 = vmax.f32 %v494, %v598
    %v663 = vmax.f32 %v497, %v599
    %v664 = vmax.f32 %v499, %v600
    %v665 = vmax.f32 %v502, %v601
    %v666 = vmax.f32 %v504, %v602
    %v667 = vmax.f32 %v507, %v603
    %v668 = vmax.f32 %v509, %v604
    %v669 = vmax.f32 %v512, %v605
    %v670 = vmax.f32 %v514, %v606
    %v671 = vmax.f32 %v517, %v607
    %v672 = vmax.f32 %v519, %v608
    %v673 = vmax.f32 %v522, %v609
    %v674 = vmax.f32 %v524, %v610
    %v675 = vmax.f32 %v527, %v611
    %v676 = vmax.f32 %v529, %v612
    %v677 = vmax.f32 %v532, %v613
    %v678 = vmax.f32 %v534, %v614
    %v679 = vmax.f32 %v537, %v615
    %v680 = vmax.f32 %v539, %v616
    %v681 = vmax.f32 %v542, %v617
    %v682 = vmax.f32 %v544, %v618
    %v683 = vmax.f32 %v547, %v619
    %v684 = vmax.f32 %v549, %v620
    %v685 = vmax.f32 %v552, %v621
    %v686 = vmax.f32 %v554, %v622
    %v687 = vmax.f32 %v557, %v623
    %v688 = vmax.f32 %v559, %v624
    %v689 = vpack.c.bf16 %v625, %v625
    %v690 = vpack.c.bf16 %v626, %v626
    %v691 = vpack.c.bf16 %v627, %v627
    %v692 = vpack.c.bf16 %v628, %v628
    %v693 = vpack.c.bf16 %v629, %v629
    %v694 = vpack.c.bf16 %v630, %v630
    %v695 = vpack.c.bf16 %v631, %v631
    %v696 = vpack.c.bf16 %v632, %v632
    %v697 = vpack.c.bf16 %v633, %v633
    %v698 = vpack.c.bf16 %v634, %v634
    %v699 = vpack.c.bf16 %v635, %v635
    %v700 = vpack.c.bf16 %v636, %v636
    %v701 = vpack.c.bf16 %v637, %v637
    %v702 = vpack.c.bf16 %v638, %v638
    %v703 = vpack.c.bf16 %v639, %v639
    %v704 = vpack.c.bf16 %v640, %v640
    %v705 = vpack.c.bf16 %v641, %v641
    %v706 = vpack.c.bf16 %v642, %v642
    %v707 = vpack.c.bf16 %v643, %v643
    %v708 = vpack.c.bf16 %v644, %v644
    %v709 = vpack.c.bf16 %v645, %v645
    %v710 = vpack.c.bf16 %v646, %v646
    %v711 = vpack.c.bf16 %v647, %v647
    %v712 = vpack.c.bf16 %v648, %v648
    %v713 = vpack.c.bf16 %v649, %v649
    %v714 = vpack.c.bf16 %v650, %v650
    %v715 = vpack.c.bf16 %v651, %v651
    %v716 = vpack.c.bf16 %v652, %v652
    %v717 = vpack.c.bf16 %v653, %v653
    %v718 = vpack.c.bf16 %v654, %v654
    %v719 = vpack.c.bf16 %v655, %v655
    %v720 = vpack.c.bf16 %v656, %v656
    %v721 = vpack.c.bf16 %v657, %v657
    %v722 = vpack.c.bf16 %v658, %v658
    %v723 = vpack.c.bf16 %v659, %v659
    %v724 = vpack.c.bf16 %v660, %v660
    %v725 = vpack.c.bf16 %v661, %v661
    %v726 = vpack.c.bf16 %v662, %v662
    %v727 = vpack.c.bf16 %v663, %v663
    %v728 = vpack.c.bf16 %v664, %v664
    %v729 = vpack.c.bf16 %v665, %v665
    %v730 = vpack.c.bf16 %v666, %v666
    %v731 = vpack.c.bf16 %v667, %v667
    %v732 = vpack.c.bf16 %v668, %v668
    %v733 = vpack.c.bf16 %v669, %v669
    %v734 = vpack.c.bf16 %v670, %v670
    %v735 = vpack.c.bf16 %v671, %v671
    %v736 = vpack.c.bf16 %v672, %v672
    %v737 = vpack.c.bf16 %v673, %v673
    %v738 = vpack.c.bf16 %v674, %v674
    %v739 = vpack.c.bf16 %v675, %v675
    %v740 = vpack.c.bf16 %v676, %v676
    %v741 = vpack.c.bf16 %v677, %v677
    %v742 = vpack.c.bf16 %v678, %v678
    %v743 = vpack.c.bf16 %v679, %v679
    %v744 = vpack.c.bf16 %v680, %v680
    %v745 = vpack.c.bf16 %v681, %v681
    %v746 = vpack.c.bf16 %v682, %v682
    %v747 = vpack.c.bf16 %v683, %v683
    %v748 = vpack.c.bf16 %v684, %v684
    %v749 = vpack.c.bf16 %v685, %v685
    %v750 = vpack.c.bf16 %v686, %v686
    %v751 = vpack.c.bf16 %v687, %v687
    %v752 = vpack.c.bf16 %v688, %v688
    %753 = vst [vmem:[%s3] sm:$0xf] %v689
    %754 = vst [vmem:[%s3 + $0x4] sm:$0xf] %v690
    %755 = vst [vmem:[%s3 + $0x8] sm:$0xf] %v691
    %756 = vst [vmem:[%s3 + $0xc] sm:$0xf] %v692
    %757 = vst [vmem:[%s3 + $0x10] sm:$0xf] %v693
    %758 = vst [vmem:[%s3 + $0x14] sm:$0xf] %v694
    %759 = vst [vmem:[%s3 + $0x18] sm:$0xf] %v695
    %760 = vst [vmem:[%s3 + $0x1c] sm:$0xf] %v696
    %761 = vst [vmem:[%s3 + $0x20] sm:$0xf] %v697
    %762 = vst [vmem:[%s3 + $0x24] sm:$0xf] %v698
    %763 = vst [vmem:[%s3 + $0x28] sm:$0xf] %v699
    %764 = vst [vmem:[%s3 + $0x2c] sm:$0xf] %v700
    %765 = vst [vmem:[%s3 + $0x30] sm:$0xf] %v701
    %766 = vst [vmem:[%s3 + $0x34] sm:$0xf] %v702
    %767 = vst [vmem:[%s3 + $0x38] sm:$0xf] %v703
    %768 = vst [vmem:[%s3 + $0x3c] sm:$0xf] %v704
    %769 = vst [vmem:[%s3 + $0x40] sm:$0xf] %v705
    %770 = vst [vmem:[%s3 + $0x44] sm:$0xf] %v706
    %771 = vst [vmem:[%s3 + $0x48] sm:$0xf] %v707
    %772 = vst [vmem:[%s3 + $0x4c] sm:$0xf] %v708
    %773 = vst [vmem:[%s3 + $0x50] sm:$0xf] %v709
    %774 = vst [vmem:[%s3 + $0x54] sm:$0xf] %v710
    %775 = vst [vmem:[%s3 + $0x58] sm:$0xf] %v711
    %776 = vst [vmem:[%s3 + $0x5c] sm:$0xf] %v712
    %777 = vst [vmem:[%s3 + $0x60] sm:$0xf] %v713
    %778 = vst [vmem:[%s3 + $0x64] sm:$0xf] %v714
    %779 = vst [vmem:[%s3 + $0x68] sm:$0xf] %v715
    %780 = vst [vmem:[%s3 + $0x6c] sm:$0xf] %v716
    %781 = vst [vmem:[%s3 + $0x70] sm:$0xf] %v717
    %782 = vst [vmem:[%s3 + $0x74] sm:$0xf] %v718
    %783 = vst [vmem:[%s3 + $0x78] sm:$0xf] %v719
    %784 = vst [vmem:[%s3 + $0x7c] sm:$0xf] %v720
    %785 = vst [vmem:[%s3 + $0x80] sm:$0xf] %v721
    %786 = vst [vmem:[%s3 + $0x84] sm:$0xf] %v722
    %787 = vst [vmem:[%s3 + $0x88] sm:$0xf] %v723
    %788 = vst [vmem:[%s3 + $0x8c] sm:$0xf] %v724
    %789 = vst [vmem:[%s3 + $0x90] sm:$0xf] %v725
    %790 = vst [vmem:[%s3 + $0x94] sm:$0xf] %v726
    %791 = vst [vmem:[%s3 + $0x98] sm:$0xf] %v727
    %792 = vst [vmem:[%s3 + $0x9c] sm:$0xf] %v728
    %793 = vst [vmem:[%s3 + $0xa0] sm:$0xf] %v729
    %794 = vst [vmem:[%s3 + $0xa4] sm:$0xf] %v730
    %795 = vst [vmem:[%s3 + $0xa8] sm:$0xf] %v731
    %796 = vst [vmem:[%s3 + $0xac] sm:$0xf] %v732
    %797 = vst [vmem:[%s3 + $0xb0] sm:$0xf] %v733
    %798 = vst [vmem:[%s3 + $0xb4] sm:$0xf] %v734
    %799 = vst [vmem:[%s3 + $0xb8] sm:$0xf] %v735
    %800 = vst [vmem:[%s3 + $0xbc] sm:$0xf] %v736
    %801 = vst [vmem:[%s3 + $0xc0] sm:$0xf] %v737
    %802 = vst [vmem:[%s3 + $0xc4] sm:$0xf] %v738
    %803 = vst [vmem:[%s3 + $0xc8] sm:$0xf] %v739
    %804 = vst [vmem:[%s3 + $0xcc] sm:$0xf] %v740
    %805 = vst [vmem:[%s3 + $0xd0] sm:$0xf] %v741
    %806 = vst [vmem:[%s3 + $0xd4] sm:$0xf] %v742
    %807 = vst [vmem:[%s3 + $0xd8] sm:$0xf] %v743
    %808 = vst [vmem:[%s3 + $0xdc] sm:$0xf] %v744
    %809 = vst [vmem:[%s3 + $0xe0] sm:$0xf] %v745
    %810 = vst [vmem:[%s3 + $0xe4] sm:$0xf] %v746
    %811 = vst [vmem:[%s3 + $0xe8] sm:$0xf] %v747
    %812 = vst [vmem:[%s3 + $0xec] sm:$0xf] %v748
    %813 = vst [vmem:[%s3 + $0xf0] sm:$0xf] %v749
    %814 = vst [vmem:[%s3 + $0xf4] sm:$0xf] %v750
    %815 = vst [vmem:[%s3 + $0xf8] sm:$0xf] %v751
    %816 = vst [vmem:[%s3 + $0xfc] sm:$0xf] %v752
    // Predicated region
    $region22: #{discriminator_forward.7} parent=1 // pred_check
      _
    $region23: #{discriminator_forward.7} parent=1 // pred_check_branch
      %818 = sbr.rel (0) target = $region25
    $region24: #{discriminator_forward.7} parent=1 // pred_region
      _
    $region25: #{discriminator_forward.7} parent=1 // pred_fallthru
      _
    // Predicated region
    $region26: #{discriminator_forward.7} parent=1 // pred_check
      _
    $region27: #{discriminator_forward.7} parent=1 // pred_check_branch
      %820 = sbr.rel (0) target = $region29
    $region28: #{discriminator_forward.7} parent=1 // pred_region
      _
    $region29: #{discriminator_forward.7} parent=1 // pred_fallthru
      _
    %821 = vsyncpa [#allocation3], 1
    %822 = vsyncpa [#allocation5], 1

// kernel: discriminator_forward.8
$region0: #{discriminator_forward.8}
  #allocation0 [shape = 'u32[]', space=smem, size = 0x4, offset = 0x4, fixed_abs, tag = 'smem constant byte address 0x4 - core index']
  #allocation1 [shape = 'u32[72,128]{1,0:T(1,128)}', space=vmem, size = 0x9000, scoped, tag = 'internal scratch']
  %s0 = inlined_call_operand.vmem [shape: bf16[512,144], index: 0, kind: input, shape index: {}]
  %s1 = inlined_call_operand.vmem [shape: bf16[144,128], index: 1, kind: input, shape index: {}]
  %s2 = inlined_call_operand.vmem [shape: f32[1,128], index: 2, kind: input, shape index: {}]
  %s3 = inlined_call_operand.vmem [shape: bf16[512,128], index: 3, kind: output, shape index: {}]
  %s4 = sld [smem:[#allocation0]]
  $region22: #{discriminator_forward.8} parent=0
    _
  %s6 = ssub.s32 1, %s4
  %s7 = scalar_select 0, %s6, %s4
  // Predicated region
  $region2: #{discriminator_forward.8} parent=0 // pred_check
    _
  $region3: #{discriminator_forward.8} parent=0 // pred_check_branch
    %9 = sbr.rel (0) target = $region5
  $region4: #{discriminator_forward.8} parent=0 // pred_region
    _
  $region5: #{discriminator_forward.8} parent=0 // pred_fallthru
    _
  // Predicated region
  $region6: #{discriminator_forward.8} parent=0 // pred_check
    _
  $region7: #{discriminator_forward.8} parent=0 // pred_check_branch
    %11 = sbr.rel (0) target = $region9
  $region8: #{discriminator_forward.8} parent=0 // pred_region
    _
  $region9: #{discriminator_forward.8} parent=0 // pred_fallthru
    _
  // Predicated region
  $region10: #{discriminator_forward.8} parent=0 // pred_check
    _
  $region11: #{discriminator_forward.8} parent=0 // pred_check_branch
    %13 = sbr.rel (0) target = $region13
  $region12: #{discriminator_forward.8} parent=0 // pred_region
    _
  $region13: #{discriminator_forward.8} parent=0 // pred_fallthru
    _
  %v15 = vld [vmem:[%s0] sm:$0xff]
  %v16 = vld [vmem:[%s0 + $0x8] sm:$0xff]
  %v17 = vld [vmem:[%s0 + $0x10] sm:$0xff]
  %v18 = vld [vmem:[%s0 + $0x18] sm:$0xff]
  %v19 = vld [vmem:[%s0 + $0x20] sm:$0xff]
  %v20 = vld [vmem:[%s0 + $0x28] sm:$0xff]
  %v21 = vld [vmem:[%s0 + $0x30] sm:$0xff]
  %v22 = vld [vmem:[%s0 + $0x38] sm:$0xff]
  %v23 = vld [vmem:[%s0 + $0x40] sm:$0xff]
  %v24 = vld [vmem:[%s0 + $0x48] sm:$0xff]
  %v25 = vld [vmem:[%s0 + $0x50] sm:$0xff]
  %v26 = vld [vmem:[%s0 + $0x58] sm:$0xff]
  %v27 = vld [vmem:[%s0 + $0x60] sm:$0xff]
  %v28 = vld [vmem:[%s0 + $0x68] sm:$0xff]
  %v29 = vld [vmem:[%s0 + $0x70] sm:$0xff]
  %v30 = vld [vmem:[%s0 + $0x78] sm:$0xff]
  %v31 = vld [vmem:[%s0 + $0x80] sm:$0xff]
  %v32 = vld [vmem:[%s0 + $0x88] sm:$0xff]
  %v33 = vld [vmem:[%s0 + $0x90] sm:$0xff]
  %v34 = vld [vmem:[%s0 + $0x98] sm:$0xff]
  %v35 = vld [vmem:[%s0 + $0xa0] sm:$0xff]
  %v36 = vld [vmem:[%s0 + $0xa8] sm:$0xff]
  %v37 = vld [vmem:[%s0 + $0xb0] sm:$0xff]
  %v38 = vld [vmem:[%s0 + $0xb8] sm:$0xff]
  %v39 = vld [vmem:[%s0 + $0xc0] sm:$0xff]
  %v40 = vld [vmem:[%s0 + $0xc8] sm:$0xff]
  %v41 = vld [vmem:[%s0 + $0xd0] sm:$0xff]
  %v42 = vld [vmem:[%s0 + $0xd8] sm:$0xff]
  %v43 = vld [vmem:[%s0 + $0xe0] sm:$0xff]
  %v44 = vld [vmem:[%s0 + $0xe8] sm:$0xff]
  %v45 = vld [vmem:[%s0 + $0xf0] sm:$0xff]
  %v46 = vld [vmem:[%s0 + $0xf8] sm:$0xff]
  %v47 = vld [vmem:[%s0 + $0x100] sm:$0xff]
  %v48 = vld [vmem:[%s0 + $0x108] sm:$0xff]
  %v49 = vld [vmem:[%s0 + $0x110] sm:$0xff]
  %v50 = vld [vmem:[%s0 + $0x118] sm:$0xff]
  %v51 = vld [vmem:[%s0 + $0x120] sm:$0xff]
  %v52 = vld [vmem:[%s0 + $0x128] sm:$0xff]
  %v53 = vld [vmem:[%s0 + $0x130] sm:$0xff]
  %v54 = vld [vmem:[%s0 + $0x138] sm:$0xff]
  %v55 = vld [vmem:[%s0 + $0x140] sm:$0xff]
  %v56 = vld [vmem:[%s0 + $0x148] sm:$0xff]
  %v57 = vld [vmem:[%s0 + $0x150] sm:$0xff]
  %v58 = vld [vmem:[%s0 + $0x158] sm:$0xff]
  %v59 = vld [vmem:[%s0 + $0x160] sm:$0xff]
  %v60 = vld [vmem:[%s0 + $0x168] sm:$0xff]
  %v61 = vld [vmem:[%s0 + $0x170] sm:$0xff]
  %v62 = vld [vmem:[%s0 + $0x178] sm:$0xff]
  %v63 = vld [vmem:[%s0 + $0x180] sm:$0xff]
  %v64 = vld [vmem:[%s0 + $0x188] sm:$0xff]
  %v65 = vld [vmem:[%s0 + $0x190] sm:$0xff]
  %v66 = vld [vmem:[%s0 + $0x198] sm:$0xff]
  %v67 = vld [vmem:[%s0 + $0x1a0] sm:$0xff]
  %v68 = vld [vmem:[%s0 + $0x1a8] sm:$0xff]
  %v69 = vld [vmem:[%s0 + $0x1b0] sm:$0xff]
  %v70 = vld [vmem:[%s0 + $0x1b8] sm:$0xff]
  %v71 = vld [vmem:[%s0 + $0x1c0] sm:$0xff]
  %v72 = vld [vmem:[%s0 + $0x1c8] sm:$0xff]
  %v73 = vld [vmem:[%s0 + $0x1d0] sm:$0xff]
  %v74 = vld [vmem:[%s0 + $0x1d8] sm:$0xff]
  %v75 = vld [vmem:[%s0 + $0x1e0] sm:$0xff]
  %v76 = vld [vmem:[%s0 + $0x1e8] sm:$0xff]
  %v77 = vld [vmem:[%s0 + $0x1f0] sm:$0xff]
  %v78 = vld [vmem:[%s0 + $0x1f8] sm:$0xff]
  %v79 = vld [vmem:[%s1] sm:$0xf]
  %v80 = vld [vmem:[%s1 + $0x4] sm:$0xf]
  %v81 = vld [vmem:[%s1 + $0x8] sm:$0xf]
  %v82 = vld [vmem:[%s1 + $0xc] sm:$0xf]
  %v83 = vld [vmem:[%s1 + $0x10] sm:$0xf]
  %v84 = vld [vmem:[%s1 + $0x14] sm:$0xf]
  %v85 = vld [vmem:[%s1 + $0x18] sm:$0xf]
  %v86 = vld [vmem:[%s1 + $0x1c] sm:$0xf]
  %v87 = vld [vmem:[%s1 + $0x20] sm:$0xf]
  %v88 = vld [vmem:[%s1 + $0x24] sm:$0xf]
  %v89 = vld [vmem:[%s1 + $0x28] sm:$0xf]
  %v90 = vld [vmem:[%s1 + $0x2c] sm:$0xf]
  %v91 = vld [vmem:[%s1 + $0x30] sm:$0xf]
  %v92 = vld [vmem:[%s1 + $0x34] sm:$0xf]
  %v93 = vld [vmem:[%s1 + $0x38] sm:$0xf]
  %v94 = vld [vmem:[%s1 + $0x3c] sm:$0xf]
  %v95 = vld [vmem:[%s1 + $0x40] sm:$0xf]
  %v96 = vld [vmem:[%s1 + $0x44] sm:$0xf]
  %v97 = vld [vmem:[%s2] sm:$0x1]
  %v99 = vperm.slane %v97, 0
  %v165 = vunpack.c.l.b16 %v15
  %v166 = vunpack.c.h.b16 %v15
  %v167 = vunpack.c.l.b16 %v16
  %v168 = vunpack.c.h.b16 %v16
  %v169 = vunpack.c.l.b16 %v17
  %v170 = vunpack.c.h.b16 %v17
  %v171 = vunpack.c.l.b16 %v18
  %v172 = vunpack.c.h.b16 %v18
  %v173 = vunpack.c.l.b16 %v19
  %v174 = vunpack.c.h.b16 %v19
  %v175 = vunpack.c.l.b16 %v20
  %v176 = vunpack.c.h.b16 %v20
  %v177 = vunpack.c.l.b16 %v21
  %v178 = vunpack.c.h.b16 %v21
  %v179 = vunpack.c.l.b16 %v22
  %v180 = vunpack.c.h.b16 %v22
  %v181 = vunpack.c.l.b16 %v23
  %v182 = vunpack.c.h.b16 %v23
  %v183 = vunpack.c.l.b16 %v24
  %v184 = vunpack.c.h.b16 %v24
  %v185 = vunpack.c.l.b16 %v25
  %v186 = vunpack.c.h.b16 %v25
  %v187 = vunpack.c.l.b16 %v26
  %v188 = vunpack.c.h.b16 %v26
  %v189 = vunpack.c.l.b16 %v27
  %v190 = vunpack.c.h.b16 %v27
  %v191 = vunpack.c.l.b16 %v28
  %v192 = vunpack.c.h.b16 %v28
  %v193 = vunpack.c.l.b16 %v29
  %v194 = vunpack.c.h.b16 %v29
  %v195 = vunpack.c.l.b16 %v30
  %v196 = vunpack.c.h.b16 %v30
  %v197 = vunpack.c.l.b16 %v31
  %v198 = vunpack.c.h.b16 %v31
  %v199 = vunpack.c.l.b16 %v32
  %v200 = vunpack.c.h.b16 %v32
  %v201 = vunpack.c.l.b16 %v33
  %v202 = vunpack.c.h.b16 %v33
  %v203 = vunpack.c.l.b16 %v34
  %v204 = vunpack.c.h.b16 %v34
  %v205 = vunpack.c.l.b16 %v35
  %v206 = vunpack.c.h.b16 %v35
  %v207 = vunpack.c.l.b16 %v36
  %v208 = vunpack.c.h.b16 %v36
  %v209 = vunpack.c.l.b16 %v37
  %v210 = vunpack.c.h.b16 %v37
  %v211 = vunpack.c.l.b16 %v38
  %v212 = vunpack.c.h.b16 %v38
  %v213 = vunpack.c.l.b16 %v39
  %v214 = vunpack.c.h.b16 %v39
  %v215 = vunpack.c.l.b16 %v40
  %v216 = vunpack.c.h.b16 %v40
  %v217 = vunpack.c.l.b16 %v41
  %v218 = vunpack.c.h.b16 %v41
  %v219 = vunpack.c.l.b16 %v42
  %v220 = vunpack.c.h.b16 %v42
  %v221 = vunpack.c.l.b16 %v43
  %v222 = vunpack.c.h.b16 %v43
  %v223 = vunpack.c.l.b16 %v44
  %v224 = vunpack.c.h.b16 %v44
  %v225 = vunpack.c.l.b16 %v45
  %v226 = vunpack.c.h.b16 %v45
  %v227 = vunpack.c.l.b16 %v46
  %v228 = vunpack.c.h.b16 %v46
  %v229 = vunpack.c.l.b16 %v47
  %v230 = vunpack.c.h.b16 %v47
  %v231 = vunpack.c.l.b16 %v48
  %v232 = vunpack.c.h.b16 %v48
  %v233 = vunpack.c.l.b16 %v49
  %v234 = vunpack.c.h.b16 %v49
  %v235 = vunpack.c.l.b16 %v50
  %v236 = vunpack.c.h.b16 %v50
  %v237 = vunpack.c.l.b16 %v51
  %v238 = vunpack.c.h.b16 %v51
  %v239 = vunpack.c.l.b16 %v52
  %v240 = vunpack.c.h.b16 %v52
  %v241 = vunpack.c.l.b16 %v53
  %v242 = vunpack.c.h.b16 %v53
  %v243 = vunpack.c.l.b16 %v54
  %v244 = vunpack.c.h.b16 %v54
  %v245 = vunpack.c.l.b16 %v55
  %v246 = vunpack.c.h.b16 %v55
  %v247 = vunpack.c.l.b16 %v56
  %v248 = vunpack.c.h.b16 %v56
  %v249 = vunpack.c.l.b16 %v57
  %v250 = vunpack.c.h.b16 %v57
  %v251 = vunpack.c.l.b16 %v58
  %v252 = vunpack.c.h.b16 %v58
  %v253 = vunpack.c.l.b16 %v59
  %v254 = vunpack.c.h.b16 %v59
  %v255 = vunpack.c.l.b16 %v60
  %v256 = vunpack.c.h.b16 %v60
  %v257 = vunpack.c.l.b16 %v61
  %v258 = vunpack.c.h.b16 %v61
  %v259 = vunpack.c.l.b16 %v62
  %v260 = vunpack.c.h.b16 %v62
  %v261 = vunpack.c.l.b16 %v63
  %v262 = vunpack.c.h.b16 %v63
  %v263 = vunpack.c.l.b16 %v64
  %v264 = vunpack.c.h.b16 %v64
  %v265 = vunpack.c.l.b16 %v65
  %v266 = vunpack.c.h.b16 %v65
  %v267 = vunpack.c.l.b16 %v66
  %v268 = vunpack.c.h.b16 %v66
  %v269 = vunpack.c.l.b16 %v67
  %v270 = vunpack.c.h.b16 %v67
  %v271 = vunpack.c.l.b16 %v68
  %v272 = vunpack.c.h.b16 %v68
  %v273 = vunpack.c.l.b16 %v69
  %v274 = vunpack.c.h.b16 %v69
  %v275 = vunpack.c.l.b16 %v70
  %v276 = vunpack.c.h.b16 %v70
  %v277 = vunpack.c.l.b16 %v71
  %v278 = vunpack.c.h.b16 %v71
  %v279 = vunpack.c.l.b16 %v72
  %v280 = vunpack.c.h.b16 %v72
  %v281 = vunpack.c.l.b16 %v73
  %v282 = vunpack.c.h.b16 %v73
  %v283 = vunpack.c.l.b16 %v74
  %v284 = vunpack.c.h.b16 %v74
  %v285 = vunpack.c.l.b16 %v75
  %v286 = vunpack.c.h.b16 %v75
  %v287 = vunpack.c.l.b16 %v76
  %v288 = vunpack.c.h.b16 %v76
  %v289 = vunpack.c.l.b16 %v77
  %v290 = vunpack.c.h.b16 %v77
  %v291 = vunpack.c.l.b16 %v78
  %v292 = vunpack.c.h.b16 %v78
  %v293 = vpack.c.b16 %v167, %v165
  %v294 = vpack.c.b16 %v168, %v166
  %v295 = vpack.c.b16 %v171, %v169
  %v296 = vpack.c.b16 %v172, %v170
  %v297 = vpack.c.b16 %v175, %v173
  %v298 = vpack.c.b16 %v176, %v174
  %v299 = vpack.c.b16 %v179, %v177
  %v300 = vpack.c.b16 %v180, %v178
  %v301 = vpack.c.b16 %v183, %v181
  %v302 = vpack.c.b16 %v184, %v182
  %v303 = vpack.c.b16 %v187, %v185
  %v304 = vpack.c.b16 %v188, %v186
  %v305 = vpack.c.b16 %v191, %v189
  %v306 = vpack.c.b16 %v192, %v190
  %v307 = vpack.c.b16 %v195, %v193
  %v308 = vpack.c.b16 %v196, %v194
  %v309 = vpack.c.b16 %v199, %v197
  %v310 = vpack.c.b16 %v200, %v198
  %v311 = vpack.c.b16 %v203, %v201
  %v312 = vpack.c.b16 %v204, %v202
  %v313 = vpack.c.b16 %v207, %v205
  %v314 = vpack.c.b16 %v208, %v206
  %v315 = vpack.c.b16 %v211, %v209
  %v316 = vpack.c.b16 %v212, %v210
  %v317 = vpack.c.b16 %v215, %v213
  %v318 = vpack.c.b16 %v216, %v214
  %v319 = vpack.c.b16 %v219, %v217
  %v320 = vpack.c.b16 %v220, %v218
  %v321 = vpack.c.b16 %v223, %v221
  %v322 = vpack.c.b16 %v224, %v222
  %v323 = vpack.c.b16 %v227, %v225
  %v324 = vpack.c.b16 %v228, %v226
  %v325 = vpack.c.b16 %v231, %v229
  %v326 = vpack.c.b16 %v232, %v230
  %v327 = vpack.c.b16 %v235, %v233
  %v328 = vpack.c.b16 %v236, %v234
  %v329 = vpack.c.b16 %v239, %v237
  %v330 = vpack.c.b16 %v240, %v238
  %v331 = vpack.c.b16 %v243, %v241
  %v332 = vpack.c.b16 %v244, %v242
  %v333 = vpack.c.b16 %v247, %v245
  %v334 = vpack.c.b16 %v248, %v246
  %v335 = vpack.c.b16 %v251, %v249
  %v336 = vpack.c.b16 %v252, %v250
  %v337 = vpack.c.b16 %v255, %v253
  %v338 = vpack.c.b16 %v256, %v254
  %v339 = vpack.c.b16 %v259, %v257
  %v340 = vpack.c.b16 %v260, %v258
  %v341 = vpack.c.b16 %v263, %v261
  %v342 = vpack.c.b16 %v264, %v262
  %v343 = vpack.c.b16 %v267, %v265
  %v344 = vpack.c.b16 %v268, %v266
  %v345 = vpack.c.b16 %v271, %v269
  %v346 = vpack.c.b16 %v272, %v270
  %v347 = vpack.c.b16 %v275, %v273
  %v348 = vpack.c.b16 %v276, %v274
  %v349 = vpack.c.b16 %v279, %v277
  %v350 = vpack.c.b16 %v280, %v278
  %v351 = vpack.c.b16 %v283, %v281
  %v352 = vpack.c.b16 %v284, %v282
  %v353 = vpack.c.b16 %v287, %v285
  %v354 = vpack.c.b16 %v288, %v286
  %v355 = vpack.c.b16 %v291, %v289
  %v356 = vpack.c.b16 %v292, %v290
  %v407 = vunpack.c.l.b16 %v79
  %v408 = vunpack.c.l.b16 %v80
  %v409 = vunpack.c.l.b16 %v81
  %v410 = vunpack.c.l.b16 %v82
  %v411 = vunpack.c.l.b16 %v83
  %v412 = vunpack.c.l.b16 %v84
  %v413 = vunpack.c.l.b16 %v85
  %v414 = vunpack.c.l.b16 %v86
  %v415 = vunpack.c.l.b16 %v87
  %v416 = vunpack.c.l.b16 %v88
  %v417 = vunpack.c.l.b16 %v89
  %v418 = vunpack.c.l.b16 %v90
  %v419 = vunpack.c.l.b16 %v91
  %v420 = vunpack.c.l.b16 %v92
  %v421 = vunpack.c.l.b16 %v93
  %v422 = vunpack.c.l.b16 %v94
  %v423 = vunpack.c.l.b16 %v95
  %v424 = vunpack.c.l.b16 %v96
  %v425 = vpack.c.b16 %v408, %v407
  %v426 = vpack.c.b16 %v410, %v409
  %v427 = vpack.c.b16 %v412, %v411
  %v428 = vpack.c.b16 %v414, %v413
  %v429 = vpack.c.b16 %v416, %v415
  %v430 = vpack.c.b16 %v418, %v417
  %v431 = vpack.c.b16 %v420, %v419
  %v432 = vpack.c.b16 %v422, %v421
  %v433 = vpack.c.b16 %v424, %v423
  %vm443 = vcmask 130048
  %v445 = vsel %vm443, %v294, 0
  %v448 = vsel %vm443, %v296, 0
  %v451 = vsel %vm443, %v298, 0
  %v454 = vsel %vm443, %v300, 0
  %v457 = vsel %vm443, %v302, 0
  %v460 = vsel %vm443, %v304, 0
  %v463 = vsel %vm443, %v306, 0
  %v466 = vsel %vm443, %v308, 0
  %v469 = vsel %vm443, %v310, 0
  %v472 = vsel %vm443, %v312, 0
  %v475 = vsel %vm443, %v314, 0
  %v478 = vsel %vm443, %v316, 0
  %v481 = vsel %vm443, %v318, 0
  %v484 = vsel %vm443, %v320, 0
  %v487 = vsel %vm443, %v322, 0
  %v490 = vsel %vm443, %v324, 0
  %v493 = vsel %vm443, %v326, 0
  %v496 = vsel %vm443, %v328, 0
  %v499 = vsel %vm443, %v330, 0
  %v502 = vsel %vm443, %v332, 0
  %v505 = vsel %vm443, %v334, 0
  %v508 = vsel %vm443, %v336, 0
  %v511 = vsel %vm443, %v338, 0
  %v514 = vsel %vm443, %v340, 0
  %v517 = vsel %vm443, %v342, 0
  %v520 = vsel %vm443, %v344, 0
  %v523 = vsel %vm443, %v346, 0
  %v526 = vsel %vm443, %v348, 0
  %v529 = vsel %vm443, %v350, 0
  %v532 = vsel %vm443, %v352, 0
  %v535 = vsel %vm443, %v354, 0
  %v538 = vsel %vm443, %v356, 0
  %540 = vmatpush.bf16.msra.mxu0 %v432
  %541 = vmatpush.bf16.msra.mxu0 %v431
  %542 = vmatpush.bf16.msra.mxu0 %v430
  %543 = vmatpush.bf16.msra.mxu0 %v429
  %544 = vmatpush.bf16.msra.mxu0 %v428
  %545 = vmatpush.bf16.msra.mxu0 %v427
  %546 = vmatpush.bf16.msra.mxu0 %v426
  %547 = vmatpush.bf16.msra.mxu0 %v425
  %548 = vmatmul.bf16.gmra.mxu0 %v293
  %v549 = vpop.f32.mrf.mxu0
  %v550 = vadd.f32 %v99, %v549
  %v551 = vpop.f32.mrf.mxu0
  %v552 = vadd.f32 %v99, %v551
  %553 = vmatmul.bf16.gmra.mxu0 %v295
  %v554 = vpop.f32.mrf.mxu0
  %v555 = vadd.f32 %v99, %v554
  %v556 = vpop.f32.mrf.mxu0
  %v557 = vadd.f32 %v99, %v556
  %558 = vmatmul.bf16.gmra.mxu0 %v297
  %v559 = vpop.f32.mrf.mxu0
  %v560 = vadd.f32 %v99, %v559
  %v561 = vpop.f32.mrf.mxu0
  %v562 = vadd.f32 %v99, %v561
  %563 = vmatmul.bf16.gmra.mxu0 %v299
  %v564 = vpop.f32.mrf.mxu0
  %v565 = vadd.f32 %v99, %v564
  %v566 = vpop.f32.mrf.mxu0
  %v567 = vadd.f32 %v99, %v566
  %568 = vmatmul.bf16.gmra.mxu0 %v301
  %v569 = vpop.f32.mrf.mxu0
  %v570 = vadd.f32 %v99, %v569
  %v571 = vpop.f32.mrf.mxu0
  %v572 = vadd.f32 %v99, %v571
  %573 = vmatmul.bf16.gmra.mxu0 %v303
  %v574 = vpop.f32.mrf.mxu0
  %v575 = vadd.f32 %v99, %v574
  %v576 = vpop.f32.mrf.mxu0
  %v577 = vadd.f32 %v99, %v576
  %578 = vmatmul.bf16.gmra.mxu0 %v305
  %v579 = vpop.f32.mrf.mxu0
  %v580 = vadd.f32 %v99, %v579
  %v581 = vpop.f32.mrf.mxu0
  %v582 = vadd.f32 %v99, %v581
  %583 = vmatmul.bf16.gmra.mxu0 %v307
  %v584 = vpop.f32.mrf.mxu0
  %v585 = vadd.f32 %v99, %v584
  %v586 = vpop.f32.mrf.mxu0
  %v587 = vadd.f32 %v99, %v586
  %588 = vmatmul.bf16.gmra.mxu0 %v309
  %v589 = vpop.f32.mrf.mxu0
  %v590 = vadd.f32 %v99, %v589
  %v591 = vpop.f32.mrf.mxu0
  %v592 = vadd.f32 %v99, %v591
  %593 = vmatmul.bf16.gmra.mxu0 %v311
  %v594 = vpop.f32.mrf.mxu0
  %v595 = vadd.f32 %v99, %v594
  %v596 = vpop.f32.mrf.mxu0
  %v597 = vadd.f32 %v99, %v596
  %598 = vmatmul.bf16.gmra.mxu0 %v313
  %v599 = vpop.f32.mrf.mxu0
  %v600 = vadd.f32 %v99, %v599
  %v601 = vpop.f32.mrf.mxu0
  %v602 = vadd.f32 %v99, %v601
  %603 = vmatmul.bf16.gmra.mxu0 %v315
  %v604 = vpop.f32.mrf.mxu0
  %v605 = vadd.f32 %v99, %v604
  %v606 = vpop.f32.mrf.mxu0
  %v607 = vadd.f32 %v99, %v606
  %608 = vmatmul.bf16.gmra.mxu0 %v317
  %v609 = vpop.f32.mrf.mxu0
  %v610 = vadd.f32 %v99, %v609
  %v611 = vpop.f32.mrf.mxu0
  %v612 = vadd.f32 %v99, %v611
  %613 = vmatmul.bf16.gmra.mxu0 %v319
  %v614 = vpop.f32.mrf.mxu0
  %v615 = vadd.f32 %v99, %v614
  %v616 = vpop.f32.mrf.mxu0
  %v617 = vadd.f32 %v99, %v616
  %618 = vmatmul.bf16.gmra.mxu0 %v321
  %v619 = vpop.f32.mrf.mxu0
  %v620 = vadd.f32 %v99, %v619
  %v621 = vpop.f32.mrf.mxu0
  %v622 = vadd.f32 %v99, %v621
  %623 = vmatmul.bf16.gmra.mxu0 %v323
  %v624 = vpop.f32.mrf.mxu0
  %v625 = vadd.f32 %v99, %v624
  %v626 = vpop.f32.mrf.mxu0
  %v627 = vadd.f32 %v99, %v626
  %628 = vmatmul.bf16.gmra.mxu0 %v325
  %v629 = vpop.f32.mrf.mxu0
  %v630 = vadd.f32 %v99, %v629
  %v631 = vpop.f32.mrf.mxu0
  %v632 = vadd.f32 %v99, %v631
  %633 = vmatmul.bf16.gmra.mxu0 %v327
  %v634 = vpop.f32.mrf.mxu0
  %v635 = vadd.f32 %v99, %v634
  %v636 = vpop.f32.mrf.mxu0
  %v637 = vadd.f32 %v99, %v636
  %638 = vmatmul.bf16.gmra.mxu0 %v329
  %v639 = vpop.f32.mrf.mxu0
  %v640 = vadd.f32 %v99, %v639
  %v641 = vpop.f32.mrf.mxu0
  %v642 = vadd.f32 %v99, %v641
  %643 = vmatmul.bf16.gmra.mxu0 %v331
  %v644 = vpop.f32.mrf.mxu0
  %v645 = vadd.f32 %v99, %v644
  %v646 = vpop.f32.mrf.mxu0
  %v647 = vadd.f32 %v99, %v646
  %648 = vmatmul.bf16.gmra.mxu0 %v333
  %v649 = vpop.f32.mrf.mxu0
  %v650 = vadd.f32 %v99, %v649
  %v651 = vpop.f32.mrf.mxu0
  %v652 = vadd.f32 %v99, %v651
  %653 = vmatmul.bf16.gmra.mxu0 %v335
  %v654 = vpop.f32.mrf.mxu0
  %v655 = vadd.f32 %v99, %v654
  %v656 = vpop.f32.mrf.mxu0
  %v657 = vadd.f32 %v99, %v656
  %658 = vmatmul.bf16.gmra.mxu0 %v337
  %v659 = vpop.f32.mrf.mxu0
  %v660 = vadd.f32 %v99, %v659
  %v661 = vpop.f32.mrf.mxu0
  %v662 = vadd.f32 %v99, %v661
  %663 = vmatmul.bf16.gmra.mxu0 %v339
  %v664 = vpop.f32.mrf.mxu0
  %v665 = vadd.f32 %v99, %v664
  %v666 = vpop.f32.mrf.mxu0
  %v667 = vadd.f32 %v99, %v666
  %668 = vmatmul.bf16.gmra.mxu0 %v341
  %v669 = vpop.f32.mrf.mxu0
  %v670 = vadd.f32 %v99, %v669
  %v671 = vpop.f32.mrf.mxu0
  %v672 = vadd.f32 %v99, %v671
  %673 = vmatmul.bf16.gmra.mxu0 %v343
  %v674 = vpop.f32.mrf.mxu0
  %v675 = vadd.f32 %v99, %v674
  %v676 = vpop.f32.mrf.mxu0
  %v677 = vadd.f32 %v99, %v676
  %678 = vmatmul.bf16.gmra.mxu0 %v345
  %v679 = vpop.f32.mrf.mxu0
  %v680 = vadd.f32 %v99, %v679
  %v681 = vpop.f32.mrf.mxu0
  %v682 = vadd.f32 %v99, %v681
  %683 = vmatmul.bf16.gmra.mxu0 %v347
  %v684 = vpop.f32.mrf.mxu0
  %v685 = vadd.f32 %v99, %v684
  %v686 = vpop.f32.mrf.mxu0
  %v687 = vadd.f32 %v99, %v686
  %688 = vmatmul.bf16.gmra.mxu0 %v349
  %v689 = vpop.f32.mrf.mxu0
  %v690 = vadd.f32 %v99, %v689
  %v691 = vpop.f32.mrf.mxu0
  %v692 = vadd.f32 %v99, %v691
  %693 = vmatmul.bf16.gmra.mxu0 %v351
  %v694 = vpop.f32.mrf.mxu0
  %v695 = vadd.f32 %v99, %v694
  %v696 = vpop.f32.mrf.mxu0
  %v697 = vadd.f32 %v99, %v696
  %698 = vmatmul.bf16.gmra.mxu0 %v353
  %v699 = vpop.f32.mrf.mxu0
  %v700 = vadd.f32 %v99, %v699
  %v701 = vpop.f32.mrf.mxu0
  %v702 = vadd.f32 %v99, %v701
  %703 = vmatmul.bf16.gmra.mxu0 %v355
  %v704 = vpop.f32.mrf.mxu0
  %v705 = vadd.f32 %v99, %v704
  %v706 = vpop.f32.mrf.mxu0
  %v707 = vadd.f32 %v99, %v706
  %708 = vdwg.mxu0
  %709 = vmatpush.bf16.msra.mxu0 0
  %710 = vmatpush.bf16.msra.mxu0 0
  %711 = vmatpush.bf16.msra.mxu0 0
  %712 = vmatpush.bf16.msra.mxu0 0
  %713 = vmatpush.bf16.msra.mxu0 0
  %714 = vmatpush.bf16.msra.mxu0 0
  %715 = vmatpush.bf16.msra.mxu0 0
  %716 = vmatpush.bf16.msra.mxu0 %v433
  %717 = vmatmul.bf16.gmra.mxu0 %v445
  %v718 = vpop.f32.mrf.mxu0
  %v719 = vadd.f32 %v550, %v718
  %v720 = vpop.f32.mrf.mxu0
  %v721 = vadd.f32 %v552, %v720
  %722 = vmatmul.bf16.gmra.mxu0 %v448
  %v723 = vpop.f32.mrf.mxu0
  %v724 = vadd.f32 %v555, %v723
  %v725 = vpop.f32.mrf.mxu0
  %v726 = vadd.f32 %v557, %v725
  %727 = vmatmul.bf16.gmra.mxu0 %v451
  %v728 = vpop.f32.mrf.mxu0
  %v729 = vadd.f32 %v560, %v728
  %v730 = vpop.f32.mrf.mxu0
  %v731 = vadd.f32 %v562, %v730
  %732 = vmatmul.bf16.gmra.mxu0 %v454
  %v733 = vpop.f32.mrf.mxu0
  %v734 = vadd.f32 %v565, %v733
  %v735 = vpop.f32.mrf.mxu0
  %v736 = vadd.f32 %v567, %v735
  %737 = vmatmul.bf16.gmra.mxu0 %v457
  %v738 = vpop.f32.mrf.mxu0
  %v739 = vadd.f32 %v570, %v738
  %v740 = vpop.f32.mrf.mxu0
  %v741 = vadd.f32 %v572, %v740
  %742 = vmatmul.bf16.gmra.mxu0 %v460
  %v743 = vpop.f32.mrf.mxu0
  %v744 = vadd.f32 %v575, %v743
  %v745 = vpop.f32.mrf.mxu0
  %v746 = vadd.f32 %v577, %v745
  %747 = vmatmul.bf16.gmra.mxu0 %v463
  %v748 = vpop.f32.mrf.mxu0
  %v749 = vadd.f32 %v580, %v748
  %v750 = vpop.f32.mrf.mxu0
  %v751 = vadd.f32 %v582, %v750
  %752 = vmatmul.bf16.gmra.mxu0 %v466
  %v753 = vpop.f32.mrf.mxu0
  %v754 = vadd.f32 %v585, %v753
  %v755 = vpop.f32.mrf.mxu0
  %v756 = vadd.f32 %v587, %v755
  %757 = vmatmul.bf16.gmra.mxu0 %v469
  %v758 = vpop.f32.mrf.mxu0
  %v759 = vadd.f32 %v590, %v758
  %v760 = vpop.f32.mrf.mxu0
  %v761 = vadd.f32 %v592, %v760
  %762 = vmatmul.bf16.gmra.mxu0 %v472
  %v763 = vpop.f32.mrf.mxu0
  %v764 = vadd.f32 %v595, %v763
  %v765 = vpop.f32.mrf.mxu0
  %v766 = vadd.f32 %v597, %v765
  %767 = vmatmul.bf16.gmra.mxu0 %v475
  %v768 = vpop.f32.mrf.mxu0
  %v769 = vadd.f32 %v600, %v768
  %v770 = vpop.f32.mrf.mxu0
  %v771 = vadd.f32 %v602, %v770
  %772 = vmatmul.bf16.gmra.mxu0 %v478
  %v773 = vpop.f32.mrf.mxu0
  %v774 = vadd.f32 %v605, %v773
  %v775 = vpop.f32.mrf.mxu0
  %v776 = vadd.f32 %v607, %v775
  %777 = vmatmul.bf16.gmra.mxu0 %v481
  %v778 = vpop.f32.mrf.mxu0
  %v779 = vadd.f32 %v610, %v778
  %v780 = vpop.f32.mrf.mxu0
  %v781 = vadd.f32 %v612, %v780
  %782 = vmatmul.bf16.gmra.mxu0 %v484
  %v783 = vpop.f32.mrf.mxu0
  %v784 = vadd.f32 %v615, %v783
  %v785 = vpop.f32.mrf.mxu0
  %v786 = vadd.f32 %v617, %v785
  %787 = vmatmul.bf16.gmra.mxu0 %v487
  %v788 = vpop.f32.mrf.mxu0
  %v789 = vadd.f32 %v620, %v788
  %v790 = vpop.f32.mrf.mxu0
  %v791 = vadd.f32 %v622, %v790
  %792 = vmatmul.bf16.gmra.mxu0 %v490
  %v793 = vpop.f32.mrf.mxu0
  %v794 = vadd.f32 %v625, %v793
  %v795 = vpop.f32.mrf.mxu0
  %v796 = vadd.f32 %v627, %v795
  %797 = vmatmul.bf16.gmra.mxu0 %v493
  %v798 = vpop.f32.mrf.mxu0
  %v799 = vadd.f32 %v630, %v798
  %v800 = vpop.f32.mrf.mxu0
  %v801 = vadd.f32 %v632, %v800
  %802 = vmatmul.bf16.gmra.mxu0 %v496
  %v803 = vpop.f32.mrf.mxu0
  %v804 = vadd.f32 %v635, %v803
  %v805 = vpop.f32.mrf.mxu0
  %v806 = vadd.f32 %v637, %v805
  %807 = vmatmul.bf16.gmra.mxu0 %v499
  %v808 = vpop.f32.mrf.mxu0
  %v809 = vadd.f32 %v640, %v808
  %v810 = vpop.f32.mrf.mxu0
  %v811 = vadd.f32 %v642, %v810
  %812 = vmatmul.bf16.gmra.mxu0 %v502
  %v813 = vpop.f32.mrf.mxu0
  %v814 = vadd.f32 %v645, %v813
  %v815 = vpop.f32.mrf.mxu0
  %v816 = vadd.f32 %v647, %v815
  %817 = vmatmul.bf16.gmra.mxu0 %v505
  %v818 = vpop.f32.mrf.mxu0
  %v819 = vadd.f32 %v650, %v818
  %v820 = vpop.f32.mrf.mxu0
  %v821 = vadd.f32 %v652, %v820
  %822 = vmatmul.bf16.gmra.mxu0 %v508
  %v823 = vpop.f32.mrf.mxu0
  %v824 = vadd.f32 %v655, %v823
  %v825 = vpop.f32.mrf.mxu0
  %v826 = vadd.f32 %v657, %v825
  %827 = vmatmul.bf16.gmra.mxu0 %v511
  %v828 = vpop.f32.mrf.mxu0
  %v829 = vadd.f32 %v660, %v828
  %v830 = vpop.f32.mrf.mxu0
  %v831 = vadd.f32 %v662, %v830
  %832 = vmatmul.bf16.gmra.mxu0 %v514
  %v833 = vpop.f32.mrf.mxu0
  %v834 = vadd.f32 %v665, %v833
  %v835 = vpop.f32.mrf.mxu0
  %v836 = vadd.f32 %v667, %v835
  %837 = vmatmul.bf16.gmra.mxu0 %v517
  %v838 = vpop.f32.mrf.mxu0
  %v839 = vadd.f32 %v670, %v838
  %v840 = vpop.f32.mrf.mxu0
  %v841 = vadd.f32 %v672, %v840
  %842 = vmatmul.bf16.gmra.mxu0 %v520
  %v843 = vpop.f32.mrf.mxu0
  %v844 = vadd.f32 %v675, %v843
  %v845 = vpop.f32.mrf.mxu0
  %v846 = vadd.f32 %v677, %v845
  %847 = vmatmul.bf16.gmra.mxu0 %v523
  %v848 = vpop.f32.mrf.mxu0
  %v849 = vadd.f32 %v680, %v848
  %v850 = vpop.f32.mrf.mxu0
  %v851 = vadd.f32 %v682, %v850
  %852 = vmatmul.bf16.gmra.mxu0 %v526
  %v853 = vpop.f32.mrf.mxu0
  %v854 = vadd.f32 %v685, %v853
  %v855 = vpop.f32.mrf.mxu0
  %v856 = vadd.f32 %v687, %v855
  %857 = vmatmul.bf16.gmra.mxu0 %v529
  %v858 = vpop.f32.mrf.mxu0
  %v859 = vadd.f32 %v690, %v858
  %v860 = vpop.f32.mrf.mxu0
  %v861 = vadd.f32 %v692, %v860
  %862 = vmatmul.bf16.gmra.mxu0 %v532
  %v863 = vpop.f32.mrf.mxu0
  %v864 = vadd.f32 %v695, %v863
  %v865 = vpop.f32.mrf.mxu0
  %v866 = vadd.f32 %v697, %v865
  %867 = vmatmul.bf16.gmra.mxu0 %v535
  %v868 = vpop.f32.mrf.mxu0
  %v869 = vadd.f32 %v700, %v868
  %v870 = vpop.f32.mrf.mxu0
  %v871 = vadd.f32 %v702, %v870
  %872 = vmatmul.bf16.gmra.mxu0 %v538
  %v873 = vpop.f32.mrf.mxu0
  %v874 = vadd.f32 %v705, %v873
  %v875 = vpop.f32.mrf.mxu0
  %v876 = vadd.f32 %v707, %v875
  %877 = vdwg.mxu0
  %v878 = vmul.f32 %v719, 0.2
  %v879 = vmul.f32 %v721, 0.2
  %v880 = vmul.f32 %v724, 0.2
  %v881 = vmul.f32 %v726, 0.2
  %v882 = vmul.f32 %v729, 0.2
  %v883 = vmul.f32 %v731, 0.2
  %v884 = vmul.f32 %v734, 0.2
  %v885 = vmul.f32 %v736, 0.2
  %v886 = vmul.f32 %v739, 0.2
  %v887 = vmul.f32 %v741, 0.2
  %v888 = vmul.f32 %v744, 0.2
  %v889 = vmul.f32 %v746, 0.2
  %v890 = vmul.f32 %v749, 0.2
  %v891 = vmul.f32 %v751, 0.2
  %v892 = vmul.f32 %v754, 0.2
  %v893 = vmul.f32 %v756, 0.2
  %v894 = vmul.f32 %v759, 0.2
  %v895 = vmul.f32 %v761, 0.2
  %v896 = vmul.f32 %v764, 0.2
  %v897 = vmul.f32 %v766, 0.2
  %v898 = vmul.f32 %v769, 0.2
  %v899 = vmul.f32 %v771, 0.2
  %v900 = vmul.f32 %v774, 0.2
  %v901 = vmul.f32 %v776, 0.2
  %v902 = vmul.f32 %v779, 0.2
  %v903 = vmul.f32 %v781, 0.2
  %v904 = vmul.f32 %v784, 0.2
  %v905 = vmul.f32 %v786, 0.2
  %v906 = vmul.f32 %v789, 0.2
  %v907 = vmul.f32 %v791, 0.2
  %v908 = vmul.f32 %v794, 0.2
  %v909 = vmul.f32 %v796, 0.2
  %v910 = vmul.f32 %v799, 0.2
  %v911 = vmul.f32 %v801, 0.2
  %v912 = vmul.f32 %v804, 0.2
  %v913 = vmul.f32 %v806, 0.2
  %v914 = vmul.f32 %v809, 0.2
  %v915 = vmul.f32 %v811, 0.2
  %v916 = vmul.f32 %v814, 0.2
  %v917 = vmul.f32 %v816, 0.2
  %v918 = vmul.f32 %v819, 0.2
  %v919 = vmul.f32 %v821, 0.2
  %v920 = vmul.f32 %v824, 0.2
  %v921 = vmul.f32 %v826, 0.2
  %v922 = vmul.f32 %v829, 0.2
  %v923 = vmul.f32 %v831, 0.2
  %v924 = vmul.f32 %v834, 0.2
  %v925 = vmul.f32 %v836, 0.2
  %v926 = vmul.f32 %v839, 0.2
  %v927 = vmul.f32 %v841, 0.2
  %v928 = vmul.f32 %v844, 0.2
  %v929 = vmul.f32 %v846, 0.2
  %v930 = vmul.f32 %v849, 0.2
  %v931 = vmul.f32 %v851, 0.2
  %v932 = vmul.f32 %v854, 0.2
  %v933 = vmul.f32 %v856, 0.2
  %v934 = vmul.f32 %v859, 0.2
  %v935 = vmul.f32 %v861, 0.2
  %v936 = vmul.f32 %v864, 0.2
  %v937 = vmul.f32 %v866, 0.2
  %v938 = vmul.f32 %v869, 0.2
  %v939 = vmul.f32 %v871, 0.2
  %v940 = vmul.f32 %v874, 0.2
  %v941 = vmul.f32 %v876, 0.2
  %v942 = vmax.f32 %v719, %v878
  %v943 = vmax.f32 %v721, %v879
  %v944 = vmax.f32 %v724, %v880
  %v945 = vmax.f32 %v726, %v881
  %v946 = vmax.f32 %v729, %v882
  %v947 = vmax.f32 %v731, %v883
  %v948 = vmax.f32 %v734, %v884
  %v949 = vmax.f32 %v736, %v885
  %v950 = vmax.f32 %v739, %v886
  %v951 = vmax.f32 %v741, %v887
  %v952 = vmax.f32 %v744, %v888
  %v953 = vmax.f32 %v746, %v889
  %v954 = vmax.f32 %v749, %v890
  %v955 = vmax.f32 %v751, %v891
  %v956 = vmax.f32 %v754, %v892
  %v957 = vmax.f32 %v756, %v893
  %v958 = vmax.f32 %v759, %v894
  %v959 = vmax.f32 %v761, %v895
  %v960 = vmax.f32 %v764, %v896
  %v961 = vmax.f32 %v766, %v897
  %v962 = vmax.f32 %v769, %v898
  %v963 = vmax.f32 %v771, %v899
  %v964 = vmax.f32 %v774, %v900
  %v965 = vmax.f32 %v776, %v901
  %v966 = vmax.f32 %v779, %v902
  %v967 = vmax.f32 %v781, %v903
  %v968 = vmax.f32 %v784, %v904
  %v969 = vmax.f32 %v786, %v905
  %v970 = vmax.f32 %v789, %v906
  %v971 = vmax.f32 %v791, %v907
  %v972 = vmax.f32 %v794, %v908
  %v973 = vmax.f32 %v796, %v909
  %v974 = vmax.f32 %v799, %v910
  %v975 = vmax.f32 %v801, %v911
  %v976 = vmax.f32 %v804, %v912
  %v977 = vmax.f32 %v806, %v913
  %v978 = vmax.f32 %v809, %v914
  %v979 = vmax.f32 %v811, %v915
  %v980 = vmax.f32 %v814, %v916
  %v981 = vmax.f32 %v816, %v917
  %v982 = vmax.f32 %v819, %v918
  %v983 = vmax.f32 %v821, %v919
  %v984 = vmax.f32 %v824, %v920
  %v985 = vmax.f32 %v826, %v921
  %v986 = vmax.f32 %v829, %v922
  %v987 = vmax.f32 %v831, %v923
  %v988 = vmax.f32 %v834, %v924
  %v989 = vmax.f32 %v836, %v925
  %v990 = vmax.f32 %v839, %v926
  %v991 = vmax.f32 %v841, %v927
  %v992 = vmax.f32 %v844, %v928
  %v993 = vmax.f32 %v846, %v929
  %v994 = vmax.f32 %v849, %v930
  %v995 = vmax.f32 %v851, %v931
  %v996 = vmax.f32 %v854, %v932
  %v997 = vmax.f32 %v856, %v933
  %v998 = vmax.f32 %v859, %v934
  %v999 = vmax.f32 %v861, %v935
  %v1000 = vmax.f32 %v864, %v936
  %v1001 = vmax.f32 %v866, %v937
  %v1002 = vmax.f32 %v869, %v938
  %v1003 = vmax.f32 %v871, %v939
  %v1004 = vmax.f32 %v874, %v940
  %v1005 = vmax.f32 %v876, %v941
  %v1006 = vpack.c.bf16 %v942, %v942
  %v1007 = vpack.c.bf16 %v943, %v943
  %v1008 = vpack.c.bf16 %v944, %v944
  %v1009 = vpack.c.bf16 %v945, %v945
  %v1010 = vpack.c.bf16 %v946, %v946
  %v1011 = vpack.c.bf16 %v947, %v947
  %v1012 = vpack.c.bf16 %v948, %v948
  %v1013 = vpack.c.bf16 %v949, %v949
  %v1014 = vpack.c.bf16 %v950, %v950
  %v1015 = vpack.c.bf16 %v951, %v951
  %v1016 = vpack.c.bf16 %v952, %v952
  %v1017 = vpack.c.bf16 %v953, %v953
  %v1018 = vpack.c.bf16 %v954, %v954
  %v1019 = vpack.c.bf16 %v955, %v955
  %v1020 = vpack.c.bf16 %v956, %v956
  %v1021 = vpack.c.bf16 %v957, %v957
  %v1022 = vpack.c.bf16 %v958, %v958
  %v1023 = vpack.c.bf16 %v959, %v959
  %v1024 = vpack.c.bf16 %v960, %v960
  %v1025 = vpack.c.bf16 %v961, %v961
  %v1026 = vpack.c.bf16 %v962, %v962
  %v1027 = vpack.c.bf16 %v963, %v963
  %v1028 = vpack.c.bf16 %v964, %v964
  %v1029 = vpack.c.bf16 %v965, %v965
  %v1030 = vpack.c.bf16 %v966, %v966
  %v1031 = vpack.c.bf16 %v967, %v967
  %v1032 = vpack.c.bf16 %v968, %v968
  %v1033 = vpack.c.bf16 %v969, %v969
  %v1034 = vpack.c.bf16 %v970, %v970
  %v1035 = vpack.c.bf16 %v971, %v971
  %v1036 = vpack.c.bf16 %v972, %v972
  %v1037 = vpack.c.bf16 %v973, %v973
  %v1038 = vpack.c.bf16 %v974, %v974
  %v1039 = vpack.c.bf16 %v975, %v975
  %v1040 = vpack.c.bf16 %v976, %v976
  %v1041 = vpack.c.bf16 %v977, %v977
  %v1042 = vpack.c.bf16 %v978, %v978
  %v1043 = vpack.c.bf16 %v979, %v979
  %v1044 = vpack.c.bf16 %v980, %v980
  %v1045 = vpack.c.bf16 %v981, %v981
  %v1046 = vpack.c.bf16 %v982, %v982
  %v1047 = vpack.c.bf16 %v983, %v983
  %v1048 = vpack.c.bf16 %v984, %v984
  %v1049 = vpack.c.bf16 %v985, %v985
  %v1050 = vpack.c.bf16 %v986, %v986
  %v1051 = vpack.c.bf16 %v987, %v987
  %v1052 = vpack.c.bf16 %v988, %v988
  %v1053 = vpack.c.bf16 %v989, %v989
  %v1054 = vpack.c.bf16 %v990, %v990
  %v1055 = vpack.c.bf16 %v991, %v991
  %v1056 = vpack.c.bf16 %v992, %v992
  %v1057 = vpack.c.bf16 %v993, %v993
  %v1058 = vpack.c.bf16 %v994, %v994
  %v1059 = vpack.c.bf16 %v995, %v995
  %v1060 = vpack.c.bf16 %v996, %v996
  %v1061 = vpack.c.bf16 %v997, %v997
  %v1062 = vpack.c.bf16 %v998, %v998
  %v1063 = vpack.c.bf16 %v999, %v999
  %v1064 = vpack.c.bf16 %v1000, %v1000
  %v1065 = vpack.c.bf16 %v1001, %v1001
  %v1066 = vpack.c.bf16 %v1002, %v1002
  %v1067 = vpack.c.bf16 %v1003, %v1003
  %v1068 = vpack.c.bf16 %v1004, %v1004
  %v1069 = vpack.c.bf16 %v1005, %v1005
  %1070 = vst [vmem:[%s3] sm:$0xf] %v1006
  %1071 = vst [vmem:[%s3 + $0x4] sm:$0xf] %v1007
  %1072 = vst [vmem:[%s3 + $0x8] sm:$0xf] %v1008
  %1073 = vst [vmem:[%s3 + $0xc] sm:$0xf] %v1009
  %1074 = vst [vmem:[%s3 + $0x10] sm:$0xf] %v1010
  %1075 = vst [vmem:[%s3 + $0x14] sm:$0xf] %v1011
  %1076 = vst [vmem:[%s3 + $0x18] sm:$0xf] %v1012
  %1077 = vst [vmem:[%s3 + $0x1c] sm:$0xf] %v1013
  %1078 = vst [vmem:[%s3 + $0x20] sm:$0xf] %v1014
  %1079 = vst [vmem:[%s3 + $0x24] sm:$0xf] %v1015
  %1080 = vst [vmem:[%s3 + $0x28] sm:$0xf] %v1016
  %1081 = vst [vmem:[%s3 + $0x2c] sm:$0xf] %v1017
  %1082 = vst [vmem:[%s3 + $0x30] sm:$0xf] %v1018
  %1083 = vst [vmem:[%s3 + $0x34] sm:$0xf] %v1019
  %1084 = vst [vmem:[%s3 + $0x38] sm:$0xf] %v1020
  %1085 = vst [vmem:[%s3 + $0x3c] sm:$0xf] %v1021
  %1086 = vst [vmem:[%s3 + $0x40] sm:$0xf] %v1022
  %1087 = vst [vmem:[%s3 + $0x44] sm:$0xf] %v1023
  %1088 = vst [vmem:[%s3 + $0x48] sm:$0xf] %v1024
  %1089 = vst [vmem:[%s3 + $0x4c] sm:$0xf] %v1025
  %1090 = vst [vmem:[%s3 + $0x50] sm:$0xf] %v1026
  %1091 = vst [vmem:[%s3 + $0x54] sm:$0xf] %v1027
  %1092 = vst [vmem:[%s3 + $0x58] sm:$0xf] %v1028
  %1093 = vst [vmem:[%s3 + $0x5c] sm:$0xf] %v1029
  %1094 = vst [vmem:[%s3 + $0x60] sm:$0xf] %v1030
  %1095 = vst [vmem:[%s3 + $0x64] sm:$0xf] %v1031
  %1096 = vst [vmem:[%s3 + $0x68] sm:$0xf] %v1032
  %1097 = vst [vmem:[%s3 + $0x6c] sm:$0xf] %v1033
  %1098 = vst [vmem:[%s3 + $0x70] sm:$0xf] %v1034
  %1099 = vst [vmem:[%s3 + $0x74] sm:$0xf] %v1035
  %1100 = vst [vmem:[%s3 + $0x78] sm:$0xf] %v1036
  %1101 = vst [vmem:[%s3 + $0x7c] sm:$0xf] %v1037
  %1102 = vst [vmem:[%s3 + $0x80] sm:$0xf] %v1038
  %1103 = vst [vmem:[%s3 + $0x84] sm:$0xf] %v1039
  %1104 = vst [vmem:[%s3 + $0x88] sm:$0xf] %v1040
  %1105 = vst [vmem:[%s3 + $0x8c] sm:$0xf] %v1041
  %1106 = vst [vmem:[%s3 + $0x90] sm:$0xf] %v1042
  %1107 = vst [vmem:[%s3 + $0x94] sm:$0xf] %v1043
  %1108 = vst [vmem:[%s3 + $0x98] sm:$0xf] %v1044
  %1109 = vst [vmem:[%s3 + $0x9c] sm:$0xf] %v1045
  %1110 = vst [vmem:[%s3 + $0xa0] sm:$0xf] %v1046
  %1111 = vst [vmem:[%s3 + $0xa4] sm:$0xf] %v1047
  %1112 = vst [vmem:[%s3 + $0xa8] sm:$0xf] %v1048
  %1113 = vst [vmem:[%s3 + $0xac] sm:$0xf] %v1049
  %1114 = vst [vmem:[%s3 + $0xb0] sm:$0xf] %v1050
  %1115 = vst [vmem:[%s3 + $0xb4] sm:$0xf] %v1051
  %1116 = vst [vmem:[%s3 + $0xb8] sm:$0xf] %v1052
  %1117 = vst [vmem:[%s3 + $0xbc] sm:$0xf] %v1053
  %1118 = vst [vmem:[%s3 + $0xc0] sm:$0xf] %v1054
  %1119 = vst [vmem:[%s3 + $0xc4] sm:$0xf] %v1055
  %1120 = vst [vmem:[%s3 + $0xc8] sm:$0xf] %v1056
  %1121 = vst [vmem:[%s3 + $0xcc] sm:$0xf] %v1057
  %1122 = vst [vmem:[%s3 + $0xd0] sm:$0xf] %v1058
  %1123 = vst [vmem:[%s3 + $0xd4] sm:$0xf] %v1059
  %1124 = vst [vmem:[%s3 + $0xd8] sm:$0xf] %v1060
  %1125 = vst [vmem:[%s3 + $0xdc] sm:$0xf] %v1061
  %1126 = vst [vmem:[%s3 + $0xe0] sm:$0xf] %v1062
  %1127 = vst [vmem:[%s3 + $0xe4] sm:$0xf] %v1063
  %1128 = vst [vmem:[%s3 + $0xe8] sm:$0xf] %v1064
  %1129 = vst [vmem:[%s3 + $0xec] sm:$0xf] %v1065
  %1130 = vst [vmem:[%s3 + $0xf0] sm:$0xf] %v1066
  %1131 = vst [vmem:[%s3 + $0xf4] sm:$0xf] %v1067
  %1132 = vst [vmem:[%s3 + $0xf8] sm:$0xf] %v1068
  %1133 = vst [vmem:[%s3 + $0xfc] sm:$0xf] %v1069
  // Predicated region
  $region14: #{discriminator_forward.8} parent=0 // pred_check
    _
  $region15: #{discriminator_forward.8} parent=0 // pred_check_branch
    %1135 = sbr.rel (0) target = $region17
  $region16: #{discriminator_forward.8} parent=0 // pred_region
    _
  $region17: #{discriminator_forward.8} parent=0 // pred_fallthru
    _
  // Predicated region
  $region18: #{discriminator_forward.8} parent=0 // pred_check
    _
  $region19: #{discriminator_forward.8} parent=0 // pred_check_branch
    %1137 = sbr.rel (0) target = $region21
  $region20: #{discriminator_forward.8} parent=0 // pred_region
    _
  $region21: #{discriminator_forward.8} parent=0 // pred_fallthru
    _

// kernel: discriminator_forward.9
$region0: #{discriminator_forward.9}
  #allocation0 [shape = 'u32[]', space=smem, size = 0x4, offset = 0x4, fixed_abs, tag = 'smem constant byte address 0x4 - core index']
  #allocation1 [shape = 'u32[72,128]{1,0:T(1,128)}', space=vmem, size = 0x9000, scoped, tag = 'internal scratch']
  %s0 = inlined_call_operand.vmem [shape: bf16[128,288], index: 0, kind: input, shape index: {}]
  %s1 = inlined_call_operand.vmem [shape: bf16[288,128], index: 1, kind: input, shape index: {}]
  %s2 = inlined_call_operand.vmem [shape: f32[1,128], index: 2, kind: input, shape index: {}]
  %s3 = inlined_call_operand.vmem [shape: bf16[128,128], index: 3, kind: output, shape index: {}]
  %s4 = sld [smem:[#allocation0]]
  $region22: #{discriminator_forward.9} parent=0
    _
  %s6 = ssub.s32 1, %s4
  %s7 = scalar_select 0, %s6, %s4
  // Predicated region
  $region2: #{discriminator_forward.9} parent=0 // pred_check
    _
  $region3: #{discriminator_forward.9} parent=0 // pred_check_branch
    %9 = sbr.rel (0) target = $region5
  $region4: #{discriminator_forward.9} parent=0 // pred_region
    _
  $region5: #{discriminator_forward.9} parent=0 // pred_fallthru
    _
  // Predicated region
  $region6: #{discriminator_forward.9} parent=0 // pred_check
    _
  $region7: #{discriminator_forward.9} parent=0 // pred_check_branch
    %11 = sbr.rel (0) target = $region9
  $region8: #{discriminator_forward.9} parent=0 // pred_region
    _
  $region9: #{discriminator_forward.9} parent=0 // pred_fallthru
    _
  // Predicated region
  $region10: #{discriminator_forward.9} parent=0 // pred_check
    _
  $region11: #{discriminator_forward.9} parent=0 // pred_check_branch
    %13 = sbr.rel (0) target = $region13
  $region12: #{discriminator_forward.9} parent=0 // pred_region
    _
  $region13: #{discriminator_forward.9} parent=0 // pred_fallthru
    _
  %v15 = vld [vmem:[%s0] sm:$0xff]
  %v16 = vld [vmem:[%s0 + $0x8] sm:$0xf]
  %v17 = vld [vmem:[%s0 + $0xc] sm:$0xff]
  %v18 = vld [vmem:[%s0 + $0x14] sm:$0xf]
  %v19 = vld [vmem:[%s0 + $0x18] sm:$0xff]
  %v20 = vld [vmem:[%s0 + $0x20] sm:$0xf]
  %v21 = vld [vmem:[%s0 + $0x24] sm:$0xff]
  %v22 = vld [vmem:[%s0 + $0x2c] sm:$0xf]
  %v23 = vld [vmem:[%s0 + $0x30] sm:$0xff]
  %v24 = vld [vmem:[%s0 + $0x38] sm:$0xf]
  %v25 = vld [vmem:[%s0 + $0x3c] sm:$0xff]
  %v26 = vld [vmem:[%s0 + $0x44] sm:$0xf]
  %v27 = vld [vmem:[%s0 + $0x48] sm:$0xff]
  %v28 = vld [vmem:[%s0 + $0x50] sm:$0xf]
  %v29 = vld [vmem:[%s0 + $0x54] sm:$0xff]
  %v30 = vld [vmem:[%s0 + $0x5c] sm:$0xf]
  %v31 = vld [vmem:[%s0 + $0x60] sm:$0xff]
  %v32 = vld [vmem:[%s0 + $0x68] sm:$0xf]
  %v33 = vld [vmem:[%s0 + $0x6c] sm:$0xff]
  %v34 = vld [vmem:[%s0 + $0x74] sm:$0xf]
  %v35 = vld [vmem:[%s0 + $0x78] sm:$0xff]
  %v36 = vld [vmem:[%s0 + $0x80] sm:$0xf]
  %v37 = vld [vmem:[%s0 + $0x84] sm:$0xff]
  %v38 = vld [vmem:[%s0 + $0x8c] sm:$0xf]
  %v39 = vld [vmem:[%s0 + $0x90] sm:$0xff]
  %v40 = vld [vmem:[%s0 + $0x98] sm:$0xf]
  %v41 = vld [vmem:[%s0 + $0x9c] sm:$0xff]
  %v42 = vld [vmem:[%s0 + $0xa4] sm:$0xf]
  %v43 = vld [vmem:[%s0 + $0xa8] sm:$0xff]
  %v44 = vld [vmem:[%s0 + $0xb0] sm:$0xf]
  %v45 = vld [vmem:[%s0 + $0xb4] sm:$0xff]
  %v46 = vld [vmem:[%s0 + $0xbc] sm:$0xf]
  %v47 = vld [vmem:[%s1] sm:$0xf]
  %v48 = vld [vmem:[%s1 + $0x4] sm:$0xf]
  %v49 = vld [vmem:[%s1 + $0x8] sm:$0xf]
  %v50 = vld [vmem:[%s1 + $0xc] sm:$0xf]
  %v51 = vld [vmem:[%s1 + $0x10] sm:$0xf]
  %v52 = vld [vmem:[%s1 + $0x14] sm:$0xf]
  %v53 = vld [vmem:[%s1 + $0x18] sm:$0xf]
  %v54 = vld [vmem:[%s1 + $0x1c] sm:$0xf]
  %v55 = vld [vmem:[%s1 + $0x20] sm:$0xf]
  %v56 = vld [vmem:[%s1 + $0x24] sm:$0xf]
  %v57 = vld [vmem:[%s1 + $0x28] sm:$0xf]
  %v58 = vld [vmem:[%s1 + $0x2c] sm:$0xf]
  %v59 = vld [vmem:[%s1 + $0x30] sm:$0xf]
  %v60 = vld [vmem:[%s1 + $0x34] sm:$0xf]
  %v61 = vld [vmem:[%s1 + $0x38] sm:$0xf]
  %v62 = vld [vmem:[%s1 + $0x3c] sm:$0xf]
  %v63 = vld [vmem:[%s1 + $0x40] sm:$0xf]
  %v64 = vld [vmem:[%s1 + $0x44] sm:$0xf]
  %v65 = vld [vmem:[%s1 + $0x48] sm:$0xf]
  %v66 = vld [vmem:[%s1 + $0x4c] sm:$0xf]
  %v67 = vld [vmem:[%s1 + $0x50] sm:$0xf]
  %v68 = vld [vmem:[%s1 + $0x54] sm:$0xf]
  %v69 = vld [vmem:[%s1 + $0x58] sm:$0xf]
  %v70 = vld [vmem:[%s1 + $0x5c] sm:$0xf]
  %v71 = vld [vmem:[%s1 + $0x60] sm:$0xf]
  %v72 = vld [vmem:[%s1 + $0x64] sm:$0xf]
  %v73 = vld [vmem:[%s1 + $0x68] sm:$0xf]
  %v74 = vld [vmem:[%s1 + $0x6c] sm:$0xf]
  %v75 = vld [vmem:[%s1 + $0x70] sm:$0xf]
  %v76 = vld [vmem:[%s1 + $0x74] sm:$0xf]
  %v77 = vld [vmem:[%s1 + $0x78] sm:$0xf]
  %v78 = vld [vmem:[%s1 + $0x7c] sm:$0xf]
  %v79 = vld [vmem:[%s1 + $0x80] sm:$0xf]
  %v80 = vld [vmem:[%s1 + $0x84] sm:$0xf]
  %v81 = vld [vmem:[%s1 + $0x88] sm:$0xf]
  %v82 = vld [vmem:[%s1 + $0x8c] sm:$0xf]
  %v83 = vld [vmem:[%s2] sm:$0x1]
  %v85 = vperm.slane %v83, 0
  %v119 = vunpack.c.l.b16 %v15
  %v120 = vunpack.c.h.b16 %v15
  %v121 = vunpack.c.l.b16 %v16
  %v122 = vunpack.c.l.b16 %v17
  %v123 = vunpack.c.h.b16 %v17
  %v124 = vunpack.c.l.b16 %v18
  %v125 = vunpack.c.l.b16 %v19
  %v126 = vunpack.c.h.b16 %v19
  %v127 = vunpack.c.l.b16 %v20
  %v128 = vunpack.c.l.b16 %v21
  %v129 = vunpack.c.h.b16 %v21
  %v130 = vunpack.c.l.b16 %v22
  %v131 = vunpack.c.l.b16 %v23
  %v132 = vunpack.c.h.b16 %v23
  %v133 = vunpack.c.l.b16 %v24
  %v134 = vunpack.c.l.b16 %v25
  %v135 = vunpack.c.h.b16 %v25
  %v136 = vunpack.c.l.b16 %v26
  %v137 = vunpack.c.l.b16 %v27
  %v138 = vunpack.c.h.b16 %v27
  %v139 = vunpack.c.l.b16 %v28
  %v140 = vunpack.c.l.b16 %v29
  %v141 = vunpack.c.h.b16 %v29
  %v142 = vunpack.c.l.b16 %v30
  %v143 = vunpack.c.l.b16 %v31
  %v144 = vunpack.c.h.b16 %v31
  %v145 = vunpack.c.l.b16 %v32
  %v146 = vunpack.c.l.b16 %v33
  %v147 = vunpack.c.h.b16 %v33
  %v148 = vunpack.c.l.b16 %v34
  %v149 = vunpack.c.l.b16 %v35
  %v150 = vunpack.c.h.b16 %v35
  %v151 = vunpack.c.l.b16 %v36
  %v152 = vunpack.c.l.b16 %v37
  %v153 = vunpack.c.h.b16 %v37
  %v154 = vunpack.c.l.b16 %v38
  %v155 = vunpack.c.l.b16 %v39
  %v156 = vunpack.c.h.b16 %v39
  %v157 = vunpack.c.l.b16 %v40
  %v158 = vunpack.c.l.b16 %v41
  %v159 = vunpack.c.h.b16 %v41
  %v160 = vunpack.c.l.b16 %v42
  %v161 = vunpack.c.l.b16 %v43
  %v162 = vunpack.c.h.b16 %v43
  %v163 = vunpack.c.l.b16 %v44
  %v164 = vunpack.c.l.b16 %v45
  %v165 = vunpack.c.h.b16 %v45
  %v166 = vunpack.c.l.b16 %v46
  %v167 = vpack.c.b16 %v122, %v119
  %v168 = vpack.c.b16 %v123, %v120
  %v169 = vpack.c.b16 %v124, %v121
  %v170 = vpack.c.b16 %v128, %v125
  %v171 = vpack.c.b16 %v129, %v126
  %v172 = vpack.c.b16 %v130, %v127
  %v173 = vpack.c.b16 %v134, %v131
  %v174 = vpack.c.b16 %v135, %v132
  %v175 = vpack.c.b16 %v136, %v133
  %v176 = vpack.c.b16 %v140, %v137
  %v177 = vpack.c.b16 %v141, %v138
  %v178 = vpack.c.b16 %v142, %v139
  %v179 = vpack.c.b16 %v146, %v143
  %v180 = vpack.c.b16 %v147, %v144
  %v181 = vpack.c.b16 %v148, %v145
  %v182 = vpack.c.b16 %v152, %v149
  %v183 = vpack.c.b16 %v153, %v150
  %v184 = vpack.c.b16 %v154, %v151
  %v185 = vpack.c.b16 %v158, %v155
  %v186 = vpack.c.b16 %v159, %v156
  %v187 = vpack.c.b16 %v160, %v157
  %v188 = vpack.c.b16 %v164, %v161
  %v189 = vpack.c.b16 %v165, %v162
  %v190 = vpack.c.b16 %v166, %v163
  %v243 = vunpack.c.l.b16 %v47
  %v244 = vunpack.c.l.b16 %v48
  %v245 = vunpack.c.l.b16 %v49
  %v246 = vunpack.c.l.b16 %v50
  %v247 = vunpack.c.l.b16 %v51
  %v248 = vunpack.c.l.b16 %v52
  %v249 = vunpack.c.l.b16 %v53
  %v250 = vunpack.c.l.b16 %v54
  %v251 = vunpack.c.l.b16 %v55
  %v252 = vunpack.c.l.b16 %v56
  %v253 = vunpack.c.l.b16 %v57
  %v254 = vunpack.c.l.b16 %v58
  %v255 = vunpack.c.l.b16 %v59
  %v256 = vunpack.c.l.b16 %v60
  %v257 = vunpack.c.l.b16 %v61
  %v258 = vunpack.c.l.b16 %v62
  %v259 = vunpack.c.l.b16 %v63
  %v260 = vunpack.c.l.b16 %v64
  %v261 = vunpack.c.l.b16 %v65
  %v262 = vunpack.c.l.b16 %v66
  %v263 = vunpack.c.l.b16 %v67
  %v264 = vunpack.c.l.b16 %v68
  %v265 = vunpack.c.l.b16 %v69
  %v266 = vunpack.c.l.b16 %v70
  %v267 = vunpack.c.l.b16 %v71
  %v268 = vunpack.c.l.b16 %v72
  %v269 = vunpack.c.l.b16 %v73
  %v270 = vunpack.c.l.b16 %v74
  %v271 = vunpack.c.l.b16 %v75
  %v272 = vunpack.c.l.b16 %v76
  %v273 = vunpack.c.l.b16 %v77
  %v274 = vunpack.c.l.b16 %v78
  %v275 = vunpack.c.l.b16 %v79
  %v276 = vunpack.c.l.b16 %v80
  %v277 = vunpack.c.l.b16 %v81
  %v278 = vunpack.c.l.b16 %v82
  %v279 = vpack.c.b16 %v244, %v243
  %v280 = vpack.c.b16 %v246, %v245
  %v281 = vpack.c.b16 %v248, %v247
  %v282 = vpack.c.b16 %v250, %v249
  %v283 = vpack.c.b16 %v252, %v251
  %v284 = vpack.c.b16 %v254, %v253
  %v285 = vpack.c.b16 %v256, %v255
  %v286 = vpack.c.b16 %v258, %v257
  %v287 = vpack.c.b16 %v260, %v259
  %v288 = vpack.c.b16 %v262, %v261
  %v289 = vpack.c.b16 %v264, %v263
  %v290 = vpack.c.b16 %v266, %v265
  %v291 = vpack.c.b16 %v268, %v267
  %v292 = vpack.c.b16 %v270, %v269
  %v293 = vpack.c.b16 %v272, %v271
  %v294 = vpack.c.b16 %v274, %v273
  %v295 = vpack.c.b16 %v276, %v275
  %v296 = vpack.c.b16 %v278, %v277
  %vm315 = vcmask 261120
  %v317 = vsel %vm315, %v169, 0
  %v320 = vsel %vm315, %v172, 0
  %v323 = vsel %vm315, %v175, 0
  %v326 = vsel %vm315, %v178, 0
  %v329 = vsel %vm315, %v181, 0
  %v332 = vsel %vm315, %v184, 0
  %v335 = vsel %vm315, %v187, 0
  %v338 = vsel %vm315, %v190, 0
  %340 = vmatpush.bf16.msra.mxu0 %v286
  %341 = vmatpush.bf16.msra.mxu0 %v285
  %342 = vmatpush.bf16.msra.mxu0 %v284
  %343 = vmatpush.bf16.msra.mxu0 %v283
  %344 = vmatpush.bf16.msra.mxu0 %v282
  %345 = vmatpush.bf16.msra.mxu0 %v281
  %346 = vmatpush.bf16.msra.mxu0 %v280
  %347 = vmatpush.bf16.msra.mxu0 %v279
  %348 = vmatmul.bf16.gmra.mxu0 %v167
  %v349 = vpop.f32.mrf.mxu0
  %v350 = vadd.f32 %v85, %v349
  %v351 = vpop.f32.mrf.mxu0
  %v352 = vadd.f32 %v85, %v351
  %353 = vmatmul.bf16.gmra.mxu0 %v170
  %v354 = vpop.f32.mrf.mxu0
  %v355 = vadd.f32 %v85, %v354
  %v356 = vpop.f32.mrf.mxu0
  %v357 = vadd.f32 %v85, %v356
  %358 = vmatmul.bf16.gmra.mxu0 %v173
  %v359 = vpop.f32.mrf.mxu0
  %v360 = vadd.f32 %v85, %v359
  %v361 = vpop.f32.mrf.mxu0
  %v362 = vadd.f32 %v85, %v361
  %363 = vmatmul.bf16.gmra.mxu0 %v176
  %v364 = vpop.f32.mrf.mxu0
  %v365 = vadd.f32 %v85, %v364
  %v366 = vpop.f32.mrf.mxu0
  %v367 = vadd.f32 %v85, %v366
  %368 = vmatmul.bf16.gmra.mxu0 %v179
  %v369 = vpop.f32.mrf.mxu0
  %v370 = vadd.f32 %v85, %v369
  %v371 = vpop.f32.mrf.mxu0
  %v372 = vadd.f32 %v85, %v371
  %373 = vmatmul.bf16.gmra.mxu0 %v182
  %v374 = vpop.f32.mrf.mxu0
  %v375 = vadd.f32 %v85, %v374
  %v376 = vpop.f32.mrf.mxu0
  %v377 = vadd.f32 %v85, %v376
  %378 = vmatmul.bf16.gmra.mxu0 %v185
  %v379 = vpop.f32.mrf.mxu0
  %v380 = vadd.f32 %v85, %v379
  %v381 = vpop.f32.mrf.mxu0
  %v382 = vadd.f32 %v85, %v381
  %383 = vmatmul.bf16.gmra.mxu0 %v188
  %v384 = vpop.f32.mrf.mxu0
  %v385 = vadd.f32 %v85, %v384
  %v386 = vpop.f32.mrf.mxu0
  %v387 = vadd.f32 %v85, %v386
  %388 = vdwg.mxu0
  %389 = vmatpush.bf16.msra.mxu0 %v294
  %390 = vmatpush.bf16.msra.mxu0 %v293
  %391 = vmatpush.bf16.msra.mxu0 %v292
  %392 = vmatpush.bf16.msra.mxu0 %v291
  %393 = vmatpush.bf16.msra.mxu0 %v290
  %394 = vmatpush.bf16.msra.mxu0 %v289
  %395 = vmatpush.bf16.msra.mxu0 %v288
  %396 = vmatpush.bf16.msra.mxu0 %v287
  %397 = vmatmul.bf16.gmra.mxu0 %v168
  %v398 = vpop.f32.mrf.mxu0
  %v399 = vadd.f32 %v350, %v398
  %v400 = vpop.f32.mrf.mxu0
  %v401 = vadd.f32 %v352, %v400
  %402 = vmatmul.bf16.gmra.mxu0 %v171
  %v403 = vpop.f32.mrf.mxu0
  %v404 = vadd.f32 %v355, %v403
  %v405 = vpop.f32.mrf.mxu0
  %v406 = vadd.f32 %v357, %v405
  %407 = vmatmul.bf16.gmra.mxu0 %v174
  %v408 = vpop.f32.mrf.mxu0
  %v409 = vadd.f32 %v360, %v408
  %v410 = vpop.f32.mrf.mxu0
  %v411 = vadd.f32 %v362, %v410
  %412 = vmatmul.bf16.gmra.mxu0 %v177
  %v413 = vpop.f32.mrf.mxu0
  %v414 = vadd.f32 %v365, %v413
  %v415 = vpop.f32.mrf.mxu0
  %v416 = vadd.f32 %v367, %v415
  %417 = vmatmul.bf16.gmra.mxu0 %v180
  %v418 = vpop.f32.mrf.mxu0
  %v419 = vadd.f32 %v370, %v418
  %v420 = vpop.f32.mrf.mxu0
  %v421 = vadd.f32 %v372, %v420
  %422 = vmatmul.bf16.gmra.mxu0 %v183
  %v423 = vpop.f32.mrf.mxu0
  %v424 = vadd.f32 %v375, %v423
  %v425 = vpop.f32.mrf.mxu0
  %v426 = vadd.f32 %v377, %v425
  %427 = vmatmul.bf16.gmra.mxu0 %v186
  %v428 = vpop.f32.mrf.mxu0
  %v429 = vadd.f32 %v380, %v428
  %v430 = vpop.f32.mrf.mxu0
  %v431 = vadd.f32 %v382, %v430
  %432 = vmatmul.bf16.gmra.mxu0 %v189
  %v433 = vpop.f32.mrf.mxu0
  %v434 = vadd.f32 %v385, %v433
  %v435 = vpop.f32.mrf.mxu0
  %v436 = vadd.f32 %v387, %v435
  %437 = vdwg.mxu0
  %438 = vmatpush.bf16.msra.mxu0 0
  %439 = vmatpush.bf16.msra.mxu0 0
  %440 = vmatpush.bf16.msra.mxu0 0
  %441 = vmatpush.bf16.msra.mxu0 0
  %442 = vmatpush.bf16.msra.mxu0 0
  %443 = vmatpush.bf16.msra.mxu0 0
  %444 = vmatpush.bf16.msra.mxu0 %v296
  %445 = vmatpush.bf16.msra.mxu0 %v295
  %446 = vmatmul.bf16.gmra.mxu0 %v317
  %v447 = vpop.f32.mrf.mxu0
  %v448 = vadd.f32 %v399, %v447
  %v449 = vpop.f32.mrf.mxu0
  %v450 = vadd.f32 %v401, %v449
  %451 = vmatmul.bf16.gmra.mxu0 %v320
  %v452 = vpop.f32.mrf.mxu0
  %v453 = vadd.f32 %v404, %v452
  %v454 = vpop.f32.mrf.mxu0
  %v455 = vadd.f32 %v406, %v454
  %456 = vmatmul.bf16.gmra.mxu0 %v323
  %v457 = vpop.f32.mrf.mxu0
  %v458 = vadd.f32 %v409, %v457
  %v459 = vpop.f32.mrf.mxu0
  %v460 = vadd.f32 %v411, %v459
  %461 = vmatmul.bf16.gmra.mxu0 %v326
  %v462 = vpop.f32.mrf.mxu0
  %v463 = vadd.f32 %v414, %v462
  %v464 = vpop.f32.mrf.mxu0
  %v465 = vadd.f32 %v416, %v464
  %466 = vmatmul.bf16.gmra.mxu0 %v329
  %v467 = vpop.f32.mrf.mxu0
  %v468 = vadd.f32 %v419, %v467
  %v469 = vpop.f32.mrf.mxu0
  %v470 = vadd.f32 %v421, %v469
  %471 = vmatmul.bf16.gmra.mxu0 %v332
  %v472 = vpop.f32.mrf.mxu0
  %v473 = vadd.f32 %v424, %v472
  %v474 = vpop.f32.mrf.mxu0
  %v475 = vadd.f32 %v426, %v474
  %476 = vmatmul.bf16.gmra.mxu0 %v335
  %v477 = vpop.f32.mrf.mxu0
  %v478 = vadd.f32 %v429, %v477
  %v479 = vpop.f32.mrf.mxu0
  %v480 = vadd.f32 %v431, %v479
  %481 = vmatmul.bf16.gmra.mxu0 %v338
  %v482 = vpop.f32.mrf.mxu0
  %v483 = vadd.f32 %v434, %v482
  %v484 = vpop.f32.mrf.mxu0
  %v485 = vadd.f32 %v436, %v484
  %486 = vdwg.mxu0
  %v487 = vmul.f32 %v448, 0.2
  %v488 = vmul.f32 %v450, 0.2
  %v489 = vmul.f32 %v453, 0.2
  %v490 = vmul.f32 %v455, 0.2
  %v491 = vmul.f32 %v458, 0.2
  %v492 = vmul.f32 %v460, 0.2
  %v493 = vmul.f32 %v463, 0.2
  %v494 = vmul.f32 %v465, 0.2
  %v495 = vmul.f32 %v468, 0.2
  %v496 = vmul.f32 %v470, 0.2
  %v497 = vmul.f32 %v473, 0.2
  %v498 = vmul.f32 %v475, 0.2
  %v499 = vmul.f32 %v478, 0.2
  %v500 = vmul.f32 %v480, 0.2
  %v501 = vmul.f32 %v483, 0.2
  %v502 = vmul.f32 %v485, 0.2
  %v503 = vmax.f32 %v448, %v487
  %v504 = vmax.f32 %v450, %v488
  %v505 = vmax.f32 %v453, %v489
  %v506 = vmax.f32 %v455, %v490
  %v507 = vmax.f32 %v458, %v491
  %v508 = vmax.f32 %v460, %v492
  %v509 = vmax.f32 %v463, %v493
  %v510 = vmax.f32 %v465, %v494
  %v511 = vmax.f32 %v468, %v495
  %v512 = vmax.f32 %v470, %v496
  %v513 = vmax.f32 %v473, %v497
  %v514 = vmax.f32 %v475, %v498
  %v515 = vmax.f32 %v478, %v499
  %v516 = vmax.f32 %v480, %v500
  %v517 = vmax.f32 %v483, %v501
  %v518 = vmax.f32 %v485, %v502
  %v519 = vpack.c.bf16 %v503, %v503
  %v520 = vpack.c.bf16 %v504, %v504
  %v521 = vpack.c.bf16 %v505, %v505
  %v522 = vpack.c.bf16 %v506, %v506
  %v523 = vpack.c.bf16 %v507, %v507
  %v524 = vpack.c.bf16 %v508, %v508
  %v525 = vpack.c.bf16 %v509, %v509
  %v526 = vpack.c.bf16 %v510, %v510
  %v527 = vpack.c.bf16 %v511, %v511
  %v528 = vpack.c.bf16 %v512, %v512
  %v529 = vpack.c.bf16 %v513, %v513
  %v530 = vpack.c.bf16 %v514, %v514
  %v531 = vpack.c.bf16 %v515, %v515
  %v532 = vpack.c.bf16 %v516, %v516
  %v533 = vpack.c.bf16 %v517, %v517
  %v534 = vpack.c.bf16 %v518, %v518
  %535 = vst [vmem:[%s3] sm:$0xf] %v519
  %536 = vst [vmem:[%s3 + $0x4] sm:$0xf] %v520
  %537 = vst [vmem:[%s3 + $0x8] sm:$0xf] %v521
  %538 = vst [vmem:[%s3 + $0xc] sm:$0xf] %v522
  %539 = vst [vmem:[%s3 + $0x10] sm:$0xf] %v523
  %540 = vst [vmem:[%s3 + $0x14] sm:$0xf] %v524
  %541 = vst [vmem:[%s3 + $0x18] sm:$0xf] %v525
  %542 = vst [vmem:[%s3 + $0x1c] sm:$0xf] %v526
  %543 = vst [vmem:[%s3 + $0x20] sm:$0xf] %v527
  %544 = vst [vmem:[%s3 + $0x24] sm:$0xf] %v528
  %545 = vst [vmem:[%s3 + $0x28] sm:$0xf] %v529
  %546 = vst [vmem:[%s3 + $0x2c] sm:$0xf] %v530
  %547 = vst [vmem:[%s3 + $0x30] sm:$0xf] %v531
  %548 = vst [vmem:[%s3 + $0x34] sm:$0xf] %v532
  %549 = vst [vmem:[%s3 + $0x38] sm:$0xf] %v533
  %550 = vst [vmem:[%s3 + $0x3c] sm:$0xf] %v534
  // Predicated region
  $region14: #{discriminator_forward.9} parent=0 // pred_check
    _
  $region15: #{discriminator_forward.9} parent=0 // pred_check_branch
    %552 = sbr.rel (0) target = $region17
  $region16: #{discriminator_forward.9} parent=0 // pred_region
    _
  $region17: #{discriminator_forward.9} parent=0 // pred_fallthru
    _
  // Predicated region
  $region18: #{discriminator_forward.9} parent=0 // pred_check
    _
  $region19: #{discriminator_forward.9} parent=0 // pred_check_branch
    %554 = sbr.rel (0) target = $region21
  $region20: #{discriminator_forward.9} parent=0 // pred_region
    _
  $region21: #{discriminator_forward.9} parent=0 // pred_fallthru
    _

// kernel: discriminator_forward.10
$region0: #{discriminator_forward.10}
  #allocation0 [shape = 'u32[]', space=smem, size = 0x4, offset = 0x4, fixed_abs, tag = 'smem constant byte address 0x4 - core index']
  #allocation1 [shape = 'u32[72,128]{1,0:T(1,128)}', space=vmem, size = 0x9000, scoped, tag = 'internal scratch']
  %s0 = inlined_call_operand.vmem [shape: bf16[128,576], index: 0, kind: input, shape index: {}]
  %s1 = inlined_call_operand.vmem [shape: bf16[576,128], index: 1, kind: input, shape index: {}]
  %s2 = inlined_call_operand.vmem [shape: f32[1,128], index: 2, kind: input, shape index: {}]
  %s3 = inlined_call_operand.vmem [shape: bf16[128,128], index: 3, kind: output, shape index: {}]
  %s4 = sld [smem:[#allocation0]]
  $region22: #{discriminator_forward.10} parent=0
    _
  %s6 = ssub.s32 1, %s4
  %s7 = scalar_select 0, %s6, %s4
  // Predicated region
  $region2: #{discriminator_forward.10} parent=0 // pred_check
    _
  $region3: #{discriminator_forward.10} parent=0 // pred_check_branch
    %9 = sbr.rel (0) target = $region5
  $region4: #{discriminator_forward.10} parent=0 // pred_region
    _
  $region5: #{discriminator_forward.10} parent=0 // pred_fallthru
    _
  // Predicated region
  $region6: #{discriminator_forward.10} parent=0 // pred_check
    _
  $region7: #{discriminator_forward.10} parent=0 // pred_check_branch
    %11 = sbr.rel (0) target = $region9
  $region8: #{discriminator_forward.10} parent=0 // pred_region
    _
  $region9: #{discriminator_forward.10} parent=0 // pred_fallthru
    _
  // Predicated region
  $region10: #{discriminator_forward.10} parent=0 // pred_check
    _
  $region11: #{discriminator_forward.10} parent=0 // pred_check_branch
    %13 = sbr.rel (0) target = $region13
  $region12: #{discriminator_forward.10} parent=0 // pred_region
    _
  $region13: #{discriminator_forward.10} parent=0 // pred_fallthru
    _
  %v15 = vld [vmem:[%s0] sm:$0xff]
  %v16 = vld [vmem:[%s0 + $0x8] sm:$0xff]
  %v17 = vld [vmem:[%s0 + $0x10] sm:$0xf]
  %v18 = vld [vmem:[%s0 + $0x14] sm:$0xff]
  %v19 = vld [vmem:[%s0 + $0x1c] sm:$0xff]
  %v20 = vld [vmem:[%s0 + $0x24] sm:$0xf]
  %v21 = vld [vmem:[%s0 + $0x28] sm:$0xff]
  %v22 = vld [vmem:[%s0 + $0x30] sm:$0xff]
  %v23 = vld [vmem:[%s0 + $0x38] sm:$0xf]
  %v24 = vld [vmem:[%s0 + $0x3c] sm:$0xff]
  %v25 = vld [vmem:[%s0 + $0x44] sm:$0xff]
  %v26 = vld [vmem:[%s0 + $0x4c] sm:$0xf]
  %v27 = vld [vmem:[%s0 + $0x50] sm:$0xff]
  %v28 = vld [vmem:[%s0 + $0x58] sm:$0xff]
  %v29 = vld [vmem:[%s0 + $0x60] sm:$0xf]
  %v30 = vld [vmem:[%s0 + $0x64] sm:$0xff]
  %v31 = vld [vmem:[%s0 + $0x6c] sm:$0xff]
  %v32 = vld [vmem:[%s0 + $0x74] sm:$0xf]
  %v33 = vld [vmem:[%s0 + $0x78] sm:$0xff]
  %v34 = vld [vmem:[%s0 + $0x80] sm:$0xff]
  %v35 = vld [vmem:[%s0 + $0x88] sm:$0xf]
  %v36 = vld [vmem:[%s0 + $0x8c] sm:$0xff]
  %v37 = vld [vmem:[%s0 + $0x94] sm:$0xff]
  %v38 = vld [vmem:[%s0 + $0x9c] sm:$0xf]
  %v39 = vld [vmem:[%s0 + $0xa0] sm:$0xff]
  %v40 = vld [vmem:[%s0 + $0xa8] sm:$0xff]
  %v41 = vld [vmem:[%s0 + $0xb0] sm:$0xf]
  %v42 = vld [vmem:[%s0 + $0xb4] sm:$0xff]
  %v43 = vld [vmem:[%s0 + $0xbc] sm:$0xff]
  %v44 = vld [vmem:[%s0 + $0xc4] sm:$0xf]
  %v45 = vld [vmem:[%s0 + $0xc8] sm:$0xff]
  %v46 = vld [vmem:[%s0 + $0xd0] sm:$0xff]
  %v47 = vld [vmem:[%s0 + $0xd8] sm:$0xf]
  %v48 = vld [vmem:[%s0 + $0xdc] sm:$0xff]
  %v49 = vld [vmem:[%s0 + $0xe4] sm:$0xff]
  %v50 = vld [vmem:[%s0 + $0xec] sm:$0xf]
  %v51 = vld [vmem:[%s0 + $0xf0] sm:$0xff]
  %v52 = vld [vmem:[%s0 + $0xf8] sm:$0xff]
  %v53 = vld [vmem:[%s0 + $0x100] sm:$0xf]
  %v54 = vld [vmem:[%s0 + $0x104] sm:$0xff]
  %v55 = vld [vmem:[%s0 + $0x10c] sm:$0xff]
  %v56 = vld [vmem:[%s0 + $0x114] sm:$0xf]
  %v57 = vld [vmem:[%s0 + $0x118] sm:$0xff]
  %v58 = vld [vmem:[%s0 + $0x120] sm:$0xff]
  %v59 = vld [vmem:[%s0 + $0x128] sm:$0xf]
  %v60 = vld [vmem:[%s0 + $0x12c] sm:$0xff]
  %v61 = vld [vmem:[%s0 + $0x134] sm:$0xff]
  %v62 = vld [vmem:[%s0 + $0x13c] sm:$0xf]
  %v63 = vld [vmem:[%s1] sm:$0xf]
  %v64 = vld [vmem:[%s1 + $0x4] sm:$0xf]
  %v65 = vld [vmem:[%s1 + $0x8] sm:$0xf]
  %v66 = vld [vmem:[%s1 + $0xc] sm:$0xf]
  %v67 = vld [vmem:[%s1 + $0x10] sm:$0xf]
  %v68 = vld [vmem:[%s1 + $0x14] sm:$0xf]
  %v69 = vld [vmem:[%s1 + $0x18] sm:$0xf]
  %v70 = vld [vmem:[%s1 + $0x1c] sm:$0xf]
  %v71 = vld [vmem:[%s1 + $0x20] sm:$0xf]
  %v72 = vld [vmem:[%s1 + $0x24] sm:$0xf]
  %v73 = vld [vmem:[%s1 + $0x28] sm:$0xf]
  %v74 = vld [vmem:[%s1 + $0x2c] sm:$0xf]
  %v75 = vld [vmem:[%s1 + $0x30] sm:$0xf]
  %v76 = vld [vmem:[%s1 + $0x34] sm:$0xf]
  %v77 = vld [vmem:[%s1 + $0x38] sm:$0xf]
  %v78 = vld [vmem:[%s1 + $0x3c] sm:$0xf]
  %v79 = vld [vmem:[%s1 + $0x40] sm:$0xf]
  %v80 = vld [vmem:[%s1 + $0x44] sm:$0xf]
  %v81 = vld [vmem:[%s1 + $0x48] sm:$0xf]
  %v82 = vld [vmem:[%s1 + $0x4c] sm:$0xf]
  %v83 = vld [vmem:[%s1 + $0x50] sm:$0xf]
  %v84 = vld [vmem:[%s1 + $0x54] sm:$0xf]
  %v85 = vld [vmem:[%s1 + $0x58] sm:$0xf]
  %v86 = vld [vmem:[%s1 + $0x5c] sm:$0xf]
  %v87 = vld [vmem:[%s1 + $0x60] sm:$0xf]
  %v88 = vld [vmem:[%s1 + $0x64] sm:$0xf]
  %v89 = vld [vmem:[%s1 + $0x68] sm:$0xf]
  %v90 = vld [vmem:[%s1 + $0x6c] sm:$0xf]
  %v91 = vld [vmem:[%s1 + $0x70] sm:$0xf]
  %v92 = vld [vmem:[%s1 + $0x74] sm:$0xf]
  %v93 = vld [vmem:[%s1 + $0x78] sm:$0xf]
  %v94 = vld [vmem:[%s1 + $0x7c] sm:$0xf]
  %v95 = vld [vmem:[%s1 + $0x80] sm:$0xf]
  %v96 = vld [vmem:[%s1 + $0x84] sm:$0xf]
  %v97 = vld [vmem:[%s1 + $0x88] sm:$0xf]
  %v98 = vld [vmem:[%s1 + $0x8c] sm:$0xf]
  %v99 = vld [vmem:[%s1 + $0x90] sm:$0xf]
  %v100 = vld [vmem:[%s1 + $0x94] sm:$0xf]
  %v101 = vld [vmem:[%s1 + $0x98] sm:$0xf]
  %v102 = vld [vmem:[%s1 + $0x9c] sm:$0xf]
  %v103 = vld [vmem:[%s1 + $0xa0] sm:$0xf]
  %v104 = vld [vmem:[%s1 + $0xa4] sm:$0xf]
  %v105 = vld [vmem:[%s1 + $0xa8] sm:$0xf]
  %v106 = vld [vmem:[%s1 + $0xac] sm:$0xf]
  %v107 = vld [vmem:[%s1 + $0xb0] sm:$0xf]
  %v108 = vld [vmem:[%s1 + $0xb4] sm:$0xf]
  %v109 = vld [vmem:[%s1 + $0xb8] sm:$0xf]
  %v110 = vld [vmem:[%s1 + $0xbc] sm:$0xf]
  %v111 = vld [vmem:[%s1 + $0xc0] sm:$0xf]
  %v112 = vld [vmem:[%s1 + $0xc4] sm:$0xf]
  %v113 = vld [vmem:[%s1 + $0xc8] sm:$0xf]
  %v114 = vld [vmem:[%s1 + $0xcc] sm:$0xf]
  %v115 = vld [vmem:[%s1 + $0xd0] sm:$0xf]
  %v116 = vld [vmem:[%s1 + $0xd4] sm:$0xf]
  %v117 = vld [vmem:[%s1 + $0xd8] sm:$0xf]
  %v118 = vld [vmem:[%s1 + $0xdc] sm:$0xf]
  %v119 = vld [vmem:[%s1 + $0xe0] sm:$0xf]
  %v120 = vld [vmem:[%s1 + $0xe4] sm:$0xf]
  %v121 = vld [vmem:[%s1 + $0xe8] sm:$0xf]
  %v122 = vld [vmem:[%s1 + $0xec] sm:$0xf]
  %v123 = vld [vmem:[%s1 + $0xf0] sm:$0xf]
  %v124 = vld [vmem:[%s1 + $0xf4] sm:$0xf]
  %v125 = vld [vmem:[%s1 + $0xf8] sm:$0xf]
  %v126 = vld [vmem:[%s1 + $0xfc] sm:$0xf]
  %v127 = vld [vmem:[%s1 + $0x100] sm:$0xf]
  %v128 = vld [vmem:[%s1 + $0x104] sm:$0xf]
  %v129 = vld [vmem:[%s1 + $0x108] sm:$0xf]
  %v130 = vld [vmem:[%s1 + $0x10c] sm:$0xf]
  %v131 = vld [vmem:[%s1 + $0x110] sm:$0xf]
  %v132 = vld [vmem:[%s1 + $0x114] sm:$0xf]
  %v133 = vld [vmem:[%s1 + $0x118] sm:$0xf]
  %v134 = vld [vmem:[%s1 + $0x11c] sm:$0xf]
  %v135 = vld [vmem:[%s2] sm:$0x1]
  %v137 = vperm.slane %v135, 0
  %v187 = vunpack.c.l.b16 %v15
  %v188 = vunpack.c.h.b16 %v15
  %v189 = vunpack.c.l.b16 %v16
  %v190 = vunpack.c.h.b16 %v16
  %v191 = vunpack.c.l.b16 %v17
  %v192 = vunpack.c.l.b16 %v18
  %v193 = vunpack.c.h.b16 %v18
  %v194 = vunpack.c.l.b16 %v19
  %v195 = vunpack.c.h.b16 %v19
  %v196 = vunpack.c.l.b16 %v20
  %v197 = vunpack.c.l.b16 %v21
  %v198 = vunpack.c.h.b16 %v21
  %v199 = vunpack.c.l.b16 %v22
  %v200 = vunpack.c.h.b16 %v22
  %v201 = vunpack.c.l.b16 %v23
  %v202 = vunpack.c.l.b16 %v24
  %v203 = vunpack.c.h.b16 %v24
  %v204 = vunpack.c.l.b16 %v25
  %v205 = vunpack.c.h.b16 %v25
  %v206 = vunpack.c.l.b16 %v26
  %v207 = vunpack.c.l.b16 %v27
  %v208 = vunpack.c.h.b16 %v27
  %v209 = vunpack.c.l.b16 %v28
  %v210 = vunpack.c.h.b16 %v28
  %v211 = vunpack.c.l.b16 %v29
  %v212 = vunpack.c.l.b16 %v30
  %v213 = vunpack.c.h.b16 %v30
  %v214 = vunpack.c.l.b16 %v31
  %v215 = vunpack.c.h.b16 %v31
  %v216 = vunpack.c.l.b16 %v32
  %v217 = vunpack.c.l.b16 %v33
  %v218 = vunpack.c.h.b16 %v33
  %v219 = vunpack.c.l.b16 %v34
  %v220 = vunpack.c.h.b16 %v34
  %v221 = vunpack.c.l.b16 %v35
  %v222 = vunpack.c.l.b16 %v36
  %v223 = vunpack.c.h.b16 %v36
  %v224 = vunpack.c.l.b16 %v37
  %v225 = vunpack.c.h.b16 %v37
  %v226 = vunpack.c.l.b16 %v38
  %v227 = vunpack.c.l.b16 %v39
  %v228 = vunpack.c.h.b16 %v39
  %v229 = vunpack.c.l.b16 %v40
  %v230 = vunpack.c.h.b16 %v40
  %v231 = vunpack.c.l.b16 %v41
  %v232 = vunpack.c.l.b16 %v42
  %v233 = vunpack.c.h.b16 %v42
  %v234 = vunpack.c.l.b16 %v43
  %v235 = vunpack.c.h.b16 %v43
  %v236 = vunpack.c.l.b16 %v44
  %v237 = vunpack.c.l.b16 %v45
  %v238 = vunpack.c.h.b16 %v45
  %v239 = vunpack.c.l.b16 %v46
  %v240 = vunpack.c.h.b16 %v46
  %v241 = vunpack.c.l.b16 %v47
  %v242 = vunpack.c.l.b16 %v48
  %v243 = vunpack.c.h.b16 %v48
  %v244 = vunpack.c.l.b16 %v49
  %v245 = vunpack.c.h.b16 %v49
  %v246 = vunpack.c.l.b16 %v50
  %v247 = vunpack.c.l.b16 %v51
  %v248 = vunpack.c.h.b16 %v51
  %v249 = vunpack.c.l.b16 %v52
  %v250 = vunpack.c.h.b16 %v52
  %v251 = vunpack.c.l.b16 %v53
  %v252 = vunpack.c.l.b16 %v54
  %v253 = vunpack.c.h.b16 %v54
  %v254 = vunpack.c.l.b16 %v55
  %v255 = vunpack.c.h.b16 %v55
  %v256 = vunpack.c.l.b16 %v56
  %v257 = vunpack.c.l.b16 %v57
  %v258 = vunpack.c.h.b16 %v57
  %v259 = vunpack.c.l.b16 %v58
  %v260 = vunpack.c.h.b16 %v58
  %v261 = vunpack.c.l.b16 %v59
  %v262 = vunpack.c.l.b16 %v60
  %v263 = vunpack.c.h.b16 %v60
  %v264 = vunpack.c.l.b16 %v61
  %v265 = vunpack.c.h.b16 %v61
  %v266 = vunpack.c.l.b16 %v62
  %v267 = vpack.c.b16 %v192, %v187
  %v268 = vpack.c.b16 %v193, %v188
  %v269 = vpack.c.b16 %v194, %v189
  %v270 = vpack.c.b16 %v195, %v190
  %v271 = vpack.c.b16 %v196, %v191
  %v272 = vpack.c.b16 %v202, %v197
  %v273 = vpack.c.b16 %v203, %v198
  %v274 = vpack.c.b16 %v204, %v199
  %v275 = vpack.c.b16 %v205, %v200
  %v276 = vpack.c.b16 %v206, %v201
  %v277 = vpack.c.b16 %v212, %v207
  %v278 = vpack.c.b16 %v213, %v208
  %v279 = vpack.c.b16 %v214, %v209
  %v280 = vpack.c.b16 %v215, %v210
  %v281 = vpack.c.b16 %v216, %v211
  %v282 = vpack.c.b16 %v222, %v217
  %v283 = vpack.c.b16 %v223, %v218
  %v284 = vpack.c.b16 %v224, %v219
  %v285 = vpack.c.b16 %v225, %v220
  %v286 = vpack.c.b16 %v226, %v221
  %v287 = vpack.c.b16 %v232, %v227
  %v288 = vpack.c.b16 %v233, %v228
  %v289 = vpack.c.b16 %v234, %v229
  %v290 = vpack.c.b16 %v235, %v230
  %v291 = vpack.c.b16 %v236, %v231
  %v292 = vpack.c.b16 %v242, %v237
  %v293 = vpack.c.b16 %v243, %v238
  %v294 = vpack.c.b16 %v244, %v239
  %v295 = vpack.c.b16 %v245, %v240
  %v296 = vpack.c.b16 %v246, %v241
  %v297 = vpack.c.b16 %v252, %v247
  %v298 = vpack.c.b16 %v253, %v248
  %v299 = vpack.c.b16 %v254, %v249
  %v300 = vpack.c.b16 %v255, %v250
  %v301 = vpack.c.b16 %v256, %v251
  %v302 = vpack.c.b16 %v262, %v257
  %v303 = vpack.c.b16 %v263, %v258
  %v304 = vpack.c.b16 %v264, %v259
  %v305 = vpack.c.b16 %v265, %v260
  %v306 = vpack.c.b16 %v266, %v261
  %v411 = vunpack.c.l.b16 %v63
  %v412 = vunpack.c.l.b16 %v64
  %v413 = vunpack.c.l.b16 %v65
  %v414 = vunpack.c.l.b16 %v66
  %v415 = vunpack.c.l.b16 %v67
  %v416 = vunpack.c.l.b16 %v68
  %v417 = vunpack.c.l.b16 %v69
  %v418 = vunpack.c.l.b16 %v70
  %v419 = vunpack.c.l.b16 %v71
  %v420 = vunpack.c.l.b16 %v72
  %v421 = vunpack.c.l.b16 %v73
  %v422 = vunpack.c.l.b16 %v74
  %v423 = vunpack.c.l.b16 %v75
  %v424 = vunpack.c.l.b16 %v76
  %v425 = vunpack.c.l.b16 %v77
  %v426 = vunpack.c.l.b16 %v78
  %v427 = vunpack.c.l.b16 %v79
  %v428 = vunpack.c.l.b16 %v80
  %v429 = vunpack.c.l.b16 %v81
  %v430 = vunpack.c.l.b16 %v82
  %v431 = vunpack.c.l.b16 %v83
  %v432 = vunpack.c.l.b16 %v84
  %v433 = vunpack.c.l.b16 %v85
  %v434 = vunpack.c.l.b16 %v86
  %v435 = vunpack.c.l.b16 %v87
  %v436 = vunpack.c.l.b16 %v88
  %v437 = vunpack.c.l.b16 %v89
  %v438 = vunpack.c.l.b16 %v90
  %v439 = vunpack.c.l.b16 %v91
  %v440 = vunpack.c.l.b16 %v92
  %v441 = vunpack.c.l.b16 %v93
  %v442 = vunpack.c.l.b16 %v94
  %v443 = vunpack.c.l.b16 %v95
  %v444 = vunpack.c.l.b16 %v96
  %v445 = vunpack.c.l.b16 %v97
  %v446 = vunpack.c.l.b16 %v98
  %v447 = vunpack.c.l.b16 %v99
  %v448 = vunpack.c.l.b16 %v100
  %v449 = vunpack.c.l.b16 %v101
  %v450 = vunpack.c.l.b16 %v102
  %v451 = vunpack.c.l.b16 %v103
  %v452 = vunpack.c.l.b16 %v104
  %v453 = vunpack.c.l.b16 %v105
  %v454 = vunpack.c.l.b16 %v106
  %v455 = vunpack.c.l.b16 %v107
  %v456 = vunpack.c.l.b16 %v108
  %v457 = vunpack.c.l.b16 %v109
  %v458 = vunpack.c.l.b16 %v110
  %v459 = vunpack.c.l.b16 %v111
  %v460 = vunpack.c.l.b16 %v112
  %v461 = vunpack.c.l.b16 %v113
  %v462 = vunpack.c.l.b16 %v114
  %v463 = vunpack.c.l.b16 %v115
  %v464 = vunpack.c.l.b16 %v116
  %v465 = vunpack.c.l.b16 %v117
  %v466 = vunpack.c.l.b16 %v118
  %v467 = vunpack.c.l.b16 %v119
  %v468 = vunpack.c.l.b16 %v120
  %v469 = vunpack.c.l.b16 %v121
  %v470 = vunpack.c.l.b16 %v122
  %v471 = vunpack.c.l.b16 %v123
  %v472 = vunpack.c.l.b16 %v124
  %v473 = vunpack.c.l.b16 %v125
  %v474 = vunpack.c.l.b16 %v126
  %v475 = vunpack.c.l.b16 %v127
  %v476 = vunpack.c.l.b16 %v128
  %v477 = vunpack.c.l.b16 %v129
  %v478 = vunpack.c.l.b16 %v130
  %v479 = vunpack.c.l.b16 %v131
  %v480 = vunpack.c.l.b16 %v132
  %v481 = vunpack.c.l.b16 %v133
  %v482 = vunpack.c.l.b16 %v134
  %v483 = vpack.c.b16 %v412, %v411
  %v484 = vpack.c.b16 %v414, %v413
  %v485 = vpack.c.b16 %v416, %v415
  %v486 = vpack.c.b16 %v418, %v417
  %v487 = vpack.c.b16 %v420, %v419
  %v488 = vpack.c.b16 %v422, %v421
  %v489 = vpack.c.b16 %v424, %v423
  %v490 = vpack.c.b16 %v426, %v425
  %v491 = vpack.c.b16 %v428, %v427
  %v492 = vpack.c.b16 %v430, %v429
  %v493 = vpack.c.b16 %v432, %v431
  %v494 = vpack.c.b16 %v434, %v433
  %v495 = vpack.c.b16 %v436, %v435
  %v496 = vpack.c.b16 %v438, %v437
  %v497 = vpack.c.b16 %v440, %v439
  %v498 = vpack.c.b16 %v442, %v441
  %v499 = vpack.c.b16 %v444, %v443
  %v500 = vpack.c.b16 %v446, %v445
  %v501 = vpack.c.b16 %v448, %v447
  %v502 = vpack.c.b16 %v450, %v449
  %v503 = vpack.c.b16 %v452, %v451
  %v504 = vpack.c.b16 %v454, %v453
  %v505 = vpack.c.b16 %v456, %v455
  %v506 = vpack.c.b16 %v458, %v457
  %v507 = vpack.c.b16 %v460, %v459
  %v508 = vpack.c.b16 %v462, %v461
  %v509 = vpack.c.b16 %v464, %v463
  %v510 = vpack.c.b16 %v466, %v465
  %v511 = vpack.c.b16 %v468, %v467
  %v512 = vpack.c.b16 %v470, %v469
  %v513 = vpack.c.b16 %v472, %v471
  %v514 = vpack.c.b16 %v474, %v473
  %v515 = vpack.c.b16 %v476, %v475
  %v516 = vpack.c.b16 %v478, %v477
  %v517 = vpack.c.b16 %v480, %v479
  %v518 = vpack.c.b16 %v482, %v481
  %vm555 = vcmask 523264
  %v557 = vsel %vm555, %v271, 0
  %v560 = vsel %vm555, %v276, 0
  %v563 = vsel %vm555, %v281, 0
  %v566 = vsel %vm555, %v286, 0
  %v569 = vsel %vm555, %v291, 0
  %v572 = vsel %vm555, %v296, 0
  %v575 = vsel %vm555, %v301, 0
  %v578 = vsel %vm555, %v306, 0
  %580 = vmatpush.bf16.msra.mxu0 %v490
  %581 = vmatpush.bf16.msra.mxu0 %v489
  %582 = vmatpush.bf16.msra.mxu0 %v488
  %583 = vmatpush.bf16.msra.mxu0 %v487
  %584 = vmatpush.bf16.msra.mxu0 %v486
  %585 = vmatpush.bf16.msra.mxu0 %v485
  %586 = vmatpush.bf16.msra.mxu0 %v484
  %587 = vmatpush.bf16.msra.mxu0 %v483
  %588 = vmatmul.bf16.gmra.mxu0 %v267
  %v589 = vpop.f32.mrf.mxu0
  %v590 = vadd.f32 %v137, %v589
  %v591 = vpop.f32.mrf.mxu0
  %v592 = vadd.f32 %v137, %v591
  %593 = vmatmul.bf16.gmra.mxu0 %v272
  %v594 = vpop.f32.mrf.mxu0
  %v595 = vadd.f32 %v137, %v594
  %v596 = vpop.f32.mrf.mxu0
  %v597 = vadd.f32 %v137, %v596
  %598 = vmatmul.bf16.gmra.mxu0 %v277
  %v599 = vpop.f32.mrf.mxu0
  %v600 = vadd.f32 %v137, %v599
  %v601 = vpop.f32.mrf.mxu0
  %v602 = vadd.f32 %v137, %v601
  %603 = vmatmul.bf16.gmra.mxu0 %v282
  %v604 = vpop.f32.mrf.mxu0
  %v605 = vadd.f32 %v137, %v604
  %v606 = vpop.f32.mrf.mxu0
  %v607 = vadd.f32 %v137, %v606
  %608 = vmatmul.bf16.gmra.mxu0 %v287
  %v609 = vpop.f32.mrf.mxu0
  %v610 = vadd.f32 %v137, %v609
  %v611 = vpop.f32.mrf.mxu0
  %v612 = vadd.f32 %v137, %v611
  %613 = vmatmul.bf16.gmra.mxu0 %v292
  %v614 = vpop.f32.mrf.mxu0
  %v615 = vadd.f32 %v137, %v614
  %v616 = vpop.f32.mrf.mxu0
  %v617 = vadd.f32 %v137, %v616
  %618 = vmatmul.bf16.gmra.mxu0 %v297
  %v619 = vpop.f32.mrf.mxu0
  %v620 = vadd.f32 %v137, %v619
  %v621 = vpop.f32.mrf.mxu0
  %v622 = vadd.f32 %v137, %v621
  %623 = vmatmul.bf16.gmra.mxu0 %v302
  %v624 = vpop.f32.mrf.mxu0
  %v625 = vadd.f32 %v137, %v624
  %v626 = vpop.f32.mrf.mxu0
  %v627 = vadd.f32 %v137, %v626
  %628 = vdwg.mxu0
  %629 = vmatpush.bf16.msra.mxu0 %v498
  %630 = vmatpush.bf16.msra.mxu0 %v497
  %631 = vmatpush.bf16.msra.mxu0 %v496
  %632 = vmatpush.bf16.msra.mxu0 %v495
  %633 = vmatpush.bf16.msra.mxu0 %v494
  %634 = vmatpush.bf16.msra.mxu0 %v493
  %635 = vmatpush.bf16.msra.mxu0 %v492
  %636 = vmatpush.bf16.msra.mxu0 %v491
  %637 = vmatmul.bf16.gmra.mxu0 %v268
  %v638 = vpop.f32.mrf.mxu0
  %v639 = vadd.f32 %v590, %v638
  %v640 = vpop.f32.mrf.mxu0
  %v641 = vadd.f32 %v592, %v640
  %642 = vmatmul.bf16.gmra.mxu0 %v273
  %v643 = vpop.f32.mrf.mxu0
  %v644 = vadd.f32 %v595, %v643
  %v645 = vpop.f32.mrf.mxu0
  %v646 = vadd.f32 %v597, %v645
  %647 = vmatmul.bf16.gmra.mxu0 %v278
  %v648 = vpop.f32.mrf.mxu0
  %v649 = vadd.f32 %v600, %v648
  %v650 = vpop.f32.mrf.mxu0
  %v651 = vadd.f32 %v602, %v650
  %652 = vmatmul.bf16.gmra.mxu0 %v283
  %v653 = vpop.f32.mrf.mxu0
  %v654 = vadd.f32 %v605, %v653
  %v655 = vpop.f32.mrf.mxu0
  %v656 = vadd.f32 %v607, %v655
  %657 = vmatmul.bf16.gmra.mxu0 %v288
  %v658 = vpop.f32.mrf.mxu0
  %v659 = vadd.f32 %v610, %v658
  %v660 = vpop.f32.mrf.mxu0
  %v661 = vadd.f32 %v612, %v660
  %662 = vmatmul.bf16.gmra.mxu0 %v293
  %v663 = vpop.f32.mrf.mxu0
  %v664 = vadd.f32 %v615, %v663
  %v665 = vpop.f32.mrf.mxu0
  %v666 = vadd.f32 %v617, %v665
  %667 = vmatmul.bf16.gmra.mxu0 %v298
  %v668 = vpop.f32.mrf.mxu0
  %v669 = vadd.f32 %v620, %v668
  %v670 = vpop.f32.mrf.mxu0
  %v671 = vadd.f32 %v622, %v670
  %672 = vmatmul.bf16.gmra.mxu0 %v303
  %v673 = vpop.f32.mrf.mxu0
  %v674 = vadd.f32 %v625, %v673
  %v675 = vpop.f32.mrf.mxu0
  %v676 = vadd.f32 %v627, %v675
  %677 = vdwg.mxu0
  %678 = vmatpush.bf16.msra.mxu0 %v506
  %679 = vmatpush.bf16.msra.mxu0 %v505
  %680 = vmatpush.bf16.msra.mxu0 %v504
  %681 = vmatpush.bf16.msra.mxu0 %v503
  %682 = vmatpush.bf16.msra.mxu0 %v502
  %683 = vmatpush.bf16.msra.mxu0 %v501
  %684 = vmatpush.bf16.msra.mxu0 %v500
  %685 = vmatpush.bf16.msra.mxu0 %v499
  %686 = vmatmul.bf16.gmra.mxu0 %v269
  %v687 = vpop.f32.mrf.mxu0
  %v688 = vadd.f32 %v639, %v687
  %v689 = vpop.f32.mrf.mxu0
  %v690 = vadd.f32 %v641, %v689
  %691 = vmatmul.bf16.gmra.mxu0 %v274
  %v692 = vpop.f32.mrf.mxu0
  %v693 = vadd.f32 %v644, %v692
  %v694 = vpop.f32.mrf.mxu0
  %v695 = vadd.f32 %v646, %v694
  %696 = vmatmul.bf16.gmra.mxu0 %v279
  %v697 = vpop.f32.mrf.mxu0
  %v698 = vadd.f32 %v649, %v697
  %v699 = vpop.f32.mrf.mxu0
  %v700 = vadd.f32 %v651, %v699
  %701 = vmatmul.bf16.gmra.mxu0 %v284
  %v702 = vpop.f32.mrf.mxu0
  %v703 = vadd.f32 %v654, %v702
  %v704 = vpop.f32.mrf.mxu0
  %v705 = vadd.f32 %v656, %v704
  %706 = vmatmul.bf16.gmra.mxu0 %v289
  %v707 = vpop.f32.mrf.mxu0
  %v708 = vadd.f32 %v659, %v707
  %v709 = vpop.f32.mrf.mxu0
  %v710 = vadd.f32 %v661, %v709
  %711 = vmatmul.bf16.gmra.mxu0 %v294
  %v712 = vpop.f32.mrf.mxu0
  %v713 = vadd.f32 %v664, %v712
  %v714 = vpop.f32.mrf.mxu0
  %v715 = vadd.f32 %v666, %v714
  %716 = vmatmul.bf16.gmra.mxu0 %v299
  %v717 = vpop.f32.mrf.mxu0
  %v718 = vadd.f32 %v669, %v717
  %v719 = vpop.f32.mrf.mxu0
  %v720 = vadd.f32 %v671, %v719
  %721 = vmatmul.bf16.gmra.mxu0 %v304
  %v722 = vpop.f32.mrf.mxu0
  %v723 = vadd.f32 %v674, %v722
  %v724 = vpop.f32.mrf.mxu0
  %v725 = vadd.f32 %v676, %v724
  %726 = vdwg.mxu0
  %727 = vmatpush.bf16.msra.mxu0 %v514
  %728 = vmatpush.bf16.msra.mxu0 %v513
  %729 = vmatpush.bf16.msra.mxu0 %v512
  %730 = vmatpush.bf16.msra.mxu0 %v511
  %731 = vmatpush.bf16.msra.mxu0 %v510
  %732 = vmatpush.bf16.msra.mxu0 %v509
  %733 = vmatpush.bf16.msra.mxu0 %v508
  %734 = vmatpush.bf16.msra.mxu0 %v507
  %735 = vmatmul.bf16.gmra.mxu0 %v270
  %v736 = vpop.f32.mrf.mxu0
  %v737 = vadd.f32 %v688, %v736
  %v738 = vpop.f32.mrf.mxu0
  %v739 = vadd.f32 %v690, %v738
  %740 = vmatmul.bf16.gmra.mxu0 %v275
  %v741 = vpop.f32.mrf.mxu0
  %v742 = vadd.f32 %v693, %v741
  %v743 = vpop.f32.mrf.mxu0
  %v744 = vadd.f32 %v695, %v743
  %745 = vmatmul.bf16.gmra.mxu0 %v280
  %v746 = vpop.f32.mrf.mxu0
  %v747 = vadd.f32 %v698, %v746
  %v748 = vpop.f32.mrf.mxu0
  %v749 = vadd.f32 %v700, %v748
  %750 = vmatmul.bf16.gmra.mxu0 %v285
  %v751 = vpop.f32.mrf.mxu0
  %v752 = vadd.f32 %v703, %v751
  %v753 = vpop.f32.mrf.mxu0
  %v754 = vadd.f32 %v705, %v753
  %755 = vmatmul.bf16.gmra.mxu0 %v290
  %v756 = vpop.f32.mrf.mxu0
  %v757 = vadd.f32 %v708, %v756
  %v758 = vpop.f32.mrf.mxu0
  %v759 = vadd.f32 %v710, %v758
  %760 = vmatmul.bf16.gmra.mxu0 %v295
  %v761 = vpop.f32.mrf.mxu0
  %v762 = vadd.f32 %v713, %v761
  %v763 = vpop.f32.mrf.mxu0
  %v764 = vadd.f32 %v715, %v763
  %765 = vmatmul.bf16.gmra.mxu0 %v300
  %v766 = vpop.f32.mrf.mxu0
  %v767 = vadd.f32 %v718, %v766
  %v768 = vpop.f32.mrf.mxu0
  %v769 = vadd.f32 %v720, %v768
  %770 = vmatmul.bf16.gmra.mxu0 %v305
  %v771 = vpop.f32.mrf.mxu0
  %v772 = vadd.f32 %v723, %v771
  %v773 = vpop.f32.mrf.mxu0
  %v774 = vadd.f32 %v725, %v773
  %775 = vdwg.mxu0
  %776 = vmatpush.bf16.msra.mxu0 0
  %777 = vmatpush.bf16.msra.mxu0 0
  %778 = vmatpush.bf16.msra.mxu0 0
  %779 = vmatpush.bf16.msra.mxu0 0
  %780 = vmatpush.bf16.msra.mxu0 %v518
  %781 = vmatpush.bf16.msra.mxu0 %v517
  %782 = vmatpush.bf16.msra.mxu0 %v516
  %783 = vmatpush.bf16.msra.mxu0 %v515
  %784 = vmatmul.bf16.gmra.mxu0 %v557
  %v785 = vpop.f32.mrf.mxu0
  %v786 = vadd.f32 %v737, %v785
  %v787 = vpop.f32.mrf.mxu0
  %v788 = vadd.f32 %v739, %v787
  %789 = vmatmul.bf16.gmra.mxu0 %v560
  %v790 = vpop.f32.mrf.mxu0
  %v791 = vadd.f32 %v742, %v790
  %v792 = vpop.f32.mrf.mxu0
  %v793 = vadd.f32 %v744, %v792
  %794 = vmatmul.bf16.gmra.mxu0 %v563
  %v795 = vpop.f32.mrf.mxu0
  %v796 = vadd.f32 %v747, %v795
  %v797 = vpop.f32.mrf.mxu0
  %v798 = vadd.f32 %v749, %v797
  %799 = vmatmul.bf16.gmra.mxu0 %v566
  %v800 = vpop.f32.mrf.mxu0
  %v801 = vadd.f32 %v752, %v800
  %v802 = vpop.f32.mrf.mxu0
  %v803 = vadd.f32 %v754, %v802
  %804 = vmatmul.bf16.gmra.mxu0 %v569
  %v805 = vpop.f32.mrf.mxu0
  %v806 = vadd.f32 %v757, %v805
  %v807 = vpop.f32.mrf.mxu0
  %v808 = vadd.f32 %v759, %v807
  %809 = vmatmul.bf16.gmra.mxu0 %v572
  %v810 = vpop.f32.mrf.mxu0
  %v811 = vadd.f32 %v762, %v810
  %v812 = vpop.f32.mrf.mxu0
  %v813 = vadd.f32 %v764, %v812
  %814 = vmatmul.bf16.gmra.mxu0 %v575
  %v815 = vpop.f32.mrf.mxu0
  %v816 = vadd.f32 %v767, %v815
  %v817 = vpop.f32.mrf.mxu0
  %v818 = vadd.f32 %v769, %v817
  %819 = vmatmul.bf16.gmra.mxu0 %v578
  %v820 = vpop.f32.mrf.mxu0
  %v821 = vadd.f32 %v772, %v820
  %v822 = vpop.f32.mrf.mxu0
  %v823 = vadd.f32 %v774, %v822
  %824 = vdwg.mxu0
  %v825 = vmul.f32 %v786, 0.2
  %v826 = vmul.f32 %v788, 0.2
  %v827 = vmul.f32 %v791, 0.2
  %v828 = vmul.f32 %v793, 0.2
  %v829 = vmul.f32 %v796, 0.2
  %v830 = vmul.f32 %v798, 0.2
  %v831 = vmul.f32 %v801, 0.2
  %v832 = vmul.f32 %v803, 0.2
  %v833 = vmul.f32 %v806, 0.2
  %v834 = vmul.f32 %v808, 0.2
  %v835 = vmul.f32 %v811, 0.2
  %v836 = vmul.f32 %v813, 0.2
  %v837 = vmul.f32 %v816, 0.2
  %v838 = vmul.f32 %v818, 0.2
  %v839 = vmul.f32 %v821, 0.2
  %v840 = vmul.f32 %v823, 0.2
  %v841 = vmax.f32 %v786, %v825
  %v842 = vmax.f32 %v788, %v826
  %v843 = vmax.f32 %v791, %v827
  %v844 = vmax.f32 %v793, %v828
  %v845 = vmax.f32 %v796, %v829
  %v846 = vmax.f32 %v798, %v830
  %v847 = vmax.f32 %v801, %v831
  %v848 = vmax.f32 %v803, %v832
  %v849 = vmax.f32 %v806, %v833
  %v850 = vmax.f32 %v808, %v834
  %v851 = vmax.f32 %v811, %v835
  %v852 = vmax.f32 %v813, %v836
  %v853 = vmax.f32 %v816, %v837
  %v854 = vmax.f32 %v818, %v838
  %v855 = vmax.f32 %v821, %v839
  %v856 = vmax.f32 %v823, %v840
  %v857 = vpack.c.bf16 %v841, %v841
  %v858 = vpack.c.bf16 %v842, %v842
  %v859 = vpack.c.bf16 %v843, %v843
  %v860 = vpack.c.bf16 %v844, %v844
  %v861 = vpack.c.bf16 %v845, %v845
  %v862 = vpack.c.bf16 %v846, %v846
  %v863 = vpack.c.bf16 %v847, %v847
  %v864 = vpack.c.bf16 %v848, %v848
  %v865 = vpack.c.bf16 %v849, %v849
  %v866 = vpack.c.bf16 %v850, %v850
  %v867 = vpack.c.bf16 %v851, %v851
  %v868 = vpack.c.bf16 %v852, %v852
  %v869 = vpack.c.bf16 %v853, %v853
  %v870 = vpack.c.bf16 %v854, %v854
  %v871 = vpack.c.bf16 %v855, %v855
  %v872 = vpack.c.bf16 %v856, %v856
  %873 = vst [vmem:[%s3] sm:$0xf] %v857
  %874 = vst [vmem:[%s3 + $0x4] sm:$0xf] %v858
  %875 = vst [vmem:[%s3 + $0x8] sm:$0xf] %v859
  %876 = vst [vmem:[%s3 + $0xc] sm:$0xf] %v860
  %877 = vst [vmem:[%s3 + $0x10] sm:$0xf] %v861
  %878 = vst [vmem:[%s3 + $0x14] sm:$0xf] %v862
  %879 = vst [vmem:[%s3 + $0x18] sm:$0xf] %v863
  %880 = vst [vmem:[%s3 + $0x1c] sm:$0xf] %v864
  %881 = vst [vmem:[%s3 + $0x20] sm:$0xf] %v865
  %882 = vst [vmem:[%s3 + $0x24] sm:$0xf] %v866
  %883 = vst [vmem:[%s3 + $0x28] sm:$0xf] %v867
  %884 = vst [vmem:[%s3 + $0x2c] sm:$0xf] %v868
  %885 = vst [vmem:[%s3 + $0x30] sm:$0xf] %v869
  %886 = vst [vmem:[%s3 + $0x34] sm:$0xf] %v870
  %887 = vst [vmem:[%s3 + $0x38] sm:$0xf] %v871
  %888 = vst [vmem:[%s3 + $0x3c] sm:$0xf] %v872
  // Predicated region
  $region14: #{discriminator_forward.10} parent=0 // pred_check
    _
  $region15: #{discriminator_forward.10} parent=0 // pred_check_branch
    %890 = sbr.rel (0) target = $region17
  $region16: #{discriminator_forward.10} parent=0 // pred_region
    _
  $region17: #{discriminator_forward.10} parent=0 // pred_fallthru
    _
  // Predicated region
  $region18: #{discriminator_forward.10} parent=0 // pred_check
    _
  $region19: #{discriminator_forward.10} parent=0 // pred_check_branch
    %892 = sbr.rel (0) target = $region21
  $region20: #{discriminator_forward.10} parent=0 // pred_region
    _
  $region21: #{discriminator_forward.10} parent=0 // pred_fallthru
    _

// kernel: discriminator_forward.11
$region0: #{discriminator_forward.11}
  #allocation0 [shape = 'u32[]', space=smem, size = 0x4, offset = 0x4, fixed_abs, tag = 'smem constant byte address 0x4 - core index']
  #allocation1 [shape = 'u32[72,128]{1,0:T(1,128)}', space=vmem, size = 0x9000, scoped, tag = 'internal scratch']
  %s0 = inlined_call_operand.vmem [shape: bf16[32,1152], index: 0, kind: input, shape index: {}]
  %s1 = inlined_call_operand.vmem [shape: bf16[1152,256], index: 1, kind: input, shape index: {}]
  %s2 = inlined_call_operand.vmem [shape: f32[1,256], index: 2, kind: input, shape index: {}]
  %s3 = inlined_call_operand.vmem [shape: bf16[32,256], index: 3, kind: output, shape index: {}]
  %s4 = sld [smem:[#allocation0]]
  $region22: #{discriminator_forward.11} parent=0
    _
  %s6 = ssub.s32 1, %s4
  %s7 = scalar_select 0, %s6, %s4
  // Predicated region
  $region2: #{discriminator_forward.11} parent=0 // pred_check
    _
  $region3: #{discriminator_forward.11} parent=0 // pred_check_branch
    %9 = sbr.rel (0) target = $region5
  $region4: #{discriminator_forward.11} parent=0 // pred_region
    _
  $region5: #{discriminator_forward.11} parent=0 // pred_fallthru
    _
  // Predicated region
  $region6: #{discriminator_forward.11} parent=0 // pred_check
    _
  $region7: #{discriminator_forward.11} parent=0 // pred_check_branch
    %11 = sbr.rel (0) target = $region9
  $region8: #{discriminator_forward.11} parent=0 // pred_region
    _
  $region9: #{discriminator_forward.11} parent=0 // pred_fallthru
    _
  // Predicated region
  $region10: #{discriminator_forward.11} parent=0 // pred_check
    _
  $region11: #{discriminator_forward.11} parent=0 // pred_check_branch
    %13 = sbr.rel (0) target = $region13
  $region12: #{discriminator_forward.11} parent=0 // pred_region
    _
  $region13: #{discriminator_forward.11} parent=0 // pred_fallthru
    _
  %v14 = vld [vmem:[%s0] sm:$0xff]
  %v15 = vld [vmem:[%s0 + $0x8] sm:$0xff]
  %v16 = vld [vmem:[%s0 + $0x10] sm:$0xff]
  %v17 = vld [vmem:[%s0 + $0x18] sm:$0xff]
  %v18 = vld [vmem:[%s0 + $0x20] sm:$0xf]
  %v19 = vld [vmem:[%s0 + $0x24] sm:$0xff]
  %v20 = vld [vmem:[%s0 + $0x2c] sm:$0xff]
  %v21 = vld [vmem:[%s0 + $0x34] sm:$0xff]
  %v22 = vld [vmem:[%s0 + $0x3c] sm:$0xff]
  %v23 = vld [vmem:[%s0 + $0x44] sm:$0xf]
  %v24 = vld [vmem:[%s0 + $0x48] sm:$0xff]
  %v25 = vld [vmem:[%s0 + $0x50] sm:$0xff]
  %v26 = vld [vmem:[%s0 + $0x58] sm:$0xff]
  %v27 = vld [vmem:[%s0 + $0x60] sm:$0xff]
  %v28 = vld [vmem:[%s0 + $0x68] sm:$0xf]
  %v29 = vld [vmem:[%s0 + $0x6c] sm:$0xff]
  %v30 = vld [vmem:[%s0 + $0x74] sm:$0xff]
  %v31 = vld [vmem:[%s0 + $0x7c] sm:$0xff]
  %v32 = vld [vmem:[%s0 + $0x84] sm:$0xff]
  %v33 = vld [vmem:[%s0 + $0x8c] sm:$0xf]
  %v34 = vld [vmem:[%s1] sm:$0xff]
  %v35 = vld [vmem:[%s1 + $0x8] sm:$0xff]
  %v36 = vld [vmem:[%s1 + $0x10] sm:$0xff]
  %v37 = vld [vmem:[%s1 + $0x18] sm:$0xff]
  %v38 = vld [vmem:[%s1 + $0x20] sm:$0xff]
  %v39 = vld [vmem:[%s1 + $0x28] sm:$0xff]
  %v40 = vld [vmem:[%s1 + $0x30] sm:$0xff]
  %v41 = vld [vmem:[%s1 + $0x38] sm:$0xff]
  %v42 = vld [vmem:[%s1 + $0x40] sm:$0xff]
  %v43 = vld [vmem:[%s1 + $0x48] sm:$0xff]
  %v44 = vld [vmem:[%s1 + $0x50] sm:$0xff]
  %v45 = vld [vmem:[%s1 + $0x58] sm:$0xff]
  %v46 = vld [vmem:[%s1 + $0x60] sm:$0xff]
  %v47 = vld [vmem:[%s1 + $0x68] sm:$0xff]
  %v48 = vld [vmem:[%s1 + $0x70] sm:$0xff]
  %v49 = vld [vmem:[%s1 + $0x78] sm:$0xff]
  %v50 = vld [vmem:[%s1 + $0x80] sm:$0xff]
  %v51 = vld [vmem:[%s1 + $0x88] sm:$0xff]
  %v52 = vld [vmem:[%s1 + $0x90] sm:$0xff]
  %v53 = vld [vmem:[%s1 + $0x98] sm:$0xff]
  %v54 = vld [vmem:[%s1 + $0xa0] sm:$0xff]
  %v55 = vld [vmem:[%s1 + $0xa8] sm:$0xff]
  %v56 = vld [vmem:[%s1 + $0xb0] sm:$0xff]
  %v57 = vld [vmem:[%s1 + $0xb8] sm:$0xff]
  %v58 = vld [vmem:[%s1 + $0xc0] sm:$0xff]
  %v59 = vld [vmem:[%s1 + $0xc8] sm:$0xff]
  %v60 = vld [vmem:[%s1 + $0xd0] sm:$0xff]
  %v61 = vld [vmem:[%s1 + $0xd8] sm:$0xff]
  %v62 = vld [vmem:[%s1 + $0xe0] sm:$0xff]
  %v63 = vld [vmem:[%s1 + $0xe8] sm:$0xff]
  %v64 = vld [vmem:[%s1 + $0xf0] sm:$0xff]
  %v65 = vld [vmem:[%s1 + $0xf8] sm:$0xff]
  %v66 = vld [vmem:[%s1 + $0x100] sm:$0xff]
  %v67 = vld [vmem:[%s1 + $0x108] sm:$0xff]
  %v68 = vld [vmem:[%s1 + $0x110] sm:$0xff]
  %v69 = vld [vmem:[%s1 + $0x118] sm:$0xff]
  %v70 = vld [vmem:[%s1 + $0x120] sm:$0xff]
  %v71 = vld [vmem:[%s1 + $0x128] sm:$0xff]
  %v72 = vld [vmem:[%s1 + $0x130] sm:$0xff]
  %v73 = vld [vmem:[%s1 + $0x138] sm:$0xff]
  %v74 = vld [vmem:[%s1 + $0x140] sm:$0xff]
  %v75 = vld [vmem:[%s1 + $0x148] sm:$0xff]
  %v76 = vld [vmem:[%s1 + $0x150] sm:$0xff]
  %v77 = vld [vmem:[%s1 + $0x158] sm:$0xff]
  %v78 = vld [vmem:[%s1 + $0x160] sm:$0xff]
  %v79 = vld [vmem:[%s1 + $0x168] sm:$0xff]
  %v80 = vld [vmem:[%s1 + $0x170] sm:$0xff]
  %v81 = vld [vmem:[%s1 + $0x178] sm:$0xff]
  %v82 = vld [vmem:[%s1 + $0x180] sm:$0xff]
  %v83 = vld [vmem:[%s1 + $0x188] sm:$0xff]
  %v84 = vld [vmem:[%s1 + $0x190] sm:$0xff]
  %v85 = vld [vmem:[%s1 + $0x198] sm:$0xff]
  %v86 = vld [vmem:[%s1 + $0x1a0] sm:$0xff]
  %v87 = vld [vmem:[%s1 + $0x1a8] sm:$0xff]
  %v88 = vld [vmem:[%s1 + $0x1b0] sm:$0xff]
  %v89 = vld [vmem:[%s1 + $0x1b8] sm:$0xff]
  %v90 = vld [vmem:[%s1 + $0x1c0] sm:$0xff]
  %v91 = vld [vmem:[%s1 + $0x1c8] sm:$0xff]
  %v92 = vld [vmem:[%s1 + $0x1d0] sm:$0xff]
  %v93 = vld [vmem:[%s1 + $0x1d8] sm:$0xff]
  %v94 = vld [vmem:[%s1 + $0x1e0] sm:$0xff]
  %v95 = vld [vmem:[%s1 + $0x1e8] sm:$0xff]
  %v96 = vld [vmem:[%s1 + $0x1f0] sm:$0xff]
  %v97 = vld [vmem:[%s1 + $0x1f8] sm:$0xff]
  %v98 = vld [vmem:[%s1 + $0x200] sm:$0xff]
  %v99 = vld [vmem:[%s1 + $0x208] sm:$0xff]
  %v100 = vld [vmem:[%s1 + $0x210] sm:$0xff]
  %v101 = vld [vmem:[%s1 + $0x218] sm:$0xff]
  %v102 = vld [vmem:[%s1 + $0x220] sm:$0xff]
  %v103 = vld [vmem:[%s1 + $0x228] sm:$0xff]
  %v104 = vld [vmem:[%s1 + $0x230] sm:$0xff]
  %v105 = vld [vmem:[%s1 + $0x238] sm:$0xff]
  %v106 = vld [vmem:[%s1 + $0x240] sm:$0xff]
  %v107 = vld [vmem:[%s1 + $0x248] sm:$0xff]
  %v108 = vld [vmem:[%s1 + $0x250] sm:$0xff]
  %v109 = vld [vmem:[%s1 + $0x258] sm:$0xff]
  %v110 = vld [vmem:[%s1 + $0x260] sm:$0xff]
  %v111 = vld [vmem:[%s1 + $0x268] sm:$0xff]
  %v112 = vld [vmem:[%s1 + $0x270] sm:$0xff]
  %v113 = vld [vmem:[%s1 + $0x278] sm:$0xff]
  %v114 = vld [vmem:[%s1 + $0x280] sm:$0xff]
  %v115 = vld [vmem:[%s1 + $0x288] sm:$0xff]
  %v116 = vld [vmem:[%s1 + $0x290] sm:$0xff]
  %v117 = vld [vmem:[%s1 + $0x298] sm:$0xff]
  %v118 = vld [vmem:[%s1 + $0x2a0] sm:$0xff]
  %v119 = vld [vmem:[%s1 + $0x2a8] sm:$0xff]
  %v120 = vld [vmem:[%s1 + $0x2b0] sm:$0xff]
  %v121 = vld [vmem:[%s1 + $0x2b8] sm:$0xff]
  %v122 = vld [vmem:[%s1 + $0x2c0] sm:$0xff]
  %v123 = vld [vmem:[%s1 + $0x2c8] sm:$0xff]
  %v124 = vld [vmem:[%s1 + $0x2d0] sm:$0xff]
  %v125 = vld [vmem:[%s1 + $0x2d8] sm:$0xff]
  %v126 = vld [vmem:[%s1 + $0x2e0] sm:$0xff]
  %v127 = vld [vmem:[%s1 + $0x2e8] sm:$0xff]
  %v128 = vld [vmem:[%s1 + $0x2f0] sm:$0xff]
  %v129 = vld [vmem:[%s1 + $0x2f8] sm:$0xff]
  %v130 = vld [vmem:[%s1 + $0x300] sm:$0xff]
  %v131 = vld [vmem:[%s1 + $0x308] sm:$0xff]
  %v132 = vld [vmem:[%s1 + $0x310] sm:$0xff]
  %v133 = vld [vmem:[%s1 + $0x318] sm:$0xff]
  %v134 = vld [vmem:[%s1 + $0x320] sm:$0xff]
  %v135 = vld [vmem:[%s1 + $0x328] sm:$0xff]
  %v136 = vld [vmem:[%s1 + $0x330] sm:$0xff]
  %v137 = vld [vmem:[%s1 + $0x338] sm:$0xff]
  %v138 = vld [vmem:[%s1 + $0x340] sm:$0xff]
  %v139 = vld [vmem:[%s1 + $0x348] sm:$0xff]
  %v140 = vld [vmem:[%s1 + $0x350] sm:$0xff]
  %v141 = vld [vmem:[%s1 + $0x358] sm:$0xff]
  %v142 = vld [vmem:[%s1 + $0x360] sm:$0xff]
  %v143 = vld [vmem:[%s1 + $0x368] sm:$0xff]
  %v144 = vld [vmem:[%s1 + $0x370] sm:$0xff]
  %v145 = vld [vmem:[%s1 + $0x378] sm:$0xff]
  %v146 = vld [vmem:[%s1 + $0x380] sm:$0xff]
  %v147 = vld [vmem:[%s1 + $0x388] sm:$0xff]
  %v148 = vld [vmem:[%s1 + $0x390] sm:$0xff]
  %v149 = vld [vmem:[%s1 + $0x398] sm:$0xff]
  %v150 = vld [vmem:[%s1 + $0x3a0] sm:$0xff]
  %v151 = vld [vmem:[%s1 + $0x3a8] sm:$0xff]
  %v152 = vld [vmem:[%s1 + $0x3b0] sm:$0xff]
  %v153 = vld [vmem:[%s1 + $0x3b8] sm:$0xff]
  %v154 = vld [vmem:[%s1 + $0x3c0] sm:$0xff]
  %v155 = vld [vmem:[%s1 + $0x3c8] sm:$0xff]
  %v156 = vld [vmem:[%s1 + $0x3d0] sm:$0xff]
  %v157 = vld [vmem:[%s1 + $0x3d8] sm:$0xff]
  %v158 = vld [vmem:[%s1 + $0x3e0] sm:$0xff]
  %v159 = vld [vmem:[%s1 + $0x3e8] sm:$0xff]
  %v160 = vld [vmem:[%s1 + $0x3f0] sm:$0xff]
  %v161 = vld [vmem:[%s1 + $0x3f8] sm:$0xff]
  %v162 = vld [vmem:[%s1 + $0x400] sm:$0xff]
  %v163 = vld [vmem:[%s1 + $0x408] sm:$0xff]
  %v164 = vld [vmem:[%s1 + $0x410] sm:$0xff]
  %v165 = vld [vmem:[%s1 + $0x418] sm:$0xff]
  %v166 = vld [vmem:[%s1 + $0x420] sm:$0xff]
  %v167 = vld [vmem:[%s1 + $0x428] sm:$0xff]
  %v168 = vld [vmem:[%s1 + $0x430] sm:$0xff]
  %v169 = vld [vmem:[%s1 + $0x438] sm:$0xff]
  %v170 = vld [vmem:[%s1 + $0x440] sm:$0xff]
  %v171 = vld [vmem:[%s1 + $0x448] sm:$0xff]
  %v172 = vld [vmem:[%s1 + $0x450] sm:$0xff]
  %v173 = vld [vmem:[%s1 + $0x458] sm:$0xff]
  %v174 = vld [vmem:[%s1 + $0x460] sm:$0xff]
  %v175 = vld [vmem:[%s1 + $0x468] sm:$0xff]
  %v176 = vld [vmem:[%s1 + $0x470] sm:$0xff]
  %v177 = vld [vmem:[%s1 + $0x478] sm:$0xff]
  %v178 = vld [vmem:[%s2] sm:$0x3]
  %v180 = vperm.slane %v178, 0
  %v181 = vperm.slane %v178, 1
  %v204 = vunpack.c.l.b16 %v14
  %v205 = vunpack.c.h.b16 %v14
  %v206 = vunpack.c.l.b16 %v15
  %v207 = vunpack.c.h.b16 %v15
  %v208 = vunpack.c.l.b16 %v16
  %v209 = vunpack.c.h.b16 %v16
  %v210 = vunpack.c.l.b16 %v17
  %v211 = vunpack.c.h.b16 %v17
  %v212 = vunpack.c.l.b16 %v18
  %v213 = vunpack.c.l.b16 %v19
  %v214 = vunpack.c.h.b16 %v19
  %v215 = vunpack.c.l.b16 %v20
  %v216 = vunpack.c.h.b16 %v20
  %v217 = vunpack.c.l.b16 %v21
  %v218 = vunpack.c.h.b16 %v21
  %v219 = vunpack.c.l.b16 %v22
  %v220 = vunpack.c.h.b16 %v22
  %v221 = vunpack.c.l.b16 %v23
  %v222 = vunpack.c.l.b16 %v24
  %v223 = vunpack.c.h.b16 %v24
  %v224 = vunpack.c.l.b16 %v25
  %v225 = vunpack.c.h.b16 %v25
  %v226 = vunpack.c.l.b16 %v26
  %v227 = vunpack.c.h.b16 %v26
  %v228 = vunpack.c.l.b16 %v27
  %v229 = vunpack.c.h.b16 %v27
  %v230 = vunpack.c.l.b16 %v28
  %v231 = vunpack.c.l.b16 %v29
  %v232 = vunpack.c.h.b16 %v29
  %v233 = vunpack.c.l.b16 %v30
  %v234 = vunpack.c.h.b16 %v30
  %v235 = vunpack.c.l.b16 %v31
  %v236 = vunpack.c.h.b16 %v31
  %v237 = vunpack.c.l.b16 %v32
  %v238 = vunpack.c.h.b16 %v32
  %v239 = vunpack.c.l.b16 %v33
  %v240 = vpack.c.b16 %v213, %v204
  %v241 = vpack.c.b16 %v214, %v205
  %v242 = vpack.c.b16 %v215, %v206
  %v243 = vpack.c.b16 %v216, %v207
  %v244 = vpack.c.b16 %v217, %v208
  %v245 = vpack.c.b16 %v218, %v209
  %v246 = vpack.c.b16 %v219, %v210
  %v247 = vpack.c.b16 %v220, %v211
  %v248 = vpack.c.b16 %v221, %v212
  %v249 = vpack.c.b16 %v231, %v222
  %v250 = vpack.c.b16 %v232, %v223
  %v251 = vpack.c.b16 %v233, %v224
  %v252 = vpack.c.b16 %v234, %v225
  %v253 = vpack.c.b16 %v235, %v226
  %v254 = vpack.c.b16 %v236, %v227
  %v255 = vpack.c.b16 %v237, %v228
  %v256 = vpack.c.b16 %v238, %v229
  %v257 = vpack.c.b16 %v239, %v230
  %v420 = vunpack.c.l.b16 %v34
  %v421 = vunpack.c.h.b16 %v34
  %v422 = vunpack.c.l.b16 %v35
  %v423 = vunpack.c.h.b16 %v35
  %v424 = vunpack.c.l.b16 %v36
  %v425 = vunpack.c.h.b16 %v36
  %v426 = vunpack.c.l.b16 %v37
  %v427 = vunpack.c.h.b16 %v37
  %v428 = vunpack.c.l.b16 %v38
  %v429 = vunpack.c.h.b16 %v38
  %v430 = vunpack.c.l.b16 %v39
  %v431 = vunpack.c.h.b16 %v39
  %v432 = vunpack.c.l.b16 %v40
  %v433 = vunpack.c.h.b16 %v40
  %v434 = vunpack.c.l.b16 %v41
  %v435 = vunpack.c.h.b16 %v41
  %v436 = vunpack.c.l.b16 %v42
  %v437 = vunpack.c.h.b16 %v42
  %v438 = vunpack.c.l.b16 %v43
  %v439 = vunpack.c.h.b16 %v43
  %v440 = vunpack.c.l.b16 %v44
  %v441 = vunpack.c.h.b16 %v44
  %v442 = vunpack.c.l.b16 %v45
  %v443 = vunpack.c.h.b16 %v45
  %v444 = vunpack.c.l.b16 %v46
  %v445 = vunpack.c.h.b16 %v46
  %v446 = vunpack.c.l.b16 %v47
  %v447 = vunpack.c.h.b16 %v47
  %v448 = vunpack.c.l.b16 %v48
  %v449 = vunpack.c.h.b16 %v48
  %v450 = vunpack.c.l.b16 %v49
  %v451 = vunpack.c.h.b16 %v49
  %v452 = vunpack.c.l.b16 %v50
  %v453 = vunpack.c.h.b16 %v50
  %v454 = vunpack.c.l.b16 %v51
  %v455 = vunpack.c.h.b16 %v51
  %v456 = vunpack.c.l.b16 %v52
  %v457 = vunpack.c.h.b16 %v52
  %v458 = vunpack.c.l.b16 %v53
  %v459 = vunpack.c.h.b16 %v53
  %v460 = vunpack.c.l.b16 %v54
  %v461 = vunpack.c.h.b16 %v54
  %v462 = vunpack.c.l.b16 %v55
  %v463 = vunpack.c.h.b16 %v55
  %v464 = vunpack.c.l.b16 %v56
  %v465 = vunpack.c.h.b16 %v56
  %v466 = vunpack.c.l.b16 %v57
  %v467 = vunpack.c.h.b16 %v57
  %v468 = vunpack.c.l.b16 %v58
  %v469 = vunpack.c.h.b16 %v58
  %v470 = vunpack.c.l.b16 %v59
  %v471 = vunpack.c.h.b16 %v59
  %v472 = vunpack.c.l.b16 %v60
  %v473 = vunpack.c.h.b16 %v60
  %v474 = vunpack.c.l.b16 %v61
  %v475 = vunpack.c.h.b16 %v61
  %v476 = vunpack.c.l.b16 %v62
  %v477 = vunpack.c.h.b16 %v62
  %v478 = vunpack.c.l.b16 %v63
  %v479 = vunpack.c.h.b16 %v63
  %v480 = vunpack.c.l.b16 %v64
  %v481 = vunpack.c.h.b16 %v64
  %v482 = vunpack.c.l.b16 %v65
  %v483 = vunpack.c.h.b16 %v65
  %v484 = vunpack.c.l.b16 %v66
  %v485 = vunpack.c.h.b16 %v66
  %v486 = vunpack.c.l.b16 %v67
  %v487 = vunpack.c.h.b16 %v67
  %v488 = vunpack.c.l.b16 %v68
  %v489 = vunpack.c.h.b16 %v68
  %v490 = vunpack.c.l.b16 %v69
  %v491 = vunpack.c.h.b16 %v69
  %v492 = vunpack.c.l.b16 %v70
  %v493 = vunpack.c.h.b16 %v70
  %v494 = vunpack.c.l.b16 %v71
  %v495 = vunpack.c.h.b16 %v71
  %v496 = vunpack.c.l.b16 %v72
  %v497 = vunpack.c.h.b16 %v72
  %v498 = vunpack.c.l.b16 %v73
  %v499 = vunpack.c.h.b16 %v73
  %v500 = vunpack.c.l.b16 %v74
  %v501 = vunpack.c.h.b16 %v74
  %v502 = vunpack.c.l.b16 %v75
  %v503 = vunpack.c.h.b16 %v75
  %v504 = vunpack.c.l.b16 %v76
  %v505 = vunpack.c.h.b16 %v76
  %v506 = vunpack.c.l.b16 %v77
  %v507 = vunpack.c.h.b16 %v77
  %v508 = vunpack.c.l.b16 %v78
  %v509 = vunpack.c.h.b16 %v78
  %v510 = vunpack.c.l.b16 %v79
  %v511 = vunpack.c.h.b16 %v79
  %v512 = vunpack.c.l.b16 %v80
  %v513 = vunpack.c.h.b16 %v80
  %v514 = vunpack.c.l.b16 %v81
  %v515 = vunpack.c.h.b16 %v81
  %v516 = vunpack.c.l.b16 %v82
  %v517 = vunpack.c.h.b16 %v82
  %v518 = vunpack.c.l.b16 %v83
  %v519 = vunpack.c.h.b16 %v83
  %v520 = vunpack.c.l.b16 %v84
  %v521 = vunpack.c.h.b16 %v84
  %v522 = vunpack.c.l.b16 %v85
  %v523 = vunpack.c.h.b16 %v85
  %v524 = vunpack.c.l.b16 %v86
  %v525 = vunpack.c.h.b16 %v86
  %v526 = vunpack.c.l.b16 %v87
  %v527 = vunpack.c.h.b16 %v87
  %v528 = vunpack.c.l.b16 %v88
  %v529 = vunpack.c.h.b16 %v88
  %v530 = vunpack.c.l.b16 %v89
  %v531 = vunpack.c.h.b16 %v89
  %v532 = vunpack.c.l.b16 %v90
  %v533 = vunpack.c.h.b16 %v90
  %v534 = vunpack.c.l.b16 %v91
  %v535 = vunpack.c.h.b16 %v91
  %v536 = vunpack.c.l.b16 %v92
  %v537 = vunpack.c.h.b16 %v92
  %v538 = vunpack.c.l.b16 %v93
  %v539 = vunpack.c.h.b16 %v93
  %v540 = vunpack.c.l.b16 %v94
  %v541 = vunpack.c.h.b16 %v94
  %v542 = vunpack.c.l.b16 %v95
  %v543 = vunpack.c.h.b16 %v95
  %v544 = vunpack.c.l.b16 %v96
  %v545 = vunpack.c.h.b16 %v96
  %v546 = vunpack.c.l.b16 %v97
  %v547 = vunpack.c.h.b16 %v97
  %v548 = vunpack.c.l.b16 %v98
  %v549 = vunpack.c.h.b16 %v98
  %v550 = vunpack.c.l.b16 %v99
  %v551 = vunpack.c.h.b16 %v99
  %v552 = vunpack.c.l.b16 %v100
  %v553 = vunpack.c.h.b16 %v100
  %v554 = vunpack.c.l.b16 %v101
  %v555 = vunpack.c.h.b16 %v101
  %v556 = vunpack.c.l.b16 %v102
  %v557 = vunpack.c.h.b16 %v102
  %v558 = vunpack.c.l.b16 %v103
  %v559 = vunpack.c.h.b16 %v103
  %v560 = vunpack.c.l.b16 %v104
  %v561 = vunpack.c.h.b16 %v104
  %v562 = vunpack.c.l.b16 %v105
  %v563 = vunpack.c.h.b16 %v105
  %v564 = vunpack.c.l.b16 %v106
  %v565 = vunpack.c.h.b16 %v106
  %v566 = vunpack.c.l.b16 %v107
  %v567 = vunpack.c.h.b16 %v107
  %v568 = vunpack.c.l.b16 %v108
  %v569 = vunpack.c.h.b16 %v108
  %v570 = vunpack.c.l.b16 %v109
  %v571 = vunpack.c.h.b16 %v109
  %v572 = vunpack.c.l.b16 %v110
  %v573 = vunpack.c.h.b16 %v110
  %v574 = vunpack.c.l.b16 %v111
  %v575 = vunpack.c.h.b16 %v111
  %v576 = vunpack.c.l.b16 %v112
  %v577 = vunpack.c.h.b16 %v112
  %v578 = vunpack.c.l.b16 %v113
  %v579 = vunpack.c.h.b16 %v113
  %v580 = vunpack.c.l.b16 %v114
  %v581 = vunpack.c.h.b16 %v114
  %v582 = vunpack.c.l.b16 %v115
  %v583 = vunpack.c.h.b16 %v115
  %v584 = vunpack.c.l.b16 %v116
  %v585 = vunpack.c.h.b16 %v116
  %v586 = vunpack.c.l.b16 %v117
  %v587 = vunpack.c.h.b16 %v117
  %v588 = vunpack.c.l.b16 %v118
  %v589 = vunpack.c.h.b16 %v118
  %v590 = vunpack.c.l.b16 %v119
  %v591 = vunpack.c.h.b16 %v119
  %v592 = vunpack.c.l.b16 %v120
  %v593 = vunpack.c.h.b16 %v120
  %v594 = vunpack.c.l.b16 %v121
  %v595 = vunpack.c.h.b16 %v121
  %v596 = vunpack.c.l.b16 %v122
  %v597 = vunpack.c.h.b16 %v122
  %v598 = vunpack.c.l.b16 %v123
  %v599 = vunpack.c.h.b16 %v123
  %v600 = vunpack.c.l.b16 %v124
  %v601 = vunpack.c.h.b16 %v124
  %v602 = vunpack.c.l.b16 %v125
  %v603 = vunpack.c.h.b16 %v125
  %v604 = vunpack.c.l.b16 %v126
  %v605 = vunpack.c.h.b16 %v126
  %v606 = vunpack.c.l.b16 %v127
  %v607 = vunpack.c.h.b16 %v127
  %v608 = vunpack.c.l.b16 %v128
  %v609 = vunpack.c.h.b16 %v128
  %v610 = vunpack.c.l.b16 %v129
  %v611 = vunpack.c.h.b16 %v129
  %v612 = vunpack.c.l.b16 %v130
  %v613 = vunpack.c.h.b16 %v130
  %v614 = vunpack.c.l.b16 %v131
  %v615 = vunpack.c.h.b16 %v131
  %v616 = vunpack.c.l.b16 %v132
  %v617 = vunpack.c.h.b16 %v132
  %v618 = vunpack.c.l.b16 %v133
  %v619 = vunpack.c.h.b16 %v133
  %v620 = vunpack.c.l.b16 %v134
  %v621 = vunpack.c.h.b16 %v134
  %v622 = vunpack.c.l.b16 %v135
  %v623 = vunpack.c.h.b16 %v135
  %v624 = vunpack.c.l.b16 %v136
  %v625 = vunpack.c.h.b16 %v136
  %v626 = vunpack.c.l.b16 %v137
  %v627 = vunpack.c.h.b16 %v137
  %v628 = vunpack.c.l.b16 %v138
  %v629 = vunpack.c.h.b16 %v138
  %v630 = vunpack.c.l.b16 %v139
  %v631 = vunpack.c.h.b16 %v139
  %v632 = vunpack.c.l.b16 %v140
  %v633 = vunpack.c.h.b16 %v140
  %v634 = vunpack.c.l.b16 %v141
  %v635 = vunpack.c.h.b16 %v141
  %v636 = vunpack.c.l.b16 %v142
  %v637 = vunpack.c.h.b16 %v142
  %v638 = vunpack.c.l.b16 %v143
  %v639 = vunpack.c.h.b16 %v143
  %v640 = vunpack.c.l.b16 %v144
  %v641 = vunpack.c.h.b16 %v144
  %v642 = vunpack.c.l.b16 %v145
  %v643 = vunpack.c.h.b16 %v145
  %v644 = vunpack.c.l.b16 %v146
  %v645 = vunpack.c.h.b16 %v146
  %v646 = vunpack.c.l.b16 %v147
  %v647 = vunpack.c.h.b16 %v147
  %v648 = vunpack.c.l.b16 %v148
  %v649 = vunpack.c.h.b16 %v148
  %v650 = vunpack.c.l.b16 %v149
  %v651 = vunpack.c.h.b16 %v149
  %v652 = vunpack.c.l.b16 %v150
  %v653 = vunpack.c.h.b16 %v150
  %v654 = vunpack.c.l.b16 %v151
  %v655 = vunpack.c.h.b16 %v151
  %v656 = vunpack.c.l.b16 %v152
  %v657 = vunpack.c.h.b16 %v152
  %v658 = vunpack.c.l.b16 %v153
  %v659 = vunpack.c.h.b16 %v153
  %v660 = vunpack.c.l.b16 %v154
  %v661 = vunpack.c.h.b16 %v154
  %v662 = vunpack.c.l.b16 %v155
  %v663 = vunpack.c.h.b16 %v155
  %v664 = vunpack.c.l.b16 %v156
  %v665 = vunpack.c.h.b16 %v156
  %v666 = vunpack.c.l.b16 %v157
  %v667 = vunpack.c.h.b16 %v157
  %v668 = vunpack.c.l.b16 %v158
  %v669 = vunpack.c.h.b16 %v158
  %v670 = vunpack.c.l.b16 %v159
  %v671 = vunpack.c.h.b16 %v159
  %v672 = vunpack.c.l.b16 %v160
  %v673 = vunpack.c.h.b16 %v160
  %v674 = vunpack.c.l.b16 %v161
  %v675 = vunpack.c.h.b16 %v161
  %v676 = vunpack.c.l.b16 %v162
  %v677 = vunpack.c.h.b16 %v162
  %v678 = vunpack.c.l.b16 %v163
  %v679 = vunpack.c.h.b16 %v163
  %v680 = vunpack.c.l.b16 %v164
  %v681 = vunpack.c.h.b16 %v164
  %v682 = vunpack.c.l.b16 %v165
  %v683 = vunpack.c.h.b16 %v165
  %v684 = vunpack.c.l.b16 %v166
  %v685 = vunpack.c.h.b16 %v166
  %v686 = vunpack.c.l.b16 %v167
  %v687 = vunpack.c.h.b16 %v167
  %v688 = vunpack.c.l.b16 %v168
  %v689 = vunpack.c.h.b16 %v168
  %v690 = vunpack.c.l.b16 %v169
  %v691 = vunpack.c.h.b16 %v169
  %v692 = vunpack.c.l.b16 %v170
  %v693 = vunpack.c.h.b16 %v170
  %v694 = vunpack.c.l.b16 %v171
  %v695 = vunpack.c.h.b16 %v171
  %v696 = vunpack.c.l.b16 %v172
  %v697 = vunpack.c.h.b16 %v172
  %v698 = vunpack.c.l.b16 %v173
  %v699 = vunpack.c.h.b16 %v173
  %v700 = vunpack.c.l.b16 %v174
  %v701 = vunpack.c.h.b16 %v174
  %v702 = vunpack.c.l.b16 %v175
  %v703 = vunpack.c.h.b16 %v175
  %v704 = vunpack.c.l.b16 %v176
  %v705 = vunpack.c.h.b16 %v176
  %v706 = vunpack.c.l.b16 %v177
  %v707 = vunpack.c.h.b16 %v177
  %v708 = vpack.c.b16 %v422, %v420
  %v709 = vpack.c.b16 %v423, %v421
  %v710 = vpack.c.b16 %v426, %v424
  %v711 = vpack.c.b16 %v427, %v425
  %v712 = vpack.c.b16 %v430, %v428
  %v713 = vpack.c.b16 %v431, %v429
  %v714 = vpack.c.b16 %v434, %v432
  %v715 = vpack.c.b16 %v435, %v433
  %v716 = vpack.c.b16 %v438, %v436
  %v717 = vpack.c.b16 %v439, %v437
  %v718 = vpack.c.b16 %v442, %v440
  %v719 = vpack.c.b16 %v443, %v441
  %v720 = vpack.c.b16 %v446, %v444
  %v721 = vpack.c.b16 %v447, %v445
  %v722 = vpack.c.b16 %v450, %v448
  %v723 = vpack.c.b16 %v451, %v449
  %v724 = vpack.c.b16 %v454, %v452
  %v725 = vpack.c.b16 %v455, %v453
  %v726 = vpack.c.b16 %v458, %v456
  %v727 = vpack.c.b16 %v459, %v457
  %v728 = vpack.c.b16 %v462, %v460
  %v729 = vpack.c.b16 %v463, %v461
  %v730 = vpack.c.b16 %v466, %v464
  %v731 = vpack.c.b16 %v467, %v465
  %v732 = vpack.c.b16 %v470, %v468
  %v733 = vpack.c.b16 %v471, %v469
  %v734 = vpack.c.b16 %v474, %v472
  %v735 = vpack.c.b16 %v475, %v473
  %v736 = vpack.c.b16 %v478, %v476
  %v737 = vpack.c.b16 %v479, %v477
  %v738 = vpack.c.b16 %v482, %v480
  %v739 = vpack.c.b16 %v483, %v481
  %v740 = vpack.c.b16 %v486, %v484
  %v741 = vpack.c.b16 %v487, %v485
  %v742 = vpack.c.b16 %v490, %v488
  %v743 = vpack.c.b16 %v491, %v489
  %v744 = vpack.c.b16 %v494, %v492
  %v745 = vpack.c.b16 %v495, %v493
  %v746 = vpack.c.b16 %v498, %v496
  %v747 = vpack.c.b16 %v499, %v497
  %v748 = vpack.c.b16 %v502, %v500
  %v749 = vpack.c.b16 %v503, %v501
  %v750 = vpack.c.b16 %v506, %v504
  %v751 = vpack.c.b16 %v507, %v505
  %v752 = vpack.c.b16 %v510, %v508
  %v753 = vpack.c.b16 %v511, %v509
  %v754 = vpack.c.b16 %v514, %v512
  %v755 = vpack.c.b16 %v515, %v513
  %v756 = vpack.c.b16 %v518, %v516
  %v757 = vpack.c.b16 %v519, %v517
  %v758 = vpack.c.b16 %v522, %v520
  %v759 = vpack.c.b16 %v523, %v521
  %v760 = vpack.c.b16 %v526, %v524
  %v761 = vpack.c.b16 %v527, %v525
  %v762 = vpack.c.b16 %v530, %v528
  %v763 = vpack.c.b16 %v531, %v529
  %v764 = vpack.c.b16 %v534, %v532
  %v765 = vpack.c.b16 %v535, %v533
  %v766 = vpack.c.b16 %v538, %v536
  %v767 = vpack.c.b16 %v539, %v537
  %v768 = vpack.c.b16 %v542, %v540
  %v769 = vpack.c.b16 %v543, %v541
  %v770 = vpack.c.b16 %v546, %v544
  %v771 = vpack.c.b16 %v547, %v545
  %v772 = vpack.c.b16 %v550, %v548
  %v773 = vpack.c.b16 %v551, %v549
  %v774 = vpack.c.b16 %v554, %v552
  %v775 = vpack.c.b16 %v555, %v553
  %v776 = vpack.c.b16 %v558, %v556
  %v777 = vpack.c.b16 %v559, %v557
  %v778 = vpack.c.b16 %v562, %v560
  %v779 = vpack.c.b16 %v563, %v561
  %v780 = vpack.c.b16 %v566, %v564
  %v781 = vpack.c.b16 %v567, %v565
  %v782 = vpack.c.b16 %v570, %v568
  %v783 = vpack.c.b16 %v571, %v569
  %v784 = vpack.c.b16 %v574, %v572
  %v785 = vpack.c.b16 %v575, %v573
  %v786 = vpack.c.b16 %v578, %v576
  %v787 = vpack.c.b16 %v579, %v577
  %v788 = vpack.c.b16 %v582, %v580
  %v789 = vpack.c.b16 %v583, %v581
  %v790 = vpack.c.b16 %v586, %v584
  %v791 = vpack.c.b16 %v587, %v585
  %v792 = vpack.c.b16 %v590, %v588
  %v793 = vpack.c.b16 %v591, %v589
  %v794 = vpack.c.b16 %v594, %v592
  %v795 = vpack.c.b16 %v595, %v593
  %v796 = vpack.c.b16 %v598, %v596
  %v797 = vpack.c.b16 %v599, %v597
  %v798 = vpack.c.b16 %v602, %v600
  %v799 = vpack.c.b16 %v603, %v601
  %v800 = vpack.c.b16 %v606, %v604
  %v801 = vpack.c.b16 %v607, %v605
  %v802 = vpack.c.b16 %v610, %v608
  %v803 = vpack.c.b16 %v611, %v609
  %v804 = vpack.c.b16 %v614, %v612
  %v805 = vpack.c.b16 %v615, %v613
  %v806 = vpack.c.b16 %v618, %v616
  %v807 = vpack.c.b16 %v619, %v617
  %v808 = vpack.c.b16 %v622, %v620
  %v809 = vpack.c.b16 %v623, %v621
  %v810 = vpack.c.b16 %v626, %v624
  %v811 = vpack.c.b16 %v627, %v625
  %v812 = vpack.c.b16 %v630, %v628
  %v813 = vpack.c.b16 %v631, %v629
  %v814 = vpack.c.b16 %v634, %v632
  %v815 = vpack.c.b16 %v635, %v633
  %v816 = vpack.c.b16 %v638, %v636
  %v817 = vpack.c.b16 %v639, %v637
  %v818 = vpack.c.b16 %v642, %v640
  %v819 = vpack.c.b16 %v643, %v641
  %v820 = vpack.c.b16 %v646, %v644
  %v821 = vpack.c.b16 %v647, %v645
  %v822 = vpack.c.b16 %v650, %v648
  %v823 = vpack.c.b16 %v651, %v649
  %v824 = vpack.c.b16 %v654, %v652
  %v825 = vpack.c.b16 %v655, %v653
  %v826 = vpack.c.b16 %v658, %v656
  %v827 = vpack.c.b16 %v659, %v657
  %v828 = vpack.c.b16 %v662, %v660
  %v829 = vpack.c.b16 %v663, %v661
  %v830 = vpack.c.b16 %v666, %v664
  %v831 = vpack.c.b16 %v667, %v665
  %v832 = vpack.c.b16 %v670, %v668
  %v833 = vpack.c.b16 %v671, %v669
  %v834 = vpack.c.b16 %v674, %v672
  %v835 = vpack.c.b16 %v675, %v673
  %v836 = vpack.c.b16 %v678, %v676
  %v837 = vpack.c.b16 %v679, %v677
  %v838 = vpack.c.b16 %v682, %v680
  %v839 = vpack.c.b16 %v683, %v681
  %v840 = vpack.c.b16 %v686, %v684
  %v841 = vpack.c.b16 %v687, %v685
  %v842 = vpack.c.b16 %v690, %v688
  %v843 = vpack.c.b16 %v691, %v689
  %v844 = vpack.c.b16 %v694, %v692
  %v845 = vpack.c.b16 %v695, %v693
  %v846 = vpack.c.b16 %v698, %v696
  %v847 = vpack.c.b16 %v699, %v697
  %v848 = vpack.c.b16 %v702, %v700
  %v849 = vpack.c.b16 %v703, %v701
  %v850 = vpack.c.b16 %v706, %v704
  %v851 = vpack.c.b16 %v707, %v705
  %996 = vmatpush.bf16.msra.mxu0 %v722
  %997 = vmatpush.bf16.msra.mxu0 %v720
  %998 = vmatpush.bf16.msra.mxu0 %v718
  %999 = vmatpush.bf16.msra.mxu0 %v716
  %1000 = vmatpush.bf16.msra.mxu0 %v714
  %1001 = vmatpush.bf16.msra.mxu0 %v712
  %1002 = vmatpush.bf16.msra.mxu0 %v710
  %1003 = vmatpush.bf16.msra.mxu0 %v708
  %1004 = vmatmul.bf16.gmra.mxu0 %v240
  %v1005 = vpop.f32.mrf.mxu0
  %v1006 = vadd.f32 %v180, %v1005
  %v1007 = vpop.f32.mrf.mxu0
  %v1008 = vadd.f32 %v180, %v1007
  %1009 = vmatmul.bf16.gmra.mxu0 %v249
  %v1010 = vpop.f32.mrf.mxu0
  %v1011 = vadd.f32 %v180, %v1010
  %v1012 = vpop.f32.mrf.mxu0
  %v1013 = vadd.f32 %v180, %v1012
  %1014 = vdwg.mxu0
  %1015 = vmatpush.bf16.msra.mxu0 %v738
  %1016 = vmatpush.bf16.msra.mxu0 %v736
  %1017 = vmatpush.bf16.msra.mxu0 %v734
  %1018 = vmatpush.bf16.msra.mxu0 %v732
  %1019 = vmatpush.bf16.msra.mxu0 %v730
  %1020 = vmatpush.bf16.msra.mxu0 %v728
  %1021 = vmatpush.bf16.msra.mxu0 %v726
  %1022 = vmatpush.bf16.msra.mxu0 %v724
  %1023 = vmatmul.bf16.gmra.mxu0 %v241
  %v1024 = vpop.f32.mrf.mxu0
  %v1025 = vadd.f32 %v1006, %v1024
  %v1026 = vpop.f32.mrf.mxu0
  %v1027 = vadd.f32 %v1008, %v1026
  %1028 = vmatmul.bf16.gmra.mxu0 %v250
  %v1029 = vpop.f32.mrf.mxu0
  %v1030 = vadd.f32 %v1011, %v1029
  %v1031 = vpop.f32.mrf.mxu0
  %v1032 = vadd.f32 %v1013, %v1031
  %1033 = vdwg.mxu0
  %1034 = vmatpush.bf16.msra.mxu0 %v754
  %1035 = vmatpush.bf16.msra.mxu0 %v752
  %1036 = vmatpush.bf16.msra.mxu0 %v750
  %1037 = vmatpush.bf16.msra.mxu0 %v748
  %1038 = vmatpush.bf16.msra.mxu0 %v746
  %1039 = vmatpush.bf16.msra.mxu0 %v744
  %1040 = vmatpush.bf16.msra.mxu0 %v742
  %1041 = vmatpush.bf16.msra.mxu0 %v740
  %1042 = vmatmul.bf16.gmra.mxu0 %v242
  %v1043 = vpop.f32.mrf.mxu0
  %v1044 = vadd.f32 %v1025, %v1043
  %v1045 = vpop.f32.mrf.mxu0
  %v1046 = vadd.f32 %v1027, %v1045
  %1047 = vmatmul.bf16.gmra.mxu0 %v251
  %v1048 = vpop.f32.mrf.mxu0
  %v1049 = vadd.f32 %v1030, %v1048
  %v1050 = vpop.f32.mrf.mxu0
  %v1051 = vadd.f32 %v1032, %v1050
  %1052 = vdwg.mxu0
  %1053 = vmatpush.bf16.msra.mxu0 %v770
  %1054 = vmatpush.bf16.msra.mxu0 %v768
  %1055 = vmatpush.bf16.msra.mxu0 %v766
  %1056 = vmatpush.bf16.msra.mxu0 %v764
  %1057 = vmatpush.bf16.msra.mxu0 %v762
  %1058 = vmatpush.bf16.msra.mxu0 %v760
  %1059 = vmatpush.bf16.msra.mxu0 %v758
  %1060 = vmatpush.bf16.msra.mxu0 %v756
  %1061 = vmatmul.bf16.gmra.mxu0 %v243
  %v1062 = vpop.f32.mrf.mxu0
  %v1063 = vadd.f32 %v1044, %v1062
  %v1064 = vpop.f32.mrf.mxu0
  %v1065 = vadd.f32 %v1046, %v1064
  %1066 = vmatmul.bf16.gmra.mxu0 %v252
  %v1067 = vpop.f32.mrf.mxu0
  %v1068 = vadd.f32 %v1049, %v1067
  %v1069 = vpop.f32.mrf.mxu0
  %v1070 = vadd.f32 %v1051, %v1069
  %1071 = vdwg.mxu0
  %1072 = vmatpush.bf16.msra.mxu0 %v786
  %1073 = vmatpush.bf16.msra.mxu0 %v784
  %1074 = vmatpush.bf16.msra.mxu0 %v782
  %1075 = vmatpush.bf16.msra.mxu0 %v780
  %1076 = vmatpush.bf16.msra.mxu0 %v778
  %1077 = vmatpush.bf16.msra.mxu0 %v776
  %1078 = vmatpush.bf16.msra.mxu0 %v774
  %1079 = vmatpush.bf16.msra.mxu0 %v772
  %1080 = vmatmul.bf16.gmra.mxu0 %v244
  %v1081 = vpop.f32.mrf.mxu0
  %v1082 = vadd.f32 %v1063, %v1081
  %v1083 = vpop.f32.mrf.mxu0
  %v1084 = vadd.f32 %v1065, %v1083
  %1085 = vmatmul.bf16.gmra.mxu0 %v253
  %v1086 = vpop.f32.mrf.mxu0
  %v1087 = vadd.f32 %v1068, %v1086
  %v1088 = vpop.f32.mrf.mxu0
  %v1089 = vadd.f32 %v1070, %v1088
  %1090 = vdwg.mxu0
  %1091 = vmatpush.bf16.msra.mxu0 %v802
  %1092 = vmatpush.bf16.msra.mxu0 %v800
  %1093 = vmatpush.bf16.msra.mxu0 %v798
  %1094 = vmatpush.bf16.msra.mxu0 %v796
  %1095 = vmatpush.bf16.msra.mxu0 %v794
  %1096 = vmatpush.bf16.msra.mxu0 %v792
  %1097 = vmatpush.bf16.msra.mxu0 %v790
  %1098 = vmatpush.bf16.msra.mxu0 %v788
  %1099 = vmatmul.bf16.gmra.mxu0 %v245
  %v1100 = vpop.f32.mrf.mxu0
  %v1101 = vadd.f32 %v1082, %v1100
  %v1102 = vpop.f32.mrf.mxu0
  %v1103 = vadd.f32 %v1084, %v1102
  %1104 = vmatmul.bf16.gmra.mxu0 %v254
  %v1105 = vpop.f32.mrf.mxu0
  %v1106 = vadd.f32 %v1087, %v1105
  %v1107 = vpop.f32.mrf.mxu0
  %v1108 = vadd.f32 %v1089, %v1107
  %1109 = vdwg.mxu0
  %1110 = vmatpush.bf16.msra.mxu0 %v818
  %1111 = vmatpush.bf16.msra.mxu0 %v816
  %1112 = vmatpush.bf16.msra.mxu0 %v814
  %1113 = vmatpush.bf16.msra.mxu0 %v812
  %1114 = vmatpush.bf16.msra.mxu0 %v810
  %1115 = vmatpush.bf16.msra.mxu0 %v808
  %1116 = vmatpush.bf16.msra.mxu0 %v806
  %1117 = vmatpush.bf16.msra.mxu0 %v804
  %1118 = vmatmul.bf16.gmra.mxu0 %v246
  %v1119 = vpop.f32.mrf.mxu0
  %v1120 = vadd.f32 %v1101, %v1119
  %v1121 = vpop.f32.mrf.mxu0
  %v1122 = vadd.f32 %v1103, %v1121
  %1123 = vmatmul.bf16.gmra.mxu0 %v255
  %v1124 = vpop.f32.mrf.mxu0
  %v1125 = vadd.f32 %v1106, %v1124
  %v1126 = vpop.f32.mrf.mxu0
  %v1127 = vadd.f32 %v1108, %v1126
  %1128 = vdwg.mxu0
  %1129 = vmatpush.bf16.msra.mxu0 %v834
  %1130 = vmatpush.bf16.msra.mxu0 %v832
  %1131 = vmatpush.bf16.msra.mxu0 %v830
  %1132 = vmatpush.bf16.msra.mxu0 %v828
  %1133 = vmatpush.bf16.msra.mxu0 %v826
  %1134 = vmatpush.bf16.msra.mxu0 %v824
  %1135 = vmatpush.bf16.msra.mxu0 %v822
  %1136 = vmatpush.bf16.msra.mxu0 %v820
  %1137 = vmatmul.bf16.gmra.mxu0 %v247
  %v1138 = vpop.f32.mrf.mxu0
  %v1139 = vadd.f32 %v1120, %v1138
  %v1140 = vpop.f32.mrf.mxu0
  %v1141 = vadd.f32 %v1122, %v1140
  %1142 = vmatmul.bf16.gmra.mxu0 %v256
  %v1143 = vpop.f32.mrf.mxu0
  %v1144 = vadd.f32 %v1125, %v1143
  %v1145 = vpop.f32.mrf.mxu0
  %v1146 = vadd.f32 %v1127, %v1145
  %1147 = vdwg.mxu0
  %1148 = vmatpush.bf16.msra.mxu0 %v850
  %1149 = vmatpush.bf16.msra.mxu0 %v848
  %1150 = vmatpush.bf16.msra.mxu0 %v846
  %1151 = vmatpush.bf16.msra.mxu0 %v844
  %1152 = vmatpush.bf16.msra.mxu0 %v842
  %1153 = vmatpush.bf16.msra.mxu0 %v840
  %1154 = vmatpush.bf16.msra.mxu0 %v838
  %1155 = vmatpush.bf16.msra.mxu0 %v836
  %1156 = vmatmul.bf16.gmra.mxu0 %v248
  %v1157 = vpop.f32.mrf.mxu0
  %v1158 = vadd.f32 %v1139, %v1157
  %v1159 = vpop.f32.mrf.mxu0
  %v1160 = vadd.f32 %v1141, %v1159
  %1161 = vmatmul.bf16.gmra.mxu0 %v257
  %v1162 = vpop.f32.mrf.mxu0
  %v1163 = vadd.f32 %v1144, %v1162
  %v1164 = vpop.f32.mrf.mxu0
  %v1165 = vadd.f32 %v1146, %v1164
  %1166 = vdwg.mxu0
  %1167 = vmatpush.bf16.msra.mxu0 %v723
  %1168 = vmatpush.bf16.msra.mxu0 %v721
  %1169 = vmatpush.bf16.msra.mxu0 %v719
  %1170 = vmatpush.bf16.msra.mxu0 %v717
  %1171 = vmatpush.bf16.msra.mxu0 %v715
  %1172 = vmatpush.bf16.msra.mxu0 %v713
  %1173 = vmatpush.bf16.msra.mxu0 %v711
  %1174 = vmatpush.bf16.msra.mxu0 %v709
  %1175 = vmatmul.bf16.gmra.mxu0 %v240
  %v1176 = vpop.f32.mrf.mxu0
  %v1177 = vadd.f32 %v181, %v1176
  %v1178 = vpop.f32.mrf.mxu0
  %v1179 = vadd.f32 %v181, %v1178
  %1180 = vmatmul.bf16.gmra.mxu0 %v249
  %v1181 = vpop.f32.mrf.mxu0
  %v1182 = vadd.f32 %v181, %v1181
  %v1183 = vpop.f32.mrf.mxu0
  %v1184 = vadd.f32 %v181, %v1183
  %1185 = vdwg.mxu0
  %1186 = vmatpush.bf16.msra.mxu0 %v739
  %1187 = vmatpush.bf16.msra.mxu0 %v737
  %1188 = vmatpush.bf16.msra.mxu0 %v735
  %1189 = vmatpush.bf16.msra.mxu0 %v733
  %1190 = vmatpush.bf16.msra.mxu0 %v731
  %1191 = vmatpush.bf16.msra.mxu0 %v729
  %1192 = vmatpush.bf16.msra.mxu0 %v727
  %1193 = vmatpush.bf16.msra.mxu0 %v725
  %1194 = vmatmul.bf16.gmra.mxu0 %v241
  %v1195 = vpop.f32.mrf.mxu0
  %v1196 = vadd.f32 %v1177, %v1195
  %v1197 = vpop.f32.mrf.mxu0
  %v1198 = vadd.f32 %v1179, %v1197
  %1199 = vmatmul.bf16.gmra.mxu0 %v250
  %v1200 = vpop.f32.mrf.mxu0
  %v1201 = vadd.f32 %v1182, %v1200
  %v1202 = vpop.f32.mrf.mxu0
  %v1203 = vadd.f32 %v1184, %v1202
  %1204 = vdwg.mxu0
  %1205 = vmatpush.bf16.msra.mxu0 %v755
  %1206 = vmatpush.bf16.msra.mxu0 %v753
  %1207 = vmatpush.bf16.msra.mxu0 %v751
  %1208 = vmatpush.bf16.msra.mxu0 %v749
  %1209 = vmatpush.bf16.msra.mxu0 %v747
  %1210 = vmatpush.bf16.msra.mxu0 %v745
  %1211 = vmatpush.bf16.msra.mxu0 %v743
  %1212 = vmatpush.bf16.msra.mxu0 %v741
  %1213 = vmatmul.bf16.gmra.mxu0 %v242
  %v1214 = vpop.f32.mrf.mxu0
  %v1215 = vadd.f32 %v1196, %v1214
  %v1216 = vpop.f32.mrf.mxu0
  %v1217 = vadd.f32 %v1198, %v1216
  %1218 = vmatmul.bf16.gmra.mxu0 %v251
  %v1219 = vpop.f32.mrf.mxu0
  %v1220 = vadd.f32 %v1201, %v1219
  %v1221 = vpop.f32.mrf.mxu0
  %v1222 = vadd.f32 %v1203, %v1221
  %1223 = vdwg.mxu0
  %1224 = vmatpush.bf16.msra.mxu0 %v771
  %1225 = vmatpush.bf16.msra.mxu0 %v769
  %1226 = vmatpush.bf16.msra.mxu0 %v767
  %1227 = vmatpush.bf16.msra.mxu0 %v765
  %1228 = vmatpush.bf16.msra.mxu0 %v763
  %1229 = vmatpush.bf16.msra.mxu0 %v761
  %1230 = vmatpush.bf16.msra.mxu0 %v759
  %1231 = vmatpush.bf16.msra.mxu0 %v757
  %1232 = vmatmul.bf16.gmra.mxu0 %v243
  %v1233 = vpop.f32.mrf.mxu0
  %v1234 = vadd.f32 %v1215, %v1233
  %v1235 = vpop.f32.mrf.mxu0
  %v1236 = vadd.f32 %v1217, %v1235
  %1237 = vmatmul.bf16.gmra.mxu0 %v252
  %v1238 = vpop.f32.mrf.mxu0
  %v1239 = vadd.f32 %v1220, %v1238
  %v1240 = vpop.f32.mrf.mxu0
  %v1241 = vadd.f32 %v1222, %v1240
  %1242 = vdwg.mxu0
  %1243 = vmatpush.bf16.msra.mxu0 %v787
  %1244 = vmatpush.bf16.msra.mxu0 %v785
  %1245 = vmatpush.bf16.msra.mxu0 %v783
  %1246 = vmatpush.bf16.msra.mxu0 %v781
  %1247 = vmatpush.bf16.msra.mxu0 %v779
  %1248 = vmatpush.bf16.msra.mxu0 %v777
  %1249 = vmatpush.bf16.msra.mxu0 %v775
  %1250 = vmatpush.bf16.msra.mxu0 %v773
  %1251 = vmatmul.bf16.gmra.mxu0 %v244
  %v1252 = vpop.f32.mrf.mxu0
  %v1253 = vadd.f32 %v1234, %v1252
  %v1254 = vpop.f32.mrf.mxu0
  %v1255 = vadd.f32 %v1236, %v1254
  %1256 = vmatmul.bf16.gmra.mxu0 %v253
  %v1257 = vpop.f32.mrf.mxu0
  %v1258 = vadd.f32 %v1239, %v1257
  %v1259 = vpop.f32.mrf.mxu0
  %v1260 = vadd.f32 %v1241, %v1259
  %1261 = vdwg.mxu0
  %1262 = vmatpush.bf16.msra.mxu0 %v803
  %1263 = vmatpush.bf16.msra.mxu0 %v801
  %1264 = vmatpush.bf16.msra.mxu0 %v799
  %1265 = vmatpush.bf16.msra.mxu0 %v797
  %1266 = vmatpush.bf16.msra.mxu0 %v795
  %1267 = vmatpush.bf16.msra.mxu0 %v793
  %1268 = vmatpush.bf16.msra.mxu0 %v791
  %1269 = vmatpush.bf16.msra.mxu0 %v789
  %1270 = vmatmul.bf16.gmra.mxu0 %v245
  %v1271 = vpop.f32.mrf.mxu0
  %v1272 = vadd.f32 %v1253, %v1271
  %v1273 = vpop.f32.mrf.mxu0
  %v1274 = vadd.f32 %v1255, %v1273
  %1275 = vmatmul.bf16.gmra.mxu0 %v254
  %v1276 = vpop.f32.mrf.mxu0
  %v1277 = vadd.f32 %v1258, %v1276
  %v1278 = vpop.f32.mrf.mxu0
  %v1279 = vadd.f32 %v1260, %v1278
  %1280 = vdwg.mxu0
  %1281 = vmatpush.bf16.msra.mxu0 %v819
  %1282 = vmatpush.bf16.msra.mxu0 %v817
  %1283 = vmatpush.bf16.msra.mxu0 %v815
  %1284 = vmatpush.bf16.msra.mxu0 %v813
  %1285 = vmatpush.bf16.msra.mxu0 %v811
  %1286 = vmatpush.bf16.msra.mxu0 %v809
  %1287 = vmatpush.bf16.msra.mxu0 %v807
  %1288 = vmatpush.bf16.msra.mxu0 %v805
  %1289 = vmatmul.bf16.gmra.mxu0 %v246
  %v1290 = vpop.f32.mrf.mxu0
  %v1291 = vadd.f32 %v1272, %v1290
  %v1292 = vpop.f32.mrf.mxu0
  %v1293 = vadd.f32 %v1274, %v1292
  %1294 = vmatmul.bf16.gmra.mxu0 %v255
  %v1295 = vpop.f32.mrf.mxu0
  %v1296 = vadd.f32 %v1277, %v1295
  %v1297 = vpop.f32.mrf.mxu0
  %v1298 = vadd.f32 %v1279, %v1297
  %1299 = vdwg.mxu0
  %1300 = vmatpush.bf16.msra.mxu0 %v835
  %1301 = vmatpush.bf16.msra.mxu0 %v833
  %1302 = vmatpush.bf16.msra.mxu0 %v831
  %1303 = vmatpush.bf16.msra.mxu0 %v829
  %1304 = vmatpush.bf16.msra.mxu0 %v827
  %1305 = vmatpush.bf16.msra.mxu0 %v825
  %1306 = vmatpush.bf16.msra.mxu0 %v823
  %1307 = vmatpush.bf16.msra.mxu0 %v821
  %1308 = vmatmul.bf16.gmra.mxu0 %v247
  %v1309 = vpop.f32.mrf.mxu0
  %v1310 = vadd.f32 %v1291, %v1309
  %v1311 = vpop.f32.mrf.mxu0
  %v1312 = vadd.f32 %v1293, %v1311
  %1313 = vmatmul.bf16.gmra.mxu0 %v256
  %v1314 = vpop.f32.mrf.mxu0
  %v1315 = vadd.f32 %v1296, %v1314
  %v1316 = vpop.f32.mrf.mxu0
  %v1317 = vadd.f32 %v1298, %v1316
  %1318 = vdwg.mxu0
  %1319 = vmatpush.bf16.msra.mxu0 %v851
  %1320 = vmatpush.bf16.msra.mxu0 %v849
  %1321 = vmatpush.bf16.msra.mxu0 %v847
  %1322 = vmatpush.bf16.msra.mxu0 %v845
  %1323 = vmatpush.bf16.msra.mxu0 %v843
  %1324 = vmatpush.bf16.msra.mxu0 %v841
  %1325 = vmatpush.bf16.msra.mxu0 %v839
  %1326 = vmatpush.bf16.msra.mxu0 %v837
  %1327 = vmatmul.bf16.gmra.mxu0 %v248
  %v1328 = vpop.f32.mrf.mxu0
  %v1329 = vadd.f32 %v1310, %v1328
  %v1330 = vpop.f32.mrf.mxu0
  %v1331 = vadd.f32 %v1312, %v1330
  %1332 = vmatmul.bf16.gmra.mxu0 %v257
  %v1333 = vpop.f32.mrf.mxu0
  %v1334 = vadd.f32 %v1315, %v1333
  %v1335 = vpop.f32.mrf.mxu0
  %v1336 = vadd.f32 %v1317, %v1335
  %1337 = vdwg.mxu0
  %v1338 = vmul.f32 %v1158, 0.2
  %v1339 = vmul.f32 %v1329, 0.2
  %v1340 = vmul.f32 %v1160, 0.2
  %v1341 = vmul.f32 %v1331, 0.2
  %v1342 = vmul.f32 %v1163, 0.2
  %v1343 = vmul.f32 %v1334, 0.2
  %v1344 = vmul.f32 %v1165, 0.2
  %v1345 = vmul.f32 %v1336, 0.2
  %v1346 = vmax.f32 %v1158, %v1338
  %v1347 = vmax.f32 %v1329, %v1339
  %v1348 = vmax.f32 %v1160, %v1340
  %v1349 = vmax.f32 %v1331, %v1341
  %v1350 = vmax.f32 %v1163, %v1342
  %v1351 = vmax.f32 %v1334, %v1343
  %v1352 = vmax.f32 %v1165, %v1344
  %v1353 = vmax.f32 %v1336, %v1345
  %v1354 = vpack.c.bf16 %v1347, %v1346
  %v1355 = vpack.c.bf16 %v1349, %v1348
  %v1356 = vpack.c.bf16 %v1351, %v1350
  %v1357 = vpack.c.bf16 %v1353, %v1352
  %1358 = vst [vmem:[%s3] sm:$0xff] %v1354
  %1359 = vst [vmem:[%s3 + $0x8] sm:$0xff] %v1355
  %1360 = vst [vmem:[%s3 + $0x10] sm:$0xff] %v1356
  %1361 = vst [vmem:[%s3 + $0x18] sm:$0xff] %v1357
  // Predicated region
  $region14: #{discriminator_forward.11} parent=0 // pred_check
    _
  $region15: #{discriminator_forward.11} parent=0 // pred_check_branch
    %1363 = sbr.rel (0) target = $region17
  $region16: #{discriminator_forward.11} parent=0 // pred_region
    _
  $region17: #{discriminator_forward.11} parent=0 // pred_fallthru
    _
  // Predicated region
  $region18: #{discriminator_forward.11} parent=0 // pred_check
    _
  $region19: #{discriminator_forward.11} parent=0 // pred_check_branch
    %1365 = sbr.rel (0) target = $region21
  $region20: #{discriminator_forward.11} parent=0 // pred_region
    _
  $region21: #{discriminator_forward.11} parent=0 // pred_fallthru
    _

// kernel: discriminator_forward.13
$region0: #{discriminator_forward.13}
  #allocation0 [shape = 'u32[]', space=smem, size = 0x4, offset = 0x4, fixed_abs, tag = 'smem constant byte address 0x4 - core index']
  #allocation1 [shape = 'u32[72,128]{1,0:T(1,128)}', space=vmem, size = 0x9000, scoped, tag = 'internal scratch']
  #allocation2 [shape = 'f32[2,128]{1,0:T(2,128)}', space=vmem, size = 0x400, scoped, tag = 'scratch operand']
  %s0 = inlined_call_operand.vmem [shape: bf16[2,8192], index: 0, kind: input, shape index: {}]
  %s1 = inlined_call_operand.vmem [shape: bf16[8192,128], index: 1, kind: input, shape index: {}]
  %s2 = inlined_call_operand.vmem [shape: f32[1,128], index: 2, kind: input, shape index: {}]
  %s3 = inlined_call_operand.vmem [shape: f32[2,1], index: 3, kind: output, shape index: {0}]
  %s4 = inlined_call_operand.hbm [shape: f32[2,10], index: 4, kind: output, shape index: {1}]
  %5 = xla_tuple %s3, %s4
  %s6 = sld [smem:[#allocation0]]
  $region61: #{discriminator_forward.13} parent=0
    _
  %s8 = ssub.s32 1, %s6
  %s9 = scalar_select 0, %s8, %s6
  $region1: #{discriminator_forward.13} parent=0
    #allocation3 [shape = 'u8[1024]{0}', space=vmem, size = 0x400, scoped, tag = 'output window, operand 1, single buffered']
    #allocation4 [shape = 's32[2]{0}', space=sflag, size = 0x8, scoped, tag = 'scoped memory for discriminator_forward.13']
    %10 = vsyncpa [#allocation4], 0
    loop: start=0, step=1, limit=6
    $region2: #{discriminator_forward.13} parent=1 // loop_pre_header
      _
    $region3: #{discriminator_forward.13} parent=1 // loop_header
      %s12 = sphi 0, %s16
      %p13 = scmp.ge.s32.totalorder %s12, 6
      %s22 = sphi 0, %s24
      %s25 = sphi 0, %s22
      %s26 = sphi 0, %s25
      %s42 = sphi 0, %s26
      %s48 = sphi 0, %s50
      %s51 = sphi 0, %s48
      %s52 = sphi 0, %s51
      %s68 = sphi 0, %s52
      %s72 = sphi 0, %s72
      %s74 = sphi 0, %s72
      %s75 = sphi 0, %s74
      %s89 = sphi 0, %s75
      %s93 = sphi 0, %s93
      %s95 = sphi 0, %s93
      %s96 = sphi 0, %s95
      %s110 = sphi 0, %s96
      %s114 = sphi 0, %s114
      %s116 = sphi 0, %s114
      %s117 = sphi 0, %s116
      %s131 = sphi 0, %s117
    $region4: #{discriminator_forward.13} parent=1 // loop_header_branch
      %15 = sbr.rel (%p13) target = $region8
    $region5: #{discriminator_forward.13} parent=1 // loop_body
      %s17 = ssub.s32 %s12, 1
      %s18 = ssub.s32 %s12, 2
      %s19 = sadd.s32 %s12, 1
      %s20 = ssub.s32 %s12, %s19
      %p21 = scmp.eq.s32.totalorder %s20, 0
      %s23 = sadd.s32 %s22, 1
      %s24 = scalar_select %p21, %s22, %s23
      %p27 = pneg %p21
      %p28 = scmp.eq.s32.totalorder %s12, 3
      %p29 = por %p27, %p28
      %p30 = scmp.ne.s32.totalorder %s22, %s25
      %p31 = scmp.eq.s32.totalorder %s12, 0
      %p32 = por %p30, %p31
      %p33 = scmp.ne.s32.totalorder %s22, %s25
      %p34 = scmp.eq.s32.totalorder %s17, 3
      %p35 = por %p33, %p34
      %p36 = scmp.ne.s32.totalorder %s25, %s26
      %p37 = scmp.eq.s32.totalorder %s17, 0
      %p38 = por %p36, %p37
      %p39 = scmp.ne.s32.totalorder %s25, %s26
      %p40 = scmp.eq.s32.totalorder %s18, 3
      %p41 = por %p39, %p40
      %p43 = scmp.ne.s32.totalorder %s26, %s42
      %p44 = scmp.eq.s32.totalorder %s18, 0
      %p45 = por %p43, %p44
      %s46 = ssub.s32 %s12, %s19
      %p47 = scmp.eq.s32.totalorder %s46, 0
      %s49 = sadd.s32 %s48, 1
      %s50 = scalar_select %p47, %s48, %s49
      %p53 = pneg %p47
      %p54 = scmp.eq.s32.totalorder %s12, 3
      %p55 = por %p53, %p54
      %p56 = scmp.ne.s32.totalorder %s48, %s51
      %p57 = scmp.eq.s32.totalorder %s12, 0
      %p58 = por %p56, %p57
      %p59 = scmp.ne.s32.totalorder %s48, %s51
      %p60 = scmp.eq.s32.totalorder %s17, 3
      %p61 = por %p59, %p60
      %p62 = scmp.ne.s32.totalorder %s51, %s52
      %p63 = scmp.eq.s32.totalorder %s17, 0
      %p64 = por %p62, %p63
      %p65 = scmp.ne.s32.totalorder %s51, %s52
      %p66 = scmp.eq.s32.totalorder %s18, 3
      %p67 = por %p65, %p66
      %p69 = scmp.ne.s32.totalorder %s52, %s68
      %p70 = scmp.eq.s32.totalorder %s18, 0
      %p71 = por %p69, %p70
      %s73 = sadd.s32 %s72, 1
      %p76 = scmp.eq.s32.totalorder %s12, 3
      %p77 = scmp.ne.s32.totalorder %s72, %s74
      %p78 = scmp.eq.s32.totalorder %s12, 0
      %p79 = por %p77, %p78
      %p80 = scmp.ne.s32.totalorder %s72, %s74
      %p81 = scmp.eq.s32.totalorder %s17, 3
      %p82 = por %p80, %p81
      %p83 = scmp.ne.s32.totalorder %s74, %s75
      %p84 = scmp.eq.s32.totalorder %s17, 0
      %p85 = por %p83, %p84
      %p86 = scmp.ne.s32.totalorder %s74, %s75
      %p87 = scmp.eq.s32.totalorder %s18, 3
      %p88 = por %p86, %p87
      %p90 = scmp.ne.s32.totalorder %s75, %s89
      %p91 = scmp.eq.s32.totalorder %s18, 0
      %p92 = por %p90, %p91
      %s94 = sadd.s32 %s93, 1
      %p97 = scmp.eq.s32.totalorder %s12, 3
      %p98 = scmp.ne.s32.totalorder %s93, %s95
      %p99 = scmp.eq.s32.totalorder %s12, 0
      %p100 = por %p98, %p99
      %p101 = scmp.ne.s32.totalorder %s93, %s95
      %p102 = scmp.eq.s32.totalorder %s17, 3
      %p103 = por %p101, %p102
      %p104 = scmp.ne.s32.totalorder %s95, %s96
      %p105 = scmp.eq.s32.totalorder %s17, 0
      %p106 = por %p104, %p105
      %p107 = scmp.ne.s32.totalorder %s95, %s96
      %p108 = scmp.eq.s32.totalorder %s18, 3
      %p109 = por %p107, %p108
      %p111 = scmp.ne.s32.totalorder %s96, %s110
      %p112 = scmp.eq.s32.totalorder %s18, 0
      %p113 = por %p111, %p112
      %s115 = sadd.s32 %s114, 1
      %p118 = scmp.eq.s32.totalorder %s12, 3
      %p119 = scmp.ne.s32.totalorder %s114, %s116
      %p120 = scmp.eq.s32.totalorder %s12, 0
      %p121 = por %p119, %p120
      %p122 = scmp.ne.s32.totalorder %s114, %s116
      %p123 = scmp.eq.s32.totalorder %s17, 3
      %p124 = por %p122, %p123
      %p125 = scmp.ne.s32.totalorder %s116, %s117
      %p126 = scmp.eq.s32.totalorder %s17, 0
      %p127 = por %p125, %p126
      %p128 = scmp.ne.s32.totalorder %s116, %s117
      %p129 = scmp.eq.s32.totalorder %s18, 3
      %p130 = por %p128, %p129
      %p132 = scmp.ne.s32.totalorder %s117, %s131
      %p133 = scmp.eq.s32.totalorder %s18, 0
      %p134 = por %p132, %p133
      %p135 = scmp.le.s32.totalorder 1, %s12
      %p136 = scmp.lt.s32.totalorder %s12, 5
      %p137 = pnand %p135, %p136
      %p138 = pneg %p137
      // Predicated region
      $region9: #{discriminator_forward.13} parent=5 // pred_check
        _
      $region10: #{discriminator_forward.13} parent=5 // pred_check_branch
        %140 = sbr.rel (%p137) target = $region12
      $region11: #{discriminator_forward.13} parent=5 // pred_region
        %s141 = ssub.s32 %s12, 1
        // Predicated region
        $region13: #{discriminator_forward.13} parent=11 // pred_check
          %p142 = pneg %p85
        $region14: #{discriminator_forward.13} parent=11 // pred_check_branch
          %144 = sbr.rel (%p142) target = $region16
        $region15: #{discriminator_forward.13} parent=11 // pred_region
          _
        $region16: #{discriminator_forward.13} parent=11 // pred_fallthru
          _
      $region12: #{discriminator_forward.13} parent=5 // pred_fallthru
        _
      %p145 = scmp.lt.s32.totalorder %s12, 4
      // Predicated region
      $region17: #{discriminator_forward.13} parent=5 // pred_check
        %p146 = pneg %p145
      $region18: #{discriminator_forward.13} parent=5 // pred_check_branch
        %148 = sbr.rel (%p146) target = $region20
      $region19: #{discriminator_forward.13} parent=5 // pred_region
        // Predicated region
        $region21: #{discriminator_forward.13} parent=19 // pred_check
          %p149 = pneg %p32
        $region22: #{discriminator_forward.13} parent=19 // pred_check_branch
          %151 = sbr.rel (%p149) target = $region24
        $region23: #{discriminator_forward.13} parent=19 // pred_region
          %s152 = smul.u32 16, %s12
          %p153 = scmp.lt.s32.totalorder %s152, 63
          %s154 = scalar_select %p153, %s152, 63
          %s155 = scalar_lea.vmem %s0, %s154
          %s156 = smul.u32 16, %s12
        $region24: #{discriminator_forward.13} parent=19 // pred_fallthru
          _
        // Predicated region
        $region25: #{discriminator_forward.13} parent=19 // pred_check
          %p157 = pneg %p58
        $region26: #{discriminator_forward.13} parent=19 // pred_check_branch
          %159 = sbr.rel (%p157) target = $region28
        $region27: #{discriminator_forward.13} parent=19 // pred_region
          %s160 = smul.u32 256, %s12
          %p161 = scmp.lt.s32.totalorder %s160, 1023
          %s162 = scalar_select %p161, %s160, 1023
          %s163 = smul.addr %s162, 4
          %s164 = scalar_lea.vmem %s1, %s163
          %s165 = smul.u32 256, %s12
        $region28: #{discriminator_forward.13} parent=19 // pred_fallthru
          _
      $region20: #{discriminator_forward.13} parent=5 // pred_fallthru
        _
      %p166 = scmp.le.s32.totalorder 1, %s12
      %p167 = scmp.lt.s32.totalorder %s12, 5
      %p168 = pnand %p166, %p167
      %p169 = pneg %p168
      // Predicated region
      $region29: #{discriminator_forward.13} parent=5 // pred_check
        _
      $region30: #{discriminator_forward.13} parent=5 // pred_check_branch
        %171 = sbr.rel (%p168) target = $region32
      $region31: #{discriminator_forward.13} parent=5 // pred_region
        %s172 = ssub.s32 %s12, 1
        %s173 = smul.u32 16, %s17
        %p174 = scmp.lt.s32.totalorder %s173, 63
        %s175 = scalar_select %p174, %s173, 63
        %s176 = scalar_lea.vmem %s0, %s175
        %p177 = pneg %p38
        %p178 = pneg %p35
        %s179 = smul.u32 256, %s17
        %p180 = scmp.lt.s32.totalorder %s179, 1023
        %s181 = scalar_select %p180, %s179, 1023
        %s182 = smul.addr %s181, 4
        %s183 = scalar_lea.vmem %s1, %s182
        %p184 = pneg %p64
        %p185 = pneg %p61
        %p186 = pneg %p85
        %p187 = pneg %p82
        %p188 = pneg %p106
        %p189 = pneg %p103
        %p190 = pneg %p127
        %p191 = pneg %p124
        %s192 = smul.u32 16, %s17
        %p193 = scmp.lt.s32.totalorder %s192, 63
        %s194 = scalar_select %p193, %s192, 63
        %s195 = scalar_lea.vmem %s0, %s194
        %s196 = smul.u32 16, %s17
        %s197 = smul.u32 256, %s17
        %p198 = scmp.lt.s32.totalorder %s197, 1023
        %s199 = scalar_select %p198, %s197, 1023
        %s200 = smul.addr %s199, 4
        %s201 = scalar_lea.vmem %s1, %s200
        %s202 = smul.u32 256, %s17
        %p203 = scmp.eq.s32.totalorder %s17, 0
        // Predicated region
        $region33: #{discriminator_forward.13} parent=31 // pred_check
          %p204 = pneg %p203
        $region34: #{discriminator_forward.13} parent=31 // pred_check_branch
          %206 = sbr.rel (%p204) target = $region36
        $region35: #{discriminator_forward.13} parent=31 // pred_region
          %207 = vst [vmem:[#allocation2] sm:$0x3] 0.0
        $region36: #{discriminator_forward.13} parent=31 // pred_fallthru
          _
        %v208 = vld [vmem:[#allocation2] sm:$0x3]
        %v209 = vld [vmem:[%s195] sm:$0xff]
        %v210 = vld [vmem:[%s195 + $0x8] sm:$0xff]
        %v211 = vld [vmem:[%s201] sm:$0xf]
        %v212 = vld [vmem:[%s201 + $0x4] sm:$0xf]
        %v213 = vld [vmem:[%s201 + $0x8] sm:$0xf]
        %v214 = vld [vmem:[%s201 + $0xc] sm:$0xf]
        %v215 = vld [vmem:[%s201 + $0x10] sm:$0xf]
        %v216 = vld [vmem:[%s201 + $0x14] sm:$0xf]
        %v217 = vld [vmem:[%s201 + $0x18] sm:$0xf]
        %v218 = vld [vmem:[%s201 + $0x1c] sm:$0xf]
        %v219 = vld [vmem:[%s201 + $0x20] sm:$0xf]
        %v220 = vld [vmem:[%s201 + $0x24] sm:$0xf]
        %v221 = vld [vmem:[%s201 + $0x28] sm:$0xf]
        %v222 = vld [vmem:[%s201 + $0x2c] sm:$0xf]
        %v223 = vld [vmem:[%s201 + $0x30] sm:$0xf]
        %v224 = vld [vmem:[%s201 + $0x34] sm:$0xf]
        %v225 = vld [vmem:[%s201 + $0x38] sm:$0xf]
        %v226 = vld [vmem:[%s201 + $0x3c] sm:$0xf]
        %v227 = vld [vmem:[%s201 + $0x40] sm:$0xf]
        %v228 = vld [vmem:[%s201 + $0x44] sm:$0xf]
        %v229 = vld [vmem:[%s201 + $0x48] sm:$0xf]
        %v230 = vld [vmem:[%s201 + $0x4c] sm:$0xf]
        %v231 = vld [vmem:[%s201 + $0x50] sm:$0xf]
        %v232 = vld [vmem:[%s201 + $0x54] sm:$0xf]
        %v233 = vld [vmem:[%s201 + $0x58] sm:$0xf]
        %v234 = vld [vmem:[%s201 + $0x5c] sm:$0xf]
        %v235 = vld [vmem:[%s201 + $0x60] sm:$0xf]
        %v236 = vld [vmem:[%s201 + $0x64] sm:$0xf]
        %v237 = vld [vmem:[%s201 + $0x68] sm:$0xf]
        %v238 = vld [vmem:[%s201 + $0x6c] sm:$0xf]
        %v239 = vld [vmem:[%s201 + $0x70] sm:$0xf]
        %v240 = vld [vmem:[%s201 + $0x74] sm:$0xf]
        %v241 = vld [vmem:[%s201 + $0x78] sm:$0xf]
        %v242 = vld [vmem:[%s201 + $0x7c] sm:$0xf]
        %v243 = vld [vmem:[%s201 + $0x80] sm:$0xf]
        %v244 = vld [vmem:[%s201 + $0x84] sm:$0xf]
        %v245 = vld [vmem:[%s201 + $0x88] sm:$0xf]
        %v246 = vld [vmem:[%s201 + $0x8c] sm:$0xf]
        %v247 = vld [vmem:[%s201 + $0x90] sm:$0xf]
        %v248 = vld [vmem:[%s201 + $0x94] sm:$0xf]
        %v249 = vld [vmem:[%s201 + $0x98] sm:$0xf]
        %v250 = vld [vmem:[%s201 + $0x9c] sm:$0xf]
        %v251 = vld [vmem:[%s201 + $0xa0] sm:$0xf]
        %v252 = vld [vmem:[%s201 + $0xa4] sm:$0xf]
        %v253 = vld [vmem:[%s201 + $0xa8] sm:$0xf]
        %v254 = vld [vmem:[%s201 + $0xac] sm:$0xf]
        %v255 = vld [vmem:[%s201 + $0xb0] sm:$0xf]
        %v256 = vld [vmem:[%s201 + $0xb4] sm:$0xf]
        %v257 = vld [vmem:[%s201 + $0xb8] sm:$0xf]
        %v258 = vld [vmem:[%s201 + $0xbc] sm:$0xf]
        %v259 = vld [vmem:[%s201 + $0xc0] sm:$0xf]
        %v260 = vld [vmem:[%s201 + $0xc4] sm:$0xf]
        %v261 = vld [vmem:[%s201 + $0xc8] sm:$0xf]
        %v262 = vld [vmem:[%s201 + $0xcc] sm:$0xf]
        %v263 = vld [vmem:[%s201 + $0xd0] sm:$0xf]
        %v264 = vld [vmem:[%s201 + $0xd4] sm:$0xf]
        %v265 = vld [vmem:[%s201 + $0xd8] sm:$0xf]
        %v266 = vld [vmem:[%s201 + $0xdc] sm:$0xf]
        %v267 = vld [vmem:[%s201 + $0xe0] sm:$0xf]
        %v268 = vld [vmem:[%s201 + $0xe4] sm:$0xf]
        %v269 = vld [vmem:[%s201 + $0xe8] sm:$0xf]
        %v270 = vld [vmem:[%s201 + $0xec] sm:$0xf]
        %v271 = vld [vmem:[%s201 + $0xf0] sm:$0xf]
        %v272 = vld [vmem:[%s201 + $0xf4] sm:$0xf]
        %v273 = vld [vmem:[%s201 + $0xf8] sm:$0xf]
        %v274 = vld [vmem:[%s201 + $0xfc] sm:$0xf]
        %v275 = vld [vmem:[%s201 + $0x100] sm:$0xf]
        %v276 = vld [vmem:[%s201 + $0x104] sm:$0xf]
        %v277 = vld [vmem:[%s201 + $0x108] sm:$0xf]
        %v278 = vld [vmem:[%s201 + $0x10c] sm:$0xf]
        %v279 = vld [vmem:[%s201 + $0x110] sm:$0xf]
        %v280 = vld [vmem:[%s201 + $0x114] sm:$0xf]
        %v281 = vld [vmem:[%s201 + $0x118] sm:$0xf]
        %v282 = vld [vmem:[%s201 + $0x11c] sm:$0xf]
        %v283 = vld [vmem:[%s201 + $0x120] sm:$0xf]
        %v284 = vld [vmem:[%s201 + $0x124] sm:$0xf]
        %v285 = vld [vmem:[%s201 + $0x128] sm:$0xf]
        %v286 = vld [vmem:[%s201 + $0x12c] sm:$0xf]
        %v287 = vld [vmem:[%s201 + $0x130] sm:$0xf]
        %v288 = vld [vmem:[%s201 + $0x134] sm:$0xf]
        %v289 = vld [vmem:[%s201 + $0x138] sm:$0xf]
        %v290 = vld [vmem:[%s201 + $0x13c] sm:$0xf]
        %v291 = vld [vmem:[%s201 + $0x140] sm:$0xf]
        %v292 = vld [vmem:[%s201 + $0x144] sm:$0xf]
        %v293 = vld [vmem:[%s201 + $0x148] sm:$0xf]
        %v294 = vld [vmem:[%s201 + $0x14c] sm:$0xf]
        %v295 = vld [vmem:[%s201 + $0x150] sm:$0xf]
        %v296 = vld [vmem:[%s201 + $0x154] sm:$0xf]
        %v297 = vld [vmem:[%s201 + $0x158] sm:$0xf]
        %v298 = vld [vmem:[%s201 + $0x15c] sm:$0xf]
        %v299 = vld [vmem:[%s201 + $0x160] sm:$0xf]
        %v300 = vld [vmem:[%s201 + $0x164] sm:$0xf]
        %v301 = vld [vmem:[%s201 + $0x168] sm:$0xf]
        %v302 = vld [vmem:[%s201 + $0x16c] sm:$0xf]
        %v303 = vld [vmem:[%s201 + $0x170] sm:$0xf]
        %v304 = vld [vmem:[%s201 + $0x174] sm:$0xf]
        %v305 = vld [vmem:[%s201 + $0x178] sm:$0xf]
        %v306 = vld [vmem:[%s201 + $0x17c] sm:$0xf]
        %v307 = vld [vmem:[%s201 + $0x180] sm:$0xf]
        %v308 = vld [vmem:[%s201 + $0x184] sm:$0xf]
        %v309 = vld [vmem:[%s201 + $0x188] sm:$0xf]
        %v310 = vld [vmem:[%s201 + $0x18c] sm:$0xf]
        %v311 = vld [vmem:[%s201 + $0x190] sm:$0xf]
        %v312 = vld [vmem:[%s201 + $0x194] sm:$0xf]
        %v313 = vld [vmem:[%s201 + $0x198] sm:$0xf]
        %v314 = vld [vmem:[%s201 + $0x19c] sm:$0xf]
        %v315 = vld [vmem:[%s201 + $0x1a0] sm:$0xf]
        %v316 = vld [vmem:[%s201 + $0x1a4] sm:$0xf]
        %v317 = vld [vmem:[%s201 + $0x1a8] sm:$0xf]
        %v318 = vld [vmem:[%s201 + $0x1ac] sm:$0xf]
        %v319 = vld [vmem:[%s201 + $0x1b0] sm:$0xf]
        %v320 = vld [vmem:[%s201 + $0x1b4] sm:$0xf]
        %v321 = vld [vmem:[%s201 + $0x1b8] sm:$0xf]
        %v322 = vld [vmem:[%s201 + $0x1bc] sm:$0xf]
        %v323 = vld [vmem:[%s201 + $0x1c0] sm:$0xf]
        %v324 = vld [vmem:[%s201 + $0x1c4] sm:$0xf]
        %v325 = vld [vmem:[%s201 + $0x1c8] sm:$0xf]
        %v326 = vld [vmem:[%s201 + $0x1cc] sm:$0xf]
        %v327 = vld [vmem:[%s201 + $0x1d0] sm:$0xf]
        %v328 = vld [vmem:[%s201 + $0x1d4] sm:$0xf]
        %v329 = vld [vmem:[%s201 + $0x1d8] sm:$0xf]
        %v330 = vld [vmem:[%s201 + $0x1dc] sm:$0xf]
        %v331 = vld [vmem:[%s201 + $0x1e0] sm:$0xf]
        %v332 = vld [vmem:[%s201 + $0x1e4] sm:$0xf]
        %v333 = vld [vmem:[%s201 + $0x1e8] sm:$0xf]
        %v334 = vld [vmem:[%s201 + $0x1ec] sm:$0xf]
        %v335 = vld [vmem:[%s201 + $0x1f0] sm:$0xf]
        %v336 = vld [vmem:[%s201 + $0x1f4] sm:$0xf]
        %v337 = vld [vmem:[%s201 + $0x1f8] sm:$0xf]
        %v338 = vld [vmem:[%s201 + $0x1fc] sm:$0xf]
        %v339 = vld [vmem:[%s201 + $0x200] sm:$0xf]
        %v340 = vld [vmem:[%s201 + $0x204] sm:$0xf]
        %v341 = vld [vmem:[%s201 + $0x208] sm:$0xf]
        %v342 = vld [vmem:[%s201 + $0x20c] sm:$0xf]
        %v343 = vld [vmem:[%s201 + $0x210] sm:$0xf]
        %v344 = vld [vmem:[%s201 + $0x214] sm:$0xf]
        %v345 = vld [vmem:[%s201 + $0x218] sm:$0xf]
        %v346 = vld [vmem:[%s201 + $0x21c] sm:$0xf]
        %v347 = vld [vmem:[%s201 + $0x220] sm:$0xf]
        %v348 = vld [vmem:[%s201 + $0x224] sm:$0xf]
        %v349 = vld [vmem:[%s201 + $0x228] sm:$0xf]
        %v350 = vld [vmem:[%s201 + $0x22c] sm:$0xf]
        %v351 = vld [vmem:[%s201 + $0x230] sm:$0xf]
        %v352 = vld [vmem:[%s201 + $0x234] sm:$0xf]
        %v353 = vld [vmem:[%s201 + $0x238] sm:$0xf]
        %v354 = vld [vmem:[%s201 + $0x23c] sm:$0xf]
        %v355 = vld [vmem:[%s201 + $0x240] sm:$0xf]
        %v356 = vld [vmem:[%s201 + $0x244] sm:$0xf]
        %v357 = vld [vmem:[%s201 + $0x248] sm:$0xf]
        %v358 = vld [vmem:[%s201 + $0x24c] sm:$0xf]
        %v359 = vld [vmem:[%s201 + $0x250] sm:$0xf]
        %v360 = vld [vmem:[%s201 + $0x254] sm:$0xf]
        %v361 = vld [vmem:[%s201 + $0x258] sm:$0xf]
        %v362 = vld [vmem:[%s201 + $0x25c] sm:$0xf]
        %v363 = vld [vmem:[%s201 + $0x260] sm:$0xf]
        %v364 = vld [vmem:[%s201 + $0x264] sm:$0xf]
        %v365 = vld [vmem:[%s201 + $0x268] sm:$0xf]
        %v366 = vld [vmem:[%s201 + $0x26c] sm:$0xf]
        %v367 = vld [vmem:[%s201 + $0x270] sm:$0xf]
        %v368 = vld [vmem:[%s201 + $0x274] sm:$0xf]
        %v369 = vld [vmem:[%s201 + $0x278] sm:$0xf]
        %v370 = vld [vmem:[%s201 + $0x27c] sm:$0xf]
        %v371 = vld [vmem:[%s201 + $0x280] sm:$0xf]
        %v372 = vld [vmem:[%s201 + $0x284] sm:$0xf]
        %v373 = vld [vmem:[%s201 + $0x288] sm:$0xf]
        %v374 = vld [vmem:[%s201 + $0x28c] sm:$0xf]
        %v375 = vld [vmem:[%s201 + $0x290] sm:$0xf]
        %v376 = vld [vmem:[%s201 + $0x294] sm:$0xf]
        %v377 = vld [vmem:[%s201 + $0x298] sm:$0xf]
        %v378 = vld [vmem:[%s201 + $0x29c] sm:$0xf]
        %v379 = vld [vmem:[%s201 + $0x2a0] sm:$0xf]
        %v380 = vld [vmem:[%s201 + $0x2a4] sm:$0xf]
        %v381 = vld [vmem:[%s201 + $0x2a8] sm:$0xf]
        %v382 = vld [vmem:[%s201 + $0x2ac] sm:$0xf]
        %v383 = vld [vmem:[%s201 + $0x2b0] sm:$0xf]
        %v384 = vld [vmem:[%s201 + $0x2b4] sm:$0xf]
        %v385 = vld [vmem:[%s201 + $0x2b8] sm:$0xf]
        %v386 = vld [vmem:[%s201 + $0x2bc] sm:$0xf]
        %v387 = vld [vmem:[%s201 + $0x2c0] sm:$0xf]
        %v388 = vld [vmem:[%s201 + $0x2c4] sm:$0xf]
        %v389 = vld [vmem:[%s201 + $0x2c8] sm:$0xf]
        %v390 = vld [vmem:[%s201 + $0x2cc] sm:$0xf]
        %v391 = vld [vmem:[%s201 + $0x2d0] sm:$0xf]
        %v392 = vld [vmem:[%s201 + $0x2d4] sm:$0xf]
        %v393 = vld [vmem:[%s201 + $0x2d8] sm:$0xf]
        %v394 = vld [vmem:[%s201 + $0x2dc] sm:$0xf]
        %v395 = vld [vmem:[%s201 + $0x2e0] sm:$0xf]
        %v396 = vld [vmem:[%s201 + $0x2e4] sm:$0xf]
        %v397 = vld [vmem:[%s201 + $0x2e8] sm:$0xf]
        %v398 = vld [vmem:[%s201 + $0x2ec] sm:$0xf]
        %v399 = vld [vmem:[%s201 + $0x2f0] sm:$0xf]
        %v400 = vld [vmem:[%s201 + $0x2f4] sm:$0xf]
        %v401 = vld [vmem:[%s201 + $0x2f8] sm:$0xf]
        %v402 = vld [vmem:[%s201 + $0x2fc] sm:$0xf]
        %v403 = vld [vmem:[%s201 + $0x300] sm:$0xf]
        %v404 = vld [vmem:[%s201 + $0x304] sm:$0xf]
        %v405 = vld [vmem:[%s201 + $0x308] sm:$0xf]
        %v406 = vld [vmem:[%s201 + $0x30c] sm:$0xf]
        %v407 = vld [vmem:[%s201 + $0x310] sm:$0xf]
        %v408 = vld [vmem:[%s201 + $0x314] sm:$0xf]
        %v409 = vld [vmem:[%s201 + $0x318] sm:$0xf]
        %v410 = vld [vmem:[%s201 + $0x31c] sm:$0xf]
        %v411 = vld [vmem:[%s201 + $0x320] sm:$0xf]
        %v412 = vld [vmem:[%s201 + $0x324] sm:$0xf]
        %v413 = vld [vmem:[%s201 + $0x328] sm:$0xf]
        %v414 = vld [vmem:[%s201 + $0x32c] sm:$0xf]
        %v415 = vld [vmem:[%s201 + $0x330] sm:$0xf]
        %v416 = vld [vmem:[%s201 + $0x334] sm:$0xf]
        %v417 = vld [vmem:[%s201 + $0x338] sm:$0xf]
        %v418 = vld [vmem:[%s201 + $0x33c] sm:$0xf]
        %v419 = vld [vmem:[%s201 + $0x340] sm:$0xf]
        %v420 = vld [vmem:[%s201 + $0x344] sm:$0xf]
        %v421 = vld [vmem:[%s201 + $0x348] sm:$0xf]
        %v422 = vld [vmem:[%s201 + $0x34c] sm:$0xf]
        %v423 = vld [vmem:[%s201 + $0x350] sm:$0xf]
        %v424 = vld [vmem:[%s201 + $0x354] sm:$0xf]
        %v425 = vld [vmem:[%s201 + $0x358] sm:$0xf]
        %v426 = vld [vmem:[%s201 + $0x35c] sm:$0xf]
        %v427 = vld [vmem:[%s201 + $0x360] sm:$0xf]
        %v428 = vld [vmem:[%s201 + $0x364] sm:$0xf]
        %v429 = vld [vmem:[%s201 + $0x368] sm:$0xf]
        %v430 = vld [vmem:[%s201 + $0x36c] sm:$0xf]
        %v431 = vld [vmem:[%s201 + $0x370] sm:$0xf]
        %v432 = vld [vmem:[%s201 + $0x374] sm:$0xf]
        %v433 = vld [vmem:[%s201 + $0x378] sm:$0xf]
        %v434 = vld [vmem:[%s201 + $0x37c] sm:$0xf]
        %v435 = vld [vmem:[%s201 + $0x380] sm:$0xf]
        %v436 = vld [vmem:[%s201 + $0x384] sm:$0xf]
        %v437 = vld [vmem:[%s201 + $0x388] sm:$0xf]
        %v438 = vld [vmem:[%s201 + $0x38c] sm:$0xf]
        %v439 = vld [vmem:[%s201 + $0x390] sm:$0xf]
        %v440 = vld [vmem:[%s201 + $0x394] sm:$0xf]
        %v441 = vld [vmem:[%s201 + $0x398] sm:$0xf]
        %v442 = vld [vmem:[%s201 + $0x39c] sm:$0xf]
        %v443 = vld [vmem:[%s201 + $0x3a0] sm:$0xf]
        %v444 = vld [vmem:[%s201 + $0x3a4] sm:$0xf]
        %v445 = vld [vmem:[%s201 + $0x3a8] sm:$0xf]
        %v446 = vld [vmem:[%s201 + $0x3ac] sm:$0xf]
        %v447 = vld [vmem:[%s201 + $0x3b0] sm:$0xf]
        %v448 = vld [vmem:[%s201 + $0x3b4] sm:$0xf]
        %v449 = vld [vmem:[%s201 + $0x3b8] sm:$0xf]
        %v450 = vld [vmem:[%s201 + $0x3bc] sm:$0xf]
        %v451 = vld [vmem:[%s201 + $0x3c0] sm:$0xf]
        %v452 = vld [vmem:[%s201 + $0x3c4] sm:$0xf]
        %v453 = vld [vmem:[%s201 + $0x3c8] sm:$0xf]
        %v454 = vld [vmem:[%s201 + $0x3cc] sm:$0xf]
        %v455 = vld [vmem:[%s201 + $0x3d0] sm:$0xf]
        %v456 = vld [vmem:[%s201 + $0x3d4] sm:$0xf]
        %v457 = vld [vmem:[%s201 + $0x3d8] sm:$0xf]
        %v458 = vld [vmem:[%s201 + $0x3dc] sm:$0xf]
        %v459 = vld [vmem:[%s201 + $0x3e0] sm:$0xf]
        %v460 = vld [vmem:[%s201 + $0x3e4] sm:$0xf]
        %v461 = vld [vmem:[%s201 + $0x3e8] sm:$0xf]
        %v462 = vld [vmem:[%s201 + $0x3ec] sm:$0xf]
        %v463 = vld [vmem:[%s201 + $0x3f0] sm:$0xf]
        %v464 = vld [vmem:[%s201 + $0x3f4] sm:$0xf]
        %v465 = vld [vmem:[%s201 + $0x3f8] sm:$0xf]
        %v466 = vld [vmem:[%s201 + $0x3fc] sm:$0xf]
        %468 = vst [vmem:[#allocation1] ss:$9 sm:$0xff] %v209
        %v469 = vld [vmem:[#allocation1] sm:$0xff]
        %v470 = vld [vmem:[#allocation1 + $0x9] sm:$0xff]
        %v471 = vld [vmem:[#allocation1 + $0x12] sm:$0xff]
        %v472 = vld [vmem:[#allocation1 + $0x1b] sm:$0xff]
        %v473 = vld [vmem:[#allocation1 + $0x24] sm:$0xff]
        %v474 = vld [vmem:[#allocation1 + $0x2d] sm:$0xff]
        %v475 = vld [vmem:[#allocation1 + $0x36] sm:$0xff]
        %v476 = vld [vmem:[#allocation1 + $0x3f] sm:$0xff]
        %478 = vst [vmem:[#allocation1] ss:$9 sm:$0xff] %v210
        %v479 = vld [vmem:[#allocation1] sm:$0xff]
        %v480 = vld [vmem:[#allocation1 + $0x9] sm:$0xff]
        %v481 = vld [vmem:[#allocation1 + $0x12] sm:$0xff]
        %v482 = vld [vmem:[#allocation1 + $0x1b] sm:$0xff]
        %v483 = vld [vmem:[#allocation1 + $0x24] sm:$0xff]
        %v484 = vld [vmem:[#allocation1 + $0x2d] sm:$0xff]
        %v485 = vld [vmem:[#allocation1 + $0x36] sm:$0xff]
        %v486 = vld [vmem:[#allocation1 + $0x3f] sm:$0xff]
        %v759 = vunpack.c.l.b16 %v211
        %v760 = vunpack.c.l.b16 %v212
        %v761 = vunpack.c.l.b16 %v213
        %v762 = vunpack.c.l.b16 %v214
        %v763 = vunpack.c.l.b16 %v215
        %v764 = vunpack.c.l.b16 %v216
        %v765 = vunpack.c.l.b16 %v217
        %v766 = vunpack.c.l.b16 %v218
        %v767 = vunpack.c.l.b16 %v219
        %v768 = vunpack.c.l.b16 %v220
        %v769 = vunpack.c.l.b16 %v221
        %v770 = vunpack.c.l.b16 %v222
        %v771 = vunpack.c.l.b16 %v223
        %v772 = vunpack.c.l.b16 %v224
        %v773 = vunpack.c.l.b16 %v225
        %v774 = vunpack.c.l.b16 %v226
        %v775 = vunpack.c.l.b16 %v227
        %v776 = vunpack.c.l.b16 %v228
        %v777 = vunpack.c.l.b16 %v229
        %v778 = vunpack.c.l.b16 %v230
        %v779 = vunpack.c.l.b16 %v231
        %v780 = vunpack.c.l.b16 %v232
        %v781 = vunpack.c.l.b16 %v233
        %v782 = vunpack.c.l.b16 %v234
        %v783 = vunpack.c.l.b16 %v235
        %v784 = vunpack.c.l.b16 %v236
        %v785 = vunpack.c.l.b16 %v237
        %v786 = vunpack.c.l.b16 %v238
        %v787 = vunpack.c.l.b16 %v239
        %v788 = vunpack.c.l.b16 %v240
        %v789 = vunpack.c.l.b16 %v241
        %v790 = vunpack.c.l.b16 %v242
        %v791 = vunpack.c.l.b16 %v243
        %v792 = vunpack.c.l.b16 %v244
        %v793 = vunpack.c.l.b16 %v245
        %v794 = vunpack.c.l.b16 %v246
        %v795 = vunpack.c.l.b16 %v247
        %v796 = vunpack.c.l.b16 %v248
        %v797 = vunpack.c.l.b16 %v249
        %v798 = vunpack.c.l.b16 %v250
        %v799 = vunpack.c.l.b16 %v251
        %v800 = vunpack.c.l.b16 %v252
        %v801 = vunpack.c.l.b16 %v253
        %v802 = vunpack.c.l.b16 %v254
        %v803 = vunpack.c.l.b16 %v255
        %v804 = vunpack.c.l.b16 %v256
        %v805 = vunpack.c.l.b16 %v257
        %v806 = vunpack.c.l.b16 %v258
        %v807 = vunpack.c.l.b16 %v259
        %v808 = vunpack.c.l.b16 %v260
        %v809 = vunpack.c.l.b16 %v261
        %v810 = vunpack.c.l.b16 %v262
        %v811 = vunpack.c.l.b16 %v263
        %v812 = vunpack.c.l.b16 %v264
        %v813 = vunpack.c.l.b16 %v265
        %v814 = vunpack.c.l.b16 %v266
        %v815 = vunpack.c.l.b16 %v267
        %v816 = vunpack.c.l.b16 %v268
        %v817 = vunpack.c.l.b16 %v269
        %v818 = vunpack.c.l.b16 %v270
        %v819 = vunpack.c.l.b16 %v271
        %v820 = vunpack.c.l.b16 %v272
        %v821 = vunpack.c.l.b16 %v273
        %v822 = vunpack.c.l.b16 %v274
        %v823 = vunpack.c.l.b16 %v275
        %v824 = vunpack.c.l.b16 %v276
        %v825 = vunpack.c.l.b16 %v277
        %v826 = vunpack.c.l.b16 %v278
        %v827 = vunpack.c.l.b16 %v279
        %v828 = vunpack.c.l.b16 %v280
        %v829 = vunpack.c.l.b16 %v281
        %v830 = vunpack.c.l.b16 %v282
        %v831 = vunpack.c.l.b16 %v283
        %v832 = vunpack.c.l.b16 %v284
        %v833 = vunpack.c.l.b16 %v285
        %v834 = vunpack.c.l.b16 %v286
        %v835 = vunpack.c.l.b16 %v287
        %v836 = vunpack.c.l.b16 %v288
        %v837 = vunpack.c.l.b16 %v289
        %v838 = vunpack.c.l.b16 %v290
        %v839 = vunpack.c.l.b16 %v291
        %v840 = vunpack.c.l.b16 %v292
        %v841 = vunpack.c.l.b16 %v293
        %v842 = vunpack.c.l.b16 %v294
        %v843 = vunpack.c.l.b16 %v295
        %v844 = vunpack.c.l.b16 %v296
        %v845 = vunpack.c.l.b16 %v297
        %v846 = vunpack.c.l.b16 %v298
        %v847 = vunpack.c.l.b16 %v299
        %v848 = vunpack.c.l.b16 %v300
        %v849 = vunpack.c.l.b16 %v301
        %v850 = vunpack.c.l.b16 %v302
        %v851 = vunpack.c.l.b16 %v303
        %v852 = vunpack.c.l.b16 %v304
        %v853 = vunpack.c.l.b16 %v305
        %v854 = vunpack.c.l.b16 %v306
        %v855 = vunpack.c.l.b16 %v307
        %v856 = vunpack.c.l.b16 %v308
        %v857 = vunpack.c.l.b16 %v309
        %v858 = vunpack.c.l.b16 %v310
        %v859 = vunpack.c.l.b16 %v311
        %v860 = vunpack.c.l.b16 %v312
        %v861 = vunpack.c.l.b16 %v313
        %v862 = vunpack.c.l.b16 %v314
        %v863 = vunpack.c.l.b16 %v315
        %v864 = vunpack.c.l.b16 %v316
        %v865 = vunpack.c.l.b16 %v317
        %v866 = vunpack.c.l.b16 %v318
        %v867 = vunpack.c.l.b16 %v319
        %v868 = vunpack.c.l.b16 %v320
        %v869 = vunpack.c.l.b16 %v321
        %v870 = vunpack.c.l.b16 %v322
        %v871 = vunpack.c.l.b16 %v323
        %v872 = vunpack.c.l.b16 %v324
        %v873 = vunpack.c.l.b16 %v325
        %v874 = vunpack.c.l.b16 %v326
        %v875 = vunpack.c.l.b16 %v327
        %v876 = vunpack.c.l.b16 %v328
        %v877 = vunpack.c.l.b16 %v329
        %v878 = vunpack.c.l.b16 %v330
        %v879 = vunpack.c.l.b16 %v331
        %v880 = vunpack.c.l.b16 %v332
        %v881 = vunpack.c.l.b16 %v333
        %v882 = vunpack.c.l.b16 %v334
        %v883 = vunpack.c.l.b16 %v335
        %v884 = vunpack.c.l.b16 %v336
        %v885 = vunpack.c.l.b16 %v337
        %v886 = vunpack.c.l.b16 %v338
        %v887 = vunpack.c.l.b16 %v339
        %v888 = vunpack.c.l.b16 %v340
        %v889 = vunpack.c.l.b16 %v341
        %v890 = vunpack.c.l.b16 %v342
        %v891 = vunpack.c.l.b16 %v343
        %v892 = vunpack.c.l.b16 %v344
        %v893 = vunpack.c.l.b16 %v345
        %v894 = vunpack.c.l.b16 %v346
        %v895 = vunpack.c.l.b16 %v347
        %v896 = vunpack.c.l.b16 %v348
        %v897 = vunpack.c.l.b16 %v349
        %v898 = vunpack.c.l.b16 %v350
        %v899 = vunpack.c.l.b16 %v351
        %v900 = vunpack.c.l.b16 %v352
        %v901 = vunpack.c.l.b16 %v353
        %v902 = vunpack.c.l.b16 %v354
        %v903 = vunpack.c.l.b16 %v355
        %v904 = vunpack.c.l.b16 %v356
        %v905 = vunpack.c.l.b16 %v357
        %v906 = vunpack.c.l.b16 %v358
        %v907 = vunpack.c.l.b16 %v359
        %v908 = vunpack.c.l.b16 %v360
        %v909 = vunpack.c.l.b16 %v361
        %v910 = vunpack.c.l.b16 %v362
        %v911 = vunpack.c.l.b16 %v363
        %v912 = vunpack.c.l.b16 %v364
        %v913 = vunpack.c.l.b16 %v365
        %v914 = vunpack.c.l.b16 %v366
        %v915 = vunpack.c.l.b16 %v367
        %v916 = vunpack.c.l.b16 %v368
        %v917 = vunpack.c.l.b16 %v369
        %v918 = vunpack.c.l.b16 %v370
        %v919 = vunpack.c.l.b16 %v371
        %v920 = vunpack.c.l.b16 %v372
        %v921 = vunpack.c.l.b16 %v373
        %v922 = vunpack.c.l.b16 %v374
        %v923 = vunpack.c.l.b16 %v375
        %v924 = vunpack.c.l.b16 %v376
        %v925 = vunpack.c.l.b16 %v377
        %v926 = vunpack.c.l.b16 %v378
        %v927 = vunpack.c.l.b16 %v379
        %v928 = vunpack.c.l.b16 %v380
        %v929 = vunpack.c.l.b16 %v381
        %v930 = vunpack.c.l.b16 %v382
        %v931 = vunpack.c.l.b16 %v383
        %v932 = vunpack.c.l.b16 %v384
        %v933 = vunpack.c.l.b16 %v385
        %v934 = vunpack.c.l.b16 %v386
        %v935 = vunpack.c.l.b16 %v387
        %v936 = vunpack.c.l.b16 %v388
        %v937 = vunpack.c.l.b16 %v389
        %v938 = vunpack.c.l.b16 %v390
        %v939 = vunpack.c.l.b16 %v391
        %v940 = vunpack.c.l.b16 %v392
        %v941 = vunpack.c.l.b16 %v393
        %v942 = vunpack.c.l.b16 %v394
        %v943 = vunpack.c.l.b16 %v395
        %v944 = vunpack.c.l.b16 %v396
        %v945 = vunpack.c.l.b16 %v397
        %v946 = vunpack.c.l.b16 %v398
        %v947 = vunpack.c.l.b16 %v399
        %v948 = vunpack.c.l.b16 %v400
        %v949 = vunpack.c.l.b16 %v401
        %v950 = vunpack.c.l.b16 %v402
        %v951 = vunpack.c.l.b16 %v403
        %v952 = vunpack.c.l.b16 %v404
        %v953 = vunpack.c.l.b16 %v405
        %v954 = vunpack.c.l.b16 %v406
        %v955 = vunpack.c.l.b16 %v407
        %v956 = vunpack.c.l.b16 %v408
        %v957 = vunpack.c.l.b16 %v409
        %v958 = vunpack.c.l.b16 %v410
        %v959 = vunpack.c.l.b16 %v411
        %v960 = vunpack.c.l.b16 %v412
        %v961 = vunpack.c.l.b16 %v413
        %v962 = vunpack.c.l.b16 %v414
        %v963 = vunpack.c.l.b16 %v415
        %v964 = vunpack.c.l.b16 %v416
        %v965 = vunpack.c.l.b16 %v417
        %v966 = vunpack.c.l.b16 %v418
        %v967 = vunpack.c.l.b16 %v419
        %v968 = vunpack.c.l.b16 %v420
        %v969 = vunpack.c.l.b16 %v421
        %v970 = vunpack.c.l.b16 %v422
        %v971 = vunpack.c.l.b16 %v423
        %v972 = vunpack.c.l.b16 %v424
        %v973 = vunpack.c.l.b16 %v425
        %v974 = vunpack.c.l.b16 %v426
        %v975 = vunpack.c.l.b16 %v427
        %v976 = vunpack.c.l.b16 %v428
        %v977 = vunpack.c.l.b16 %v429
        %v978 = vunpack.c.l.b16 %v430
        %v979 = vunpack.c.l.b16 %v431
        %v980 = vunpack.c.l.b16 %v432
        %v981 = vunpack.c.l.b16 %v433
        %v982 = vunpack.c.l.b16 %v434
        %v983 = vunpack.c.l.b16 %v435
        %v984 = vunpack.c.l.b16 %v436
        %v985 = vunpack.c.l.b16 %v437
        %v986 = vunpack.c.l.b16 %v438
        %v987 = vunpack.c.l.b16 %v439
        %v988 = vunpack.c.l.b16 %v440
        %v989 = vunpack.c.l.b16 %v441
        %v990 = vunpack.c.l.b16 %v442
        %v991 = vunpack.c.l.b16 %v443
        %v992 = vunpack.c.l.b16 %v444
        %v993 = vunpack.c.l.b16 %v445
        %v994 = vunpack.c.l.b16 %v446
        %v995 = vunpack.c.l.b16 %v447
        %v996 = vunpack.c.l.b16 %v448
        %v997 = vunpack.c.l.b16 %v449
        %v998 = vunpack.c.l.b16 %v450
        %v999 = vunpack.c.l.b16 %v451
        %v1000 = vunpack.c.l.b16 %v452
        %v1001 = vunpack.c.l.b16 %v453
        %v1002 = vunpack.c.l.b16 %v454
        %v1003 = vunpack.c.l.b16 %v455
        %v1004 = vunpack.c.l.b16 %v456
        %v1005 = vunpack.c.l.b16 %v457
        %v1006 = vunpack.c.l.b16 %v458
        %v1007 = vunpack.c.l.b16 %v459
        %v1008 = vunpack.c.l.b16 %v460
        %v1009 = vunpack.c.l.b16 %v461
        %v1010 = vunpack.c.l.b16 %v462
        %v1011 = vunpack.c.l.b16 %v463
        %v1012 = vunpack.c.l.b16 %v464
        %v1013 = vunpack.c.l.b16 %v465
        %v1014 = vunpack.c.l.b16 %v466
        %v1015 = vpack.c.b16 %v760, %v759
        %v1016 = vpack.c.b16 %v762, %v761
        %v1017 = vpack.c.b16 %v764, %v763
        %v1018 = vpack.c.b16 %v766, %v765
        %v1019 = vpack.c.b16 %v768, %v767
        %v1020 = vpack.c.b16 %v770, %v769
        %v1021 = vpack.c.b16 %v772, %v771
        %v1022 = vpack.c.b16 %v774, %v773
        %v1023 = vpack.c.b16 %v776, %v775
        %v1024 = vpack.c.b16 %v778, %v777
        %v1025 = vpack.c.b16 %v780, %v779
        %v1026 = vpack.c.b16 %v782, %v781
        %v1027 = vpack.c.b16 %v784, %v783
        %v1028 = vpack.c.b16 %v786, %v785
        %v1029 = vpack.c.b16 %v788, %v787
        %v1030 = vpack.c.b16 %v790, %v789
        %v1031 = vpack.c.b16 %v792, %v791
        %v1032 = vpack.c.b16 %v794, %v793
        %v1033 = vpack.c.b16 %v796, %v795
        %v1034 = vpack.c.b16 %v798, %v797
        %v1035 = vpack.c.b16 %v800, %v799
        %v1036 = vpack.c.b16 %v802, %v801
        %v1037 = vpack.c.b16 %v804, %v803
        %v1038 = vpack.c.b16 %v806, %v805
        %v1039 = vpack.c.b16 %v808, %v807
        %v1040 = vpack.c.b16 %v810, %v809
        %v1041 = vpack.c.b16 %v812, %v811
        %v1042 = vpack.c.b16 %v814, %v813
        %v1043 = vpack.c.b16 %v816, %v815
        %v1044 = vpack.c.b16 %v818, %v817
        %v1045 = vpack.c.b16 %v820, %v819
        %v1046 = vpack.c.b16 %v822, %v821
        %v1047 = vpack.c.b16 %v824, %v823
        %v1048 = vpack.c.b16 %v826, %v825
        %v1049 = vpack.c.b16 %v828, %v827
        %v1050 = vpack.c.b16 %v830, %v829
        %v1051 = vpack.c.b16 %v832, %v831
        %v1052 = vpack.c.b16 %v834, %v833
        %v1053 = vpack.c.b16 %v836, %v835
        %v1054 = vpack.c.b16 %v838, %v837
        %v1055 = vpack.c.b16 %v840, %v839
        %v1056 = vpack.c.b16 %v842, %v841
        %v1057 = vpack.c.b16 %v844, %v843
        %v1058 = vpack.c.b16 %v846, %v845
        %v1059 = vpack.c.b16 %v848, %v847
        %v1060 = vpack.c.b16 %v850, %v849
        %v1061 = vpack.c.b16 %v852, %v851
        %v1062 = vpack.c.b16 %v854, %v853
        %v1063 = vpack.c.b16 %v856, %v855
        %v1064 = vpack.c.b16 %v858, %v857
        %v1065 = vpack.c.b16 %v860, %v859
        %v1066 = vpack.c.b16 %v862, %v861
        %v1067 = vpack.c.b16 %v864, %v863
        %v1068 = vpack.c.b16 %v866, %v865
        %v1069 = vpack.c.b16 %v868, %v867
        %v1070 = vpack.c.b16 %v870, %v869
        %v1071 = vpack.c.b16 %v872, %v871
        %v1072 = vpack.c.b16 %v874, %v873
        %v1073 = vpack.c.b16 %v876, %v875
        %v1074 = vpack.c.b16 %v878, %v877
        %v1075 = vpack.c.b16 %v880, %v879
        %v1076 = vpack.c.b16 %v882, %v881
        %v1077 = vpack.c.b16 %v884, %v883
        %v1078 = vpack.c.b16 %v886, %v885
        %v1079 = vpack.c.b16 %v888, %v887
        %v1080 = vpack.c.b16 %v890, %v889
        %v1081 = vpack.c.b16 %v892, %v891
        %v1082 = vpack.c.b16 %v894, %v893
        %v1083 = vpack.c.b16 %v896, %v895
        %v1084 = vpack.c.b16 %v898, %v897
        %v1085 = vpack.c.b16 %v900, %v899
        %v1086 = vpack.c.b16 %v902, %v901
        %v1087 = vpack.c.b16 %v904, %v903
        %v1088 = vpack.c.b16 %v906, %v905
        %v1089 = vpack.c.b16 %v908, %v907
        %v1090 = vpack.c.b16 %v910, %v909
        %v1091 = vpack.c.b16 %v912, %v911
        %v1092 = vpack.c.b16 %v914, %v913
        %v1093 = vpack.c.b16 %v916, %v915
        %v1094 = vpack.c.b16 %v918, %v917
        %v1095 = vpack.c.b16 %v920, %v919
        %v1096 = vpack.c.b16 %v922, %v921
        %v1097 = vpack.c.b16 %v924, %v923
        %v1098 = vpack.c.b16 %v926, %v925
        %v1099 = vpack.c.b16 %v928, %v927
        %v1100 = vpack.c.b16 %v930, %v929
        %v1101 = vpack.c.b16 %v932, %v931
        %v1102 = vpack.c.b16 %v934, %v933
        %v1103 = vpack.c.b16 %v936, %v935
        %v1104 = vpack.c.b16 %v938, %v937
        %v1105 = vpack.c.b16 %v940, %v939
        %v1106 = vpack.c.b16 %v942, %v941
        %v1107 = vpack.c.b16 %v944, %v943
        %v1108 = vpack.c.b16 %v946, %v945
        %v1109 = vpack.c.b16 %v948, %v947
        %v1110 = vpack.c.b16 %v950, %v949
        %v1111 = vpack.c.b16 %v952, %v951
        %v1112 = vpack.c.b16 %v954, %v953
        %v1113 = vpack.c.b16 %v956, %v955
        %v1114 = vpack.c.b16 %v958, %v957
        %v1115 = vpack.c.b16 %v960, %v959
        %v1116 = vpack.c.b16 %v962, %v961
        %v1117 = vpack.c.b16 %v964, %v963
        %v1118 = vpack.c.b16 %v966, %v965
        %v1119 = vpack.c.b16 %v968, %v967
        %v1120 = vpack.c.b16 %v970, %v969
        %v1121 = vpack.c.b16 %v972, %v971
        %v1122 = vpack.c.b16 %v974, %v973
        %v1123 = vpack.c.b16 %v976, %v975
        %v1124 = vpack.c.b16 %v978, %v977
        %v1125 = vpack.c.b16 %v980, %v979
        %v1126 = vpack.c.b16 %v982, %v981
        %v1127 = vpack.c.b16 %v984, %v983
        %v1128 = vpack.c.b16 %v986, %v985
        %v1129 = vpack.c.b16 %v988, %v987
        %v1130 = vpack.c.b16 %v990, %v989
        %v1131 = vpack.c.b16 %v992, %v991
        %v1132 = vpack.c.b16 %v994, %v993
        %v1133 = vpack.c.b16 %v996, %v995
        %v1134 = vpack.c.b16 %v998, %v997
        %v1135 = vpack.c.b16 %v1000, %v999
        %v1136 = vpack.c.b16 %v1002, %v1001
        %v1137 = vpack.c.b16 %v1004, %v1003
        %v1138 = vpack.c.b16 %v1006, %v1005
        %v1139 = vpack.c.b16 %v1008, %v1007
        %v1140 = vpack.c.b16 %v1010, %v1009
        %v1141 = vpack.c.b16 %v1012, %v1011
        %v1142 = vpack.c.b16 %v1014, %v1013
        %1271 = vmatpush.bf16.msra.mxu0 %v1022
        %1272 = vmatpush.bf16.msra.mxu0 %v1021
        %1273 = vmatpush.bf16.msra.mxu0 %v1020
        %1274 = vmatpush.bf16.msra.mxu0 %v1019
        %1275 = vmatpush.bf16.msra.mxu0 %v1018
        %1276 = vmatpush.bf16.msra.mxu0 %v1017
        %1277 = vmatpush.bf16.msra.mxu0 %v1016
        %1278 = vmatpush.bf16.msra.mxu0 %v1015
        %1279 = vmatmul.bf16.gmra.mxu0 %v469
        %v1280 = vpop.f32.mrf.mxu0
        %v1281 = vadd.f32 0.0, %v1280
        %v1282 = vpop.f32.mrf.mxu0
        %1283 = vdwg.mxu0
        %1284 = vmatpush.bf16.msra.mxu0 %v1030
        %1285 = vmatpush.bf16.msra.mxu0 %v1029
        %1286 = vmatpush.bf16.msra.mxu0 %v1028
        %1287 = vmatpush.bf16.msra.mxu0 %v1027
        %1288 = vmatpush.bf16.msra.mxu0 %v1026
        %1289 = vmatpush.bf16.msra.mxu0 %v1025
        %1290 = vmatpush.bf16.msra.mxu0 %v1024
        %1291 = vmatpush.bf16.msra.mxu0 %v1023
        %1292 = vmatmul.bf16.gmra.mxu0 %v470
        %v1293 = vpop.f32.mrf.mxu0
        %v1294 = vadd.f32 %v1281, %v1293
        %v1295 = vpop.f32.mrf.mxu0
        %1296 = vdwg.mxu0
        %1297 = vmatpush.bf16.msra.mxu0 %v1038
        %1298 = vmatpush.bf16.msra.mxu0 %v1037
        %1299 = vmatpush.bf16.msra.mxu0 %v1036
        %1300 = vmatpush.bf16.msra.mxu0 %v1035
        %1301 = vmatpush.bf16.msra.mxu0 %v1034
        %1302 = vmatpush.bf16.msra.mxu0 %v1033
        %1303 = vmatpush.bf16.msra.mxu0 %v1032
        %1304 = vmatpush.bf16.msra.mxu0 %v1031
        %1305 = vmatmul.bf16.gmra.mxu0 %v471
        %v1306 = vpop.f32.mrf.mxu0
        %v1307 = vadd.f32 %v1294, %v1306
        %v1308 = vpop.f32.mrf.mxu0
        %1309 = vdwg.mxu0
        %1310 = vmatpush.bf16.msra.mxu0 %v1046
        %1311 = vmatpush.bf16.msra.mxu0 %v1045
        %1312 = vmatpush.bf16.msra.mxu0 %v1044
        %1313 = vmatpush.bf16.msra.mxu0 %v1043
        %1314 = vmatpush.bf16.msra.mxu0 %v1042
        %1315 = vmatpush.bf16.msra.mxu0 %v1041
        %1316 = vmatpush.bf16.msra.mxu0 %v1040
        %1317 = vmatpush.bf16.msra.mxu0 %v1039
        %1318 = vmatmul.bf16.gmra.mxu0 %v472
        %v1319 = vpop.f32.mrf.mxu0
        %v1320 = vadd.f32 %v1307, %v1319
        %v1321 = vpop.f32.mrf.mxu0
        %1322 = vdwg.mxu0
        %1323 = vmatpush.bf16.msra.mxu0 %v1054
        %1324 = vmatpush.bf16.msra.mxu0 %v1053
        %1325 = vmatpush.bf16.msra.mxu0 %v1052
        %1326 = vmatpush.bf16.msra.mxu0 %v1051
        %1327 = vmatpush.bf16.msra.mxu0 %v1050
        %1328 = vmatpush.bf16.msra.mxu0 %v1049
        %1329 = vmatpush.bf16.msra.mxu0 %v1048
        %1330 = vmatpush.bf16.msra.mxu0 %v1047
        %1331 = vmatmul.bf16.gmra.mxu0 %v473
        %v1332 = vpop.f32.mrf.mxu0
        %v1333 = vadd.f32 %v1320, %v1332
        %v1334 = vpop.f32.mrf.mxu0
        %1335 = vdwg.mxu0
        %1336 = vmatpush.bf16.msra.mxu0 %v1062
        %1337 = vmatpush.bf16.msra.mxu0 %v1061
        %1338 = vmatpush.bf16.msra.mxu0 %v1060
        %1339 = vmatpush.bf16.msra.mxu0 %v1059
        %1340 = vmatpush.bf16.msra.mxu0 %v1058
        %1341 = vmatpush.bf16.msra.mxu0 %v1057
        %1342 = vmatpush.bf16.msra.mxu0 %v1056
        %1343 = vmatpush.bf16.msra.mxu0 %v1055
        %1344 = vmatmul.bf16.gmra.mxu0 %v474
        %v1345 = vpop.f32.mrf.mxu0
        %v1346 = vadd.f32 %v1333, %v1345
        %v1347 = vpop.f32.mrf.mxu0
        %1348 = vdwg.mxu0
        %1349 = vmatpush.bf16.msra.mxu0 %v1070
        %1350 = vmatpush.bf16.msra.mxu0 %v1069
        %1351 = vmatpush.bf16.msra.mxu0 %v1068
        %1352 = vmatpush.bf16.msra.mxu0 %v1067
        %1353 = vmatpush.bf16.msra.mxu0 %v1066
        %1354 = vmatpush.bf16.msra.mxu0 %v1065
        %1355 = vmatpush.bf16.msra.mxu0 %v1064
        %1356 = vmatpush.bf16.msra.mxu0 %v1063
        %1357 = vmatmul.bf16.gmra.mxu0 %v475
        %v1358 = vpop.f32.mrf.mxu0
        %v1359 = vadd.f32 %v1346, %v1358
        %v1360 = vpop.f32.mrf.mxu0
        %1361 = vdwg.mxu0
        %1362 = vmatpush.bf16.msra.mxu0 %v1078
        %1363 = vmatpush.bf16.msra.mxu0 %v1077
        %1364 = vmatpush.bf16.msra.mxu0 %v1076
        %1365 = vmatpush.bf16.msra.mxu0 %v1075
        %1366 = vmatpush.bf16.msra.mxu0 %v1074
        %1367 = vmatpush.bf16.msra.mxu0 %v1073
        %1368 = vmatpush.bf16.msra.mxu0 %v1072
        %1369 = vmatpush.bf16.msra.mxu0 %v1071
        %1370 = vmatmul.bf16.gmra.mxu0 %v476
        %v1371 = vpop.f32.mrf.mxu0
        %v1372 = vadd.f32 %v1359, %v1371
        %v1373 = vpop.f32.mrf.mxu0
        %1374 = vdwg.mxu0
        %1375 = vmatpush.bf16.msra.mxu0 %v1086
        %1376 = vmatpush.bf16.msra.mxu0 %v1085
        %1377 = vmatpush.bf16.msra.mxu0 %v1084
        %1378 = vmatpush.bf16.msra.mxu0 %v1083
        %1379 = vmatpush.bf16.msra.mxu0 %v1082
        %1380 = vmatpush.bf16.msra.mxu0 %v1081
        %1381 = vmatpush.bf16.msra.mxu0 %v1080
        %1382 = vmatpush.bf16.msra.mxu0 %v1079
        %1383 = vmatmul.bf16.gmra.mxu0 %v479
        %v1384 = vpop.f32.mrf.mxu0
        %v1385 = vadd.f32 %v1372, %v1384
        %v1386 = vpop.f32.mrf.mxu0
        %1387 = vdwg.mxu0
        %1388 = vmatpush.bf16.msra.mxu0 %v1094
        %1389 = vmatpush.bf16.msra.mxu0 %v1093
        %1390 = vmatpush.bf16.msra.mxu0 %v1092
        %1391 = vmatpush.bf16.msra.mxu0 %v1091
        %1392 = vmatpush.bf16.msra.mxu0 %v1090
        %1393 = vmatpush.bf16.msra.mxu0 %v1089
        %1394 = vmatpush.bf16.msra.mxu0 %v1088
        %1395 = vmatpush.bf16.msra.mxu0 %v1087
        %1396 = vmatmul.bf16.gmra.mxu0 %v480
        %v1397 = vpop.f32.mrf.mxu0
        %v1398 = vadd.f32 %v1385, %v1397
        %v1399 = vpop.f32.mrf.mxu0
        %1400 = vdwg.mxu0
        %1401 = vmatpush.bf16.msra.mxu0 %v1102
        %1402 = vmatpush.bf16.msra.mxu0 %v1101
        %1403 = vmatpush.bf16.msra.mxu0 %v1100
        %1404 = vmatpush.bf16.msra.mxu0 %v1099
        %1405 = vmatpush.bf16.msra.mxu0 %v1098
        %1406 = vmatpush.bf16.msra.mxu0 %v1097
        %1407 = vmatpush.bf16.msra.mxu0 %v1096
        %1408 = vmatpush.bf16.msra.mxu0 %v1095
        %1409 = vmatmul.bf16.gmra.mxu0 %v481
        %v1410 = vpop.f32.mrf.mxu0
        %v1411 = vadd.f32 %v1398, %v1410
        %v1412 = vpop.f32.mrf.mxu0
        %1413 = vdwg.mxu0
        %1414 = vmatpush.bf16.msra.mxu0 %v1110
        %1415 = vmatpush.bf16.msra.mxu0 %v1109
        %1416 = vmatpush.bf16.msra.mxu0 %v1108
        %1417 = vmatpush.bf16.msra.mxu0 %v1107
        %1418 = vmatpush.bf16.msra.mxu0 %v1106
        %1419 = vmatpush.bf16.msra.mxu0 %v1105
        %1420 = vmatpush.bf16.msra.mxu0 %v1104
        %1421 = vmatpush.bf16.msra.mxu0 %v1103
        %1422 = vmatmul.bf16.gmra.mxu0 %v482
        %v1423 = vpop.f32.mrf.mxu0
        %v1424 = vadd.f32 %v1411, %v1423
        %v1425 = vpop.f32.mrf.mxu0
        %1426 = vdwg.mxu0
        %1427 = vmatpush.bf16.msra.mxu0 %v1118
        %1428 = vmatpush.bf16.msra.mxu0 %v1117
        %1429 = vmatpush.bf16.msra.mxu0 %v1116
        %1430 = vmatpush.bf16.msra.mxu0 %v1115
        %1431 = vmatpush.bf16.msra.mxu0 %v1114
        %1432 = vmatpush.bf16.msra.mxu0 %v1113
        %1433 = vmatpush.bf16.msra.mxu0 %v1112
        %1434 = vmatpush.bf16.msra.mxu0 %v1111
        %1435 = vmatmul.bf16.gmra.mxu0 %v483
        %v1436 = vpop.f32.mrf.mxu0
        %v1437 = vadd.f32 %v1424, %v1436
        %v1438 = vpop.f32.mrf.mxu0
        %1439 = vdwg.mxu0
        %1440 = vmatpush.bf16.msra.mxu0 %v1126
        %1441 = vmatpush.bf16.msra.mxu0 %v1125
        %1442 = vmatpush.bf16.msra.mxu0 %v1124
        %1443 = vmatpush.bf16.msra.mxu0 %v1123
        %1444 = vmatpush.bf16.msra.mxu0 %v1122
        %1445 = vmatpush.bf16.msra.mxu0 %v1121
        %1446 = vmatpush.bf16.msra.mxu0 %v1120
        %1447 = vmatpush.bf16.msra.mxu0 %v1119
        %1448 = vmatmul.bf16.gmra.mxu0 %v484
        %v1449 = vpop.f32.mrf.mxu0
        %v1450 = vadd.f32 %v1437, %v1449
        %v1451 = vpop.f32.mrf.mxu0
        %1452 = vdwg.mxu0
        %1453 = vmatpush.bf16.msra.mxu0 %v1134
        %1454 = vmatpush.bf16.msra.mxu0 %v1133
        %1455 = vmatpush.bf16.msra.mxu0 %v1132
        %1456 = vmatpush.bf16.msra.mxu0 %v1131
        %1457 = vmatpush.bf16.msra.mxu0 %v1130
        %1458 = vmatpush.bf16.msra.mxu0 %v1129
        %1459 = vmatpush.bf16.msra.mxu0 %v1128
        %1460 = vmatpush.bf16.msra.mxu0 %v1127
        %1461 = vmatmul.bf16.gmra.mxu0 %v485
        %v1462 = vpop.f32.mrf.mxu0
        %v1463 = vadd.f32 %v1450, %v1462
        %v1464 = vpop.f32.mrf.mxu0
        %1465 = vdwg.mxu0
        %1466 = vmatpush.bf16.msra.mxu0 %v1142
        %1467 = vmatpush.bf16.msra.mxu0 %v1141
        %1468 = vmatpush.bf16.msra.mxu0 %v1140
        %1469 = vmatpush.bf16.msra.mxu0 %v1139
        %1470 = vmatpush.bf16.msra.mxu0 %v1138
        %1471 = vmatpush.bf16.msra.mxu0 %v1137
        %1472 = vmatpush.bf16.msra.mxu0 %v1136
        %1473 = vmatpush.bf16.msra.mxu0 %v1135
        %1474 = vmatmul.bf16.gmra.mxu0 %v486
        %v1475 = vpop.f32.mrf.mxu0
        %v1476 = vadd.f32 %v1463, %v1475
        %v1477 = vpop.f32.mrf.mxu0
        %1478 = vdwg.mxu0
        %v1479 = vadd.f32 %v208, %v1476
        %1480 = vst [vmem:[#allocation2] sm:$0x3] %v1479
        %p1481 = scmp.eq.s32.totalorder %s17, 3
        // Predicated region
        $region37: #{discriminator_forward.13} parent=31 // pred_check
          %p1482 = pneg %p1481
        $region38: #{discriminator_forward.13} parent=31 // pred_check_branch
          %1484 = sbr.rel (%p1482) target = $region40
        $region39: #{discriminator_forward.13} parent=31 // pred_region
          %v1485 = vld [vmem:[#allocation2] sm:$0x3]
          %v1486 = vld [vmem:[%s2] sm:$0x1]
          %v1488 = vperm.slane %v1486, 0
          %v1490 = vadd.f32 %v1485, %v1488
          %v1491 = vsub.f32 0.0, %v1490
          %v1492 = vmul.f32 %v1491, 1.442695
          %v1493 = vpow.pop %v1492
          %v1494 = vadd.f32 %v1493, 1.0
          %v1495 = vrcp.pop %v1494
          %v1496 = vmul.f32 %v1494, %v1495
          %v1497 = vsub.f32 1.0, %v1496
          %v1498 = vmul.f32 %v1495, %v1497
          %v1499 = vadd.f32 %v1495, %v1498
          %vm1500 = vweird.f32 %v1494
          %vm1501 = vweird.f32 %v1495
          %vm1502 = vmor %vm1500, %vm1501
          %v1503 = vsel %vm1502, %v1495, %v1499
          %v1504 = vand.u32 2147483647, %v1494
          %vm1505 = vcmp.eq.f32.partialorder %v1504, 8.507059e+37
          %v1506 = vand.u32 %v1494, 2147483648
          %v1507 = vor.u32 1.1754944e-38, %v1506
          %v1508 = vsel %vm1505, %v1507, %v1503
          %v1509 = vmul.f32 1.0, %v1508
          %vm1510 = vcmask 1024
          %1511 = vst.msk [vmem:[%s3] sm:$0x3] %vm1510, %v1509
          %vm1512 = vcmask 82952
          %v1513 = vsel %vm1512, %v1490, -inf
          %1514 = vmax.xlane.f32.xlu0 %v1513
          %v1515 = vpop.xlane.xlu0 %1514
          %v1516 = vsub.f32 %v1490, %v1515
          %v1517 = vmul.f32 %v1516, 1.442695
          %v1518 = vpow.pop %v1517
          %1520 = vrot.lane.b32.xlu0 %v1518, 127
          %v1521 = vpop.permute.xlu0 %1520
          %vm1523 = vcmask 74752
          %v1524 = vsel %vm1523, %v1521, 0.0
          %1525 = vadd.xlane.f32.xlu0 %v1524
          %v1526 = vpop.xlane.xlu0 %1525
          %v1527 = vrcp.pop %v1526
          %v1528 = vmul.f32 %v1526, %v1527
          %v1529 = vsub.f32 1.0, %v1528
          %v1530 = vmul.f32 %v1527, %v1529
          %v1531 = vadd.f32 %v1527, %v1530
          %vm1532 = vweird.f32 %v1526
          %vm1533 = vweird.f32 %v1527
          %vm1534 = vmor %vm1532, %vm1533
          %v1535 = vsel %vm1534, %v1527, %v1531
          %v1536 = vand.u32 2147483647, %v1526
          %vm1537 = vcmp.eq.f32.partialorder %v1536, 8.507059e+37
          %v1538 = vand.u32 %v1526, 2147483648
          %v1539 = vor.u32 1.1754944e-38, %v1538
          %v1540 = vsel %vm1537, %v1539, %v1535
          %v1541 = vmul.f32 %v1518, %v1540
          %1543 = vrot.lane.b32.xlu0 %v1541, 127
          %v1544 = vpop.permute.xlu0 %1543
          %1546 = vst.msk [vmem:[#allocation3] sm:$0x3] %vm1523, %v1544
        $region40: #{discriminator_forward.13} parent=31 // pred_fallthru
          _
        // Predicated region
        $region41: #{discriminator_forward.13} parent=31 // pred_check
          %p1547 = pneg %p103
        $region42: #{discriminator_forward.13} parent=31 // pred_check_branch
          %1549 = sbr.rel (%p1547) target = $region44
        $region43: #{discriminator_forward.13} parent=31 // pred_region
          _
        $region44: #{discriminator_forward.13} parent=31 // pred_fallthru
          _
        // Predicated region
        $region45: #{discriminator_forward.13} parent=31 // pred_check
          %p1550 = pneg %p124
        $region46: #{discriminator_forward.13} parent=31 // pred_check_branch
          %1552 = sbr.rel (%p1550) target = $region48
        $region47: #{discriminator_forward.13} parent=31 // pred_region
          %1554 = vsyncadd [#allocation4], 0
          %s1556 = sshll.u32 [#allocation3], 4
          %s1557 = int_to_ptr.vmem [resolvable:$true] %s1556
          %s1558 = sshll.u32 %s4, 4
          %s1559 = int_to_ptr.hbm [resolvable:$true] %s1558
          %1561 = dma.vmem_to_hbm [thread:$0]  %s1557, 32, %s1559, [#allocation4]
        $region48: #{discriminator_forward.13} parent=31 // pred_fallthru
          _
        // Predicated region
        $region49: #{discriminator_forward.13} parent=31 // pred_check
          %p1562 = pneg %p103
        $region50: #{discriminator_forward.13} parent=31 // pred_check_branch
          %1564 = sbr.rel (%p1562) target = $region52
        $region51: #{discriminator_forward.13} parent=31 // pred_region
          _
        $region52: #{discriminator_forward.13} parent=31 // pred_fallthru
          _
        // Predicated region
        $region53: #{discriminator_forward.13} parent=31 // pred_check
          %p1565 = pneg %p124
        $region54: #{discriminator_forward.13} parent=31 // pred_check_branch
          %1567 = sbr.rel (%p1565) target = $region56
        $region55: #{discriminator_forward.13} parent=31 // pred_region
          %1569 = dma.done [#allocation4], 32
        $region56: #{discriminator_forward.13} parent=31 // pred_fallthru
          _
      $region32: #{discriminator_forward.13} parent=5 // pred_fallthru
        _
      %p1570 = scmp.le.s32.totalorder 2, %s12
      // Predicated region
      $region57: #{discriminator_forward.13} parent=5 // pred_check
        %p1571 = pneg %p1570
      $region58: #{discriminator_forward.13} parent=5 // pred_check_branch
        %1573 = sbr.rel (%p1571) target = $region60
      $region59: #{discriminator_forward.13} parent=5 // pred_region
        %s1574 = ssub.s32 %s12, 2
      $region60: #{discriminator_forward.13} parent=5 // pred_fallthru
        _
    $region6: #{discriminator_forward.13} parent=1 // loop_footer
      %s16 = sadd.s32 1, %s12
    $region7: #{discriminator_forward.13} parent=1 // loop_footer_branch
      %11 = sbr.rel target = $region3
    $region8: #{discriminator_forward.13} parent=1 // loop_exit
      _
    %1575 = vsyncpa [#allocation4], 1
    %s1576 = scalar_lea.sflag [#allocation4], 1
    %1577 = vsyncpa %s1576, 1

// kernel: discriminator_forward.12
$region0: #{discriminator_forward.12}
  #allocation0 [shape = 'u32[]', space=smem, size = 0x4, offset = 0x4, fixed_abs, tag = 'smem constant byte address 0x4 - core index']
  #allocation1 [shape = 'u32[72,128]{1,0:T(1,128)}', space=vmem, size = 0x9000, scoped, tag = 'internal scratch']
  %s0 = inlined_call_operand.vmem [shape: bf16[32,2304], index: 0, kind: input, shape index: {}]
  %s1 = inlined_call_operand.vmem [shape: bf16[2304,512], index: 1, kind: input, shape index: {}]
  %s2 = inlined_call_operand.vmem [shape: f32[1,512], index: 2, kind: input, shape index: {}]
  %s3 = inlined_call_operand.vmem [shape: bf16[32,512], index: 3, kind: output, shape index: {}]
  %s4 = sld [smem:[#allocation0]]
  $region22: #{discriminator_forward.12} parent=0
    _
  %s6 = ssub.s32 1, %s4
  %s7 = scalar_select 0, %s6, %s4
  // Predicated region
  $region2: #{discriminator_forward.12} parent=0 // pred_check
    _
  $region3: #{discriminator_forward.12} parent=0 // pred_check_branch
    %9 = sbr.rel (0) target = $region5
  $region4: #{discriminator_forward.12} parent=0 // pred_region
    _
  $region5: #{discriminator_forward.12} parent=0 // pred_fallthru
    _
  // Predicated region
  $region6: #{discriminator_forward.12} parent=0 // pred_check
    _
  $region7: #{discriminator_forward.12} parent=0 // pred_check_branch
    %11 = sbr.rel (0) target = $region9
  $region8: #{discriminator_forward.12} parent=0 // pred_region
    _
  $region9: #{discriminator_forward.12} parent=0 // pred_fallthru
    _
  // Predicated region
  $region10: #{discriminator_forward.12} parent=0 // pred_check
    _
  $region11: #{discriminator_forward.12} parent=0 // pred_check_branch
    %13 = sbr.rel (0) target = $region13
  $region12: #{discriminator_forward.12} parent=0 // pred_region
    _
  $region13: #{discriminator_forward.12} parent=0 // pred_fallthru
    _
  %v14 = vld [vmem:[%s0] sm:$0xff]
  %v15 = vld [vmem:[%s0 + $0x8] sm:$0xff]
  %v16 = vld [vmem:[%s0 + $0x10] sm:$0xff]
  %v17 = vld [vmem:[%s0 + $0x18] sm:$0xff]
  %v18 = vld [vmem:[%s0 + $0x20] sm:$0xff]
  %v19 = vld [vmem:[%s0 + $0x28] sm:$0xff]
  %v20 = vld [vmem:[%s0 + $0x30] sm:$0xff]
  %v21 = vld [vmem:[%s0 + $0x38] sm:$0xff]
  %v22 = vld [vmem:[%s0 + $0x40] sm:$0xff]
  %v23 = vld [vmem:[%s0 + $0x48] sm:$0xff]
  %v24 = vld [vmem:[%s0 + $0x50] sm:$0xff]
  %v25 = vld [vmem:[%s0 + $0x58] sm:$0xff]
  %v26 = vld [vmem:[%s0 + $0x60] sm:$0xff]
  %v27 = vld [vmem:[%s0 + $0x68] sm:$0xff]
  %v28 = vld [vmem:[%s0 + $0x70] sm:$0xff]
  %v29 = vld [vmem:[%s0 + $0x78] sm:$0xff]
  %v30 = vld [vmem:[%s0 + $0x80] sm:$0xff]
  %v31 = vld [vmem:[%s0 + $0x88] sm:$0xff]
  %v32 = vld [vmem:[%s0 + $0x90] sm:$0xff]
  %v33 = vld [vmem:[%s0 + $0x98] sm:$0xff]
  %v34 = vld [vmem:[%s0 + $0xa0] sm:$0xff]
  %v35 = vld [vmem:[%s0 + $0xa8] sm:$0xff]
  %v36 = vld [vmem:[%s0 + $0xb0] sm:$0xff]
  %v37 = vld [vmem:[%s0 + $0xb8] sm:$0xff]
  %v38 = vld [vmem:[%s0 + $0xc0] sm:$0xff]
  %v39 = vld [vmem:[%s0 + $0xc8] sm:$0xff]
  %v40 = vld [vmem:[%s0 + $0xd0] sm:$0xff]
  %v41 = vld [vmem:[%s0 + $0xd8] sm:$0xff]
  %v42 = vld [vmem:[%s0 + $0xe0] sm:$0xff]
  %v43 = vld [vmem:[%s0 + $0xe8] sm:$0xff]
  %v44 = vld [vmem:[%s0 + $0xf0] sm:$0xff]
  %v45 = vld [vmem:[%s0 + $0xf8] sm:$0xff]
  %v46 = vld [vmem:[%s0 + $0x100] sm:$0xff]
  %v47 = vld [vmem:[%s0 + $0x108] sm:$0xff]
  %v48 = vld [vmem:[%s0 + $0x110] sm:$0xff]
  %v49 = vld [vmem:[%s0 + $0x118] sm:$0xff]
  %v50 = vld [vmem:[%s1] sm:$0xff]
  %v51 = vld [vmem:[%s1 + $0x8] sm:$0xff]
  %v52 = vld [vmem:[%s1 + $0x10] sm:$0xff]
  %v53 = vld [vmem:[%s1 + $0x18] sm:$0xff]
  %v54 = vld [vmem:[%s1 + $0x20] sm:$0xff]
  %v55 = vld [vmem:[%s1 + $0x28] sm:$0xff]
  %v56 = vld [vmem:[%s1 + $0x30] sm:$0xff]
  %v57 = vld [vmem:[%s1 + $0x38] sm:$0xff]
  %v58 = vld [vmem:[%s1 + $0x40] sm:$0xff]
  %v59 = vld [vmem:[%s1 + $0x48] sm:$0xff]
  %v60 = vld [vmem:[%s1 + $0x50] sm:$0xff]
  %v61 = vld [vmem:[%s1 + $0x58] sm:$0xff]
  %v62 = vld [vmem:[%s1 + $0x60] sm:$0xff]
  %v63 = vld [vmem:[%s1 + $0x68] sm:$0xff]
  %v64 = vld [vmem:[%s1 + $0x70] sm:$0xff]
  %v65 = vld [vmem:[%s1 + $0x78] sm:$0xff]
  %v66 = vld [vmem:[%s1 + $0x80] sm:$0xff]
  %v67 = vld [vmem:[%s1 + $0x88] sm:$0xff]
  %v68 = vld [vmem:[%s1 + $0x90] sm:$0xff]
  %v69 = vld [vmem:[%s1 + $0x98] sm:$0xff]
  %v70 = vld [vmem:[%s1 + $0xa0] sm:$0xff]
  %v71 = vld [vmem:[%s1 + $0xa8] sm:$0xff]
  %v72 = vld [vmem:[%s1 + $0xb0] sm:$0xff]
  %v73 = vld [vmem:[%s1 + $0xb8] sm:$0xff]
  %v74 = vld [vmem:[%s1 + $0xc0] sm:$0xff]
  %v75 = vld [vmem:[%s1 + $0xc8] sm:$0xff]
  %v76 = vld [vmem:[%s1 + $0xd0] sm:$0xff]
  %v77 = vld [vmem:[%s1 + $0xd8] sm:$0xff]
  %v78 = vld [vmem:[%s1 + $0xe0] sm:$0xff]
  %v79 = vld [vmem:[%s1 + $0xe8] sm:$0xff]
  %v80 = vld [vmem:[%s1 + $0xf0] sm:$0xff]
  %v81 = vld [vmem:[%s1 + $0xf8] sm:$0xff]
  %v82 = vld [vmem:[%s1 + $0x100] sm:$0xff]
  %v83 = vld [vmem:[%s1 + $0x108] sm:$0xff]
  %v84 = vld [vmem:[%s1 + $0x110] sm:$0xff]
  %v85 = vld [vmem:[%s1 + $0x118] sm:$0xff]
  %v86 = vld [vmem:[%s1 + $0x120] sm:$0xff]
  %v87 = vld [vmem:[%s1 + $0x128] sm:$0xff]
  %v88 = vld [vmem:[%s1 + $0x130] sm:$0xff]
  %v89 = vld [vmem:[%s1 + $0x138] sm:$0xff]
  %v90 = vld [vmem:[%s1 + $0x140] sm:$0xff]
  %v91 = vld [vmem:[%s1 + $0x148] sm:$0xff]
  %v92 = vld [vmem:[%s1 + $0x150] sm:$0xff]
  %v93 = vld [vmem:[%s1 + $0x158] sm:$0xff]
  %v94 = vld [vmem:[%s1 + $0x160] sm:$0xff]
  %v95 = vld [vmem:[%s1 + $0x168] sm:$0xff]
  %v96 = vld [vmem:[%s1 + $0x170] sm:$0xff]
  %v97 = vld [vmem:[%s1 + $0x178] sm:$0xff]
  %v98 = vld [vmem:[%s1 + $0x180] sm:$0xff]
  %v99 = vld [vmem:[%s1 + $0x188] sm:$0xff]
  %v100 = vld [vmem:[%s1 + $0x190] sm:$0xff]
  %v101 = vld [vmem:[%s1 + $0x198] sm:$0xff]
  %v102 = vld [vmem:[%s1 + $0x1a0] sm:$0xff]
  %v103 = vld [vmem:[%s1 + $0x1a8] sm:$0xff]
  %v104 = vld [vmem:[%s1 + $0x1b0] sm:$0xff]
  %v105 = vld [vmem:[%s1 + $0x1b8] sm:$0xff]
  %v106 = vld [vmem:[%s1 + $0x1c0] sm:$0xff]
  %v107 = vld [vmem:[%s1 + $0x1c8] sm:$0xff]
  %v108 = vld [vmem:[%s1 + $0x1d0] sm:$0xff]
  %v109 = vld [vmem:[%s1 + $0x1d8] sm:$0xff]
  %v110 = vld [vmem:[%s1 + $0x1e0] sm:$0xff]
  %v111 = vld [vmem:[%s1 + $0x1e8] sm:$0xff]
  %v112 = vld [vmem:[%s1 + $0x1f0] sm:$0xff]
  %v113 = vld [vmem:[%s1 + $0x1f8] sm:$0xff]
  %v114 = vld [vmem:[%s1 + $0x200] sm:$0xff]
  %v115 = vld [vmem:[%s1 + $0x208] sm:$0xff]
  %v116 = vld [vmem:[%s1 + $0x210] sm:$0xff]
  %v117 = vld [vmem:[%s1 + $0x218] sm:$0xff]
  %v118 = vld [vmem:[%s1 + $0x220] sm:$0xff]
  %v119 = vld [vmem:[%s1 + $0x228] sm:$0xff]
  %v120 = vld [vmem:[%s1 + $0x230] sm:$0xff]
  %v121 = vld [vmem:[%s1 + $0x238] sm:$0xff]
  %v122 = vld [vmem:[%s1 + $0x240] sm:$0xff]
  %v123 = vld [vmem:[%s1 + $0x248] sm:$0xff]
  %v124 = vld [vmem:[%s1 + $0x250] sm:$0xff]
  %v125 = vld [vmem:[%s1 + $0x258] sm:$0xff]
  %v126 = vld [vmem:[%s1 + $0x260] sm:$0xff]
  %v127 = vld [vmem:[%s1 + $0x268] sm:$0xff]
  %v128 = vld [vmem:[%s1 + $0x270] sm:$0xff]
  %v129 = vld [vmem:[%s1 + $0x278] sm:$0xff]
  %v130 = vld [vmem:[%s1 + $0x280] sm:$0xff]
  %v131 = vld [vmem:[%s1 + $0x288] sm:$0xff]
  %v132 = vld [vmem:[%s1 + $0x290] sm:$0xff]
  %v133 = vld [vmem:[%s1 + $0x298] sm:$0xff]
  %v134 = vld [vmem:[%s1 + $0x2a0] sm:$0xff]
  %v135 = vld [vmem:[%s1 + $0x2a8] sm:$0xff]
  %v136 = vld [vmem:[%s1 + $0x2b0] sm:$0xff]
  %v137 = vld [vmem:[%s1 + $0x2b8] sm:$0xff]
  %v138 = vld [vmem:[%s1 + $0x2c0] sm:$0xff]
  %v139 = vld [vmem:[%s1 + $0x2c8] sm:$0xff]
  %v140 = vld [vmem:[%s1 + $0x2d0] sm:$0xff]
  %v141 = vld [vmem:[%s1 + $0x2d8] sm:$0xff]
  %v142 = vld [vmem:[%s1 + $0x2e0] sm:$0xff]
  %v143 = vld [vmem:[%s1 + $0x2e8] sm:$0xff]
  %v144 = vld [vmem:[%s1 + $0x2f0] sm:$0xff]
  %v145 = vld [vmem:[%s1 + $0x2f8] sm:$0xff]
  %v146 = vld [vmem:[%s1 + $0x300] sm:$0xff]
  %v147 = vld [vmem:[%s1 + $0x308] sm:$0xff]
  %v148 = vld [vmem:[%s1 + $0x310] sm:$0xff]
  %v149 = vld [vmem:[%s1 + $0x318] sm:$0xff]
  %v150 = vld [vmem:[%s1 + $0x320] sm:$0xff]
  %v151 = vld [vmem:[%s1 + $0x328] sm:$0xff]
  %v152 = vld [vmem:[%s1 + $0x330] sm:$0xff]
  %v153 = vld [vmem:[%s1 + $0x338] sm:$0xff]
  %v154 = vld [vmem:[%s1 + $0x340] sm:$0xff]
  %v155 = vld [vmem:[%s1 + $0x348] sm:$0xff]
  %v156 = vld [vmem:[%s1 + $0x350] sm:$0xff]
  %v157 = vld [vmem:[%s1 + $0x358] sm:$0xff]
  %v158 = vld [vmem:[%s1 + $0x360] sm:$0xff]
  %v159 = vld [vmem:[%s1 + $0x368] sm:$0xff]
  %v160 = vld [vmem:[%s1 + $0x370] sm:$0xff]
  %v161 = vld [vmem:[%s1 + $0x378] sm:$0xff]
  %v162 = vld [vmem:[%s1 + $0x380] sm:$0xff]
  %v163 = vld [vmem:[%s1 + $0x388] sm:$0xff]
  %v164 = vld [vmem:[%s1 + $0x390] sm:$0xff]
  %v165 = vld [vmem:[%s1 + $0x398] sm:$0xff]
  %v166 = vld [vmem:[%s1 + $0x3a0] sm:$0xff]
  %v167 = vld [vmem:[%s1 + $0x3a8] sm:$0xff]
  %v168 = vld [vmem:[%s1 + $0x3b0] sm:$0xff]
  %v169 = vld [vmem:[%s1 + $0x3b8] sm:$0xff]
  %v170 = vld [vmem:[%s1 + $0x3c0] sm:$0xff]
  %v171 = vld [vmem:[%s1 + $0x3c8] sm:$0xff]
  %v172 = vld [vmem:[%s1 + $0x3d0] sm:$0xff]
  %v173 = vld [vmem:[%s1 + $0x3d8] sm:$0xff]
  %v174 = vld [vmem:[%s1 + $0x3e0] sm:$0xff]
  %v175 = vld [vmem:[%s1 + $0x3e8] sm:$0xff]
  %v176 = vld [vmem:[%s1 + $0x3f0] sm:$0xff]
  %v177 = vld [vmem:[%s1 + $0x3f8] sm:$0xff]
  %v178 = vld [vmem:[%s1 + $0x400] sm:$0xff]
  %v179 = vld [vmem:[%s1 + $0x408] sm:$0xff]
  %v180 = vld [vmem:[%s1 + $0x410] sm:$0xff]
  %v181 = vld [vmem:[%s1 + $0x418] sm:$0xff]
  %v182 = vld [vmem:[%s1 + $0x420] sm:$0xff]
  %v183 = vld [vmem:[%s1 + $0x428] sm:$0xff]
  %v184 = vld [vmem:[%s1 + $0x430] sm:$0xff]
  %v185 = vld [vmem:[%s1 + $0x438] sm:$0xff]
  %v186 = vld [vmem:[%s1 + $0x440] sm:$0xff]
  %v187 = vld [vmem:[%s1 + $0x448] sm:$0xff]
  %v188 = vld [vmem:[%s1 + $0x450] sm:$0xff]
  %v189 = vld [vmem:[%s1 + $0x458] sm:$0xff]
  %v190 = vld [vmem:[%s1 + $0x460] sm:$0xff]
  %v191 = vld [vmem:[%s1 + $0x468] sm:$0xff]
  %v192 = vld [vmem:[%s1 + $0x470] sm:$0xff]
  %v193 = vld [vmem:[%s1 + $0x478] sm:$0xff]
  %v194 = vld [vmem:[%s1 + $0x480] sm:$0xff]
  %v195 = vld [vmem:[%s1 + $0x488] sm:$0xff]
  %v196 = vld [vmem:[%s1 + $0x490] sm:$0xff]
  %v197 = vld [vmem:[%s1 + $0x498] sm:$0xff]
  %v198 = vld [vmem:[%s1 + $0x4a0] sm:$0xff]
  %v199 = vld [vmem:[%s1 + $0x4a8] sm:$0xff]
  %v200 = vld [vmem:[%s1 + $0x4b0] sm:$0xff]
  %v201 = vld [vmem:[%s1 + $0x4b8] sm:$0xff]
  %v202 = vld [vmem:[%s1 + $0x4c0] sm:$0xff]
  %v203 = vld [vmem:[%s1 + $0x4c8] sm:$0xff]
  %v204 = vld [vmem:[%s1 + $0x4d0] sm:$0xff]
  %v205 = vld [vmem:[%s1 + $0x4d8] sm:$0xff]
  %v206 = vld [vmem:[%s1 + $0x4e0] sm:$0xff]
  %v207 = vld [vmem:[%s1 + $0x4e8] sm:$0xff]
  %v208 = vld [vmem:[%s1 + $0x4f0] sm:$0xff]
  %v209 = vld [vmem:[%s1 + $0x4f8] sm:$0xff]
  %v210 = vld [vmem:[%s1 + $0x500] sm:$0xff]
  %v211 = vld [vmem:[%s1 + $0x508] sm:$0xff]
  %v212 = vld [vmem:[%s1 + $0x510] sm:$0xff]
  %v213 = vld [vmem:[%s1 + $0x518] sm:$0xff]
  %v214 = vld [vmem:[%s1 + $0x520] sm:$0xff]
  %v215 = vld [vmem:[%s1 + $0x528] sm:$0xff]
  %v216 = vld [vmem:[%s1 + $0x530] sm:$0xff]
  %v217 = vld [vmem:[%s1 + $0x538] sm:$0xff]
  %v218 = vld [vmem:[%s1 + $0x540] sm:$0xff]
  %v219 = vld [vmem:[%s1 + $0x548] sm:$0xff]
  %v220 = vld [vmem:[%s1 + $0x550] sm:$0xff]
  %v221 = vld [vmem:[%s1 + $0x558] sm:$0xff]
  %v222 = vld [vmem:[%s1 + $0x560] sm:$0xff]
  %v223 = vld [vmem:[%s1 + $0x568] sm:$0xff]
  %v224 = vld [vmem:[%s1 + $0x570] sm:$0xff]
  %v225 = vld [vmem:[%s1 + $0x578] sm:$0xff]
  %v226 = vld [vmem:[%s1 + $0x580] sm:$0xff]
  %v227 = vld [vmem:[%s1 + $0x588] sm:$0xff]
  %v228 = vld [vmem:[%s1 + $0x590] sm:$0xff]
  %v229 = vld [vmem:[%s1 + $0x598] sm:$0xff]
  %v230 = vld [vmem:[%s1 + $0x5a0] sm:$0xff]
  %v231 = vld [vmem:[%s1 + $0x5a8] sm:$0xff]
  %v232 = vld [vmem:[%s1 + $0x5b0] sm:$0xff]
  %v233 = vld [vmem:[%s1 + $0x5b8] sm:$0xff]
  %v234 = vld [vmem:[%s1 + $0x5c0] sm:$0xff]
  %v235 = vld [vmem:[%s1 + $0x5c8] sm:$0xff]
  %v236 = vld [vmem:[%s1 + $0x5d0] sm:$0xff]
  %v237 = vld [vmem:[%s1 + $0x5d8] sm:$0xff]
  %v238 = vld [vmem:[%s1 + $0x5e0] sm:$0xff]
  %v239 = vld [vmem:[%s1 + $0x5e8] sm:$0xff]
  %v240 = vld [vmem:[%s1 + $0x5f0] sm:$0xff]
  %v241 = vld [vmem:[%s1 + $0x5f8] sm:$0xff]
  %v242 = vld [vmem:[%s1 + $0x600] sm:$0xff]
  %v243 = vld [vmem:[%s1 + $0x608] sm:$0xff]
  %v244 = vld [vmem:[%s1 + $0x610] sm:$0xff]
  %v245 = vld [vmem:[%s1 + $0x618] sm:$0xff]
  %v246 = vld [vmem:[%s1 + $0x620] sm:$0xff]
  %v247 = vld [vmem:[%s1 + $0x628] sm:$0xff]
  %v248 = vld [vmem:[%s1 + $0x630] sm:$0xff]
  %v249 = vld [vmem:[%s1 + $0x638] sm:$0xff]
  %v250 = vld [vmem:[%s1 + $0x640] sm:$0xff]
  %v251 = vld [vmem:[%s1 + $0x648] sm:$0xff]
  %v252 = vld [vmem:[%s1 + $0x650] sm:$0xff]
  %v253 = vld [vmem:[%s1 + $0x658] sm:$0xff]
  %v254 = vld [vmem:[%s1 + $0x660] sm:$0xff]
  %v255 = vld [vmem:[%s1 + $0x668] sm:$0xff]
  %v256 = vld [vmem:[%s1 + $0x670] sm:$0xff]
  %v257 = vld [vmem:[%s1 + $0x678] sm:$0xff]
  %v258 = vld [vmem:[%s1 + $0x680] sm:$0xff]
  %v259 = vld [vmem:[%s1 + $0x688] sm:$0xff]
  %v260 = vld [vmem:[%s1 + $0x690] sm:$0xff]
  %v261 = vld [vmem:[%s1 + $0x698] sm:$0xff]
  %v262 = vld [vmem:[%s1 + $0x6a0] sm:$0xff]
  %v263 = vld [vmem:[%s1 + $0x6a8] sm:$0xff]
  %v264 = vld [vmem:[%s1 + $0x6b0] sm:$0xff]
  %v265 = vld [vmem:[%s1 + $0x6b8] sm:$0xff]
  %v266 = vld [vmem:[%s1 + $0x6c0] sm:$0xff]
  %v267 = vld [vmem:[%s1 + $0x6c8] sm:$0xff]
  %v268 = vld [vmem:[%s1 + $0x6d0] sm:$0xff]
  %v269 = vld [vmem:[%s1 + $0x6d8] sm:$0xff]
  %v270 = vld [vmem:[%s1 + $0x6e0] sm:$0xff]
  %v271 = vld [vmem:[%s1 + $0x6e8] sm:$0xff]
  %v272 = vld [vmem:[%s1 + $0x6f0] sm:$0xff]
  %v273 = vld [vmem:[%s1 + $0x6f8] sm:$0xff]
  %v274 = vld [vmem:[%s1 + $0x700] sm:$0xff]
  %v275 = vld [vmem:[%s1 + $0x708] sm:$0xff]
  %v276 = vld [vmem:[%s1 + $0x710] sm:$0xff]
  %v277 = vld [vmem:[%s1 + $0x718] sm:$0xff]
  %v278 = vld [vmem:[%s1 + $0x720] sm:$0xff]
  %v279 = vld [vmem:[%s1 + $0x728] sm:$0xff]
  %v280 = vld [vmem:[%s1 + $0x730] sm:$0xff]
  %v281 = vld [vmem:[%s1 + $0x738] sm:$0xff]
  %v282 = vld [vmem:[%s1 + $0x740] sm:$0xff]
  %v283 = vld [vmem:[%s1 + $0x748] sm:$0xff]
  %v284 = vld [vmem:[%s1 + $0x750] sm:$0xff]
  %v285 = vld [vmem:[%s1 + $0x758] sm:$0xff]
  %v286 = vld [vmem:[%s1 + $0x760] sm:$0xff]
  %v287 = vld [vmem:[%s1 + $0x768] sm:$0xff]
  %v288 = vld [vmem:[%s1 + $0x770] sm:$0xff]
  %v289 = vld [vmem:[%s1 + $0x778] sm:$0xff]
  %v290 = vld [vmem:[%s1 + $0x780] sm:$0xff]
  %v291 = vld [vmem:[%s1 + $0x788] sm:$0xff]
  %v292 = vld [vmem:[%s1 + $0x790] sm:$0xff]
  %v293 = vld [vmem:[%s1 + $0x798] sm:$0xff]
  %v294 = vld [vmem:[%s1 + $0x7a0] sm:$0xff]
  %v295 = vld [vmem:[%s1 + $0x7a8] sm:$0xff]
  %v296 = vld [vmem:[%s1 + $0x7b0] sm:$0xff]
  %v297 = vld [vmem:[%s1 + $0x7b8] sm:$0xff]
  %v298 = vld [vmem:[%s1 + $0x7c0] sm:$0xff]
  %v299 = vld [vmem:[%s1 + $0x7c8] sm:$0xff]
  %v300 = vld [vmem:[%s1 + $0x7d0] sm:$0xff]
  %v301 = vld [vmem:[%s1 + $0x7d8] sm:$0xff]
  %v302 = vld [vmem:[%s1 + $0x7e0] sm:$0xff]
  %v303 = vld [vmem:[%s1 + $0x7e8] sm:$0xff]
  %v304 = vld [vmem:[%s1 + $0x7f0] sm:$0xff]
  %v305 = vld [vmem:[%s1 + $0x7f8] sm:$0xff]
  %v306 = vld [vmem:[%s1 + $0x800] sm:$0xff]
  %v307 = vld [vmem:[%s1 + $0x808] sm:$0xff]
  %v308 = vld [vmem:[%s1 + $0x810] sm:$0xff]
  %v309 = vld [vmem:[%s1 + $0x818] sm:$0xff]
  %v310 = vld [vmem:[%s1 + $0x820] sm:$0xff]
  %v311 = vld [vmem:[%s1 + $0x828] sm:$0xff]
  %v312 = vld [vmem:[%s1 + $0x830] sm:$0xff]
  %v313 = vld [vmem:[%s1 + $0x838] sm:$0xff]
  %v314 = vld [vmem:[%s1 + $0x840] sm:$0xff]
  %v315 = vld [vmem:[%s1 + $0x848] sm:$0xff]
  %v316 = vld [vmem:[%s1 + $0x850] sm:$0xff]
  %v317 = vld [vmem:[%s1 + $0x858] sm:$0xff]
  %v318 = vld [vmem:[%s1 + $0x860] sm:$0xff]
  %v319 = vld [vmem:[%s1 + $0x868] sm:$0xff]
  %v320 = vld [vmem:[%s1 + $0x870] sm:$0xff]
  %v321 = vld [vmem:[%s1 + $0x878] sm:$0xff]
  %v322 = vld [vmem:[%s1 + $0x880] sm:$0xff]
  %v323 = vld [vmem:[%s1 + $0x888] sm:$0xff]
  %v324 = vld [vmem:[%s1 + $0x890] sm:$0xff]
  %v325 = vld [vmem:[%s1 + $0x898] sm:$0xff]
  %v326 = vld [vmem:[%s1 + $0x8a0] sm:$0xff]
  %v327 = vld [vmem:[%s1 + $0x8a8] sm:$0xff]
  %v328 = vld [vmem:[%s1 + $0x8b0] sm:$0xff]
  %v329 = vld [vmem:[%s1 + $0x8b8] sm:$0xff]
  %v330 = vld [vmem:[%s1 + $0x8c0] sm:$0xff]
  %v331 = vld [vmem:[%s1 + $0x8c8] sm:$0xff]
  %v332 = vld [vmem:[%s1 + $0x8d0] sm:$0xff]
  %v333 = vld [vmem:[%s1 + $0x8d8] sm:$0xff]
  %v334 = vld [vmem:[%s1 + $0x8e0] sm:$0xff]
  %v335 = vld [vmem:[%s1 + $0x8e8] sm:$0xff]
  %v336 = vld [vmem:[%s1 + $0x8f0] sm:$0xff]
  %v337 = vld [vmem:[%s1 + $0x8f8] sm:$0xff]
  %v338 = vld [vmem:[%s1 + $0x900] sm:$0xff]
  %v339 = vld [vmem:[%s1 + $0x908] sm:$0xff]
  %v340 = vld [vmem:[%s1 + $0x910] sm:$0xff]
  %v341 = vld [vmem:[%s1 + $0x918] sm:$0xff]
  %v342 = vld [vmem:[%s1 + $0x920] sm:$0xff]
  %v343 = vld [vmem:[%s1 + $0x928] sm:$0xff]
  %v344 = vld [vmem:[%s1 + $0x930] sm:$0xff]
  %v345 = vld [vmem:[%s1 + $0x938] sm:$0xff]
  %v346 = vld [vmem:[%s1 + $0x940] sm:$0xff]
  %v347 = vld [vmem:[%s1 + $0x948] sm:$0xff]
  %v348 = vld [vmem:[%s1 + $0x950] sm:$0xff]
  %v349 = vld [vmem:[%s1 + $0x958] sm:$0xff]
  %v350 = vld [vmem:[%s1 + $0x960] sm:$0xff]
  %v351 = vld [vmem:[%s1 + $0x968] sm:$0xff]
  %v352 = vld [vmem:[%s1 + $0x970] sm:$0xff]
  %v353 = vld [vmem:[%s1 + $0x978] sm:$0xff]
  %v354 = vld [vmem:[%s1 + $0x980] sm:$0xff]
  %v355 = vld [vmem:[%s1 + $0x988] sm:$0xff]
  %v356 = vld [vmem:[%s1 + $0x990] sm:$0xff]
  %v357 = vld [vmem:[%s1 + $0x998] sm:$0xff]
  %v358 = vld [vmem:[%s1 + $0x9a0] sm:$0xff]
  %v359 = vld [vmem:[%s1 + $0x9a8] sm:$0xff]
  %v360 = vld [vmem:[%s1 + $0x9b0] sm:$0xff]
  %v361 = vld [vmem:[%s1 + $0x9b8] sm:$0xff]
  %v362 = vld [vmem:[%s1 + $0x9c0] sm:$0xff]
  %v363 = vld [vmem:[%s1 + $0x9c8] sm:$0xff]
  %v364 = vld [vmem:[%s1 + $0x9d0] sm:$0xff]
  %v365 = vld [vmem:[%s1 + $0x9d8] sm:$0xff]
  %v366 = vld [vmem:[%s1 + $0x9e0] sm:$0xff]
  %v367 = vld [vmem:[%s1 + $0x9e8] sm:$0xff]
  %v368 = vld [vmem:[%s1 + $0x9f0] sm:$0xff]
  %v369 = vld [vmem:[%s1 + $0x9f8] sm:$0xff]
  %v370 = vld [vmem:[%s1 + $0xa00] sm:$0xff]
  %v371 = vld [vmem:[%s1 + $0xa08] sm:$0xff]
  %v372 = vld [vmem:[%s1 + $0xa10] sm:$0xff]
  %v373 = vld [vmem:[%s1 + $0xa18] sm:$0xff]
  %v374 = vld [vmem:[%s1 + $0xa20] sm:$0xff]
  %v375 = vld [vmem:[%s1 + $0xa28] sm:$0xff]
  %v376 = vld [vmem:[%s1 + $0xa30] sm:$0xff]
  %v377 = vld [vmem:[%s1 + $0xa38] sm:$0xff]
  %v378 = vld [vmem:[%s1 + $0xa40] sm:$0xff]
  %v379 = vld [vmem:[%s1 + $0xa48] sm:$0xff]
  %v380 = vld [vmem:[%s1 + $0xa50] sm:$0xff]
  %v381 = vld [vmem:[%s1 + $0xa58] sm:$0xff]
  %v382 = vld [vmem:[%s1 + $0xa60] sm:$0xff]
  %v383 = vld [vmem:[%s1 + $0xa68] sm:$0xff]
  %v384 = vld [vmem:[%s1 + $0xa70] sm:$0xff]
  %v385 = vld [vmem:[%s1 + $0xa78] sm:$0xff]
  %v386 = vld [vmem:[%s1 + $0xa80] sm:$0xff]
  %v387 = vld [vmem:[%s1 + $0xa88] sm:$0xff]
  %v388 = vld [vmem:[%s1 + $0xa90] sm:$0xff]
  %v389 = vld [vmem:[%s1 + $0xa98] sm:$0xff]
  %v390 = vld [vmem:[%s1 + $0xaa0] sm:$0xff]
  %v391 = vld [vmem:[%s1 + $0xaa8] sm:$0xff]
  %v392 = vld [vmem:[%s1 + $0xab0] sm:$0xff]
  %v393 = vld [vmem:[%s1 + $0xab8] sm:$0xff]
  %v394 = vld [vmem:[%s1 + $0xac0] sm:$0xff]
  %v395 = vld [vmem:[%s1 + $0xac8] sm:$0xff]
  %v396 = vld [vmem:[%s1 + $0xad0] sm:$0xff]
  %v397 = vld [vmem:[%s1 + $0xad8] sm:$0xff]
  %v398 = vld [vmem:[%s1 + $0xae0] sm:$0xff]
  %v399 = vld [vmem:[%s1 + $0xae8] sm:$0xff]
  %v400 = vld [vmem:[%s1 + $0xaf0] sm:$0xff]
  %v401 = vld [vmem:[%s1 + $0xaf8] sm:$0xff]
  %v402 = vld [vmem:[%s1 + $0xb00] sm:$0xff]
  %v403 = vld [vmem:[%s1 + $0xb08] sm:$0xff]
  %v404 = vld [vmem:[%s1 + $0xb10] sm:$0xff]
  %v405 = vld [vmem:[%s1 + $0xb18] sm:$0xff]
  %v406 = vld [vmem:[%s1 + $0xb20] sm:$0xff]
  %v407 = vld [vmem:[%s1 + $0xb28] sm:$0xff]
  %v408 = vld [vmem:[%s1 + $0xb30] sm:$0xff]
  %v409 = vld [vmem:[%s1 + $0xb38] sm:$0xff]
  %v410 = vld [vmem:[%s1 + $0xb40] sm:$0xff]
  %v411 = vld [vmem:[%s1 + $0xb48] sm:$0xff]
  %v412 = vld [vmem:[%s1 + $0xb50] sm:$0xff]
  %v413 = vld [vmem:[%s1 + $0xb58] sm:$0xff]
  %v414 = vld [vmem:[%s1 + $0xb60] sm:$0xff]
  %v415 = vld [vmem:[%s1 + $0xb68] sm:$0xff]
  %v416 = vld [vmem:[%s1 + $0xb70] sm:$0xff]
  %v417 = vld [vmem:[%s1 + $0xb78] sm:$0xff]
  %v418 = vld [vmem:[%s1 + $0xb80] sm:$0xff]
  %v419 = vld [vmem:[%s1 + $0xb88] sm:$0xff]
  %v420 = vld [vmem:[%s1 + $0xb90] sm:$0xff]
  %v421 = vld [vmem:[%s1 + $0xb98] sm:$0xff]
  %v422 = vld [vmem:[%s1 + $0xba0] sm:$0xff]
  %v423 = vld [vmem:[%s1 + $0xba8] sm:$0xff]
  %v424 = vld [vmem:[%s1 + $0xbb0] sm:$0xff]
  %v425 = vld [vmem:[%s1 + $0xbb8] sm:$0xff]
  %v426 = vld [vmem:[%s1 + $0xbc0] sm:$0xff]
  %v427 = vld [vmem:[%s1 + $0xbc8] sm:$0xff]
  %v428 = vld [vmem:[%s1 + $0xbd0] sm:$0xff]
  %v429 = vld [vmem:[%s1 + $0xbd8] sm:$0xff]
  %v430 = vld [vmem:[%s1 + $0xbe0] sm:$0xff]
  %v431 = vld [vmem:[%s1 + $0xbe8] sm:$0xff]
  %v432 = vld [vmem:[%s1 + $0xbf0] sm:$0xff]
  %v433 = vld [vmem:[%s1 + $0xbf8] sm:$0xff]
  %v434 = vld [vmem:[%s1 + $0xc00] sm:$0xff]
  %v435 = vld [vmem:[%s1 + $0xc08] sm:$0xff]
  %v436 = vld [vmem:[%s1 + $0xc10] sm:$0xff]
  %v437 = vld [vmem:[%s1 + $0xc18] sm:$0xff]
  %v438 = vld [vmem:[%s1 + $0xc20] sm:$0xff]
  %v439 = vld [vmem:[%s1 + $0xc28] sm:$0xff]
  %v440 = vld [vmem:[%s1 + $0xc30] sm:$0xff]
  %v441 = vld [vmem:[%s1 + $0xc38] sm:$0xff]
  %v442 = vld [vmem:[%s1 + $0xc40] sm:$0xff]
  %v443 = vld [vmem:[%s1 + $0xc48] sm:$0xff]
  %v444 = vld [vmem:[%s1 + $0xc50] sm:$0xff]
  %v445 = vld [vmem:[%s1 + $0xc58] sm:$0xff]
  %v446 = vld [vmem:[%s1 + $0xc60] sm:$0xff]
  %v447 = vld [vmem:[%s1 + $0xc68] sm:$0xff]
  %v448 = vld [vmem:[%s1 + $0xc70] sm:$0xff]
  %v449 = vld [vmem:[%s1 + $0xc78] sm:$0xff]
  %v450 = vld [vmem:[%s1 + $0xc80] sm:$0xff]
  %v451 = vld [vmem:[%s1 + $0xc88] sm:$0xff]
  %v452 = vld [vmem:[%s1 + $0xc90] sm:$0xff]
  %v453 = vld [vmem:[%s1 + $0xc98] sm:$0xff]
  %v454 = vld [vmem:[%s1 + $0xca0] sm:$0xff]
  %v455 = vld [vmem:[%s1 + $0xca8] sm:$0xff]
  %v456 = vld [vmem:[%s1 + $0xcb0] sm:$0xff]
  %v457 = vld [vmem:[%s1 + $0xcb8] sm:$0xff]
  %v458 = vld [vmem:[%s1 + $0xcc0] sm:$0xff]
  %v459 = vld [vmem:[%s1 + $0xcc8] sm:$0xff]
  %v460 = vld [vmem:[%s1 + $0xcd0] sm:$0xff]
  %v461 = vld [vmem:[%s1 + $0xcd8] sm:$0xff]
  %v462 = vld [vmem:[%s1 + $0xce0] sm:$0xff]
  %v463 = vld [vmem:[%s1 + $0xce8] sm:$0xff]
  %v464 = vld [vmem:[%s1 + $0xcf0] sm:$0xff]
  %v465 = vld [vmem:[%s1 + $0xcf8] sm:$0xff]
  %v466 = vld [vmem:[%s1 + $0xd00] sm:$0xff]
  %v467 = vld [vmem:[%s1 + $0xd08] sm:$0xff]
  %v468 = vld [vmem:[%s1 + $0xd10] sm:$0xff]
  %v469 = vld [vmem:[%s1 + $0xd18] sm:$0xff]
  %v470 = vld [vmem:[%s1 + $0xd20] sm:$0xff]
  %v471 = vld [vmem:[%s1 + $0xd28] sm:$0xff]
  %v472 = vld [vmem:[%s1 + $0xd30] sm:$0xff]
  %v473 = vld [vmem:[%s1 + $0xd38] sm:$0xff]
  %v474 = vld [vmem:[%s1 + $0xd40] sm:$0xff]
  %v475 = vld [vmem:[%s1 + $0xd48] sm:$0xff]
  %v476 = vld [vmem:[%s1 + $0xd50] sm:$0xff]
  %v477 = vld [vmem:[%s1 + $0xd58] sm:$0xff]
  %v478 = vld [vmem:[%s1 + $0xd60] sm:$0xff]
  %v479 = vld [vmem:[%s1 + $0xd68] sm:$0xff]
  %v480 = vld [vmem:[%s1 + $0xd70] sm:$0xff]
  %v481 = vld [vmem:[%s1 + $0xd78] sm:$0xff]
  %v482 = vld [vmem:[%s1 + $0xd80] sm:$0xff]
  %v483 = vld [vmem:[%s1 + $0xd88] sm:$0xff]
  %v484 = vld [vmem:[%s1 + $0xd90] sm:$0xff]
  %v485 = vld [vmem:[%s1 + $0xd98] sm:$0xff]
  %v486 = vld [vmem:[%s1 + $0xda0] sm:$0xff]
  %v487 = vld [vmem:[%s1 + $0xda8] sm:$0xff]
  %v488 = vld [vmem:[%s1 + $0xdb0] sm:$0xff]
  %v489 = vld [vmem:[%s1 + $0xdb8] sm:$0xff]
  %v490 = vld [vmem:[%s1 + $0xdc0] sm:$0xff]
  %v491 = vld [vmem:[%s1 + $0xdc8] sm:$0xff]
  %v492 = vld [vmem:[%s1 + $0xdd0] sm:$0xff]
  %v493 = vld [vmem:[%s1 + $0xdd8] sm:$0xff]
  %v494 = vld [vmem:[%s1 + $0xde0] sm:$0xff]
  %v495 = vld [vmem:[%s1 + $0xde8] sm:$0xff]
  %v496 = vld [vmem:[%s1 + $0xdf0] sm:$0xff]
  %v497 = vld [vmem:[%s1 + $0xdf8] sm:$0xff]
  %v498 = vld [vmem:[%s1 + $0xe00] sm:$0xff]
  %v499 = vld [vmem:[%s1 + $0xe08] sm:$0xff]
  %v500 = vld [vmem:[%s1 + $0xe10] sm:$0xff]
  %v501 = vld [vmem:[%s1 + $0xe18] sm:$0xff]
  %v502 = vld [vmem:[%s1 + $0xe20] sm:$0xff]
  %v503 = vld [vmem:[%s1 + $0xe28] sm:$0xff]
  %v504 = vld [vmem:[%s1 + $0xe30] sm:$0xff]
  %v505 = vld [vmem:[%s1 + $0xe38] sm:$0xff]
  %v506 = vld [vmem:[%s1 + $0xe40] sm:$0xff]
  %v507 = vld [vmem:[%s1 + $0xe48] sm:$0xff]
  %v508 = vld [vmem:[%s1 + $0xe50] sm:$0xff]
  %v509 = vld [vmem:[%s1 + $0xe58] sm:$0xff]
  %v510 = vld [vmem:[%s1 + $0xe60] sm:$0xff]
  %v511 = vld [vmem:[%s1 + $0xe68] sm:$0xff]
  %v512 = vld [vmem:[%s1 + $0xe70] sm:$0xff]
  %v513 = vld [vmem:[%s1 + $0xe78] sm:$0xff]
  %v514 = vld [vmem:[%s1 + $0xe80] sm:$0xff]
  %v515 = vld [vmem:[%s1 + $0xe88] sm:$0xff]
  %v516 = vld [vmem:[%s1 + $0xe90] sm:$0xff]
  %v517 = vld [vmem:[%s1 + $0xe98] sm:$0xff]
  %v518 = vld [vmem:[%s1 + $0xea0] sm:$0xff]
  %v519 = vld [vmem:[%s1 + $0xea8] sm:$0xff]
  %v520 = vld [vmem:[%s1 + $0xeb0] sm:$0xff]
  %v521 = vld [vmem:[%s1 + $0xeb8] sm:$0xff]
  %v522 = vld [vmem:[%s1 + $0xec0] sm:$0xff]
  %v523 = vld [vmem:[%s1 + $0xec8] sm:$0xff]
  %v524 = vld [vmem:[%s1 + $0xed0] sm:$0xff]
  %v525 = vld [vmem:[%s1 + $0xed8] sm:$0xff]
  %v526 = vld [vmem:[%s1 + $0xee0] sm:$0xff]
  %v527 = vld [vmem:[%s1 + $0xee8] sm:$0xff]
  %v528 = vld [vmem:[%s1 + $0xef0] sm:$0xff]
  %v529 = vld [vmem:[%s1 + $0xef8] sm:$0xff]
  %v530 = vld [vmem:[%s1 + $0xf00] sm:$0xff]
  %v531 = vld [vmem:[%s1 + $0xf08] sm:$0xff]
  %v532 = vld [vmem:[%s1 + $0xf10] sm:$0xff]
  %v533 = vld [vmem:[%s1 + $0xf18] sm:$0xff]
  %v534 = vld [vmem:[%s1 + $0xf20] sm:$0xff]
  %v535 = vld [vmem:[%s1 + $0xf28] sm:$0xff]
  %v536 = vld [vmem:[%s1 + $0xf30] sm:$0xff]
  %v537 = vld [vmem:[%s1 + $0xf38] sm:$0xff]
  %v538 = vld [vmem:[%s1 + $0xf40] sm:$0xff]
  %v539 = vld [vmem:[%s1 + $0xf48] sm:$0xff]
  %v540 = vld [vmem:[%s1 + $0xf50] sm:$0xff]
  %v541 = vld [vmem:[%s1 + $0xf58] sm:$0xff]
  %v542 = vld [vmem:[%s1 + $0xf60] sm:$0xff]
  %v543 = vld [vmem:[%s1 + $0xf68] sm:$0xff]
  %v544 = vld [vmem:[%s1 + $0xf70] sm:$0xff]
  %v545 = vld [vmem:[%s1 + $0xf78] sm:$0xff]
  %v546 = vld [vmem:[%s1 + $0xf80] sm:$0xff]
  %v547 = vld [vmem:[%s1 + $0xf88] sm:$0xff]
  %v548 = vld [vmem:[%s1 + $0xf90] sm:$0xff]
  %v549 = vld [vmem:[%s1 + $0xf98] sm:$0xff]
  %v550 = vld [vmem:[%s1 + $0xfa0] sm:$0xff]
  %v551 = vld [vmem:[%s1 + $0xfa8] sm:$0xff]
  %v552 = vld [vmem:[%s1 + $0xfb0] sm:$0xff]
  %v553 = vld [vmem:[%s1 + $0xfb8] sm:$0xff]
  %v554 = vld [vmem:[%s1 + $0xfc0] sm:$0xff]
  %v555 = vld [vmem:[%s1 + $0xfc8] sm:$0xff]
  %v556 = vld [vmem:[%s1 + $0xfd0] sm:$0xff]
  %v557 = vld [vmem:[%s1 + $0xfd8] sm:$0xff]
  %v558 = vld [vmem:[%s1 + $0xfe0] sm:$0xff]
  %v559 = vld [vmem:[%s1 + $0xfe8] sm:$0xff]
  %v560 = vld [vmem:[%s1 + $0xff0] sm:$0xff]
  %v561 = vld [vmem:[%s1 + $0xff8] sm:$0xff]
  %v562 = vld [vmem:[%s1 + $0x1000] sm:$0xff]
  %v563 = vld [vmem:[%s1 + $0x1008] sm:$0xff]
  %v564 = vld [vmem:[%s1 + $0x1010] sm:$0xff]
  %v565 = vld [vmem:[%s1 + $0x1018] sm:$0xff]
  %v566 = vld [vmem:[%s1 + $0x1020] sm:$0xff]
  %v567 = vld [vmem:[%s1 + $0x1028] sm:$0xff]
  %v568 = vld [vmem:[%s1 + $0x1030] sm:$0xff]
  %v569 = vld [vmem:[%s1 + $0x1038] sm:$0xff]
  %v570 = vld [vmem:[%s1 + $0x1040] sm:$0xff]
  %v571 = vld [vmem:[%s1 + $0x1048] sm:$0xff]
  %v572 = vld [vmem:[%s1 + $0x1050] sm:$0xff]
  %v573 = vld [vmem:[%s1 + $0x1058] sm:$0xff]
  %v574 = vld [vmem:[%s1 + $0x1060] sm:$0xff]
  %v575 = vld [vmem:[%s1 + $0x1068] sm:$0xff]
  %v576 = vld [vmem:[%s1 + $0x1070] sm:$0xff]
  %v577 = vld [vmem:[%s1 + $0x1078] sm:$0xff]
  %v578 = vld [vmem:[%s1 + $0x1080] sm:$0xff]
  %v579 = vld [vmem:[%s1 + $0x1088] sm:$0xff]
  %v580 = vld [vmem:[%s1 + $0x1090] sm:$0xff]
  %v581 = vld [vmem:[%s1 + $0x1098] sm:$0xff]
  %v582 = vld [vmem:[%s1 + $0x10a0] sm:$0xff]
  %v583 = vld [vmem:[%s1 + $0x10a8] sm:$0xff]
  %v584 = vld [vmem:[%s1 + $0x10b0] sm:$0xff]
  %v585 = vld [vmem:[%s1 + $0x10b8] sm:$0xff]
  %v586 = vld [vmem:[%s1 + $0x10c0] sm:$0xff]
  %v587 = vld [vmem:[%s1 + $0x10c8] sm:$0xff]
  %v588 = vld [vmem:[%s1 + $0x10d0] sm:$0xff]
  %v589 = vld [vmem:[%s1 + $0x10d8] sm:$0xff]
  %v590 = vld [vmem:[%s1 + $0x10e0] sm:$0xff]
  %v591 = vld [vmem:[%s1 + $0x10e8] sm:$0xff]
  %v592 = vld [vmem:[%s1 + $0x10f0] sm:$0xff]
  %v593 = vld [vmem:[%s1 + $0x10f8] sm:$0xff]
  %v594 = vld [vmem:[%s1 + $0x1100] sm:$0xff]
  %v595 = vld [vmem:[%s1 + $0x1108] sm:$0xff]
  %v596 = vld [vmem:[%s1 + $0x1110] sm:$0xff]
  %v597 = vld [vmem:[%s1 + $0x1118] sm:$0xff]
  %v598 = vld [vmem:[%s1 + $0x1120] sm:$0xff]
  %v599 = vld [vmem:[%s1 + $0x1128] sm:$0xff]
  %v600 = vld [vmem:[%s1 + $0x1130] sm:$0xff]
  %v601 = vld [vmem:[%s1 + $0x1138] sm:$0xff]
  %v602 = vld [vmem:[%s1 + $0x1140] sm:$0xff]
  %v603 = vld [vmem:[%s1 + $0x1148] sm:$0xff]
  %v604 = vld [vmem:[%s1 + $0x1150] sm:$0xff]
  %v605 = vld [vmem:[%s1 + $0x1158] sm:$0xff]
  %v606 = vld [vmem:[%s1 + $0x1160] sm:$0xff]
  %v607 = vld [vmem:[%s1 + $0x1168] sm:$0xff]
  %v608 = vld [vmem:[%s1 + $0x1170] sm:$0xff]
  %v609 = vld [vmem:[%s1 + $0x1178] sm:$0xff]
  %v610 = vld [vmem:[%s1 + $0x1180] sm:$0xff]
  %v611 = vld [vmem:[%s1 + $0x1188] sm:$0xff]
  %v612 = vld [vmem:[%s1 + $0x1190] sm:$0xff]
  %v613 = vld [vmem:[%s1 + $0x1198] sm:$0xff]
  %v614 = vld [vmem:[%s1 + $0x11a0] sm:$0xff]
  %v615 = vld [vmem:[%s1 + $0x11a8] sm:$0xff]
  %v616 = vld [vmem:[%s1 + $0x11b0] sm:$0xff]
  %v617 = vld [vmem:[%s1 + $0x11b8] sm:$0xff]
  %v618 = vld [vmem:[%s1 + $0x11c0] sm:$0xff]
  %v619 = vld [vmem:[%s1 + $0x11c8] sm:$0xff]
  %v620 = vld [vmem:[%s1 + $0x11d0] sm:$0xff]
  %v621 = vld [vmem:[%s1 + $0x11d8] sm:$0xff]
  %v622 = vld [vmem:[%s1 + $0x11e0] sm:$0xff]
  %v623 = vld [vmem:[%s1 + $0x11e8] sm:$0xff]
  %v624 = vld [vmem:[%s1 + $0x11f0] sm:$0xff]
  %v625 = vld [vmem:[%s1 + $0x11f8] sm:$0xff]
  %v626 = vld [vmem:[%s2] sm:$0xf]
  %v628 = vperm.slane %v626, 0
  %v629 = vperm.slane %v626, 1
  %v630 = vperm.slane %v626, 2
  %v631 = vperm.slane %v626, 3
  %v672 = vunpack.c.l.b16 %v14
  %v673 = vunpack.c.h.b16 %v14
  %v674 = vunpack.c.l.b16 %v15
  %v675 = vunpack.c.h.b16 %v15
  %v676 = vunpack.c.l.b16 %v16
  %v677 = vunpack.c.h.b16 %v16
  %v678 = vunpack.c.l.b16 %v17
  %v679 = vunpack.c.h.b16 %v17
  %v680 = vunpack.c.l.b16 %v18
  %v681 = vunpack.c.h.b16 %v18
  %v682 = vunpack.c.l.b16 %v19
  %v683 = vunpack.c.h.b16 %v19
  %v684 = vunpack.c.l.b16 %v20
  %v685 = vunpack.c.h.b16 %v20
  %v686 = vunpack.c.l.b16 %v21
  %v687 = vunpack.c.h.b16 %v21
  %v688 = vunpack.c.l.b16 %v22
  %v689 = vunpack.c.h.b16 %v22
  %v690 = vunpack.c.l.b16 %v23
  %v691 = vunpack.c.h.b16 %v23
  %v692 = vunpack.c.l.b16 %v24
  %v693 = vunpack.c.h.b16 %v24
  %v694 = vunpack.c.l.b16 %v25
  %v695 = vunpack.c.h.b16 %v25
  %v696 = vunpack.c.l.b16 %v26
  %v697 = vunpack.c.h.b16 %v26
  %v698 = vunpack.c.l.b16 %v27
  %v699 = vunpack.c.h.b16 %v27
  %v700 = vunpack.c.l.b16 %v28
  %v701 = vunpack.c.h.b16 %v28
  %v702 = vunpack.c.l.b16 %v29
  %v703 = vunpack.c.h.b16 %v29
  %v704 = vunpack.c.l.b16 %v30
  %v705 = vunpack.c.h.b16 %v30
  %v706 = vunpack.c.l.b16 %v31
  %v707 = vunpack.c.h.b16 %v31
  %v708 = vunpack.c.l.b16 %v32
  %v709 = vunpack.c.h.b16 %v32
  %v710 = vunpack.c.l.b16 %v33
  %v711 = vunpack.c.h.b16 %v33
  %v712 = vunpack.c.l.b16 %v34
  %v713 = vunpack.c.h.b16 %v34
  %v714 = vunpack.c.l.b16 %v35
  %v715 = vunpack.c.h.b16 %v35
  %v716 = vunpack.c.l.b16 %v36
  %v717 = vunpack.c.h.b16 %v36
  %v718 = vunpack.c.l.b16 %v37
  %v719 = vunpack.c.h.b16 %v37
  %v720 = vunpack.c.l.b16 %v38
  %v721 = vunpack.c.h.b16 %v38
  %v722 = vunpack.c.l.b16 %v39
  %v723 = vunpack.c.h.b16 %v39
  %v724 = vunpack.c.l.b16 %v40
  %v725 = vunpack.c.h.b16 %v40
  %v726 = vunpack.c.l.b16 %v41
  %v727 = vunpack.c.h.b16 %v41
  %v728 = vunpack.c.l.b16 %v42
  %v729 = vunpack.c.h.b16 %v42
  %v730 = vunpack.c.l.b16 %v43
  %v731 = vunpack.c.h.b16 %v43
  %v732 = vunpack.c.l.b16 %v44
  %v733 = vunpack.c.h.b16 %v44
  %v734 = vunpack.c.l.b16 %v45
  %v735 = vunpack.c.h.b16 %v45
  %v736 = vunpack.c.l.b16 %v46
  %v737 = vunpack.c.h.b16 %v46
  %v738 = vunpack.c.l.b16 %v47
  %v739 = vunpack.c.h.b16 %v47
  %v740 = vunpack.c.l.b16 %v48
  %v741 = vunpack.c.h.b16 %v48
  %v742 = vunpack.c.l.b16 %v49
  %v743 = vunpack.c.h.b16 %v49
  %v744 = vpack.c.b16 %v690, %v672
  %v745 = vpack.c.b16 %v691, %v673
  %v746 = vpack.c.b16 %v692, %v674
  %v747 = vpack.c.b16 %v693, %v675
  %v748 = vpack.c.b16 %v694, %v676
  %v749 = vpack.c.b16 %v695, %v677
  %v750 = vpack.c.b16 %v696, %v678
  %v751 = vpack.c.b16 %v697, %v679
  %v752 = vpack.c.b16 %v698, %v680
  %v753 = vpack.c.b16 %v699, %v681
  %v754 = vpack.c.b16 %v700, %v682
  %v755 = vpack.c.b16 %v701, %v683
  %v756 = vpack.c.b16 %v702, %v684
  %v757 = vpack.c.b16 %v703, %v685
  %v758 = vpack.c.b16 %v704, %v686
  %v759 = vpack.c.b16 %v705, %v687
  %v760 = vpack.c.b16 %v706, %v688
  %v761 = vpack.c.b16 %v707, %v689
  %v762 = vpack.c.b16 %v726, %v708
  %v763 = vpack.c.b16 %v727, %v709
  %v764 = vpack.c.b16 %v728, %v710
  %v765 = vpack.c.b16 %v729, %v711
  %v766 = vpack.c.b16 %v730, %v712
  %v767 = vpack.c.b16 %v731, %v713
  %v768 = vpack.c.b16 %v732, %v714
  %v769 = vpack.c.b16 %v733, %v715
  %v770 = vpack.c.b16 %v734, %v716
  %v771 = vpack.c.b16 %v735, %v717
  %v772 = vpack.c.b16 %v736, %v718
  %v773 = vpack.c.b16 %v737, %v719
  %v774 = vpack.c.b16 %v738, %v720
  %v775 = vpack.c.b16 %v739, %v721
  %v776 = vpack.c.b16 %v740, %v722
  %v777 = vpack.c.b16 %v741, %v723
  %v778 = vpack.c.b16 %v742, %v724
  %v779 = vpack.c.b16 %v743, %v725
  %v1392 = vunpack.c.l.b16 %v50
  %v1393 = vunpack.c.h.b16 %v50
  %v1394 = vunpack.c.l.b16 %v51
  %v1395 = vunpack.c.h.b16 %v51
  %v1396 = vunpack.c.l.b16 %v52
  %v1397 = vunpack.c.h.b16 %v52
  %v1398 = vunpack.c.l.b16 %v53
  %v1399 = vunpack.c.h.b16 %v53
  %v1400 = vunpack.c.l.b16 %v54
  %v1401 = vunpack.c.h.b16 %v54
  %v1402 = vunpack.c.l.b16 %v55
  %v1403 = vunpack.c.h.b16 %v55
  %v1404 = vunpack.c.l.b16 %v56
  %v1405 = vunpack.c.h.b16 %v56
  %v1406 = vunpack.c.l.b16 %v57
  %v1407 = vunpack.c.h.b16 %v57
  %v1408 = vunpack.c.l.b16 %v58
  %v1409 = vunpack.c.h.b16 %v58
  %v1410 = vunpack.c.l.b16 %v59
  %v1411 = vunpack.c.h.b16 %v59
  %v1412 = vunpack.c.l.b16 %v60
  %v1413 = vunpack.c.h.b16 %v60
  %v1414 = vunpack.c.l.b16 %v61
  %v1415 = vunpack.c.h.b16 %v61
  %v1416 = vunpack.c.l.b16 %v62
  %v1417 = vunpack.c.h.b16 %v62
  %v1418 = vunpack.c.l.b16 %v63
  %v1419 = vunpack.c.h.b16 %v63
  %v1420 = vunpack.c.l.b16 %v64
  %v1421 = vunpack.c.h.b16 %v64
  %v1422 = vunpack.c.l.b16 %v65
  %v1423 = vunpack.c.h.b16 %v65
  %v1424 = vunpack.c.l.b16 %v66
  %v1425 = vunpack.c.h.b16 %v66
  %v1426 = vunpack.c.l.b16 %v67
  %v1427 = vunpack.c.h.b16 %v67
  %v1428 = vunpack.c.l.b16 %v68
  %v1429 = vunpack.c.h.b16 %v68
  %v1430 = vunpack.c.l.b16 %v69
  %v1431 = vunpack.c.h.b16 %v69
  %v1432 = vunpack.c.l.b16 %v70
  %v1433 = vunpack.c.h.b16 %v70
  %v1434 = vunpack.c.l.b16 %v71
  %v1435 = vunpack.c.h.b16 %v71
  %v1436 = vunpack.c.l.b16 %v72
  %v1437 = vunpack.c.h.b16 %v72
  %v1438 = vunpack.c.l.b16 %v73
  %v1439 = vunpack.c.h.b16 %v73
  %v1440 = vunpack.c.l.b16 %v74
  %v1441 = vunpack.c.h.b16 %v74
  %v1442 = vunpack.c.l.b16 %v75
  %v1443 = vunpack.c.h.b16 %v75
  %v1444 = vunpack.c.l.b16 %v76
  %v1445 = vunpack.c.h.b16 %v76
  %v1446 = vunpack.c.l.b16 %v77
  %v1447 = vunpack.c.h.b16 %v77
  %v1448 = vunpack.c.l.b16 %v78
  %v1449 = vunpack.c.h.b16 %v78
  %v1450 = vunpack.c.l.b16 %v79
  %v1451 = vunpack.c.h.b16 %v79
  %v1452 = vunpack.c.l.b16 %v80
  %v1453 = vunpack.c.h.b16 %v80
  %v1454 = vunpack.c.l.b16 %v81
  %v1455 = vunpack.c.h.b16 %v81
  %v1456 = vunpack.c.l.b16 %v82
  %v1457 = vunpack.c.h.b16 %v82
  %v1458 = vunpack.c.l.b16 %v83
  %v1459 = vunpack.c.h.b16 %v83
  %v1460 = vunpack.c.l.b16 %v84
  %v1461 = vunpack.c.h.b16 %v84
  %v1462 = vunpack.c.l.b16 %v85
  %v1463 = vunpack.c.h.b16 %v85
  %v1464 = vunpack.c.l.b16 %v86
  %v1465 = vunpack.c.h.b16 %v86
  %v1466 = vunpack.c.l.b16 %v87
  %v1467 = vunpack.c.h.b16 %v87
  %v1468 = vunpack.c.l.b16 %v88
  %v1469 = vunpack.c.h.b16 %v88
  %v1470 = vunpack.c.l.b16 %v89
  %v1471 = vunpack.c.h.b16 %v89
  %v1472 = vunpack.c.l.b16 %v90
  %v1473 = vunpack.c.h.b16 %v90
  %v1474 = vunpack.c.l.b16 %v91
  %v1475 = vunpack.c.h.b16 %v91
  %v1476 = vunpack.c.l.b16 %v92
  %v1477 = vunpack.c.h.b16 %v92
  %v1478 = vunpack.c.l.b16 %v93
  %v1479 = vunpack.c.h.b16 %v93
  %v1480 = vunpack.c.l.b16 %v94
  %v1481 = vunpack.c.h.b16 %v94
  %v1482 = vunpack.c.l.b16 %v95
  %v1483 = vunpack.c.h.b16 %v95
  %v1484 = vunpack.c.l.b16 %v96
  %v1485 = vunpack.c.h.b16 %v96
  %v1486 = vunpack.c.l.b16 %v97
  %v1487 = vunpack.c.h.b16 %v97
  %v1488 = vunpack.c.l.b16 %v98
  %v1489 = vunpack.c.h.b16 %v98
  %v1490 = vunpack.c.l.b16 %v99
  %v1491 = vunpack.c.h.b16 %v99
  %v1492 = vunpack.c.l.b16 %v100
  %v1493 = vunpack.c.h.b16 %v100
  %v1494 = vunpack.c.l.b16 %v101
  %v1495 = vunpack.c.h.b16 %v101
  %v1496 = vunpack.c.l.b16 %v102
  %v1497 = vunpack.c.h.b16 %v102
  %v1498 = vunpack.c.l.b16 %v103
  %v1499 = vunpack.c.h.b16 %v103
  %v1500 = vunpack.c.l.b16 %v104
  %v1501 = vunpack.c.h.b16 %v104
  %v1502 = vunpack.c.l.b16 %v105
  %v1503 = vunpack.c.h.b16 %v105
  %v1504 = vunpack.c.l.b16 %v106
  %v1505 = vunpack.c.h.b16 %v106
  %v1506 = vunpack.c.l.b16 %v107
  %v1507 = vunpack.c.h.b16 %v107
  %v1508 = vunpack.c.l.b16 %v108
  %v1509 = vunpack.c.h.b16 %v108
  %v1510 = vunpack.c.l.b16 %v109
  %v1511 = vunpack.c.h.b16 %v109
  %v1512 = vunpack.c.l.b16 %v110
  %v1513 = vunpack.c.h.b16 %v110
  %v1514 = vunpack.c.l.b16 %v111
  %v1515 = vunpack.c.h.b16 %v111
  %v1516 = vunpack.c.l.b16 %v112
  %v1517 = vunpack.c.h.b16 %v112
  %v1518 = vunpack.c.l.b16 %v113
  %v1519 = vunpack.c.h.b16 %v113
  %v1520 = vunpack.c.l.b16 %v114
  %v1521 = vunpack.c.h.b16 %v114
  %v1522 = vunpack.c.l.b16 %v115
  %v1523 = vunpack.c.h.b16 %v115
  %v1524 = vunpack.c.l.b16 %v116
  %v1525 = vunpack.c.h.b16 %v116
  %v1526 = vunpack.c.l.b16 %v117
  %v1527 = vunpack.c.h.b16 %v117
  %v1528 = vunpack.c.l.b16 %v118
  %v1529 = vunpack.c.h.b16 %v118
  %v1530 = vunpack.c.l.b16 %v119
  %v1531 = vunpack.c.h.b16 %v119
  %v1532 = vunpack.c.l.b16 %v120
  %v1533 = vunpack.c.h.b16 %v120
  %v1534 = vunpack.c.l.b16 %v121
  %v1535 = vunpack.c.h.b16 %v121
  %v1536 = vunpack.c.l.b16 %v122
  %v1537 = vunpack.c.h.b16 %v122
  %v1538 = vunpack.c.l.b16 %v123
  %v1539 = vunpack.c.h.b16 %v123
  %v1540 = vunpack.c.l.b16 %v124
  %v1541 = vunpack.c.h.b16 %v124
  %v1542 = vunpack.c.l.b16 %v125
  %v1543 = vunpack.c.h.b16 %v125
  %v1544 = vunpack.c.l.b16 %v126
  %v1545 = vunpack.c.h.b16 %v126
  %v1546 = vunpack.c.l.b16 %v127
  %v1547 = vunpack.c.h.b16 %v127
  %v1548 = vunpack.c.l.b16 %v128
  %v1549 = vunpack.c.h.b16 %v128
  %v1550 = vunpack.c.l.b16 %v129
  %v1551 = vunpack.c.h.b16 %v129
  %v1552 = vunpack.c.l.b16 %v130
  %v1553 = vunpack.c.h.b16 %v130
  %v1554 = vunpack.c.l.b16 %v131
  %v1555 = vunpack.c.h.b16 %v131
  %v1556 = vunpack.c.l.b16 %v132
  %v1557 = vunpack.c.h.b16 %v132
  %v1558 = vunpack.c.l.b16 %v133
  %v1559 = vunpack.c.h.b16 %v133
  %v1560 = vunpack.c.l.b16 %v134
  %v1561 = vunpack.c.h.b16 %v134
  %v1562 = vunpack.c.l.b16 %v135
  %v1563 = vunpack.c.h.b16 %v135
  %v1564 = vunpack.c.l.b16 %v136
  %v1565 = vunpack.c.h.b16 %v136
  %v1566 = vunpack.c.l.b16 %v137
  %v1567 = vunpack.c.h.b16 %v137
  %v1568 = vunpack.c.l.b16 %v138
  %v1569 = vunpack.c.h.b16 %v138
  %v1570 = vunpack.c.l.b16 %v139
  %v1571 = vunpack.c.h.b16 %v139
  %v1572 = vunpack.c.l.b16 %v140
  %v1573 = vunpack.c.h.b16 %v140
  %v1574 = vunpack.c.l.b16 %v141
  %v1575 = vunpack.c.h.b16 %v141
  %v1576 = vunpack.c.l.b16 %v142
  %v1577 = vunpack.c.h.b16 %v142
  %v1578 = vunpack.c.l.b16 %v143
  %v1579 = vunpack.c.h.b16 %v143
  %v1580 = vunpack.c.l.b16 %v144
  %v1581 = vunpack.c.h.b16 %v144
  %v1582 = vunpack.c.l.b16 %v145
  %v1583 = vunpack.c.h.b16 %v145
  %v1584 = vunpack.c.l.b16 %v146
  %v1585 = vunpack.c.h.b16 %v146
  %v1586 = vunpack.c.l.b16 %v147
  %v1587 = vunpack.c.h.b16 %v147
  %v1588 = vunpack.c.l.b16 %v148
  %v1589 = vunpack.c.h.b16 %v148
  %v1590 = vunpack.c.l.b16 %v149
  %v1591 = vunpack.c.h.b16 %v149
  %v1592 = vunpack.c.l.b16 %v150
  %v1593 = vunpack.c.h.b16 %v150
  %v1594 = vunpack.c.l.b16 %v151
  %v1595 = vunpack.c.h.b16 %v151
  %v1596 = vunpack.c.l.b16 %v152
  %v1597 = vunpack.c.h.b16 %v152
  %v1598 = vunpack.c.l.b16 %v153
  %v1599 = vunpack.c.h.b16 %v153
  %v1600 = vunpack.c.l.b16 %v154
  %v1601 = vunpack.c.h.b16 %v154
  %v1602 = vunpack.c.l.b16 %v155
  %v1603 = vunpack.c.h.b16 %v155
  %v1604 = vunpack.c.l.b16 %v156
  %v1605 = vunpack.c.h.b16 %v156
  %v1606 = vunpack.c.l.b16 %v157
  %v1607 = vunpack.c.h.b16 %v157
  %v1608 = vunpack.c.l.b16 %v158
  %v1609 = vunpack.c.h.b16 %v158
  %v1610 = vunpack.c.l.b16 %v159
  %v1611 = vunpack.c.h.b16 %v159
  %v1612 = vunpack.c.l.b16 %v160
  %v1613 = vunpack.c.h.b16 %v160
  %v1614 = vunpack.c.l.b16 %v161
  %v1615 = vunpack.c.h.b16 %v161
  %v1616 = vunpack.c.l.b16 %v162
  %v1617 = vunpack.c.h.b16 %v162
  %v1618 = vunpack.c.l.b16 %v163
  %v1619 = vunpack.c.h.b16 %v163
  %v1620 = vunpack.c.l.b16 %v164
  %v1621 = vunpack.c.h.b16 %v164
  %v1622 = vunpack.c.l.b16 %v165
  %v1623 = vunpack.c.h.b16 %v165
  %v1624 = vunpack.c.l.b16 %v166
  %v1625 = vunpack.c.h.b16 %v166
  %v1626 = vunpack.c.l.b16 %v167
  %v1627 = vunpack.c.h.b16 %v167
  %v1628 = vunpack.c.l.b16 %v168
  %v1629 = vunpack.c.h.b16 %v168
  %v1630 = vunpack.c.l.b16 %v169
  %v1631 = vunpack.c.h.b16 %v169
  %v1632 = vunpack.c.l.b16 %v170
  %v1633 = vunpack.c.h.b16 %v170
  %v1634 = vunpack.c.l.b16 %v171
  %v1635 = vunpack.c.h.b16 %v171
  %v1636 = vunpack.c.l.b16 %v172
  %v1637 = vunpack.c.h.b16 %v172
  %v1638 = vunpack.c.l.b16 %v173
  %v1639 = vunpack.c.h.b16 %v173
  %v1640 = vunpack.c.l.b16 %v174
  %v1641 = vunpack.c.h.b16 %v174
  %v1642 = vunpack.c.l.b16 %v175
  %v1643 = vunpack.c.h.b16 %v175
  %v1644 = vunpack.c.l.b16 %v176
  %v1645 = vunpack.c.h.b16 %v176
  %v1646 = vunpack.c.l.b16 %v177
  %v1647 = vunpack.c.h.b16 %v177
  %v1648 = vunpack.c.l.b16 %v178
  %v1649 = vunpack.c.h.b16 %v178
  %v1650 = vunpack.c.l.b16 %v179
  %v1651 = vunpack.c.h.b16 %v179
  %v1652 = vunpack.c.l.b16 %v180
  %v1653 = vunpack.c.h.b16 %v180
  %v1654 = vunpack.c.l.b16 %v181
  %v1655 = vunpack.c.h.b16 %v181
  %v1656 = vunpack.c.l.b16 %v182
  %v1657 = vunpack.c.h.b16 %v182
  %v1658 = vunpack.c.l.b16 %v183
  %v1659 = vunpack.c.h.b16 %v183
  %v1660 = vunpack.c.l.b16 %v184
  %v1661 = vunpack.c.h.b16 %v184
  %v1662 = vunpack.c.l.b16 %v185
  %v1663 = vunpack.c.h.b16 %v185
  %v1664 = vunpack.c.l.b16 %v186
  %v1665 = vunpack.c.h.b16 %v186
  %v1666 = vunpack.c.l.b16 %v187
  %v1667 = vunpack.c.h.b16 %v187
  %v1668 = vunpack.c.l.b16 %v188
  %v1669 = vunpack.c.h.b16 %v188
  %v1670 = vunpack.c.l.b16 %v189
  %v1671 = vunpack.c.h.b16 %v189
  %v1672 = vunpack.c.l.b16 %v190
  %v1673 = vunpack.c.h.b16 %v190
  %v1674 = vunpack.c.l.b16 %v191
  %v1675 = vunpack.c.h.b16 %v191
  %v1676 = vunpack.c.l.b16 %v192
  %v1677 = vunpack.c.h.b16 %v192
  %v1678 = vunpack.c.l.b16 %v193
  %v1679 = vunpack.c.h.b16 %v193
  %v1680 = vunpack.c.l.b16 %v194
  %v1681 = vunpack.c.h.b16 %v194
  %v1682 = vunpack.c.l.b16 %v195
  %v1683 = vunpack.c.h.b16 %v195
  %v1684 = vunpack.c.l.b16 %v196
  %v1685 = vunpack.c.h.b16 %v196
  %v1686 = vunpack.c.l.b16 %v197
  %v1687 = vunpack.c.h.b16 %v197
  %v1688 = vunpack.c.l.b16 %v198
  %v1689 = vunpack.c.h.b16 %v198
  %v1690 = vunpack.c.l.b16 %v199
  %v1691 = vunpack.c.h.b16 %v199
  %v1692 = vunpack.c.l.b16 %v200
  %v1693 = vunpack.c.h.b16 %v200
  %v1694 = vunpack.c.l.b16 %v201
  %v1695 = vunpack.c.h.b16 %v201
  %v1696 = vunpack.c.l.b16 %v202
  %v1697 = vunpack.c.h.b16 %v202
  %v1698 = vunpack.c.l.b16 %v203
  %v1699 = vunpack.c.h.b16 %v203
  %v1700 = vunpack.c.l.b16 %v204
  %v1701 = vunpack.c.h.b16 %v204
  %v1702 = vunpack.c.l.b16 %v205
  %v1703 = vunpack.c.h.b16 %v205
  %v1704 = vunpack.c.l.b16 %v206
  %v1705 = vunpack.c.h.b16 %v206
  %v1706 = vunpack.c.l.b16 %v207
  %v1707 = vunpack.c.h.b16 %v207
  %v1708 = vunpack.c.l.b16 %v208
  %v1709 = vunpack.c.h.b16 %v208
  %v1710 = vunpack.c.l.b16 %v209
  %v1711 = vunpack.c.h.b16 %v209
  %v1712 = vunpack.c.l.b16 %v210
  %v1713 = vunpack.c.h.b16 %v210
  %v1714 = vunpack.c.l.b16 %v211
  %v1715 = vunpack.c.h.b16 %v211
  %v1716 = vunpack.c.l.b16 %v212
  %v1717 = vunpack.c.h.b16 %v212
  %v1718 = vunpack.c.l.b16 %v213
  %v1719 = vunpack.c.h.b16 %v213
  %v1720 = vunpack.c.l.b16 %v214
  %v1721 = vunpack.c.h.b16 %v214
  %v1722 = vunpack.c.l.b16 %v215
  %v1723 = vunpack.c.h.b16 %v215
  %v1724 = vunpack.c.l.b16 %v216
  %v1725 = vunpack.c.h.b16 %v216
  %v1726 = vunpack.c.l.b16 %v217
  %v1727 = vunpack.c.h.b16 %v217
  %v1728 = vunpack.c.l.b16 %v218
  %v1729 = vunpack.c.h.b16 %v218
  %v1730 = vunpack.c.l.b16 %v219
  %v1731 = vunpack.c.h.b16 %v219
  %v1732 = vunpack.c.l.b16 %v220
  %v1733 = vunpack.c.h.b16 %v220
  %v1734 = vunpack.c.l.b16 %v221
  %v1735 = vunpack.c.h.b16 %v221
  %v1736 = vunpack.c.l.b16 %v222
  %v1737 = vunpack.c.h.b16 %v222
  %v1738 = vunpack.c.l.b16 %v223
  %v1739 = vunpack.c.h.b16 %v223
  %v1740 = vunpack.c.l.b16 %v224
  %v1741 = vunpack.c.h.b16 %v224
  %v1742 = vunpack.c.l.b16 %v225
  %v1743 = vunpack.c.h.b16 %v225
  %v1744 = vunpack.c.l.b16 %v226
  %v1745 = vunpack.c.h.b16 %v226
  %v1746 = vunpack.c.l.b16 %v227
  %v1747 = vunpack.c.h.b16 %v227
  %v1748 = vunpack.c.l.b16 %v228
  %v1749 = vunpack.c.h.b16 %v228
  %v1750 = vunpack.c.l.b16 %v229
  %v1751 = vunpack.c.h.b16 %v229
  %v1752 = vunpack.c.l.b16 %v230
  %v1753 = vunpack.c.h.b16 %v230
  %v1754 = vunpack.c.l.b16 %v231
  %v1755 = vunpack.c.h.b16 %v231
  %v1756 = vunpack.c.l.b16 %v232
  %v1757 = vunpack.c.h.b16 %v232
  %v1758 = vunpack.c.l.b16 %v233
  %v1759 = vunpack.c.h.b16 %v233
  %v1760 = vunpack.c.l.b16 %v234
  %v1761 = vunpack.c.h.b16 %v234
  %v1762 = vunpack.c.l.b16 %v235
  %v1763 = vunpack.c.h.b16 %v235
  %v1764 = vunpack.c.l.b16 %v236
  %v1765 = vunpack.c.h.b16 %v236
  %v1766 = vunpack.c.l.b16 %v237
  %v1767 = vunpack.c.h.b16 %v237
  %v1768 = vunpack.c.l.b16 %v238
  %v1769 = vunpack.c.h.b16 %v238
  %v1770 = vunpack.c.l.b16 %v239
  %v1771 = vunpack.c.h.b16 %v239
  %v1772 = vunpack.c.l.b16 %v240
  %v1773 = vunpack.c.h.b16 %v240
  %v1774 = vunpack.c.l.b16 %v241
  %v1775 = vunpack.c.h.b16 %v241
  %v1776 = vunpack.c.l.b16 %v242
  %v1777 = vunpack.c.h.b16 %v242
  %v1778 = vunpack.c.l.b16 %v243
  %v1779 = vunpack.c.h.b16 %v243
  %v1780 = vunpack.c.l.b16 %v244
  %v1781 = vunpack.c.h.b16 %v244
  %v1782 = vunpack.c.l.b16 %v245
  %v1783 = vunpack.c.h.b16 %v245
  %v1784 = vunpack.c.l.b16 %v246
  %v1785 = vunpack.c.h.b16 %v246
  %v1786 = vunpack.c.l.b16 %v247
  %v1787 = vunpack.c.h.b16 %v247
  %v1788 = vunpack.c.l.b16 %v248
  %v1789 = vunpack.c.h.b16 %v248
  %v1790 = vunpack.c.l.b16 %v249
  %v1791 = vunpack.c.h.b16 %v249
  %v1792 = vunpack.c.l.b16 %v250
  %v1793 = vunpack.c.h.b16 %v250
  %v1794 = vunpack.c.l.b16 %v251
  %v1795 = vunpack.c.h.b16 %v251
  %v1796 = vunpack.c.l.b16 %v252
  %v1797 = vunpack.c.h.b16 %v252
  %v1798 = vunpack.c.l.b16 %v253
  %v1799 = vunpack.c.h.b16 %v253
  %v1800 = vunpack.c.l.b16 %v254
  %v1801 = vunpack.c.h.b16 %v254
  %v1802 = vunpack.c.l.b16 %v255
  %v1803 = vunpack.c.h.b16 %v255
  %v1804 = vunpack.c.l.b16 %v256
  %v1805 = vunpack.c.h.b16 %v256
  %v1806 = vunpack.c.l.b16 %v257
  %v1807 = vunpack.c.h.b16 %v257
  %v1808 = vunpack.c.l.b16 %v258
  %v1809 = vunpack.c.h.b16 %v258
  %v1810 = vunpack.c.l.b16 %v259
  %v1811 = vunpack.c.h.b16 %v259
  %v1812 = vunpack.c.l.b16 %v260
  %v1813 = vunpack.c.h.b16 %v260
  %v1814 = vunpack.c.l.b16 %v261
  %v1815 = vunpack.c.h.b16 %v261
  %v1816 = vunpack.c.l.b16 %v262
  %v1817 = vunpack.c.h.b16 %v262
  %v1818 = vunpack.c.l.b16 %v263
  %v1819 = vunpack.c.h.b16 %v263
  %v1820 = vunpack.c.l.b16 %v264
  %v1821 = vunpack.c.h.b16 %v264
  %v1822 = vunpack.c.l.b16 %v265
  %v1823 = vunpack.c.h.b16 %v265
  %v1824 = vunpack.c.l.b16 %v266
  %v1825 = vunpack.c.h.b16 %v266
  %v1826 = vunpack.c.l.b16 %v267
  %v1827 = vunpack.c.h.b16 %v267
  %v1828 = vunpack.c.l.b16 %v268
  %v1829 = vunpack.c.h.b16 %v268
  %v1830 = vunpack.c.l.b16 %v269
  %v1831 = vunpack.c.h.b16 %v269
  %v1832 = vunpack.c.l.b16 %v270
  %v1833 = vunpack.c.h.b16 %v270
  %v1834 = vunpack.c.l.b16 %v271
  %v1835 = vunpack.c.h.b16 %v271
  %v1836 = vunpack.c.l.b16 %v272
  %v1837 = vunpack.c.h.b16 %v272
  %v1838 = vunpack.c.l.b16 %v273
  %v1839 = vunpack.c.h.b16 %v273
  %v1840 = vunpack.c.l.b16 %v274
  %v1841 = vunpack.c.h.b16 %v274
  %v1842 = vunpack.c.l.b16 %v275
  %v1843 = vunpack.c.h.b16 %v275
  %v1844 = vunpack.c.l.b16 %v276
  %v1845 = vunpack.c.h.b16 %v276
  %v1846 = vunpack.c.l.b16 %v277
  %v1847 = vunpack.c.h.b16 %v277
  %v1848 = vunpack.c.l.b16 %v278
  %v1849 = vunpack.c.h.b16 %v278
  %v1850 = vunpack.c.l.b16 %v279
  %v1851 = vunpack.c.h.b16 %v279
  %v1852 = vunpack.c.l.b16 %v280
  %v1853 = vunpack.c.h.b16 %v280
  %v1854 = vunpack.c.l.b16 %v281
  %v1855 = vunpack.c.h.b16 %v281
  %v1856 = vunpack.c.l.b16 %v282
  %v1857 = vunpack.c.h.b16 %v282
  %v1858 = vunpack.c.l.b16 %v283
  %v1859 = vunpack.c.h.b16 %v283
  %v1860 = vunpack.c.l.b16 %v284
  %v1861 = vunpack.c.h.b16 %v284
  %v1862 = vunpack.c.l.b16 %v285
  %v1863 = vunpack.c.h.b16 %v285
  %v1864 = vunpack.c.l.b16 %v286
  %v1865 = vunpack.c.h.b16 %v286
  %v1866 = vunpack.c.l.b16 %v287
  %v1867 = vunpack.c.h.b16 %v287
  %v1868 = vunpack.c.l.b16 %v288
  %v1869 = vunpack.c.h.b16 %v288
  %v1870 = vunpack.c.l.b16 %v289
  %v1871 = vunpack.c.h.b16 %v289
  %v1872 = vunpack.c.l.b16 %v290
  %v1873 = vunpack.c.h.b16 %v290
  %v1874 = vunpack.c.l.b16 %v291
  %v1875 = vunpack.c.h.b16 %v291
  %v1876 = vunpack.c.l.b16 %v292
  %v1877 = vunpack.c.h.b16 %v292
  %v1878 = vunpack.c.l.b16 %v293
  %v1879 = vunpack.c.h.b16 %v293
  %v1880 = vunpack.c.l.b16 %v294
  %v1881 = vunpack.c.h.b16 %v294
  %v1882 = vunpack.c.l.b16 %v295
  %v1883 = vunpack.c.h.b16 %v295
  %v1884 = vunpack.c.l.b16 %v296
  %v1885 = vunpack.c.h.b16 %v296
  %v1886 = vunpack.c.l.b16 %v297
  %v1887 = vunpack.c.h.b16 %v297
  %v1888 = vunpack.c.l.b16 %v298
  %v1889 = vunpack.c.h.b16 %v298
  %v1890 = vunpack.c.l.b16 %v299
  %v1891 = vunpack.c.h.b16 %v299
  %v1892 = vunpack.c.l.b16 %v300
  %v1893 = vunpack.c.h.b16 %v300
  %v1894 = vunpack.c.l.b16 %v301
  %v1895 = vunpack.c.h.b16 %v301
  %v1896 = vunpack.c.l.b16 %v302
  %v1897 = vunpack.c.h.b16 %v302
  %v1898 = vunpack.c.l.b16 %v303
  %v1899 = vunpack.c.h.b16 %v303
  %v1900 = vunpack.c.l.b16 %v304
  %v1901 = vunpack.c.h.b16 %v304
  %v1902 = vunpack.c.l.b16 %v305
  %v1903 = vunpack.c.h.b16 %v305
  %v1904 = vunpack.c.l.b16 %v306
  %v1905 = vunpack.c.h.b16 %v306
  %v1906 = vunpack.c.l.b16 %v307
  %v1907 = vunpack.c.h.b16 %v307
  %v1908 = vunpack.c.l.b16 %v308
  %v1909 = vunpack.c.h.b16 %v308
  %v1910 = vunpack.c.l.b16 %v309
  %v1911 = vunpack.c.h.b16 %v309
  %v1912 = vunpack.c.l.b16 %v310
  %v1913 = vunpack.c.h.b16 %v310
  %v1914 = vunpack.c.l.b16 %v311
  %v1915 = vunpack.c.h.b16 %v311
  %v1916 = vunpack.c.l.b16 %v312
  %v1917 = vunpack.c.h.b16 %v312
  %v1918 = vunpack.c.l.b16 %v313
  %v1919 = vunpack.c.h.b16 %v313
  %v1920 = vunpack.c.l.b16 %v314
  %v1921 = vunpack.c.h.b16 %v314
  %v1922 = vunpack.c.l.b16 %v315
  %v1923 = vunpack.c.h.b16 %v315
  %v1924 = vunpack.c.l.b16 %v316
  %v1925 = vunpack.c.h.b16 %v316
  %v1926 = vunpack.c.l.b16 %v317
  %v1927 = vunpack.c.h.b16 %v317
  %v1928 = vunpack.c.l.b16 %v318
  %v1929 = vunpack.c.h.b16 %v318
  %v1930 = vunpack.c.l.b16 %v319
  %v1931 = vunpack.c.h.b16 %v319
  %v1932 = vunpack.c.l.b16 %v320
  %v1933 = vunpack.c.h.b16 %v320
  %v1934 = vunpack.c.l.b16 %v321
  %v1935 = vunpack.c.h.b16 %v321
  %v1936 = vunpack.c.l.b16 %v322
  %v1937 = vunpack.c.h.b16 %v322
  %v1938 = vunpack.c.l.b16 %v323
  %v1939 = vunpack.c.h.b16 %v323
  %v1940 = vunpack.c.l.b16 %v324
  %v1941 = vunpack.c.h.b16 %v324
  %v1942 = vunpack.c.l.b16 %v325
  %v1943 = vunpack.c.h.b16 %v325
  %v1944 = vunpack.c.l.b16 %v326
  %v1945 = vunpack.c.h.b16 %v326
  %v1946 = vunpack.c.l.b16 %v327
  %v1947 = vunpack.c.h.b16 %v327
  %v1948 = vunpack.c.l.b16 %v328
  %v1949 = vunpack.c.h.b16 %v328
  %v1950 = vunpack.c.l.b16 %v329
  %v1951 = vunpack.c.h.b16 %v329
  %v1952 = vunpack.c.l.b16 %v330
  %v1953 = vunpack.c.h.b16 %v330
  %v1954 = vunpack.c.l.b16 %v331
  %v1955 = vunpack.c.h.b16 %v331
  %v1956 = vunpack.c.l.b16 %v332
  %v1957 = vunpack.c.h.b16 %v332
  %v1958 = vunpack.c.l.b16 %v333
  %v1959 = vunpack.c.h.b16 %v333
  %v1960 = vunpack.c.l.b16 %v334
  %v1961 = vunpack.c.h.b16 %v334
  %v1962 = vunpack.c.l.b16 %v335
  %v1963 = vunpack.c.h.b16 %v335
  %v1964 = vunpack.c.l.b16 %v336
  %v1965 = vunpack.c.h.b16 %v336
  %v1966 = vunpack.c.l.b16 %v337
  %v1967 = vunpack.c.h.b16 %v337
  %v1968 = vunpack.c.l.b16 %v338
  %v1969 = vunpack.c.h.b16 %v338
  %v1970 = vunpack.c.l.b16 %v339
  %v1971 = vunpack.c.h.b16 %v339
  %v1972 = vunpack.c.l.b16 %v340
  %v1973 = vunpack.c.h.b16 %v340
  %v1974 = vunpack.c.l.b16 %v341
  %v1975 = vunpack.c.h.b16 %v341
  %v1976 = vunpack.c.l.b16 %v342
  %v1977 = vunpack.c.h.b16 %v342
  %v1978 = vunpack.c.l.b16 %v343
  %v1979 = vunpack.c.h.b16 %v343
  %v1980 = vunpack.c.l.b16 %v344
  %v1981 = vunpack.c.h.b16 %v344
  %v1982 = vunpack.c.l.b16 %v345
  %v1983 = vunpack.c.h.b16 %v345
  %v1984 = vunpack.c.l.b16 %v346
  %v1985 = vunpack.c.h.b16 %v346
  %v1986 = vunpack.c.l.b16 %v347
  %v1987 = vunpack.c.h.b16 %v347
  %v1988 = vunpack.c.l.b16 %v348
  %v1989 = vunpack.c.h.b16 %v348
  %v1990 = vunpack.c.l.b16 %v349
  %v1991 = vunpack.c.h.b16 %v349
  %v1992 = vunpack.c.l.b16 %v350
  %v1993 = vunpack.c.h.b16 %v350
  %v1994 = vunpack.c.l.b16 %v351
  %v1995 = vunpack.c.h.b16 %v351
  %v1996 = vunpack.c.l.b16 %v352
  %v1997 = vunpack.c.h.b16 %v352
  %v1998 = vunpack.c.l.b16 %v353
  %v1999 = vunpack.c.h.b16 %v353
  %v2000 = vunpack.c.l.b16 %v354
  %v2001 = vunpack.c.h.b16 %v354
  %v2002 = vunpack.c.l.b16 %v355
  %v2003 = vunpack.c.h.b16 %v355
  %v2004 = vunpack.c.l.b16 %v356
  %v2005 = vunpack.c.h.b16 %v356
  %v2006 = vunpack.c.l.b16 %v357
  %v2007 = vunpack.c.h.b16 %v357
  %v2008 = vunpack.c.l.b16 %v358
  %v2009 = vunpack.c.h.b16 %v358
  %v2010 = vunpack.c.l.b16 %v359
  %v2011 = vunpack.c.h.b16 %v359
  %v2012 = vunpack.c.l.b16 %v360
  %v2013 = vunpack.c.h.b16 %v360
  %v2014 = vunpack.c.l.b16 %v361
  %v2015 = vunpack.c.h.b16 %v361
  %v2016 = vunpack.c.l.b16 %v362
  %v2017 = vunpack.c.h.b16 %v362
  %v2018 = vunpack.c.l.b16 %v363
  %v2019 = vunpack.c.h.b16 %v363
  %v2020 = vunpack.c.l.b16 %v364
  %v2021 = vunpack.c.h.b16 %v364
  %v2022 = vunpack.c.l.b16 %v365
  %v2023 = vunpack.c.h.b16 %v365
  %v2024 = vunpack.c.l.b16 %v366
  %v2025 = vunpack.c.h.b16 %v366
  %v2026 = vunpack.c.l.b16 %v367
  %v2027 = vunpack.c.h.b16 %v367
  %v2028 = vunpack.c.l.b16 %v368
  %v2029 = vunpack.c.h.b16 %v368
  %v2030 = vunpack.c.l.b16 %v369
  %v2031 = vunpack.c.h.b16 %v369
  %v2032 = vunpack.c.l.b16 %v370
  %v2033 = vunpack.c.h.b16 %v370
  %v2034 = vunpack.c.l.b16 %v371
  %v2035 = vunpack.c.h.b16 %v371
  %v2036 = vunpack.c.l.b16 %v372
  %v2037 = vunpack.c.h.b16 %v372
  %v2038 = vunpack.c.l.b16 %v373
  %v2039 = vunpack.c.h.b16 %v373
  %v2040 = vunpack.c.l.b16 %v374
  %v2041 = vunpack.c.h.b16 %v374
  %v2042 = vunpack.c.l.b16 %v375
  %v2043 = vunpack.c.h.b16 %v375
  %v2044 = vunpack.c.l.b16 %v376
  %v2045 = vunpack.c.h.b16 %v376
  %v2046 = vunpack.c.l.b16 %v377
  %v2047 = vunpack.c.h.b16 %v377
  %v2048 = vunpack.c.l.b16 %v378
  %v2049 = vunpack.c.h.b16 %v378
  %v2050 = vunpack.c.l.b16 %v379
  %v2051 = vunpack.c.h.b16 %v379
  %v2052 = vunpack.c.l.b16 %v380
  %v2053 = vunpack.c.h.b16 %v380
  %v2054 = vunpack.c.l.b16 %v381
  %v2055 = vunpack.c.h.b16 %v381
  %v2056 = vunpack.c.l.b16 %v382
  %v2057 = vunpack.c.h.b16 %v382
  %v2058 = vunpack.c.l.b16 %v383
  %v2059 = vunpack.c.h.b16 %v383
  %v2060 = vunpack.c.l.b16 %v384
  %v2061 = vunpack.c.h.b16 %v384
  %v2062 = vunpack.c.l.b16 %v385
  %v2063 = vunpack.c.h.b16 %v385
  %v2064 = vunpack.c.l.b16 %v386
  %v2065 = vunpack.c.h.b16 %v386
  %v2066 = vunpack.c.l.b16 %v387
  %v2067 = vunpack.c.h.b16 %v387
  %v2068 = vunpack.c.l.b16 %v388
  %v2069 = vunpack.c.h.b16 %v388
  %v2070 = vunpack.c.l.b16 %v389
  %v2071 = vunpack.c.h.b16 %v389
  %v2072 = vunpack.c.l.b16 %v390
  %v2073 = vunpack.c.h.b16 %v390
  %v2074 = vunpack.c.l.b16 %v391
  %v2075 = vunpack.c.h.b16 %v391
  %v2076 = vunpack.c.l.b16 %v392
  %v2077 = vunpack.c.h.b16 %v392
  %v2078 = vunpack.c.l.b16 %v393
  %v2079 = vunpack.c.h.b16 %v393
  %v2080 = vunpack.c.l.b16 %v394
  %v2081 = vunpack.c.h.b16 %v394
  %v2082 = vunpack.c.l.b16 %v395
  %v2083 = vunpack.c.h.b16 %v395
  %v2084 = vunpack.c.l.b16 %v396
  %v2085 = vunpack.c.h.b16 %v396
  %v2086 = vunpack.c.l.b16 %v397
  %v2087 = vunpack.c.h.b16 %v397
  %v2088 = vunpack.c.l.b16 %v398
  %v2089 = vunpack.c.h.b16 %v398
  %v2090 = vunpack.c.l.b16 %v399
  %v2091 = vunpack.c.h.b16 %v399
  %v2092 = vunpack.c.l.b16 %v400
  %v2093 = vunpack.c.h.b16 %v400
  %v2094 = vunpack.c.l.b16 %v401
  %v2095 = vunpack.c.h.b16 %v401
  %v2096 = vunpack.c.l.b16 %v402
  %v2097 = vunpack.c.h.b16 %v402
  %v2098 = vunpack.c.l.b16 %v403
  %v2099 = vunpack.c.h.b16 %v403
  %v2100 = vunpack.c.l.b16 %v404
  %v2101 = vunpack.c.h.b16 %v404
  %v2102 = vunpack.c.l.b16 %v405
  %v2103 = vunpack.c.h.b16 %v405
  %v2104 = vunpack.c.l.b16 %v406
  %v2105 = vunpack.c.h.b16 %v406
  %v2106 = vunpack.c.l.b16 %v407
  %v2107 = vunpack.c.h.b16 %v407
  %v2108 = vunpack.c.l.b16 %v408
  %v2109 = vunpack.c.h.b16 %v408
  %v2110 = vunpack.c.l.b16 %v409
  %v2111 = vunpack.c.h.b16 %v409
  %v2112 = vunpack.c.l.b16 %v410
  %v2113 = vunpack.c.h.b16 %v410
  %v2114 = vunpack.c.l.b16 %v411
  %v2115 = vunpack.c.h.b16 %v411
  %v2116 = vunpack.c.l.b16 %v412
  %v2117 = vunpack.c.h.b16 %v412
  %v2118 = vunpack.c.l.b16 %v413
  %v2119 = vunpack.c.h.b16 %v413
  %v2120 = vunpack.c.l.b16 %v414
  %v2121 = vunpack.c.h.b16 %v414
  %v2122 = vunpack.c.l.b16 %v415
  %v2123 = vunpack.c.h.b16 %v415
  %v2124 = vunpack.c.l.b16 %v416
  %v2125 = vunpack.c.h.b16 %v416
  %v2126 = vunpack.c.l.b16 %v417
  %v2127 = vunpack.c.h.b16 %v417
  %v2128 = vunpack.c.l.b16 %v418
  %v2129 = vunpack.c.h.b16 %v418
  %v2130 = vunpack.c.l.b16 %v419
  %v2131 = vunpack.c.h.b16 %v419
  %v2132 = vunpack.c.l.b16 %v420
  %v2133 = vunpack.c.h.b16 %v420
  %v2134 = vunpack.c.l.b16 %v421
  %v2135 = vunpack.c.h.b16 %v421
  %v2136 = vunpack.c.l.b16 %v422
  %v2137 = vunpack.c.h.b16 %v422
  %v2138 = vunpack.c.l.b16 %v423
  %v2139 = vunpack.c.h.b16 %v423
  %v2140 = vunpack.c.l.b16 %v424
  %v2141 = vunpack.c.h.b16 %v424
  %v2142 = vunpack.c.l.b16 %v425
  %v2143 = vunpack.c.h.b16 %v425
  %v2144 = vunpack.c.l.b16 %v426
  %v2145 = vunpack.c.h.b16 %v426
  %v2146 = vunpack.c.l.b16 %v427
  %v2147 = vunpack.c.h.b16 %v427
  %v2148 = vunpack.c.l.b16 %v428
  %v2149 = vunpack.c.h.b16 %v428
  %v2150 = vunpack.c.l.b16 %v429
  %v2151 = vunpack.c.h.b16 %v429
  %v2152 = vunpack.c.l.b16 %v430
  %v2153 = vunpack.c.h.b16 %v430
  %v2154 = vunpack.c.l.b16 %v431
  %v2155 = vunpack.c.h.b16 %v431
  %v2156 = vunpack.c.l.b16 %v432
  %v2157 = vunpack.c.h.b16 %v432
  %v2158 = vunpack.c.l.b16 %v433
  %v2159 = vunpack.c.h.b16 %v433
  %v2160 = vunpack.c.l.b16 %v434
  %v2161 = vunpack.c.h.b16 %v434
  %v2162 = vunpack.c.l.b16 %v435
  %v2163 = vunpack.c.h.b16 %v435
  %v2164 = vunpack.c.l.b16 %v436
  %v2165 = vunpack.c.h.b16 %v436
  %v2166 = vunpack.c.l.b16 %v437
  %v2167 = vunpack.c.h.b16 %v437
  %v2168 = vunpack.c.l.b16 %v438
  %v2169 = vunpack.c.h.b16 %v438
  %v2170 = vunpack.c.l.b16 %v439
  %v2171 = vunpack.c.h.b16 %v439
  %v2172 = vunpack.c.l.b16 %v440
  %v2173 = vunpack.c.h.b16 %v440
  %v2174 = vunpack.c.l.b16 %v441
  %v2175 = vunpack.c.h.b16 %v441
  %v2176 = vunpack.c.l.b16 %v442
  %v2177 = vunpack.c.h.b16 %v442
  %v2178 = vunpack.c.l.b16 %v443
  %v2179 = vunpack.c.h.b16 %v443
  %v2180 = vunpack.c.l.b16 %v444
  %v2181 = vunpack.c.h.b16 %v444
  %v2182 = vunpack.c.l.b16 %v445
  %v2183 = vunpack.c.h.b16 %v445
  %v2184 = vunpack.c.l.b16 %v446
  %v2185 = vunpack.c.h.b16 %v446
  %v2186 = vunpack.c.l.b16 %v447
  %v2187 = vunpack.c.h.b16 %v447
  %v2188 = vunpack.c.l.b16 %v448
  %v2189 = vunpack.c.h.b16 %v448
  %v2190 = vunpack.c.l.b16 %v449
  %v2191 = vunpack.c.h.b16 %v449
  %v2192 = vunpack.c.l.b16 %v450
  %v2193 = vunpack.c.h.b16 %v450
  %v2194 = vunpack.c.l.b16 %v451
  %v2195 = vunpack.c.h.b16 %v451
  %v2196 = vunpack.c.l.b16 %v452
  %v2197 = vunpack.c.h.b16 %v452
  %v2198 = vunpack.c.l.b16 %v453
  %v2199 = vunpack.c.h.b16 %v453
  %v2200 = vunpack.c.l.b16 %v454
  %v2201 = vunpack.c.h.b16 %v454
  %v2202 = vunpack.c.l.b16 %v455
  %v2203 = vunpack.c.h.b16 %v455
  %v2204 = vunpack.c.l.b16 %v456
  %v2205 = vunpack.c.h.b16 %v456
  %v2206 = vunpack.c.l.b16 %v457
  %v2207 = vunpack.c.h.b16 %v457
  %v2208 = vunpack.c.l.b16 %v458
  %v2209 = vunpack.c.h.b16 %v458
  %v2210 = vunpack.c.l.b16 %v459
  %v2211 = vunpack.c.h.b16 %v459
  %v2212 = vunpack.c.l.b16 %v460
  %v2213 = vunpack.c.h.b16 %v460
  %v2214 = vunpack.c.l.b16 %v461
  %v2215 = vunpack.c.h.b16 %v461
  %v2216 = vunpack.c.l.b16 %v462
  %v2217 = vunpack.c.h.b16 %v462
  %v2218 = vunpack.c.l.b16 %v463
  %v2219 = vunpack.c.h.b16 %v463
  %v2220 = vunpack.c.l.b16 %v464
  %v2221 = vunpack.c.h.b16 %v464
  %v2222 = vunpack.c.l.b16 %v465
  %v2223 = vunpack.c.h.b16 %v465
  %v2224 = vunpack.c.l.b16 %v466
  %v2225 = vunpack.c.h.b16 %v466
  %v2226 = vunpack.c.l.b16 %v467
  %v2227 = vunpack.c.h.b16 %v467
  %v2228 = vunpack.c.l.b16 %v468
  %v2229 = vunpack.c.h.b16 %v468
  %v2230 = vunpack.c.l.b16 %v469
  %v2231 = vunpack.c.h.b16 %v469
  %v2232 = vunpack.c.l.b16 %v470
  %v2233 = vunpack.c.h.b16 %v470
  %v2234 = vunpack.c.l.b16 %v471
  %v2235 = vunpack.c.h.b16 %v471
  %v2236 = vunpack.c.l.b16 %v472
  %v2237 = vunpack.c.h.b16 %v472
  %v2238 = vunpack.c.l.b16 %v473
  %v2239 = vunpack.c.h.b16 %v473
  %v2240 = vunpack.c.l.b16 %v474
  %v2241 = vunpack.c.h.b16 %v474
  %v2242 = vunpack.c.l.b16 %v475
  %v2243 = vunpack.c.h.b16 %v475
  %v2244 = vunpack.c.l.b16 %v476
  %v2245 = vunpack.c.h.b16 %v476
  %v2246 = vunpack.c.l.b16 %v477
  %v2247 = vunpack.c.h.b16 %v477
  %v2248 = vunpack.c.l.b16 %v478
  %v2249 = vunpack.c.h.b16 %v478
  %v2250 = vunpack.c.l.b16 %v479
  %v2251 = vunpack.c.h.b16 %v479
  %v2252 = vunpack.c.l.b16 %v480
  %v2253 = vunpack.c.h.b16 %v480
  %v2254 = vunpack.c.l.b16 %v481
  %v2255 = vunpack.c.h.b16 %v481
  %v2256 = vunpack.c.l.b16 %v482
  %v2257 = vunpack.c.h.b16 %v482
  %v2258 = vunpack.c.l.b16 %v483
  %v2259 = vunpack.c.h.b16 %v483
  %v2260 = vunpack.c.l.b16 %v484
  %v2261 = vunpack.c.h.b16 %v484
  %v2262 = vunpack.c.l.b16 %v485
  %v2263 = vunpack.c.h.b16 %v485
  %v2264 = vunpack.c.l.b16 %v486
  %v2265 = vunpack.c.h.b16 %v486
  %v2266 = vunpack.c.l.b16 %v487
  %v2267 = vunpack.c.h.b16 %v487
  %v2268 = vunpack.c.l.b16 %v488
  %v2269 = vunpack.c.h.b16 %v488
  %v2270 = vunpack.c.l.b16 %v489
  %v2271 = vunpack.c.h.b16 %v489
  %v2272 = vunpack.c.l.b16 %v490
  %v2273 = vunpack.c.h.b16 %v490
  %v2274 = vunpack.c.l.b16 %v491
  %v2275 = vunpack.c.h.b16 %v491
  %v2276 = vunpack.c.l.b16 %v492
  %v2277 = vunpack.c.h.b16 %v492
  %v2278 = vunpack.c.l.b16 %v493
  %v2279 = vunpack.c.h.b16 %v493
  %v2280 = vunpack.c.l.b16 %v494
  %v2281 = vunpack.c.h.b16 %v494
  %v2282 = vunpack.c.l.b16 %v495
  %v2283 = vunpack.c.h.b16 %v495
  %v2284 = vunpack.c.l.b16 %v496
  %v2285 = vunpack.c.h.b16 %v496
  %v2286 = vunpack.c.l.b16 %v497
  %v2287 = vunpack.c.h.b16 %v497
  %v2288 = vunpack.c.l.b16 %v498
  %v2289 = vunpack.c.h.b16 %v498
  %v2290 = vunpack.c.l.b16 %v499
  %v2291 = vunpack.c.h.b16 %v499
  %v2292 = vunpack.c.l.b16 %v500
  %v2293 = vunpack.c.h.b16 %v500
  %v2294 = vunpack.c.l.b16 %v501
  %v2295 = vunpack.c.h.b16 %v501
  %v2296 = vunpack.c.l.b16 %v502
  %v2297 = vunpack.c.h.b16 %v502
  %v2298 = vunpack.c.l.b16 %v503
  %v2299 = vunpack.c.h.b16 %v503
  %v2300 = vunpack.c.l.b16 %v504
  %v2301 = vunpack.c.h.b16 %v504
  %v2302 = vunpack.c.l.b16 %v505
  %v2303 = vunpack.c.h.b16 %v505
  %v2304 = vunpack.c.l.b16 %v506
  %v2305 = vunpack.c.h.b16 %v506
  %v2306 = vunpack.c.l.b16 %v507
  %v2307 = vunpack.c.h.b16 %v507
  %v2308 = vunpack.c.l.b16 %v508
  %v2309 = vunpack.c.h.b16 %v508
  %v2310 = vunpack.c.l.b16 %v509
  %v2311 = vunpack.c.h.b16 %v509
  %v2312 = vunpack.c.l.b16 %v510
  %v2313 = vunpack.c.h.b16 %v510
  %v2314 = vunpack.c.l.b16 %v511
  %v2315 = vunpack.c.h.b16 %v511
  %v2316 = vunpack.c.l.b16 %v512
  %v2317 = vunpack.c.h.b16 %v512
  %v2318 = vunpack.c.l.b16 %v513
  %v2319 = vunpack.c.h.b16 %v513
  %v2320 = vunpack.c.l.b16 %v514
  %v2321 = vunpack.c.h.b16 %v514
  %v2322 = vunpack.c.l.b16 %v515
  %v2323 = vunpack.c.h.b16 %v515
  %v2324 = vunpack.c.l.b16 %v516
  %v2325 = vunpack.c.h.b16 %v516
  %v2326 = vunpack.c.l.b16 %v517
  %v2327 = vunpack.c.h.b16 %v517
  %v2328 = vunpack.c.l.b16 %v518
  %v2329 = vunpack.c.h.b16 %v518
  %v2330 = vunpack.c.l.b16 %v519
  %v2331 = vunpack.c.h.b16 %v519
  %v2332 = vunpack.c.l.b16 %v520
  %v2333 = vunpack.c.h.b16 %v520
  %v2334 = vunpack.c.l.b16 %v521
  %v2335 = vunpack.c.h.b16 %v521
  %v2336 = vunpack.c.l.b16 %v522
  %v2337 = vunpack.c.h.b16 %v522
  %v2338 = vunpack.c.l.b16 %v523
  %v2339 = vunpack.c.h.b16 %v523
  %v2340 = vunpack.c.l.b16 %v524
  %v2341 = vunpack.c.h.b16 %v524
  %v2342 = vunpack.c.l.b16 %v525
  %v2343 = vunpack.c.h.b16 %v525
  %v2344 = vunpack.c.l.b16 %v526
  %v2345 = vunpack.c.h.b16 %v526
  %v2346 = vunpack.c.l.b16 %v527
  %v2347 = vunpack.c.h.b16 %v527
  %v2348 = vunpack.c.l.b16 %v528
  %v2349 = vunpack.c.h.b16 %v528
  %v2350 = vunpack.c.l.b16 %v529
  %v2351 = vunpack.c.h.b16 %v529
  %v2352 = vunpack.c.l.b16 %v530
  %v2353 = vunpack.c.h.b16 %v530
  %v2354 = vunpack.c.l.b16 %v531
  %v2355 = vunpack.c.h.b16 %v531
  %v2356 = vunpack.c.l.b16 %v532
  %v2357 = vunpack.c.h.b16 %v532
  %v2358 = vunpack.c.l.b16 %v533
  %v2359 = vunpack.c.h.b16 %v533
  %v2360 = vunpack.c.l.b16 %v534
  %v2361 = vunpack.c.h.b16 %v534
  %v2362 = vunpack.c.l.b16 %v535
  %v2363 = vunpack.c.h.b16 %v535
  %v2364 = vunpack.c.l.b16 %v536
  %v2365 = vunpack.c.h.b16 %v536
  %v2366 = vunpack.c.l.b16 %v537
  %v2367 = vunpack.c.h.b16 %v537
  %v2368 = vunpack.c.l.b16 %v538
  %v2369 = vunpack.c.h.b16 %v538
  %v2370 = vunpack.c.l.b16 %v539
  %v2371 = vunpack.c.h.b16 %v539
  %v2372 = vunpack.c.l.b16 %v540
  %v2373 = vunpack.c.h.b16 %v540
  %v2374 = vunpack.c.l.b16 %v541
  %v2375 = vunpack.c.h.b16 %v541
  %v2376 = vunpack.c.l.b16 %v542
  %v2377 = vunpack.c.h.b16 %v542
  %v2378 = vunpack.c.l.b16 %v543
  %v2379 = vunpack.c.h.b16 %v543
  %v2380 = vunpack.c.l.b16 %v544
  %v2381 = vunpack.c.h.b16 %v544
  %v2382 = vunpack.c.l.b16 %v545
  %v2383 = vunpack.c.h.b16 %v545
  %v2384 = vunpack.c.l.b16 %v546
  %v2385 = vunpack.c.h.b16 %v546
  %v2386 = vunpack.c.l.b16 %v547
  %v2387 = vunpack.c.h.b16 %v547
  %v2388 = vunpack.c.l.b16 %v548
  %v2389 = vunpack.c.h.b16 %v548
  %v2390 = vunpack.c.l.b16 %v549
  %v2391 = vunpack.c.h.b16 %v549
  %v2392 = vunpack.c.l.b16 %v550
  %v2393 = vunpack.c.h.b16 %v550
  %v2394 = vunpack.c.l.b16 %v551
  %v2395 = vunpack.c.h.b16 %v551
  %v2396 = vunpack.c.l.b16 %v552
  %v2397 = vunpack.c.h.b16 %v552
  %v2398 = vunpack.c.l.b16 %v553
  %v2399 = vunpack.c.h.b16 %v553
  %v2400 = vunpack.c.l.b16 %v554
  %v2401 = vunpack.c.h.b16 %v554
  %v2402 = vunpack.c.l.b16 %v555
  %v2403 = vunpack.c.h.b16 %v555
  %v2404 = vunpack.c.l.b16 %v556
  %v2405 = vunpack.c.h.b16 %v556
  %v2406 = vunpack.c.l.b16 %v557
  %v2407 = vunpack.c.h.b16 %v557
  %v2408 = vunpack.c.l.b16 %v558
  %v2409 = vunpack.c.h.b16 %v558
  %v2410 = vunpack.c.l.b16 %v559
  %v2411 = vunpack.c.h.b16 %v559
  %v2412 = vunpack.c.l.b16 %v560
  %v2413 = vunpack.c.h.b16 %v560
  %v2414 = vunpack.c.l.b16 %v561
  %v2415 = vunpack.c.h.b16 %v561
  %v2416 = vunpack.c.l.b16 %v562
  %v2417 = vunpack.c.h.b16 %v562
  %v2418 = vunpack.c.l.b16 %v563
  %v2419 = vunpack.c.h.b16 %v563
  %v2420 = vunpack.c.l.b16 %v564
  %v2421 = vunpack.c.h.b16 %v564
  %v2422 = vunpack.c.l.b16 %v565
  %v2423 = vunpack.c.h.b16 %v565
  %v2424 = vunpack.c.l.b16 %v566
  %v2425 = vunpack.c.h.b16 %v566
  %v2426 = vunpack.c.l.b16 %v567
  %v2427 = vunpack.c.h.b16 %v567
  %v2428 = vunpack.c.l.b16 %v568
  %v2429 = vunpack.c.h.b16 %v568
  %v2430 = vunpack.c.l.b16 %v569
  %v2431 = vunpack.c.h.b16 %v569
  %v2432 = vunpack.c.l.b16 %v570
  %v2433 = vunpack.c.h.b16 %v570
  %v2434 = vunpack.c.l.b16 %v571
  %v2435 = vunpack.c.h.b16 %v571
  %v2436 = vunpack.c.l.b16 %v572
  %v2437 = vunpack.c.h.b16 %v572
  %v2438 = vunpack.c.l.b16 %v573
  %v2439 = vunpack.c.h.b16 %v573
  %v2440 = vunpack.c.l.b16 %v574
  %v2441 = vunpack.c.h.b16 %v574
  %v2442 = vunpack.c.l.b16 %v575
  %v2443 = vunpack.c.h.b16 %v575
  %v2444 = vunpack.c.l.b16 %v576
  %v2445 = vunpack.c.h.b16 %v576
  %v2446 = vunpack.c.l.b16 %v577
  %v2447 = vunpack.c.h.b16 %v577
  %v2448 = vunpack.c.l.b16 %v578
  %v2449 = vunpack.c.h.b16 %v578
  %v2450 = vunpack.c.l.b16 %v579
  %v2451 = vunpack.c.h.b16 %v579
  %v2452 = vunpack.c.l.b16 %v580
  %v2453 = vunpack.c.h.b16 %v580
  %v2454 = vunpack.c.l.b16 %v581
  %v2455 = vunpack.c.h.b16 %v581
  %v2456 = vunpack.c.l.b16 %v582
  %v2457 = vunpack.c.h.b16 %v582
  %v2458 = vunpack.c.l.b16 %v583
  %v2459 = vunpack.c.h.b16 %v583
  %v2460 = vunpack.c.l.b16 %v584
  %v2461 = vunpack.c.h.b16 %v584
  %v2462 = vunpack.c.l.b16 %v585
  %v2463 = vunpack.c.h.b16 %v585
  %v2464 = vunpack.c.l.b16 %v586
  %v2465 = vunpack.c.h.b16 %v586
  %v2466 = vunpack.c.l.b16 %v587
  %v2467 = vunpack.c.h.b16 %v587
  %v2468 = vunpack.c.l.b16 %v588
  %v2469 = vunpack.c.h.b16 %v588
  %v2470 = vunpack.c.l.b16 %v589
  %v2471 = vunpack.c.h.b16 %v589
  %v2472 = vunpack.c.l.b16 %v590
  %v2473 = vunpack.c.h.b16 %v590
  %v2474 = vunpack.c.l.b16 %v591
  %v2475 = vunpack.c.h.b16 %v591
  %v2476 = vunpack.c.l.b16 %v592
  %v2477 = vunpack.c.h.b16 %v592
  %v2478 = vunpack.c.l.b16 %v593
  %v2479 = vunpack.c.h.b16 %v593
  %v2480 = vunpack.c.l.b16 %v594
  %v2481 = vunpack.c.h.b16 %v594
  %v2482 = vunpack.c.l.b16 %v595
  %v2483 = vunpack.c.h.b16 %v595
  %v2484 = vunpack.c.l.b16 %v596
  %v2485 = vunpack.c.h.b16 %v596
  %v2486 = vunpack.c.l.b16 %v597
  %v2487 = vunpack.c.h.b16 %v597
  %v2488 = vunpack.c.l.b16 %v598
  %v2489 = vunpack.c.h.b16 %v598
  %v2490 = vunpack.c.l.b16 %v599
  %v2491 = vunpack.c.h.b16 %v599
  %v2492 = vunpack.c.l.b16 %v600
  %v2493 = vunpack.c.h.b16 %v600
  %v2494 = vunpack.c.l.b16 %v601
  %v2495 = vunpack.c.h.b16 %v601
  %v2496 = vunpack.c.l.b16 %v602
  %v2497 = vunpack.c.h.b16 %v602
  %v2498 = vunpack.c.l.b16 %v603
  %v2499 = vunpack.c.h.b16 %v603
  %v2500 = vunpack.c.l.b16 %v604
  %v2501 = vunpack.c.h.b16 %v604
  %v2502 = vunpack.c.l.b16 %v605
  %v2503 = vunpack.c.h.b16 %v605
  %v2504 = vunpack.c.l.b16 %v606
  %v2505 = vunpack.c.h.b16 %v606
  %v2506 = vunpack.c.l.b16 %v607
  %v2507 = vunpack.c.h.b16 %v607
  %v2508 = vunpack.c.l.b16 %v608
  %v2509 = vunpack.c.h.b16 %v608
  %v2510 = vunpack.c.l.b16 %v609
  %v2511 = vunpack.c.h.b16 %v609
  %v2512 = vunpack.c.l.b16 %v610
  %v2513 = vunpack.c.h.b16 %v610
  %v2514 = vunpack.c.l.b16 %v611
  %v2515 = vunpack.c.h.b16 %v611
  %v2516 = vunpack.c.l.b16 %v612
  %v2517 = vunpack.c.h.b16 %v612
  %v2518 = vunpack.c.l.b16 %v613
  %v2519 = vunpack.c.h.b16 %v613
  %v2520 = vunpack.c.l.b16 %v614
  %v2521 = vunpack.c.h.b16 %v614
  %v2522 = vunpack.c.l.b16 %v615
  %v2523 = vunpack.c.h.b16 %v615
  %v2524 = vunpack.c.l.b16 %v616
  %v2525 = vunpack.c.h.b16 %v616
  %v2526 = vunpack.c.l.b16 %v617
  %v2527 = vunpack.c.h.b16 %v617
  %v2528 = vunpack.c.l.b16 %v618
  %v2529 = vunpack.c.h.b16 %v618
  %v2530 = vunpack.c.l.b16 %v619
  %v2531 = vunpack.c.h.b16 %v619
  %v2532 = vunpack.c.l.b16 %v620
  %v2533 = vunpack.c.h.b16 %v620
  %v2534 = vunpack.c.l.b16 %v621
  %v2535 = vunpack.c.h.b16 %v621
  %v2536 = vunpack.c.l.b16 %v622
  %v2537 = vunpack.c.h.b16 %v622
  %v2538 = vunpack.c.l.b16 %v623
  %v2539 = vunpack.c.h.b16 %v623
  %v2540 = vunpack.c.l.b16 %v624
  %v2541 = vunpack.c.h.b16 %v624
  %v2542 = vunpack.c.l.b16 %v625
  %v2543 = vunpack.c.h.b16 %v625
  %v2544 = vpack.c.b16 %v1396, %v1392
  %v2545 = vpack.c.b16 %v1397, %v1393
  %v2546 = vpack.c.b16 %v1398, %v1394
  %v2547 = vpack.c.b16 %v1399, %v1395
  %v2548 = vpack.c.b16 %v1404, %v1400
  %v2549 = vpack.c.b16 %v1405, %v1401
  %v2550 = vpack.c.b16 %v1406, %v1402
  %v2551 = vpack.c.b16 %v1407, %v1403
  %v2552 = vpack.c.b16 %v1412, %v1408
  %v2553 = vpack.c.b16 %v1413, %v1409
  %v2554 = vpack.c.b16 %v1414, %v1410
  %v2555 = vpack.c.b16 %v1415, %v1411
  %v2556 = vpack.c.b16 %v1420, %v1416
  %v2557 = vpack.c.b16 %v1421, %v1417
  %v2558 = vpack.c.b16 %v1422, %v1418
  %v2559 = vpack.c.b16 %v1423, %v1419
  %v2560 = vpack.c.b16 %v1428, %v1424
  %v2561 = vpack.c.b16 %v1429, %v1425
  %v2562 = vpack.c.b16 %v1430, %v1426
  %v2563 = vpack.c.b16 %v1431, %v1427
  %v2564 = vpack.c.b16 %v1436, %v1432
  %v2565 = vpack.c.b16 %v1437, %v1433
  %v2566 = vpack.c.b16 %v1438, %v1434
  %v2567 = vpack.c.b16 %v1439, %v1435
  %v2568 = vpack.c.b16 %v1444, %v1440
  %v2569 = vpack.c.b16 %v1445, %v1441
  %v2570 = vpack.c.b16 %v1446, %v1442
  %v2571 = vpack.c.b16 %v1447, %v1443
  %v2572 = vpack.c.b16 %v1452, %v1448
  %v2573 = vpack.c.b16 %v1453, %v1449
  %v2574 = vpack.c.b16 %v1454, %v1450
  %v2575 = vpack.c.b16 %v1455, %v1451
  %v2576 = vpack.c.b16 %v1460, %v1456
  %v2577 = vpack.c.b16 %v1461, %v1457
  %v2578 = vpack.c.b16 %v1462, %v1458
  %v2579 = vpack.c.b16 %v1463, %v1459
  %v2580 = vpack.c.b16 %v1468, %v1464
  %v2581 = vpack.c.b16 %v1469, %v1465
  %v2582 = vpack.c.b16 %v1470, %v1466
  %v2583 = vpack.c.b16 %v1471, %v1467
  %v2584 = vpack.c.b16 %v1476, %v1472
  %v2585 = vpack.c.b16 %v1477, %v1473
  %v2586 = vpack.c.b16 %v1478, %v1474
  %v2587 = vpack.c.b16 %v1479, %v1475
  %v2588 = vpack.c.b16 %v1484, %v1480
  %v2589 = vpack.c.b16 %v1485, %v1481
  %v2590 = vpack.c.b16 %v1486, %v1482
  %v2591 = vpack.c.b16 %v1487, %v1483
  %v2592 = vpack.c.b16 %v1492, %v1488
  %v2593 = vpack.c.b16 %v1493, %v1489
  %v2594 = vpack.c.b16 %v1494, %v1490
  %v2595 = vpack.c.b16 %v1495, %v1491
  %v2596 = vpack.c.b16 %v1500, %v1496
  %v2597 = vpack.c.b16 %v1501, %v1497
  %v2598 = vpack.c.b16 %v1502, %v1498
  %v2599 = vpack.c.b16 %v1503, %v1499
  %v2600 = vpack.c.b16 %v1508, %v1504
  %v2601 = vpack.c.b16 %v1509, %v1505
  %v2602 = vpack.c.b16 %v1510, %v1506
  %v2603 = vpack.c.b16 %v1511, %v1507
  %v2604 = vpack.c.b16 %v1516, %v1512
  %v2605 = vpack.c.b16 %v1517, %v1513
  %v2606 = vpack.c.b16 %v1518, %v1514
  %v2607 = vpack.c.b16 %v1519, %v1515
  %v2608 = vpack.c.b16 %v1524, %v1520
  %v2609 = vpack.c.b16 %v1525, %v1521
  %v2610 = vpack.c.b16 %v1526, %v1522
  %v2611 = vpack.c.b16 %v1527, %v1523
  %v2612 = vpack.c.b16 %v1532, %v1528
  %v2613 = vpack.c.b16 %v1533, %v1529
  %v2614 = vpack.c.b16 %v1534, %v1530
  %v2615 = vpack.c.b16 %v1535, %v1531
  %v2616 = vpack.c.b16 %v1540, %v1536
  %v2617 = vpack.c.b16 %v1541, %v1537
  %v2618 = vpack.c.b16 %v1542, %v1538
  %v2619 = vpack.c.b16 %v1543, %v1539
  %v2620 = vpack.c.b16 %v1548, %v1544
  %v2621 = vpack.c.b16 %v1549, %v1545
  %v2622 = vpack.c.b16 %v1550, %v1546
  %v2623 = vpack.c.b16 %v1551, %v1547
  %v2624 = vpack.c.b16 %v1556, %v1552
  %v2625 = vpack.c.b16 %v1557, %v1553
  %v2626 = vpack.c.b16 %v1558, %v1554
  %v2627 = vpack.c.b16 %v1559, %v1555
  %v2628 = vpack.c.b16 %v1564, %v1560
  %v2629 = vpack.c.b16 %v1565, %v1561
  %v2630 = vpack.c.b16 %v1566, %v1562
  %v2631 = vpack.c.b16 %v1567, %v1563
  %v2632 = vpack.c.b16 %v1572, %v1568
  %v2633 = vpack.c.b16 %v1573, %v1569
  %v2634 = vpack.c.b16 %v1574, %v1570
  %v2635 = vpack.c.b16 %v1575, %v1571
  %v2636 = vpack.c.b16 %v1580, %v1576
  %v2637 = vpack.c.b16 %v1581, %v1577
  %v2638 = vpack.c.b16 %v1582, %v1578
  %v2639 = vpack.c.b16 %v1583, %v1579
  %v2640 = vpack.c.b16 %v1588, %v1584
  %v2641 = vpack.c.b16 %v1589, %v1585
  %v2642 = vpack.c.b16 %v1590, %v1586
  %v2643 = vpack.c.b16 %v1591, %v1587
  %v2644 = vpack.c.b16 %v1596, %v1592
  %v2645 = vpack.c.b16 %v1597, %v1593
  %v2646 = vpack.c.b16 %v1598, %v1594
  %v2647 = vpack.c.b16 %v1599, %v1595
  %v2648 = vpack.c.b16 %v1604, %v1600
  %v2649 = vpack.c.b16 %v1605, %v1601
  %v2650 = vpack.c.b16 %v1606, %v1602
  %v2651 = vpack.c.b16 %v1607, %v1603
  %v2652 = vpack.c.b16 %v1612, %v1608
  %v2653 = vpack.c.b16 %v1613, %v1609
  %v2654 = vpack.c.b16 %v1614, %v1610
  %v2655 = vpack.c.b16 %v1615, %v1611
  %v2656 = vpack.c.b16 %v1620, %v1616
  %v2657 = vpack.c.b16 %v1621, %v1617
  %v2658 = vpack.c.b16 %v1622, %v1618
  %v2659 = vpack.c.b16 %v1623, %v1619
  %v2660 = vpack.c.b16 %v1628, %v1624
  %v2661 = vpack.c.b16 %v1629, %v1625
  %v2662 = vpack.c.b16 %v1630, %v1626
  %v2663 = vpack.c.b16 %v1631, %v1627
  %v2664 = vpack.c.b16 %v1636, %v1632
  %v2665 = vpack.c.b16 %v1637, %v1633
  %v2666 = vpack.c.b16 %v1638, %v1634
  %v2667 = vpack.c.b16 %v1639, %v1635
  %v2668 = vpack.c.b16 %v1644, %v1640
  %v2669 = vpack.c.b16 %v1645, %v1641
  %v2670 = vpack.c.b16 %v1646, %v1642
  %v2671 = vpack.c.b16 %v1647, %v1643
  %v2672 = vpack.c.b16 %v1652, %v1648
  %v2673 = vpack.c.b16 %v1653, %v1649
  %v2674 = vpack.c.b16 %v1654, %v1650
  %v2675 = vpack.c.b16 %v1655, %v1651
  %v2676 = vpack.c.b16 %v1660, %v1656
  %v2677 = vpack.c.b16 %v1661, %v1657
  %v2678 = vpack.c.b16 %v1662, %v1658
  %v2679 = vpack.c.b16 %v1663, %v1659
  %v2680 = vpack.c.b16 %v1668, %v1664
  %v2681 = vpack.c.b16 %v1669, %v1665
  %v2682 = vpack.c.b16 %v1670, %v1666
  %v2683 = vpack.c.b16 %v1671, %v1667
  %v2684 = vpack.c.b16 %v1676, %v1672
  %v2685 = vpack.c.b16 %v1677, %v1673
  %v2686 = vpack.c.b16 %v1678, %v1674
  %v2687 = vpack.c.b16 %v1679, %v1675
  %v2688 = vpack.c.b16 %v1684, %v1680
  %v2689 = vpack.c.b16 %v1685, %v1681
  %v2690 = vpack.c.b16 %v1686, %v1682
  %v2691 = vpack.c.b16 %v1687, %v1683
  %v2692 = vpack.c.b16 %v1692, %v1688
  %v2693 = vpack.c.b16 %v1693, %v1689
  %v2694 = vpack.c.b16 %v1694, %v1690
  %v2695 = vpack.c.b16 %v1695, %v1691
  %v2696 = vpack.c.b16 %v1700, %v1696
  %v2697 = vpack.c.b16 %v1701, %v1697
  %v2698 = vpack.c.b16 %v1702, %v1698
  %v2699 = vpack.c.b16 %v1703, %v1699
  %v2700 = vpack.c.b16 %v1708, %v1704
  %v2701 = vpack.c.b16 %v1709, %v1705
  %v2702 = vpack.c.b16 %v1710, %v1706
  %v2703 = vpack.c.b16 %v1711, %v1707
  %v2704 = vpack.c.b16 %v1716, %v1712
  %v2705 = vpack.c.b16 %v1717, %v1713
  %v2706 = vpack.c.b16 %v1718, %v1714
  %v2707 = vpack.c.b16 %v1719, %v1715
  %v2708 = vpack.c.b16 %v1724, %v1720
  %v2709 = vpack.c.b16 %v1725, %v1721
  %v2710 = vpack.c.b16 %v1726, %v1722
  %v2711 = vpack.c.b16 %v1727, %v1723
  %v2712 = vpack.c.b16 %v1732, %v1728
  %v2713 = vpack.c.b16 %v1733, %v1729
  %v2714 = vpack.c.b16 %v1734, %v1730
  %v2715 = vpack.c.b16 %v1735, %v1731
  %v2716 = vpack.c.b16 %v1740, %v1736
  %v2717 = vpack.c.b16 %v1741, %v1737
  %v2718 = vpack.c.b16 %v1742, %v1738
  %v2719 = vpack.c.b16 %v1743, %v1739
  %v2720 = vpack.c.b16 %v1748, %v1744
  %v2721 = vpack.c.b16 %v1749, %v1745
  %v2722 = vpack.c.b16 %v1750, %v1746
  %v2723 = vpack.c.b16 %v1751, %v1747
  %v2724 = vpack.c.b16 %v1756, %v1752
  %v2725 = vpack.c.b16 %v1757, %v1753
  %v2726 = vpack.c.b16 %v1758, %v1754
  %v2727 = vpack.c.b16 %v1759, %v1755
  %v2728 = vpack.c.b16 %v1764, %v1760
  %v2729 = vpack.c.b16 %v1765, %v1761
  %v2730 = vpack.c.b16 %v1766, %v1762
  %v2731 = vpack.c.b16 %v1767, %v1763
  %v2732 = vpack.c.b16 %v1772, %v1768
  %v2733 = vpack.c.b16 %v1773, %v1769
  %v2734 = vpack.c.b16 %v1774, %v1770
  %v2735 = vpack.c.b16 %v1775, %v1771
  %v2736 = vpack.c.b16 %v1780, %v1776
  %v2737 = vpack.c.b16 %v1781, %v1777
  %v2738 = vpack.c.b16 %v1782, %v1778
  %v2739 = vpack.c.b16 %v1783, %v1779
  %v2740 = vpack.c.b16 %v1788, %v1784
  %v2741 = vpack.c.b16 %v1789, %v1785
  %v2742 = vpack.c.b16 %v1790, %v1786
  %v2743 = vpack.c.b16 %v1791, %v1787
  %v2744 = vpack.c.b16 %v1796, %v1792
  %v2745 = vpack.c.b16 %v1797, %v1793
  %v2746 = vpack.c.b16 %v1798, %v1794
  %v2747 = vpack.c.b16 %v1799, %v1795
  %v2748 = vpack.c.b16 %v1804, %v1800
  %v2749 = vpack.c.b16 %v1805, %v1801
  %v2750 = vpack.c.b16 %v1806, %v1802
  %v2751 = vpack.c.b16 %v1807, %v1803
  %v2752 = vpack.c.b16 %v1812, %v1808
  %v2753 = vpack.c.b16 %v1813, %v1809
  %v2754 = vpack.c.b16 %v1814, %v1810
  %v2755 = vpack.c.b16 %v1815, %v1811
  %v2756 = vpack.c.b16 %v1820, %v1816
  %v2757 = vpack.c.b16 %v1821, %v1817
  %v2758 = vpack.c.b16 %v1822, %v1818
  %v2759 = vpack.c.b16 %v1823, %v1819
  %v2760 = vpack.c.b16 %v1828, %v1824
  %v2761 = vpack.c.b16 %v1829, %v1825
  %v2762 = vpack.c.b16 %v1830, %v1826
  %v2763 = vpack.c.b16 %v1831, %v1827
  %v2764 = vpack.c.b16 %v1836, %v1832
  %v2765 = vpack.c.b16 %v1837, %v1833
  %v2766 = vpack.c.b16 %v1838, %v1834
  %v2767 = vpack.c.b16 %v1839, %v1835
  %v2768 = vpack.c.b16 %v1844, %v1840
  %v2769 = vpack.c.b16 %v1845, %v1841
  %v2770 = vpack.c.b16 %v1846, %v1842
  %v2771 = vpack.c.b16 %v1847, %v1843
  %v2772 = vpack.c.b16 %v1852, %v1848
  %v2773 = vpack.c.b16 %v1853, %v1849
  %v2774 = vpack.c.b16 %v1854, %v1850
  %v2775 = vpack.c.b16 %v1855, %v1851
  %v2776 = vpack.c.b16 %v1860, %v1856
  %v2777 = vpack.c.b16 %v1861, %v1857
  %v2778 = vpack.c.b16 %v1862, %v1858
  %v2779 = vpack.c.b16 %v1863, %v1859
  %v2780 = vpack.c.b16 %v1868, %v1864
  %v2781 = vpack.c.b16 %v1869, %v1865
  %v2782 = vpack.c.b16 %v1870, %v1866
  %v2783 = vpack.c.b16 %v1871, %v1867
  %v2784 = vpack.c.b16 %v1876, %v1872
  %v2785 = vpack.c.b16 %v1877, %v1873
  %v2786 = vpack.c.b16 %v1878, %v1874
  %v2787 = vpack.c.b16 %v1879, %v1875
  %v2788 = vpack.c.b16 %v1884, %v1880
  %v2789 = vpack.c.b16 %v1885, %v1881
  %v2790 = vpack.c.b16 %v1886, %v1882
  %v2791 = vpack.c.b16 %v1887, %v1883
  %v2792 = vpack.c.b16 %v1892, %v1888
  %v2793 = vpack.c.b16 %v1893, %v1889
  %v2794 = vpack.c.b16 %v1894, %v1890
  %v2795 = vpack.c.b16 %v1895, %v1891
  %v2796 = vpack.c.b16 %v1900, %v1896
  %v2797 = vpack.c.b16 %v1901, %v1897
  %v2798 = vpack.c.b16 %v1902, %v1898
  %v2799 = vpack.c.b16 %v1903, %v1899
  %v2800 = vpack.c.b16 %v1908, %v1904
  %v2801 = vpack.c.b16 %v1909, %v1905
  %v2802 = vpack.c.b16 %v1910, %v1906
  %v2803 = vpack.c.b16 %v1911, %v1907
  %v2804 = vpack.c.b16 %v1916, %v1912
  %v2805 = vpack.c.b16 %v1917, %v1913
  %v2806 = vpack.c.b16 %v1918, %v1914
  %v2807 = vpack.c.b16 %v1919, %v1915
  %v2808 = vpack.c.b16 %v1924, %v1920
  %v2809 = vpack.c.b16 %v1925, %v1921
  %v2810 = vpack.c.b16 %v1926, %v1922
  %v2811 = vpack.c.b16 %v1927, %v1923
  %v2812 = vpack.c.b16 %v1932, %v1928
  %v2813 = vpack.c.b16 %v1933, %v1929
  %v2814 = vpack.c.b16 %v1934, %v1930
  %v2815 = vpack.c.b16 %v1935, %v1931
  %v2816 = vpack.c.b16 %v1940, %v1936
  %v2817 = vpack.c.b16 %v1941, %v1937
  %v2818 = vpack.c.b16 %v1942, %v1938
  %v2819 = vpack.c.b16 %v1943, %v1939
  %v2820 = vpack.c.b16 %v1948, %v1944
  %v2821 = vpack.c.b16 %v1949, %v1945
  %v2822 = vpack.c.b16 %v1950, %v1946
  %v2823 = vpack.c.b16 %v1951, %v1947
  %v2824 = vpack.c.b16 %v1956, %v1952
  %v2825 = vpack.c.b16 %v1957, %v1953
  %v2826 = vpack.c.b16 %v1958, %v1954
  %v2827 = vpack.c.b16 %v1959, %v1955
  %v2828 = vpack.c.b16 %v1964, %v1960
  %v2829 = vpack.c.b16 %v1965, %v1961
  %v2830 = vpack.c.b16 %v1966, %v1962
  %v2831 = vpack.c.b16 %v1967, %v1963
  %v2832 = vpack.c.b16 %v1972, %v1968
  %v2833 = vpack.c.b16 %v1973, %v1969
  %v2834 = vpack.c.b16 %v1974, %v1970
  %v2835 = vpack.c.b16 %v1975, %v1971
  %v2836 = vpack.c.b16 %v1980, %v1976
  %v2837 = vpack.c.b16 %v1981, %v1977
  %v2838 = vpack.c.b16 %v1982, %v1978
  %v2839 = vpack.c.b16 %v1983, %v1979
  %v2840 = vpack.c.b16 %v1988, %v1984
  %v2841 = vpack.c.b16 %v1989, %v1985
  %v2842 = vpack.c.b16 %v1990, %v1986
  %v2843 = vpack.c.b16 %v1991, %v1987
  %v2844 = vpack.c.b16 %v1996, %v1992
  %v2845 = vpack.c.b16 %v1997, %v1993
  %v2846 = vpack.c.b16 %v1998, %v1994
  %v2847 = vpack.c.b16 %v1999, %v1995
  %v2848 = vpack.c.b16 %v2004, %v2000
  %v2849 = vpack.c.b16 %v2005, %v2001
  %v2850 = vpack.c.b16 %v2006, %v2002
  %v2851 = vpack.c.b16 %v2007, %v2003
  %v2852 = vpack.c.b16 %v2012, %v2008
  %v2853 = vpack.c.b16 %v2013, %v2009
  %v2854 = vpack.c.b16 %v2014, %v2010
  %v2855 = vpack.c.b16 %v2015, %v2011
  %v2856 = vpack.c.b16 %v2020, %v2016
  %v2857 = vpack.c.b16 %v2021, %v2017
  %v2858 = vpack.c.b16 %v2022, %v2018
  %v2859 = vpack.c.b16 %v2023, %v2019
  %v2860 = vpack.c.b16 %v2028, %v2024
  %v2861 = vpack.c.b16 %v2029, %v2025
  %v2862 = vpack.c.b16 %v2030, %v2026
  %v2863 = vpack.c.b16 %v2031, %v2027
  %v2864 = vpack.c.b16 %v2036, %v2032
  %v2865 = vpack.c.b16 %v2037, %v2033
  %v2866 = vpack.c.b16 %v2038, %v2034
  %v2867 = vpack.c.b16 %v2039, %v2035
  %v2868 = vpack.c.b16 %v2044, %v2040
  %v2869 = vpack.c.b16 %v2045, %v2041
  %v2870 = vpack.c.b16 %v2046, %v2042
  %v2871 = vpack.c.b16 %v2047, %v2043
  %v2872 = vpack.c.b16 %v2052, %v2048
  %v2873 = vpack.c.b16 %v2053, %v2049
  %v2874 = vpack.c.b16 %v2054, %v2050
  %v2875 = vpack.c.b16 %v2055, %v2051
  %v2876 = vpack.c.b16 %v2060, %v2056
  %v2877 = vpack.c.b16 %v2061, %v2057
  %v2878 = vpack.c.b16 %v2062, %v2058
  %v2879 = vpack.c.b16 %v2063, %v2059
  %v2880 = vpack.c.b16 %v2068, %v2064
  %v2881 = vpack.c.b16 %v2069, %v2065
  %v2882 = vpack.c.b16 %v2070, %v2066
  %v2883 = vpack.c.b16 %v2071, %v2067
  %v2884 = vpack.c.b16 %v2076, %v2072
  %v2885 = vpack.c.b16 %v2077, %v2073
  %v2886 = vpack.c.b16 %v2078, %v2074
  %v2887 = vpack.c.b16 %v2079, %v2075
  %v2888 = vpack.c.b16 %v2084, %v2080
  %v2889 = vpack.c.b16 %v2085, %v2081
  %v2890 = vpack.c.b16 %v2086, %v2082
  %v2891 = vpack.c.b16 %v2087, %v2083
  %v2892 = vpack.c.b16 %v2092, %v2088
  %v2893 = vpack.c.b16 %v2093, %v2089
  %v2894 = vpack.c.b16 %v2094, %v2090
  %v2895 = vpack.c.b16 %v2095, %v2091
  %v2896 = vpack.c.b16 %v2100, %v2096
  %v2897 = vpack.c.b16 %v2101, %v2097
  %v2898 = vpack.c.b16 %v2102, %v2098
  %v2899 = vpack.c.b16 %v2103, %v2099
  %v2900 = vpack.c.b16 %v2108, %v2104
  %v2901 = vpack.c.b16 %v2109, %v2105
  %v2902 = vpack.c.b16 %v2110, %v2106
  %v2903 = vpack.c.b16 %v2111, %v2107
  %v2904 = vpack.c.b16 %v2116, %v2112
  %v2905 = vpack.c.b16 %v2117, %v2113
  %v2906 = vpack.c.b16 %v2118, %v2114
  %v2907 = vpack.c.b16 %v2119, %v2115
  %v2908 = vpack.c.b16 %v2124, %v2120
  %v2909 = vpack.c.b16 %v2125, %v2121
  %v2910 = vpack.c.b16 %v2126, %v2122
  %v2911 = vpack.c.b16 %v2127, %v2123
  %v2912 = vpack.c.b16 %v2132, %v2128
  %v2913 = vpack.c.b16 %v2133, %v2129
  %v2914 = vpack.c.b16 %v2134, %v2130
  %v2915 = vpack.c.b16 %v2135, %v2131
  %v2916 = vpack.c.b16 %v2140, %v2136
  %v2917 = vpack.c.b16 %v2141, %v2137
  %v2918 = vpack.c.b16 %v2142, %v2138
  %v2919 = vpack.c.b16 %v2143, %v2139
  %v2920 = vpack.c.b16 %v2148, %v2144
  %v2921 = vpack.c.b16 %v2149, %v2145
  %v2922 = vpack.c.b16 %v2150, %v2146
  %v2923 = vpack.c.b16 %v2151, %v2147
  %v2924 = vpack.c.b16 %v2156, %v2152
  %v2925 = vpack.c.b16 %v2157, %v2153
  %v2926 = vpack.c.b16 %v2158, %v2154
  %v2927 = vpack.c.b16 %v2159, %v2155
  %v2928 = vpack.c.b16 %v2164, %v2160
  %v2929 = vpack.c.b16 %v2165, %v2161
  %v2930 = vpack.c.b16 %v2166, %v2162
  %v2931 = vpack.c.b16 %v2167, %v2163
  %v2932 = vpack.c.b16 %v2172, %v2168
  %v2933 = vpack.c.b16 %v2173, %v2169
  %v2934 = vpack.c.b16 %v2174, %v2170
  %v2935 = vpack.c.b16 %v2175, %v2171
  %v2936 = vpack.c.b16 %v2180, %v2176
  %v2937 = vpack.c.b16 %v2181, %v2177
  %v2938 = vpack.c.b16 %v2182, %v2178
  %v2939 = vpack.c.b16 %v2183, %v2179
  %v2940 = vpack.c.b16 %v2188, %v2184
  %v2941 = vpack.c.b16 %v2189, %v2185
  %v2942 = vpack.c.b16 %v2190, %v2186
  %v2943 = vpack.c.b16 %v2191, %v2187
  %v2944 = vpack.c.b16 %v2196, %v2192
  %v2945 = vpack.c.b16 %v2197, %v2193
  %v2946 = vpack.c.b16 %v2198, %v2194
  %v2947 = vpack.c.b16 %v2199, %v2195
  %v2948 = vpack.c.b16 %v2204, %v2200
  %v2949 = vpack.c.b16 %v2205, %v2201
  %v2950 = vpack.c.b16 %v2206, %v2202
  %v2951 = vpack.c.b16 %v2207, %v2203
  %v2952 = vpack.c.b16 %v2212, %v2208
  %v2953 = vpack.c.b16 %v2213, %v2209
  %v2954 = vpack.c.b16 %v2214, %v2210
  %v2955 = vpack.c.b16 %v2215, %v2211
  %v2956 = vpack.c.b16 %v2220, %v2216
  %v2957 = vpack.c.b16 %v2221, %v2217
  %v2958 = vpack.c.b16 %v2222, %v2218
  %v2959 = vpack.c.b16 %v2223, %v2219
  %v2960 = vpack.c.b16 %v2228, %v2224
  %v2961 = vpack.c.b16 %v2229, %v2225
  %v2962 = vpack.c.b16 %v2230, %v2226
  %v2963 = vpack.c.b16 %v2231, %v2227
  %v2964 = vpack.c.b16 %v2236, %v2232
  %v2965 = vpack.c.b16 %v2237, %v2233
  %v2966 = vpack.c.b16 %v2238, %v2234
  %v2967 = vpack.c.b16 %v2239, %v2235
  %v2968 = vpack.c.b16 %v2244, %v2240
  %v2969 = vpack.c.b16 %v2245, %v2241
  %v2970 = vpack.c.b16 %v2246, %v2242
  %v2971 = vpack.c.b16 %v2247, %v2243
  %v2972 = vpack.c.b16 %v2252, %v2248
  %v2973 = vpack.c.b16 %v2253, %v2249
  %v2974 = vpack.c.b16 %v2254, %v2250
  %v2975 = vpack.c.b16 %v2255, %v2251
  %v2976 = vpack.c.b16 %v2260, %v2256
  %v2977 = vpack.c.b16 %v2261, %v2257
  %v2978 = vpack.c.b16 %v2262, %v2258
  %v2979 = vpack.c.b16 %v2263, %v2259
  %v2980 = vpack.c.b16 %v2268, %v2264
  %v2981 = vpack.c.b16 %v2269, %v2265
  %v2982 = vpack.c.b16 %v2270, %v2266
  %v2983 = vpack.c.b16 %v2271, %v2267
  %v2984 = vpack.c.b16 %v2276, %v2272
  %v2985 = vpack.c.b16 %v2277, %v2273
  %v2986 = vpack.c.b16 %v2278, %v2274
  %v2987 = vpack.c.b16 %v2279, %v2275
  %v2988 = vpack.c.b16 %v2284, %v2280
  %v2989 = vpack.c.b16 %v2285, %v2281
  %v2990 = vpack.c.b16 %v2286, %v2282
  %v2991 = vpack.c.b16 %v2287, %v2283
  %v2992 = vpack.c.b16 %v2292, %v2288
  %v2993 = vpack.c.b16 %v2293, %v2289
  %v2994 = vpack.c.b16 %v2294, %v2290
  %v2995 = vpack.c.b16 %v2295, %v2291
  %v2996 = vpack.c.b16 %v2300, %v2296
  %v2997 = vpack.c.b16 %v2301, %v2297
  %v2998 = vpack.c.b16 %v2302, %v2298
  %v2999 = vpack.c.b16 %v2303, %v2299
  %v3000 = vpack.c.b16 %v2308, %v2304
  %v3001 = vpack.c.b16 %v2309, %v2305
  %v3002 = vpack.c.b16 %v2310, %v2306
  %v3003 = vpack.c.b16 %v2311, %v2307
  %v3004 = vpack.c.b16 %v2316, %v2312
  %v3005 = vpack.c.b16 %v2317, %v2313
  %v3006 = vpack.c.b16 %v2318, %v2314
  %v3007 = vpack.c.b16 %v2319, %v2315
  %v3008 = vpack.c.b16 %v2324, %v2320
  %v3009 = vpack.c.b16 %v2325, %v2321
  %v3010 = vpack.c.b16 %v2326, %v2322
  %v3011 = vpack.c.b16 %v2327, %v2323
  %v3012 = vpack.c.b16 %v2332, %v2328
  %v3013 = vpack.c.b16 %v2333, %v2329
  %v3014 = vpack.c.b16 %v2334, %v2330
  %v3015 = vpack.c.b16 %v2335, %v2331
  %v3016 = vpack.c.b16 %v2340, %v2336
  %v3017 = vpack.c.b16 %v2341, %v2337
  %v3018 = vpack.c.b16 %v2342, %v2338
  %v3019 = vpack.c.b16 %v2343, %v2339
  %v3020 = vpack.c.b16 %v2348, %v2344
  %v3021 = vpack.c.b16 %v2349, %v2345
  %v3022 = vpack.c.b16 %v2350, %v2346
  %v3023 = vpack.c.b16 %v2351, %v2347
  %v3024 = vpack.c.b16 %v2356, %v2352
  %v3025 = vpack.c.b16 %v2357, %v2353
  %v3026 = vpack.c.b16 %v2358, %v2354
  %v3027 = vpack.c.b16 %v2359, %v2355
  %v3028 = vpack.c.b16 %v2364, %v2360
  %v3029 = vpack.c.b16 %v2365, %v2361
  %v3030 = vpack.c.b16 %v2366, %v2362
  %v3031 = vpack.c.b16 %v2367, %v2363
  %v3032 = vpack.c.b16 %v2372, %v2368
  %v3033 = vpack.c.b16 %v2373, %v2369
  %v3034 = vpack.c.b16 %v2374, %v2370
  %v3035 = vpack.c.b16 %v2375, %v2371
  %v3036 = vpack.c.b16 %v2380, %v2376
  %v3037 = vpack.c.b16 %v2381, %v2377
  %v3038 = vpack.c.b16 %v2382, %v2378
  %v3039 = vpack.c.b16 %v2383, %v2379
  %v3040 = vpack.c.b16 %v2388, %v2384
  %v3041 = vpack.c.b16 %v2389, %v2385
  %v3042 = vpack.c.b16 %v2390, %v2386
  %v3043 = vpack.c.b16 %v2391, %v2387
  %v3044 = vpack.c.b16 %v2396, %v2392
  %v3045 = vpack.c.b16 %v2397, %v2393
  %v3046 = vpack.c.b16 %v2398, %v2394
  %v3047 = vpack.c.b16 %v2399, %v2395
  %v3048 = vpack.c.b16 %v2404, %v2400
  %v3049 = vpack.c.b16 %v2405, %v2401
  %v3050 = vpack.c.b16 %v2406, %v2402
  %v3051 = vpack.c.b16 %v2407, %v2403
  %v3052 = vpack.c.b16 %v2412, %v2408
  %v3053 = vpack.c.b16 %v2413, %v2409
  %v3054 = vpack.c.b16 %v2414, %v2410
  %v3055 = vpack.c.b16 %v2415, %v2411
  %v3056 = vpack.c.b16 %v2420, %v2416
  %v3057 = vpack.c.b16 %v2421, %v2417
  %v3058 = vpack.c.b16 %v2422, %v2418
  %v3059 = vpack.c.b16 %v2423, %v2419
  %v3060 = vpack.c.b16 %v2428, %v2424
  %v3061 = vpack.c.b16 %v2429, %v2425
  %v3062 = vpack.c.b16 %v2430, %v2426
  %v3063 = vpack.c.b16 %v2431, %v2427
  %v3064 = vpack.c.b16 %v2436, %v2432
  %v3065 = vpack.c.b16 %v2437, %v2433
  %v3066 = vpack.c.b16 %v2438, %v2434
  %v3067 = vpack.c.b16 %v2439, %v2435
  %v3068 = vpack.c.b16 %v2444, %v2440
  %v3069 = vpack.c.b16 %v2445, %v2441
  %v3070 = vpack.c.b16 %v2446, %v2442
  %v3071 = vpack.c.b16 %v2447, %v2443
  %v3072 = vpack.c.b16 %v2452, %v2448
  %v3073 = vpack.c.b16 %v2453, %v2449
  %v3074 = vpack.c.b16 %v2454, %v2450
  %v3075 = vpack.c.b16 %v2455, %v2451
  %v3076 = vpack.c.b16 %v2460, %v2456
  %v3077 = vpack.c.b16 %v2461, %v2457
  %v3078 = vpack.c.b16 %v2462, %v2458
  %v3079 = vpack.c.b16 %v2463, %v2459
  %v3080 = vpack.c.b16 %v2468, %v2464
  %v3081 = vpack.c.b16 %v2469, %v2465
  %v3082 = vpack.c.b16 %v2470, %v2466
  %v3083 = vpack.c.b16 %v2471, %v2467
  %v3084 = vpack.c.b16 %v2476, %v2472
  %v3085 = vpack.c.b16 %v2477, %v2473
  %v3086 = vpack.c.b16 %v2478, %v2474
  %v3087 = vpack.c.b16 %v2479, %v2475
  %v3088 = vpack.c.b16 %v2484, %v2480
  %v3089 = vpack.c.b16 %v2485, %v2481
  %v3090 = vpack.c.b16 %v2486, %v2482
  %v3091 = vpack.c.b16 %v2487, %v2483
  %v3092 = vpack.c.b16 %v2492, %v2488
  %v3093 = vpack.c.b16 %v2493, %v2489
  %v3094 = vpack.c.b16 %v2494, %v2490
  %v3095 = vpack.c.b16 %v2495, %v2491
  %v3096 = vpack.c.b16 %v2500, %v2496
  %v3097 = vpack.c.b16 %v2501, %v2497
  %v3098 = vpack.c.b16 %v2502, %v2498
  %v3099 = vpack.c.b16 %v2503, %v2499
  %v3100 = vpack.c.b16 %v2508, %v2504
  %v3101 = vpack.c.b16 %v2509, %v2505
  %v3102 = vpack.c.b16 %v2510, %v2506
  %v3103 = vpack.c.b16 %v2511, %v2507
  %v3104 = vpack.c.b16 %v2516, %v2512
  %v3105 = vpack.c.b16 %v2517, %v2513
  %v3106 = vpack.c.b16 %v2518, %v2514
  %v3107 = vpack.c.b16 %v2519, %v2515
  %v3108 = vpack.c.b16 %v2524, %v2520
  %v3109 = vpack.c.b16 %v2525, %v2521
  %v3110 = vpack.c.b16 %v2526, %v2522
  %v3111 = vpack.c.b16 %v2527, %v2523
  %v3112 = vpack.c.b16 %v2532, %v2528
  %v3113 = vpack.c.b16 %v2533, %v2529
  %v3114 = vpack.c.b16 %v2534, %v2530
  %v3115 = vpack.c.b16 %v2535, %v2531
  %v3116 = vpack.c.b16 %v2540, %v2536
  %v3117 = vpack.c.b16 %v2541, %v2537
  %v3118 = vpack.c.b16 %v2542, %v2538
  %v3119 = vpack.c.b16 %v2543, %v2539
  %3696 = vmatpush.bf16.msra.mxu0 %v2572
  %3697 = vmatpush.bf16.msra.mxu0 %v2568
  %3698 = vmatpush.bf16.msra.mxu0 %v2564
  %3699 = vmatpush.bf16.msra.mxu0 %v2560
  %3700 = vmatpush.bf16.msra.mxu0 %v2556
  %3701 = vmatpush.bf16.msra.mxu0 %v2552
  %3702 = vmatpush.bf16.msra.mxu0 %v2548
  %3703 = vmatpush.bf16.msra.mxu0 %v2544
  %3704 = vmatmul.bf16.gmra.mxu0 %v744
  %v3705 = vpop.f32.mrf.mxu0
  %v3706 = vadd.f32 %v628, %v3705
  %v3707 = vpop.f32.mrf.mxu0
  %v3708 = vadd.f32 %v628, %v3707
  %3709 = vmatmul.bf16.gmra.mxu0 %v762
  %v3710 = vpop.f32.mrf.mxu0
  %v3711 = vadd.f32 %v628, %v3710
  %v3712 = vpop.f32.mrf.mxu0
  %v3713 = vadd.f32 %v628, %v3712
  %3714 = vdwg.mxu0
  %3715 = vmatpush.bf16.msra.mxu0 %v2604
  %3716 = vmatpush.bf16.msra.mxu0 %v2600
  %3717 = vmatpush.bf16.msra.mxu0 %v2596
  %3718 = vmatpush.bf16.msra.mxu0 %v2592
  %3719 = vmatpush.bf16.msra.mxu0 %v2588
  %3720 = vmatpush.bf16.msra.mxu0 %v2584
  %3721 = vmatpush.bf16.msra.mxu0 %v2580
  %3722 = vmatpush.bf16.msra.mxu0 %v2576
  %3723 = vmatmul.bf16.gmra.mxu0 %v745
  %v3724 = vpop.f32.mrf.mxu0
  %v3725 = vadd.f32 %v3706, %v3724
  %v3726 = vpop.f32.mrf.mxu0
  %v3727 = vadd.f32 %v3708, %v3726
  %3728 = vmatmul.bf16.gmra.mxu0 %v763
  %v3729 = vpop.f32.mrf.mxu0
  %v3730 = vadd.f32 %v3711, %v3729
  %v3731 = vpop.f32.mrf.mxu0
  %v3732 = vadd.f32 %v3713, %v3731
  %3733 = vdwg.mxu0
  %3734 = vmatpush.bf16.msra.mxu0 %v2636
  %3735 = vmatpush.bf16.msra.mxu0 %v2632
  %3736 = vmatpush.bf16.msra.mxu0 %v2628
  %3737 = vmatpush.bf16.msra.mxu0 %v2624
  %3738 = vmatpush.bf16.msra.mxu0 %v2620
  %3739 = vmatpush.bf16.msra.mxu0 %v2616
  %3740 = vmatpush.bf16.msra.mxu0 %v2612
  %3741 = vmatpush.bf16.msra.mxu0 %v2608
  %3742 = vmatmul.bf16.gmra.mxu0 %v746
  %v3743 = vpop.f32.mrf.mxu0
  %v3744 = vadd.f32 %v3725, %v3743
  %v3745 = vpop.f32.mrf.mxu0
  %v3746 = vadd.f32 %v3727, %v3745
  %3747 = vmatmul.bf16.gmra.mxu0 %v764
  %v3748 = vpop.f32.mrf.mxu0
  %v3749 = vadd.f32 %v3730, %v3748
  %v3750 = vpop.f32.mrf.mxu0
  %v3751 = vadd.f32 %v3732, %v3750
  %3752 = vdwg.mxu0
  %3753 = vmatpush.bf16.msra.mxu0 %v2668
  %3754 = vmatpush.bf16.msra.mxu0 %v2664
  %3755 = vmatpush.bf16.msra.mxu0 %v2660
  %3756 = vmatpush.bf16.msra.mxu0 %v2656
  %3757 = vmatpush.bf16.msra.mxu0 %v2652
  %3758 = vmatpush.bf16.msra.mxu0 %v2648
  %3759 = vmatpush.bf16.msra.mxu0 %v2644
  %3760 = vmatpush.bf16.msra.mxu0 %v2640
  %3761 = vmatmul.bf16.gmra.mxu0 %v747
  %v3762 = vpop.f32.mrf.mxu0
  %v3763 = vadd.f32 %v3744, %v3762
  %v3764 = vpop.f32.mrf.mxu0
  %v3765 = vadd.f32 %v3746, %v3764
  %3766 = vmatmul.bf16.gmra.mxu0 %v765
  %v3767 = vpop.f32.mrf.mxu0
  %v3768 = vadd.f32 %v3749, %v3767
  %v3769 = vpop.f32.mrf.mxu0
  %v3770 = vadd.f32 %v3751, %v3769
  %3771 = vdwg.mxu0
  %3772 = vmatpush.bf16.msra.mxu0 %v2700
  %3773 = vmatpush.bf16.msra.mxu0 %v2696
  %3774 = vmatpush.bf16.msra.mxu0 %v2692
  %3775 = vmatpush.bf16.msra.mxu0 %v2688
  %3776 = vmatpush.bf16.msra.mxu0 %v2684
  %3777 = vmatpush.bf16.msra.mxu0 %v2680
  %3778 = vmatpush.bf16.msra.mxu0 %v2676
  %3779 = vmatpush.bf16.msra.mxu0 %v2672
  %3780 = vmatmul.bf16.gmra.mxu0 %v748
  %v3781 = vpop.f32.mrf.mxu0
  %v3782 = vadd.f32 %v3763, %v3781
  %v3783 = vpop.f32.mrf.mxu0
  %v3784 = vadd.f32 %v3765, %v3783
  %3785 = vmatmul.bf16.gmra.mxu0 %v766
  %v3786 = vpop.f32.mrf.mxu0
  %v3787 = vadd.f32 %v3768, %v3786
  %v3788 = vpop.f32.mrf.mxu0
  %v3789 = vadd.f32 %v3770, %v3788
  %3790 = vdwg.mxu0
  %3791 = vmatpush.bf16.msra.mxu0 %v2732
  %3792 = vmatpush.bf16.msra.mxu0 %v2728
  %3793 = vmatpush.bf16.msra.mxu0 %v2724
  %3794 = vmatpush.bf16.msra.mxu0 %v2720
  %3795 = vmatpush.bf16.msra.mxu0 %v2716
  %3796 = vmatpush.bf16.msra.mxu0 %v2712
  %3797 = vmatpush.bf16.msra.mxu0 %v2708
  %3798 = vmatpush.bf16.msra.mxu0 %v2704
  %3799 = vmatmul.bf16.gmra.mxu0 %v749
  %v3800 = vpop.f32.mrf.mxu0
  %v3801 = vadd.f32 %v3782, %v3800
  %v3802 = vpop.f32.mrf.mxu0
  %v3803 = vadd.f32 %v3784, %v3802
  %3804 = vmatmul.bf16.gmra.mxu0 %v767
  %v3805 = vpop.f32.mrf.mxu0
  %v3806 = vadd.f32 %v3787, %v3805
  %v3807 = vpop.f32.mrf.mxu0
  %v3808 = vadd.f32 %v3789, %v3807
  %3809 = vdwg.mxu0
  %3810 = vmatpush.bf16.msra.mxu0 %v2764
  %3811 = vmatpush.bf16.msra.mxu0 %v2760
  %3812 = vmatpush.bf16.msra.mxu0 %v2756
  %3813 = vmatpush.bf16.msra.mxu0 %v2752
  %3814 = vmatpush.bf16.msra.mxu0 %v2748
  %3815 = vmatpush.bf16.msra.mxu0 %v2744
  %3816 = vmatpush.bf16.msra.mxu0 %v2740
  %3817 = vmatpush.bf16.msra.mxu0 %v2736
  %3818 = vmatmul.bf16.gmra.mxu0 %v750
  %v3819 = vpop.f32.mrf.mxu0
  %v3820 = vadd.f32 %v3801, %v3819
  %v3821 = vpop.f32.mrf.mxu0
  %v3822 = vadd.f32 %v3803, %v3821
  %3823 = vmatmul.bf16.gmra.mxu0 %v768
  %v3824 = vpop.f32.mrf.mxu0
  %v3825 = vadd.f32 %v3806, %v3824
  %v3826 = vpop.f32.mrf.mxu0
  %v3827 = vadd.f32 %v3808, %v3826
  %3828 = vdwg.mxu0
  %3829 = vmatpush.bf16.msra.mxu0 %v2796
  %3830 = vmatpush.bf16.msra.mxu0 %v2792
  %3831 = vmatpush.bf16.msra.mxu0 %v2788
  %3832 = vmatpush.bf16.msra.mxu0 %v2784
  %3833 = vmatpush.bf16.msra.mxu0 %v2780
  %3834 = vmatpush.bf16.msra.mxu0 %v2776
  %3835 = vmatpush.bf16.msra.mxu0 %v2772
  %3836 = vmatpush.bf16.msra.mxu0 %v2768
  %3837 = vmatmul.bf16.gmra.mxu0 %v751
  %v3838 = vpop.f32.mrf.mxu0
  %v3839 = vadd.f32 %v3820, %v3838
  %v3840 = vpop.f32.mrf.mxu0
  %v3841 = vadd.f32 %v3822, %v3840
  %3842 = vmatmul.bf16.gmra.mxu0 %v769
  %v3843 = vpop.f32.mrf.mxu0
  %v3844 = vadd.f32 %v3825, %v3843
  %v3845 = vpop.f32.mrf.mxu0
  %v3846 = vadd.f32 %v3827, %v3845
  %3847 = vdwg.mxu0
  %3848 = vmatpush.bf16.msra.mxu0 %v2828
  %3849 = vmatpush.bf16.msra.mxu0 %v2824
  %3850 = vmatpush.bf16.msra.mxu0 %v2820
  %3851 = vmatpush.bf16.msra.mxu0 %v2816
  %3852 = vmatpush.bf16.msra.mxu0 %v2812
  %3853 = vmatpush.bf16.msra.mxu0 %v2808
  %3854 = vmatpush.bf16.msra.mxu0 %v2804
  %3855 = vmatpush.bf16.msra.mxu0 %v2800
  %3856 = vmatmul.bf16.gmra.mxu0 %v752
  %v3857 = vpop.f32.mrf.mxu0
  %v3858 = vadd.f32 %v3839, %v3857
  %v3859 = vpop.f32.mrf.mxu0
  %v3860 = vadd.f32 %v3841, %v3859
  %3861 = vmatmul.bf16.gmra.mxu0 %v770
  %v3862 = vpop.f32.mrf.mxu0
  %v3863 = vadd.f32 %v3844, %v3862
  %v3864 = vpop.f32.mrf.mxu0
  %v3865 = vadd.f32 %v3846, %v3864
  %3866 = vdwg.mxu0
  %3867 = vmatpush.bf16.msra.mxu0 %v2860
  %3868 = vmatpush.bf16.msra.mxu0 %v2856
  %3869 = vmatpush.bf16.msra.mxu0 %v2852
  %3870 = vmatpush.bf16.msra.mxu0 %v2848
  %3871 = vmatpush.bf16.msra.mxu0 %v2844
  %3872 = vmatpush.bf16.msra.mxu0 %v2840
  %3873 = vmatpush.bf16.msra.mxu0 %v2836
  %3874 = vmatpush.bf16.msra.mxu0 %v2832
  %3875 = vmatmul.bf16.gmra.mxu0 %v753
  %v3876 = vpop.f32.mrf.mxu0
  %v3877 = vadd.f32 %v3858, %v3876
  %v3878 = vpop.f32.mrf.mxu0
  %v3879 = vadd.f32 %v3860, %v3878
  %3880 = vmatmul.bf16.gmra.mxu0 %v771
  %v3881 = vpop.f32.mrf.mxu0
  %v3882 = vadd.f32 %v3863, %v3881
  %v3883 = vpop.f32.mrf.mxu0
  %v3884 = vadd.f32 %v3865, %v3883
  %3885 = vdwg.mxu0
  %3886 = vmatpush.bf16.msra.mxu0 %v2892
  %3887 = vmatpush.bf16.msra.mxu0 %v2888
  %3888 = vmatpush.bf16.msra.mxu0 %v2884
  %3889 = vmatpush.bf16.msra.mxu0 %v2880
  %3890 = vmatpush.bf16.msra.mxu0 %v2876
  %3891 = vmatpush.bf16.msra.mxu0 %v2872
  %3892 = vmatpush.bf16.msra.mxu0 %v2868
  %3893 = vmatpush.bf16.msra.mxu0 %v2864
  %3894 = vmatmul.bf16.gmra.mxu0 %v754
  %v3895 = vpop.f32.mrf.mxu0
  %v3896 = vadd.f32 %v3877, %v3895
  %v3897 = vpop.f32.mrf.mxu0
  %v3898 = vadd.f32 %v3879, %v3897
  %3899 = vmatmul.bf16.gmra.mxu0 %v772
  %v3900 = vpop.f32.mrf.mxu0
  %v3901 = vadd.f32 %v3882, %v3900
  %v3902 = vpop.f32.mrf.mxu0
  %v3903 = vadd.f32 %v3884, %v3902
  %3904 = vdwg.mxu0
  %3905 = vmatpush.bf16.msra.mxu0 %v2924
  %3906 = vmatpush.bf16.msra.mxu0 %v2920
  %3907 = vmatpush.bf16.msra.mxu0 %v2916
  %3908 = vmatpush.bf16.msra.mxu0 %v2912
  %3909 = vmatpush.bf16.msra.mxu0 %v2908
  %3910 = vmatpush.bf16.msra.mxu0 %v2904
  %3911 = vmatpush.bf16.msra.mxu0 %v2900
  %3912 = vmatpush.bf16.msra.mxu0 %v2896
  %3913 = vmatmul.bf16.gmra.mxu0 %v755
  %v3914 = vpop.f32.mrf.mxu0
  %v3915 = vadd.f32 %v3896, %v3914
  %v3916 = vpop.f32.mrf.mxu0
  %v3917 = vadd.f32 %v3898, %v3916
  %3918 = vmatmul.bf16.gmra.mxu0 %v773
  %v3919 = vpop.f32.mrf.mxu0
  %v3920 = vadd.f32 %v3901, %v3919
  %v3921 = vpop.f32.mrf.mxu0
  %v3922 = vadd.f32 %v3903, %v3921
  %3923 = vdwg.mxu0
  %3924 = vmatpush.bf16.msra.mxu0 %v2956
  %3925 = vmatpush.bf16.msra.mxu0 %v2952
  %3926 = vmatpush.bf16.msra.mxu0 %v2948
  %3927 = vmatpush.bf16.msra.mxu0 %v2944
  %3928 = vmatpush.bf16.msra.mxu0 %v2940
  %3929 = vmatpush.bf16.msra.mxu0 %v2936
  %3930 = vmatpush.bf16.msra.mxu0 %v2932
  %3931 = vmatpush.bf16.msra.mxu0 %v2928
  %3932 = vmatmul.bf16.gmra.mxu0 %v756
  %v3933 = vpop.f32.mrf.mxu0
  %v3934 = vadd.f32 %v3915, %v3933
  %v3935 = vpop.f32.mrf.mxu0
  %v3936 = vadd.f32 %v3917, %v3935
  %3937 = vmatmul.bf16.gmra.mxu0 %v774
  %v3938 = vpop.f32.mrf.mxu0
  %v3939 = vadd.f32 %v3920, %v3938
  %v3940 = vpop.f32.mrf.mxu0
  %v3941 = vadd.f32 %v3922, %v3940
  %3942 = vdwg.mxu0
  %3943 = vmatpush.bf16.msra.mxu0 %v2988
  %3944 = vmatpush.bf16.msra.mxu0 %v2984
  %3945 = vmatpush.bf16.msra.mxu0 %v2980
  %3946 = vmatpush.bf16.msra.mxu0 %v2976
  %3947 = vmatpush.bf16.msra.mxu0 %v2972
  %3948 = vmatpush.bf16.msra.mxu0 %v2968
  %3949 = vmatpush.bf16.msra.mxu0 %v2964
  %3950 = vmatpush.bf16.msra.mxu0 %v2960
  %3951 = vmatmul.bf16.gmra.mxu0 %v757
  %v3952 = vpop.f32.mrf.mxu0
  %v3953 = vadd.f32 %v3934, %v3952
  %v3954 = vpop.f32.mrf.mxu0
  %v3955 = vadd.f32 %v3936, %v3954
  %3956 = vmatmul.bf16.gmra.mxu0 %v775
  %v3957 = vpop.f32.mrf.mxu0
  %v3958 = vadd.f32 %v3939, %v3957
  %v3959 = vpop.f32.mrf.mxu0
  %v3960 = vadd.f32 %v3941, %v3959
  %3961 = vdwg.mxu0
  %3962 = vmatpush.bf16.msra.mxu0 %v3020
  %3963 = vmatpush.bf16.msra.mxu0 %v3016
  %3964 = vmatpush.bf16.msra.mxu0 %v3012
  %3965 = vmatpush.bf16.msra.mxu0 %v3008
  %3966 = vmatpush.bf16.msra.mxu0 %v3004
  %3967 = vmatpush.bf16.msra.mxu0 %v3000
  %3968 = vmatpush.bf16.msra.mxu0 %v2996
  %3969 = vmatpush.bf16.msra.mxu0 %v2992
  %3970 = vmatmul.bf16.gmra.mxu0 %v758
  %v3971 = vpop.f32.mrf.mxu0
  %v3972 = vadd.f32 %v3953, %v3971
  %v3973 = vpop.f32.mrf.mxu0
  %v3974 = vadd.f32 %v3955, %v3973
  %3975 = vmatmul.bf16.gmra.mxu0 %v776
  %v3976 = vpop.f32.mrf.mxu0
  %v3977 = vadd.f32 %v3958, %v3976
  %v3978 = vpop.f32.mrf.mxu0
  %v3979 = vadd.f32 %v3960, %v3978
  %3980 = vdwg.mxu0
  %3981 = vmatpush.bf16.msra.mxu0 %v3052
  %3982 = vmatpush.bf16.msra.mxu0 %v3048
  %3983 = vmatpush.bf16.msra.mxu0 %v3044
  %3984 = vmatpush.bf16.msra.mxu0 %v3040
  %3985 = vmatpush.bf16.msra.mxu0 %v3036
  %3986 = vmatpush.bf16.msra.mxu0 %v3032
  %3987 = vmatpush.bf16.msra.mxu0 %v3028
  %3988 = vmatpush.bf16.msra.mxu0 %v3024
  %3989 = vmatmul.bf16.gmra.mxu0 %v759
  %v3990 = vpop.f32.mrf.mxu0
  %v3991 = vadd.f32 %v3972, %v3990
  %v3992 = vpop.f32.mrf.mxu0
  %v3993 = vadd.f32 %v3974, %v3992
  %3994 = vmatmul.bf16.gmra.mxu0 %v777
  %v3995 = vpop.f32.mrf.mxu0
  %v3996 = vadd.f32 %v3977, %v3995
  %v3997 = vpop.f32.mrf.mxu0
  %v3998 = vadd.f32 %v3979, %v3997
  %3999 = vdwg.mxu0
  %4000 = vmatpush.bf16.msra.mxu0 %v3084
  %4001 = vmatpush.bf16.msra.mxu0 %v3080
  %4002 = vmatpush.bf16.msra.mxu0 %v3076
  %4003 = vmatpush.bf16.msra.mxu0 %v3072
  %4004 = vmatpush.bf16.msra.mxu0 %v3068
  %4005 = vmatpush.bf16.msra.mxu0 %v3064
  %4006 = vmatpush.bf16.msra.mxu0 %v3060
  %4007 = vmatpush.bf16.msra.mxu0 %v3056
  %4008 = vmatmul.bf16.gmra.mxu0 %v760
  %v4009 = vpop.f32.mrf.mxu0
  %v4010 = vadd.f32 %v3991, %v4009
  %v4011 = vpop.f32.mrf.mxu0
  %v4012 = vadd.f32 %v3993, %v4011
  %4013 = vmatmul.bf16.gmra.mxu0 %v778
  %v4014 = vpop.f32.mrf.mxu0
  %v4015 = vadd.f32 %v3996, %v4014
  %v4016 = vpop.f32.mrf.mxu0
  %v4017 = vadd.f32 %v3998, %v4016
  %4018 = vdwg.mxu0
  %4019 = vmatpush.bf16.msra.mxu0 %v3116
  %4020 = vmatpush.bf16.msra.mxu0 %v3112
  %4021 = vmatpush.bf16.msra.mxu0 %v3108
  %4022 = vmatpush.bf16.msra.mxu0 %v3104
  %4023 = vmatpush.bf16.msra.mxu0 %v3100
  %4024 = vmatpush.bf16.msra.mxu0 %v3096
  %4025 = vmatpush.bf16.msra.mxu0 %v3092
  %4026 = vmatpush.bf16.msra.mxu0 %v3088
  %4027 = vmatmul.bf16.gmra.mxu0 %v761
  %v4028 = vpop.f32.mrf.mxu0
  %v4029 = vadd.f32 %v4010, %v4028
  %v4030 = vpop.f32.mrf.mxu0
  %v4031 = vadd.f32 %v4012, %v4030
  %4032 = vmatmul.bf16.gmra.mxu0 %v779
  %v4033 = vpop.f32.mrf.mxu0
  %v4034 = vadd.f32 %v4015, %v4033
  %v4035 = vpop.f32.mrf.mxu0
  %v4036 = vadd.f32 %v4017, %v4035
  %4037 = vdwg.mxu0
  %4038 = vmatpush.bf16.msra.mxu0 %v2573
  %4039 = vmatpush.bf16.msra.mxu0 %v2569
  %4040 = vmatpush.bf16.msra.mxu0 %v2565
  %4041 = vmatpush.bf16.msra.mxu0 %v2561
  %4042 = vmatpush.bf16.msra.mxu0 %v2557
  %4043 = vmatpush.bf16.msra.mxu0 %v2553
  %4044 = vmatpush.bf16.msra.mxu0 %v2549
  %4045 = vmatpush.bf16.msra.mxu0 %v2545
  %4046 = vmatmul.bf16.gmra.mxu0 %v744
  %v4047 = vpop.f32.mrf.mxu0
  %v4048 = vadd.f32 %v629, %v4047
  %v4049 = vpop.f32.mrf.mxu0
  %v4050 = vadd.f32 %v629, %v4049
  %4051 = vmatmul.bf16.gmra.mxu0 %v762
  %v4052 = vpop.f32.mrf.mxu0
  %v4053 = vadd.f32 %v629, %v4052
  %v4054 = vpop.f32.mrf.mxu0
  %v4055 = vadd.f32 %v629, %v4054
  %4056 = vdwg.mxu0
  %4057 = vmatpush.bf16.msra.mxu0 %v2605
  %4058 = vmatpush.bf16.msra.mxu0 %v2601
  %4059 = vmatpush.bf16.msra.mxu0 %v2597
  %4060 = vmatpush.bf16.msra.mxu0 %v2593
  %4061 = vmatpush.bf16.msra.mxu0 %v2589
  %4062 = vmatpush.bf16.msra.mxu0 %v2585
  %4063 = vmatpush.bf16.msra.mxu0 %v2581
  %4064 = vmatpush.bf16.msra.mxu0 %v2577
  %4065 = vmatmul.bf16.gmra.mxu0 %v745
  %v4066 = vpop.f32.mrf.mxu0
  %v4067 = vadd.f32 %v4048, %v4066
  %v4068 = vpop.f32.mrf.mxu0
  %v4069 = vadd.f32 %v4050, %v4068
  %4070 = vmatmul.bf16.gmra.mxu0 %v763
  %v4071 = vpop.f32.mrf.mxu0
  %v4072 = vadd.f32 %v4053, %v4071
  %v4073 = vpop.f32.mrf.mxu0
  %v4074 = vadd.f32 %v4055, %v4073
  %4075 = vdwg.mxu0
  %4076 = vmatpush.bf16.msra.mxu0 %v2637
  %4077 = vmatpush.bf16.msra.mxu0 %v2633
  %4078 = vmatpush.bf16.msra.mxu0 %v2629
  %4079 = vmatpush.bf16.msra.mxu0 %v2625
  %4080 = vmatpush.bf16.msra.mxu0 %v2621
  %4081 = vmatpush.bf16.msra.mxu0 %v2617
  %4082 = vmatpush.bf16.msra.mxu0 %v2613
  %4083 = vmatpush.bf16.msra.mxu0 %v2609
  %4084 = vmatmul.bf16.gmra.mxu0 %v746
  %v4085 = vpop.f32.mrf.mxu0
  %v4086 = vadd.f32 %v4067, %v4085
  %v4087 = vpop.f32.mrf.mxu0
  %v4088 = vadd.f32 %v4069, %v4087
  %4089 = vmatmul.bf16.gmra.mxu0 %v764
  %v4090 = vpop.f32.mrf.mxu0
  %v4091 = vadd.f32 %v4072, %v4090
  %v4092 = vpop.f32.mrf.mxu0
  %v4093 = vadd.f32 %v4074, %v4092
  %4094 = vdwg.mxu0
  %4095 = vmatpush.bf16.msra.mxu0 %v2669
  %4096 = vmatpush.bf16.msra.mxu0 %v2665
  %4097 = vmatpush.bf16.msra.mxu0 %v2661
  %4098 = vmatpush.bf16.msra.mxu0 %v2657
  %4099 = vmatpush.bf16.msra.mxu0 %v2653
  %4100 = vmatpush.bf16.msra.mxu0 %v2649
  %4101 = vmatpush.bf16.msra.mxu0 %v2645
  %4102 = vmatpush.bf16.msra.mxu0 %v2641
  %4103 = vmatmul.bf16.gmra.mxu0 %v747
  %v4104 = vpop.f32.mrf.mxu0
  %v4105 = vadd.f32 %v4086, %v4104
  %v4106 = vpop.f32.mrf.mxu0
  %v4107 = vadd.f32 %v4088, %v4106
  %4108 = vmatmul.bf16.gmra.mxu0 %v765
  %v4109 = vpop.f32.mrf.mxu0
  %v4110 = vadd.f32 %v4091, %v4109
  %v4111 = vpop.f32.mrf.mxu0
  %v4112 = vadd.f32 %v4093, %v4111
  %4113 = vdwg.mxu0
  %4114 = vmatpush.bf16.msra.mxu0 %v2701
  %4115 = vmatpush.bf16.msra.mxu0 %v2697
  %4116 = vmatpush.bf16.msra.mxu0 %v2693
  %4117 = vmatpush.bf16.msra.mxu0 %v2689
  %4118 = vmatpush.bf16.msra.mxu0 %v2685
  %4119 = vmatpush.bf16.msra.mxu0 %v2681
  %4120 = vmatpush.bf16.msra.mxu0 %v2677
  %4121 = vmatpush.bf16.msra.mxu0 %v2673
  %4122 = vmatmul.bf16.gmra.mxu0 %v748
  %v4123 = vpop.f32.mrf.mxu0
  %v4124 = vadd.f32 %v4105, %v4123
  %v4125 = vpop.f32.mrf.mxu0
  %v4126 = vadd.f32 %v4107, %v4125
  %4127 = vmatmul.bf16.gmra.mxu0 %v766
  %v4128 = vpop.f32.mrf.mxu0
  %v4129 = vadd.f32 %v4110, %v4128
  %v4130 = vpop.f32.mrf.mxu0
  %v4131 = vadd.f32 %v4112, %v4130
  %4132 = vdwg.mxu0
  %4133 = vmatpush.bf16.msra.mxu0 %v2733
  %4134 = vmatpush.bf16.msra.mxu0 %v2729
  %4135 = vmatpush.bf16.msra.mxu0 %v2725
  %4136 = vmatpush.bf16.msra.mxu0 %v2721
  %4137 = vmatpush.bf16.msra.mxu0 %v2717
  %4138 = vmatpush.bf16.msra.mxu0 %v2713
  %4139 = vmatpush.bf16.msra.mxu0 %v2709
  %4140 = vmatpush.bf16.msra.mxu0 %v2705
  %4141 = vmatmul.bf16.gmra.mxu0 %v749
  %v4142 = vpop.f32.mrf.mxu0
  %v4143 = vadd.f32 %v4124, %v4142
  %v4144 = vpop.f32.mrf.mxu0
  %v4145 = vadd.f32 %v4126, %v4144
  %4146 = vmatmul.bf16.gmra.mxu0 %v767
  %v4147 = vpop.f32.mrf.mxu0
  %v4148 = vadd.f32 %v4129, %v4147
  %v4149 = vpop.f32.mrf.mxu0
  %v4150 = vadd.f32 %v4131, %v4149
  %4151 = vdwg.mxu0
  %4152 = vmatpush.bf16.msra.mxu0 %v2765
  %4153 = vmatpush.bf16.msra.mxu0 %v2761
  %4154 = vmatpush.bf16.msra.mxu0 %v2757
  %4155 = vmatpush.bf16.msra.mxu0 %v2753
  %4156 = vmatpush.bf16.msra.mxu0 %v2749
  %4157 = vmatpush.bf16.msra.mxu0 %v2745
  %4158 = vmatpush.bf16.msra.mxu0 %v2741
  %4159 = vmatpush.bf16.msra.mxu0 %v2737
  %4160 = vmatmul.bf16.gmra.mxu0 %v750
  %v4161 = vpop.f32.mrf.mxu0
  %v4162 = vadd.f32 %v4143, %v4161
  %v4163 = vpop.f32.mrf.mxu0
  %v4164 = vadd.f32 %v4145, %v4163
  %4165 = vmatmul.bf16.gmra.mxu0 %v768
  %v4166 = vpop.f32.mrf.mxu0
  %v4167 = vadd.f32 %v4148, %v4166
  %v4168 = vpop.f32.mrf.mxu0
  %v4169 = vadd.f32 %v4150, %v4168
  %4170 = vdwg.mxu0
  %4171 = vmatpush.bf16.msra.mxu0 %v2797
  %4172 = vmatpush.bf16.msra.mxu0 %v2793
  %4173 = vmatpush.bf16.msra.mxu0 %v2789
  %4174 = vmatpush.bf16.msra.mxu0 %v2785
  %4175 = vmatpush.bf16.msra.mxu0 %v2781
  %4176 = vmatpush.bf16.msra.mxu0 %v2777
  %4177 = vmatpush.bf16.msra.mxu0 %v2773
  %4178 = vmatpush.bf16.msra.mxu0 %v2769
  %4179 = vmatmul.bf16.gmra.mxu0 %v751
  %v4180 = vpop.f32.mrf.mxu0
  %v4181 = vadd.f32 %v4162, %v4180
  %v4182 = vpop.f32.mrf.mxu0
  %v4183 = vadd.f32 %v4164, %v4182
  %4184 = vmatmul.bf16.gmra.mxu0 %v769
  %v4185 = vpop.f32.mrf.mxu0
  %v4186 = vadd.f32 %v4167, %v4185
  %v4187 = vpop.f32.mrf.mxu0
  %v4188 = vadd.f32 %v4169, %v4187
  %4189 = vdwg.mxu0
  %4190 = vmatpush.bf16.msra.mxu0 %v2829
  %4191 = vmatpush.bf16.msra.mxu0 %v2825
  %4192 = vmatpush.bf16.msra.mxu0 %v2821
  %4193 = vmatpush.bf16.msra.mxu0 %v2817
  %4194 = vmatpush.bf16.msra.mxu0 %v2813
  %4195 = vmatpush.bf16.msra.mxu0 %v2809
  %4196 = vmatpush.bf16.msra.mxu0 %v2805
  %4197 = vmatpush.bf16.msra.mxu0 %v2801
  %4198 = vmatmul.bf16.gmra.mxu0 %v752
  %v4199 = vpop.f32.mrf.mxu0
  %v4200 = vadd.f32 %v4181, %v4199
  %v4201 = vpop.f32.mrf.mxu0
  %v4202 = vadd.f32 %v4183, %v4201
  %4203 = vmatmul.bf16.gmra.mxu0 %v770
  %v4204 = vpop.f32.mrf.mxu0
  %v4205 = vadd.f32 %v4186, %v4204
  %v4206 = vpop.f32.mrf.mxu0
  %v4207 = vadd.f32 %v4188, %v4206
  %4208 = vdwg.mxu0
  %4209 = vmatpush.bf16.msra.mxu0 %v2861
  %4210 = vmatpush.bf16.msra.mxu0 %v2857
  %4211 = vmatpush.bf16.msra.mxu0 %v2853
  %4212 = vmatpush.bf16.msra.mxu0 %v2849
  %4213 = vmatpush.bf16.msra.mxu0 %v2845
  %4214 = vmatpush.bf16.msra.mxu0 %v2841
  %4215 = vmatpush.bf16.msra.mxu0 %v2837
  %4216 = vmatpush.bf16.msra.mxu0 %v2833
  %4217 = vmatmul.bf16.gmra.mxu0 %v753
  %v4218 = vpop.f32.mrf.mxu0
  %v4219 = vadd.f32 %v4200, %v4218
  %v4220 = vpop.f32.mrf.mxu0
  %v4221 = vadd.f32 %v4202, %v4220
  %4222 = vmatmul.bf16.gmra.mxu0 %v771
  %v4223 = vpop.f32.mrf.mxu0
  %v4224 = vadd.f32 %v4205, %v4223
  %v4225 = vpop.f32.mrf.mxu0
  %v4226 = vadd.f32 %v4207, %v4225
  %4227 = vdwg.mxu0
  %4228 = vmatpush.bf16.msra.mxu0 %v2893
  %4229 = vmatpush.bf16.msra.mxu0 %v2889
  %4230 = vmatpush.bf16.msra.mxu0 %v2885
  %4231 = vmatpush.bf16.msra.mxu0 %v2881
  %4232 = vmatpush.bf16.msra.mxu0 %v2877
  %4233 = vmatpush.bf16.msra.mxu0 %v2873
  %4234 = vmatpush.bf16.msra.mxu0 %v2869
  %4235 = vmatpush.bf16.msra.mxu0 %v2865
  %4236 = vmatmul.bf16.gmra.mxu0 %v754
  %v4237 = vpop.f32.mrf.mxu0
  %v4238 = vadd.f32 %v4219, %v4237
  %v4239 = vpop.f32.mrf.mxu0
  %v4240 = vadd.f32 %v4221, %v4239
  %4241 = vmatmul.bf16.gmra.mxu0 %v772
  %v4242 = vpop.f32.mrf.mxu0
  %v4243 = vadd.f32 %v4224, %v4242
  %v4244 = vpop.f32.mrf.mxu0
  %v4245 = vadd.f32 %v4226, %v4244
  %4246 = vdwg.mxu0
  %4247 = vmatpush.bf16.msra.mxu0 %v2925
  %4248 = vmatpush.bf16.msra.mxu0 %v2921
  %4249 = vmatpush.bf16.msra.mxu0 %v2917
  %4250 = vmatpush.bf16.msra.mxu0 %v2913
  %4251 = vmatpush.bf16.msra.mxu0 %v2909
  %4252 = vmatpush.bf16.msra.mxu0 %v2905
  %4253 = vmatpush.bf16.msra.mxu0 %v2901
  %4254 = vmatpush.bf16.msra.mxu0 %v2897
  %4255 = vmatmul.bf16.gmra.mxu0 %v755
  %v4256 = vpop.f32.mrf.mxu0
  %v4257 = vadd.f32 %v4238, %v4256
  %v4258 = vpop.f32.mrf.mxu0
  %v4259 = vadd.f32 %v4240, %v4258
  %4260 = vmatmul.bf16.gmra.mxu0 %v773
  %v4261 = vpop.f32.mrf.mxu0
  %v4262 = vadd.f32 %v4243, %v4261
  %v4263 = vpop.f32.mrf.mxu0
  %v4264 = vadd.f32 %v4245, %v4263
  %4265 = vdwg.mxu0
  %4266 = vmatpush.bf16.msra.mxu0 %v2957
  %4267 = vmatpush.bf16.msra.mxu0 %v2953
  %4268 = vmatpush.bf16.msra.mxu0 %v2949
  %4269 = vmatpush.bf16.msra.mxu0 %v2945
  %4270 = vmatpush.bf16.msra.mxu0 %v2941
  %4271 = vmatpush.bf16.msra.mxu0 %v2937
  %4272 = vmatpush.bf16.msra.mxu0 %v2933
  %4273 = vmatpush.bf16.msra.mxu0 %v2929
  %4274 = vmatmul.bf16.gmra.mxu0 %v756
  %v4275 = vpop.f32.mrf.mxu0
  %v4276 = vadd.f32 %v4257, %v4275
  %v4277 = vpop.f32.mrf.mxu0
  %v4278 = vadd.f32 %v4259, %v4277
  %4279 = vmatmul.bf16.gmra.mxu0 %v774
  %v4280 = vpop.f32.mrf.mxu0
  %v4281 = vadd.f32 %v4262, %v4280
  %v4282 = vpop.f32.mrf.mxu0
  %v4283 = vadd.f32 %v4264, %v4282
  %4284 = vdwg.mxu0
  %4285 = vmatpush.bf16.msra.mxu0 %v2989
  %4286 = vmatpush.bf16.msra.mxu0 %v2985
  %4287 = vmatpush.bf16.msra.mxu0 %v2981
  %4288 = vmatpush.bf16.msra.mxu0 %v2977
  %4289 = vmatpush.bf16.msra.mxu0 %v2973
  %4290 = vmatpush.bf16.msra.mxu0 %v2969
  %4291 = vmatpush.bf16.msra.mxu0 %v2965
  %4292 = vmatpush.bf16.msra.mxu0 %v2961
  %4293 = vmatmul.bf16.gmra.mxu0 %v757
  %v4294 = vpop.f32.mrf.mxu0
  %v4295 = vadd.f32 %v4276, %v4294
  %v4296 = vpop.f32.mrf.mxu0
  %v4297 = vadd.f32 %v4278, %v4296
  %4298 = vmatmul.bf16.gmra.mxu0 %v775
  %v4299 = vpop.f32.mrf.mxu0
  %v4300 = vadd.f32 %v4281, %v4299
  %v4301 = vpop.f32.mrf.mxu0
  %v4302 = vadd.f32 %v4283, %v4301
  %4303 = vdwg.mxu0
  %4304 = vmatpush.bf16.msra.mxu0 %v3021
  %4305 = vmatpush.bf16.msra.mxu0 %v3017
  %4306 = vmatpush.bf16.msra.mxu0 %v3013
  %4307 = vmatpush.bf16.msra.mxu0 %v3009
  %4308 = vmatpush.bf16.msra.mxu0 %v3005
  %4309 = vmatpush.bf16.msra.mxu0 %v3001
  %4310 = vmatpush.bf16.msra.mxu0 %v2997
  %4311 = vmatpush.bf16.msra.mxu0 %v2993
  %4312 = vmatmul.bf16.gmra.mxu0 %v758
  %v4313 = vpop.f32.mrf.mxu0
  %v4314 = vadd.f32 %v4295, %v4313
  %v4315 = vpop.f32.mrf.mxu0
  %v4316 = vadd.f32 %v4297, %v4315
  %4317 = vmatmul.bf16.gmra.mxu0 %v776
  %v4318 = vpop.f32.mrf.mxu0
  %v4319 = vadd.f32 %v4300, %v4318
  %v4320 = vpop.f32.mrf.mxu0
  %v4321 = vadd.f32 %v4302, %v4320
  %4322 = vdwg.mxu0
  %4323 = vmatpush.bf16.msra.mxu0 %v3053
  %4324 = vmatpush.bf16.msra.mxu0 %v3049
  %4325 = vmatpush.bf16.msra.mxu0 %v3045
  %4326 = vmatpush.bf16.msra.mxu0 %v3041
  %4327 = vmatpush.bf16.msra.mxu0 %v3037
  %4328 = vmatpush.bf16.msra.mxu0 %v3033
  %4329 = vmatpush.bf16.msra.mxu0 %v3029
  %4330 = vmatpush.bf16.msra.mxu0 %v3025
  %4331 = vmatmul.bf16.gmra.mxu0 %v759
  %v4332 = vpop.f32.mrf.mxu0
  %v4333 = vadd.f32 %v4314, %v4332
  %v4334 = vpop.f32.mrf.mxu0
  %v4335 = vadd.f32 %v4316, %v4334
  %4336 = vmatmul.bf16.gmra.mxu0 %v777
  %v4337 = vpop.f32.mrf.mxu0
  %v4338 = vadd.f32 %v4319, %v4337
  %v4339 = vpop.f32.mrf.mxu0
  %v4340 = vadd.f32 %v4321, %v4339
  %4341 = vdwg.mxu0
  %4342 = vmatpush.bf16.msra.mxu0 %v3085
  %4343 = vmatpush.bf16.msra.mxu0 %v3081
  %4344 = vmatpush.bf16.msra.mxu0 %v3077
  %4345 = vmatpush.bf16.msra.mxu0 %v3073
  %4346 = vmatpush.bf16.msra.mxu0 %v3069
  %4347 = vmatpush.bf16.msra.mxu0 %v3065
  %4348 = vmatpush.bf16.msra.mxu0 %v3061
  %4349 = vmatpush.bf16.msra.mxu0 %v3057
  %4350 = vmatmul.bf16.gmra.mxu0 %v760
  %v4351 = vpop.f32.mrf.mxu0
  %v4352 = vadd.f32 %v4333, %v4351
  %v4353 = vpop.f32.mrf.mxu0
  %v4354 = vadd.f32 %v4335, %v4353
  %4355 = vmatmul.bf16.gmra.mxu0 %v778
  %v4356 = vpop.f32.mrf.mxu0
  %v4357 = vadd.f32 %v4338, %v4356
  %v4358 = vpop.f32.mrf.mxu0
  %v4359 = vadd.f32 %v4340, %v4358
  %4360 = vdwg.mxu0
  %4361 = vmatpush.bf16.msra.mxu0 %v3117
  %4362 = vmatpush.bf16.msra.mxu0 %v3113
  %4363 = vmatpush.bf16.msra.mxu0 %v3109
  %4364 = vmatpush.bf16.msra.mxu0 %v3105
  %4365 = vmatpush.bf16.msra.mxu0 %v3101
  %4366 = vmatpush.bf16.msra.mxu0 %v3097
  %4367 = vmatpush.bf16.msra.mxu0 %v3093
  %4368 = vmatpush.bf16.msra.mxu0 %v3089
  %4369 = vmatmul.bf16.gmra.mxu0 %v761
  %v4370 = vpop.f32.mrf.mxu0
  %v4371 = vadd.f32 %v4352, %v4370
  %v4372 = vpop.f32.mrf.mxu0
  %v4373 = vadd.f32 %v4354, %v4372
  %4374 = vmatmul.bf16.gmra.mxu0 %v779
  %v4375 = vpop.f32.mrf.mxu0
  %v4376 = vadd.f32 %v4357, %v4375
  %v4377 = vpop.f32.mrf.mxu0
  %v4378 = vadd.f32 %v4359, %v4377
  %4379 = vdwg.mxu0
  %4380 = vmatpush.bf16.msra.mxu0 %v2574
  %4381 = vmatpush.bf16.msra.mxu0 %v2570
  %4382 = vmatpush.bf16.msra.mxu0 %v2566
  %4383 = vmatpush.bf16.msra.mxu0 %v2562
  %4384 = vmatpush.bf16.msra.mxu0 %v2558
  %4385 = vmatpush.bf16.msra.mxu0 %v2554
  %4386 = vmatpush.bf16.msra.mxu0 %v2550
  %4387 = vmatpush.bf16.msra.mxu0 %v2546
  %4388 = vmatmul.bf16.gmra.mxu0 %v744
  %v4389 = vpop.f32.mrf.mxu0
  %v4390 = vadd.f32 %v630, %v4389
  %v4391 = vpop.f32.mrf.mxu0
  %v4392 = vadd.f32 %v630, %v4391
  %4393 = vmatmul.bf16.gmra.mxu0 %v762
  %v4394 = vpop.f32.mrf.mxu0
  %v4395 = vadd.f32 %v630, %v4394
  %v4396 = vpop.f32.mrf.mxu0
  %v4397 = vadd.f32 %v630, %v4396
  %4398 = vdwg.mxu0
  %4399 = vmatpush.bf16.msra.mxu0 %v2606
  %4400 = vmatpush.bf16.msra.mxu0 %v2602
  %4401 = vmatpush.bf16.msra.mxu0 %v2598
  %4402 = vmatpush.bf16.msra.mxu0 %v2594
  %4403 = vmatpush.bf16.msra.mxu0 %v2590
  %4404 = vmatpush.bf16.msra.mxu0 %v2586
  %4405 = vmatpush.bf16.msra.mxu0 %v2582
  %4406 = vmatpush.bf16.msra.mxu0 %v2578
  %4407 = vmatmul.bf16.gmra.mxu0 %v745
  %v4408 = vpop.f32.mrf.mxu0
  %v4409 = vadd.f32 %v4390, %v4408
  %v4410 = vpop.f32.mrf.mxu0
  %v4411 = vadd.f32 %v4392, %v4410
  %4412 = vmatmul.bf16.gmra.mxu0 %v763
  %v4413 = vpop.f32.mrf.mxu0
  %v4414 = vadd.f32 %v4395, %v4413
  %v4415 = vpop.f32.mrf.mxu0
  %v4416 = vadd.f32 %v4397, %v4415
  %4417 = vdwg.mxu0
  %4418 = vmatpush.bf16.msra.mxu0 %v2638
  %4419 = vmatpush.bf16.msra.mxu0 %v2634
  %4420 = vmatpush.bf16.msra.mxu0 %v2630
  %4421 = vmatpush.bf16.msra.mxu0 %v2626
  %4422 = vmatpush.bf16.msra.mxu0 %v2622
  %4423 = vmatpush.bf16.msra.mxu0 %v2618
  %4424 = vmatpush.bf16.msra.mxu0 %v2614
  %4425 = vmatpush.bf16.msra.mxu0 %v2610
  %4426 = vmatmul.bf16.gmra.mxu0 %v746
  %v4427 = vpop.f32.mrf.mxu0
  %v4428 = vadd.f32 %v4409, %v4427
  %v4429 = vpop.f32.mrf.mxu0
  %v4430 = vadd.f32 %v4411, %v4429
  %4431 = vmatmul.bf16.gmra.mxu0 %v764
  %v4432 = vpop.f32.mrf.mxu0
  %v4433 = vadd.f32 %v4414, %v4432
  %v4434 = vpop.f32.mrf.mxu0
  %v4435 = vadd.f32 %v4416, %v4434
  %4436 = vdwg.mxu0
  %4437 = vmatpush.bf16.msra.mxu0 %v2670
  %4438 = vmatpush.bf16.msra.mxu0 %v2666
  %4439 = vmatpush.bf16.msra.mxu0 %v2662
  %4440 = vmatpush.bf16.msra.mxu0 %v2658
  %4441 = vmatpush.bf16.msra.mxu0 %v2654
  %4442 = vmatpush.bf16.msra.mxu0 %v2650
  %4443 = vmatpush.bf16.msra.mxu0 %v2646
  %4444 = vmatpush.bf16.msra.mxu0 %v2642
  %4445 = vmatmul.bf16.gmra.mxu0 %v747
  %v4446 = vpop.f32.mrf.mxu0
  %v4447 = vadd.f32 %v4428, %v4446
  %v4448 = vpop.f32.mrf.mxu0
  %v4449 = vadd.f32 %v4430, %v4448
  %4450 = vmatmul.bf16.gmra.mxu0 %v765
  %v4451 = vpop.f32.mrf.mxu0
  %v4452 = vadd.f32 %v4433, %v4451
  %v4453 = vpop.f32.mrf.mxu0
  %v4454 = vadd.f32 %v4435, %v4453
  %4455 = vdwg.mxu0
  %4456 = vmatpush.bf16.msra.mxu0 %v2702
  %4457 = vmatpush.bf16.msra.mxu0 %v2698
  %4458 = vmatpush.bf16.msra.mxu0 %v2694
  %4459 = vmatpush.bf16.msra.mxu0 %v2690
  %4460 = vmatpush.bf16.msra.mxu0 %v2686
  %4461 = vmatpush.bf16.msra.mxu0 %v2682
  %4462 = vmatpush.bf16.msra.mxu0 %v2678
  %4463 = vmatpush.bf16.msra.mxu0 %v2674
  %4464 = vmatmul.bf16.gmra.mxu0 %v748
  %v4465 = vpop.f32.mrf.mxu0
  %v4466 = vadd.f32 %v4447, %v4465
  %v4467 = vpop.f32.mrf.mxu0
  %v4468 = vadd.f32 %v4449, %v4467
  %4469 = vmatmul.bf16.gmra.mxu0 %v766
  %v4470 = vpop.f32.mrf.mxu0
  %v4471 = vadd.f32 %v4452, %v4470
  %v4472 = vpop.f32.mrf.mxu0
  %v4473 = vadd.f32 %v4454, %v4472
  %4474 = vdwg.mxu0
  %4475 = vmatpush.bf16.msra.mxu0 %v2734
  %4476 = vmatpush.bf16.msra.mxu0 %v2730
  %4477 = vmatpush.bf16.msra.mxu0 %v2726
  %4478 = vmatpush.bf16.msra.mxu0 %v2722
  %4479 = vmatpush.bf16.msra.mxu0 %v2718
  %4480 = vmatpush.bf16.msra.mxu0 %v2714
  %4481 = vmatpush.bf16.msra.mxu0 %v2710
  %4482 = vmatpush.bf16.msra.mxu0 %v2706
  %4483 = vmatmul.bf16.gmra.mxu0 %v749
  %v4484 = vpop.f32.mrf.mxu0
  %v4485 = vadd.f32 %v4466, %v4484
  %v4486 = vpop.f32.mrf.mxu0
  %v4487 = vadd.f32 %v4468, %v4486
  %4488 = vmatmul.bf16.gmra.mxu0 %v767
  %v4489 = vpop.f32.mrf.mxu0
  %v4490 = vadd.f32 %v4471, %v4489
  %v4491 = vpop.f32.mrf.mxu0
  %v4492 = vadd.f32 %v4473, %v4491
  %4493 = vdwg.mxu0
  %4494 = vmatpush.bf16.msra.mxu0 %v2766
  %4495 = vmatpush.bf16.msra.mxu0 %v2762
  %4496 = vmatpush.bf16.msra.mxu0 %v2758
  %4497 = vmatpush.bf16.msra.mxu0 %v2754
  %4498 = vmatpush.bf16.msra.mxu0 %v2750
  %4499 = vmatpush.bf16.msra.mxu0 %v2746
  %4500 = vmatpush.bf16.msra.mxu0 %v2742
  %4501 = vmatpush.bf16.msra.mxu0 %v2738
  %4502 = vmatmul.bf16.gmra.mxu0 %v750
  %v4503 = vpop.f32.mrf.mxu0
  %v4504 = vadd.f32 %v4485, %v4503
  %v4505 = vpop.f32.mrf.mxu0
  %v4506 = vadd.f32 %v4487, %v4505
  %4507 = vmatmul.bf16.gmra.mxu0 %v768
  %v4508 = vpop.f32.mrf.mxu0
  %v4509 = vadd.f32 %v4490, %v4508
  %v4510 = vpop.f32.mrf.mxu0
  %v4511 = vadd.f32 %v4492, %v4510
  %4512 = vdwg.mxu0
  %4513 = vmatpush.bf16.msra.mxu0 %v2798
  %4514 = vmatpush.bf16.msra.mxu0 %v2794
  %4515 = vmatpush.bf16.msra.mxu0 %v2790
  %4516 = vmatpush.bf16.msra.mxu0 %v2786
  %4517 = vmatpush.bf16.msra.mxu0 %v2782
  %4518 = vmatpush.bf16.msra.mxu0 %v2778
  %4519 = vmatpush.bf16.msra.mxu0 %v2774
  %4520 = vmatpush.bf16.msra.mxu0 %v2770
  %4521 = vmatmul.bf16.gmra.mxu0 %v751
  %v4522 = vpop.f32.mrf.mxu0
  %v4523 = vadd.f32 %v4504, %v4522
  %v4524 = vpop.f32.mrf.mxu0
  %v4525 = vadd.f32 %v4506, %v4524
  %4526 = vmatmul.bf16.gmra.mxu0 %v769
  %v4527 = vpop.f32.mrf.mxu0
  %v4528 = vadd.f32 %v4509, %v4527
  %v4529 = vpop.f32.mrf.mxu0
  %v4530 = vadd.f32 %v4511, %v4529
  %4531 = vdwg.mxu0
  %4532 = vmatpush.bf16.msra.mxu0 %v2830
  %4533 = vmatpush.bf16.msra.mxu0 %v2826
  %4534 = vmatpush.bf16.msra.mxu0 %v2822
  %4535 = vmatpush.bf16.msra.mxu0 %v2818
  %4536 = vmatpush.bf16.msra.mxu0 %v2814
  %4537 = vmatpush.bf16.msra.mxu0 %v2810
  %4538 = vmatpush.bf16.msra.mxu0 %v2806
  %4539 = vmatpush.bf16.msra.mxu0 %v2802
  %4540 = vmatmul.bf16.gmra.mxu0 %v752
  %v4541 = vpop.f32.mrf.mxu0
  %v4542 = vadd.f32 %v4523, %v4541
  %v4543 = vpop.f32.mrf.mxu0
  %v4544 = vadd.f32 %v4525, %v4543
  %4545 = vmatmul.bf16.gmra.mxu0 %v770
  %v4546 = vpop.f32.mrf.mxu0
  %v4547 = vadd.f32 %v4528, %v4546
  %v4548 = vpop.f32.mrf.mxu0
  %v4549 = vadd.f32 %v4530, %v4548
  %4550 = vdwg.mxu0
  %4551 = vmatpush.bf16.msra.mxu0 %v2862
  %4552 = vmatpush.bf16.msra.mxu0 %v2858
  %4553 = vmatpush.bf16.msra.mxu0 %v2854
  %4554 = vmatpush.bf16.msra.mxu0 %v2850
  %4555 = vmatpush.bf16.msra.mxu0 %v2846
  %4556 = vmatpush.bf16.msra.mxu0 %v2842
  %4557 = vmatpush.bf16.msra.mxu0 %v2838
  %4558 = vmatpush.bf16.msra.mxu0 %v2834
  %4559 = vmatmul.bf16.gmra.mxu0 %v753
  %v4560 = vpop.f32.mrf.mxu0
  %v4561 = vadd.f32 %v4542, %v4560
  %v4562 = vpop.f32.mrf.mxu0
  %v4563 = vadd.f32 %v4544, %v4562
  %4564 = vmatmul.bf16.gmra.mxu0 %v771
  %v4565 = vpop.f32.mrf.mxu0
  %v4566 = vadd.f32 %v4547, %v4565
  %v4567 = vpop.f32.mrf.mxu0
  %v4568 = vadd.f32 %v4549, %v4567
  %4569 = vdwg.mxu0
  %4570 = vmatpush.bf16.msra.mxu0 %v2894
  %4571 = vmatpush.bf16.msra.mxu0 %v2890
  %4572 = vmatpush.bf16.msra.mxu0 %v2886
  %4573 = vmatpush.bf16.msra.mxu0 %v2882
  %4574 = vmatpush.bf16.msra.mxu0 %v2878
  %4575 = vmatpush.bf16.msra.mxu0 %v2874
  %4576 = vmatpush.bf16.msra.mxu0 %v2870
  %4577 = vmatpush.bf16.msra.mxu0 %v2866
  %4578 = vmatmul.bf16.gmra.mxu0 %v754
  %v4579 = vpop.f32.mrf.mxu0
  %v4580 = vadd.f32 %v4561, %v4579
  %v4581 = vpop.f32.mrf.mxu0
  %v4582 = vadd.f32 %v4563, %v4581
  %4583 = vmatmul.bf16.gmra.mxu0 %v772
  %v4584 = vpop.f32.mrf.mxu0
  %v4585 = vadd.f32 %v4566, %v4584
  %v4586 = vpop.f32.mrf.mxu0
  %v4587 = vadd.f32 %v4568, %v4586
  %4588 = vdwg.mxu0
  %4589 = vmatpush.bf16.msra.mxu0 %v2926
  %4590 = vmatpush.bf16.msra.mxu0 %v2922
  %4591 = vmatpush.bf16.msra.mxu0 %v2918
  %4592 = vmatpush.bf16.msra.mxu0 %v2914
  %4593 = vmatpush.bf16.msra.mxu0 %v2910
  %4594 = vmatpush.bf16.msra.mxu0 %v2906
  %4595 = vmatpush.bf16.msra.mxu0 %v2902
  %4596 = vmatpush.bf16.msra.mxu0 %v2898
  %4597 = vmatmul.bf16.gmra.mxu0 %v755
  %v4598 = vpop.f32.mrf.mxu0
  %v4599 = vadd.f32 %v4580, %v4598
  %v4600 = vpop.f32.mrf.mxu0
  %v4601 = vadd.f32 %v4582, %v4600
  %4602 = vmatmul.bf16.gmra.mxu0 %v773
  %v4603 = vpop.f32.mrf.mxu0
  %v4604 = vadd.f32 %v4585, %v4603
  %v4605 = vpop.f32.mrf.mxu0
  %v4606 = vadd.f32 %v4587, %v4605
  %4607 = vdwg.mxu0
  %4608 = vmatpush.bf16.msra.mxu0 %v2958
  %4609 = vmatpush.bf16.msra.mxu0 %v2954
  %4610 = vmatpush.bf16.msra.mxu0 %v2950
  %4611 = vmatpush.bf16.msra.mxu0 %v2946
  %4612 = vmatpush.bf16.msra.mxu0 %v2942
  %4613 = vmatpush.bf16.msra.mxu0 %v2938
  %4614 = vmatpush.bf16.msra.mxu0 %v2934
  %4615 = vmatpush.bf16.msra.mxu0 %v2930
  %4616 = vmatmul.bf16.gmra.mxu0 %v756
  %v4617 = vpop.f32.mrf.mxu0
  %v4618 = vadd.f32 %v4599, %v4617
  %v4619 = vpop.f32.mrf.mxu0
  %v4620 = vadd.f32 %v4601, %v4619
  %4621 = vmatmul.bf16.gmra.mxu0 %v774
  %v4622 = vpop.f32.mrf.mxu0
  %v4623 = vadd.f32 %v4604, %v4622
  %v4624 = vpop.f32.mrf.mxu0
  %v4625 = vadd.f32 %v4606, %v4624
  %4626 = vdwg.mxu0
  %4627 = vmatpush.bf16.msra.mxu0 %v2990
  %4628 = vmatpush.bf16.msra.mxu0 %v2986
  %4629 = vmatpush.bf16.msra.mxu0 %v2982
  %4630 = vmatpush.bf16.msra.mxu0 %v2978
  %4631 = vmatpush.bf16.msra.mxu0 %v2974
  %4632 = vmatpush.bf16.msra.mxu0 %v2970
  %4633 = vmatpush.bf16.msra.mxu0 %v2966
  %4634 = vmatpush.bf16.msra.mxu0 %v2962
  %4635 = vmatmul.bf16.gmra.mxu0 %v757
  %v4636 = vpop.f32.mrf.mxu0
  %v4637 = vadd.f32 %v4618, %v4636
  %v4638 = vpop.f32.mrf.mxu0
  %v4639 = vadd.f32 %v4620, %v4638
  %4640 = vmatmul.bf16.gmra.mxu0 %v775
  %v4641 = vpop.f32.mrf.mxu0
  %v4642 = vadd.f32 %v4623, %v4641
  %v4643 = vpop.f32.mrf.mxu0
  %v4644 = vadd.f32 %v4625, %v4643
  %4645 = vdwg.mxu0
  %4646 = vmatpush.bf16.msra.mxu0 %v3022
  %4647 = vmatpush.bf16.msra.mxu0 %v3018
  %4648 = vmatpush.bf16.msra.mxu0 %v3014
  %4649 = vmatpush.bf16.msra.mxu0 %v3010
  %4650 = vmatpush.bf16.msra.mxu0 %v3006
  %4651 = vmatpush.bf16.msra.mxu0 %v3002
  %4652 = vmatpush.bf16.msra.mxu0 %v2998
  %4653 = vmatpush.bf16.msra.mxu0 %v2994
  %4654 = vmatmul.bf16.gmra.mxu0 %v758
  %v4655 = vpop.f32.mrf.mxu0
  %v4656 = vadd.f32 %v4637, %v4655
  %v4657 = vpop.f32.mrf.mxu0
  %v4658 = vadd.f32 %v4639, %v4657
  %4659 = vmatmul.bf16.gmra.mxu0 %v776
  %v4660 = vpop.f32.mrf.mxu0
  %v4661 = vadd.f32 %v4642, %v4660
  %v4662 = vpop.f32.mrf.mxu0
  %v4663 = vadd.f32 %v4644, %v4662
  %4664 = vdwg.mxu0
  %4665 = vmatpush.bf16.msra.mxu0 %v3054
  %4666 = vmatpush.bf16.msra.mxu0 %v3050
  %4667 = vmatpush.bf16.msra.mxu0 %v3046
  %4668 = vmatpush.bf16.msra.mxu0 %v3042
  %4669 = vmatpush.bf16.msra.mxu0 %v3038
  %4670 = vmatpush.bf16.msra.mxu0 %v3034
  %4671 = vmatpush.bf16.msra.mxu0 %v3030
  %4672 = vmatpush.bf16.msra.mxu0 %v3026
  %4673 = vmatmul.bf16.gmra.mxu0 %v759
  %v4674 = vpop.f32.mrf.mxu0
  %v4675 = vadd.f32 %v4656, %v4674
  %v4676 = vpop.f32.mrf.mxu0
  %v4677 = vadd.f32 %v4658, %v4676
  %4678 = vmatmul.bf16.gmra.mxu0 %v777
  %v4679 = vpop.f32.mrf.mxu0
  %v4680 = vadd.f32 %v4661, %v4679
  %v4681 = vpop.f32.mrf.mxu0
  %v4682 = vadd.f32 %v4663, %v4681
  %4683 = vdwg.mxu0
  %4684 = vmatpush.bf16.msra.mxu0 %v3086
  %4685 = vmatpush.bf16.msra.mxu0 %v3082
  %4686 = vmatpush.bf16.msra.mxu0 %v3078
  %4687 = vmatpush.bf16.msra.mxu0 %v3074
  %4688 = vmatpush.bf16.msra.mxu0 %v3070
  %4689 = vmatpush.bf16.msra.mxu0 %v3066
  %4690 = vmatpush.bf16.msra.mxu0 %v3062
  %4691 = vmatpush.bf16.msra.mxu0 %v3058
  %4692 = vmatmul.bf16.gmra.mxu0 %v760
  %v4693 = vpop.f32.mrf.mxu0
  %v4694 = vadd.f32 %v4675, %v4693
  %v4695 = vpop.f32.mrf.mxu0
  %v4696 = vadd.f32 %v4677, %v4695
  %4697 = vmatmul.bf16.gmra.mxu0 %v778
  %v4698 = vpop.f32.mrf.mxu0
  %v4699 = vadd.f32 %v4680, %v4698
  %v4700 = vpop.f32.mrf.mxu0
  %v4701 = vadd.f32 %v4682, %v4700
  %4702 = vdwg.mxu0
  %4703 = vmatpush.bf16.msra.mxu0 %v3118
  %4704 = vmatpush.bf16.msra.mxu0 %v3114
  %4705 = vmatpush.bf16.msra.mxu0 %v3110
  %4706 = vmatpush.bf16.msra.mxu0 %v3106
  %4707 = vmatpush.bf16.msra.mxu0 %v3102
  %4708 = vmatpush.bf16.msra.mxu0 %v3098
  %4709 = vmatpush.bf16.msra.mxu0 %v3094
  %4710 = vmatpush.bf16.msra.mxu0 %v3090
  %4711 = vmatmul.bf16.gmra.mxu0 %v761
  %v4712 = vpop.f32.mrf.mxu0
  %v4713 = vadd.f32 %v4694, %v4712
  %v4714 = vpop.f32.mrf.mxu0
  %v4715 = vadd.f32 %v4696, %v4714
  %4716 = vmatmul.bf16.gmra.mxu0 %v779
  %v4717 = vpop.f32.mrf.mxu0
  %v4718 = vadd.f32 %v4699, %v4717
  %v4719 = vpop.f32.mrf.mxu0
  %v4720 = vadd.f32 %v4701, %v4719
  %4721 = vdwg.mxu0
  %4722 = vmatpush.bf16.msra.mxu0 %v2575
  %4723 = vmatpush.bf16.msra.mxu0 %v2571
  %4724 = vmatpush.bf16.msra.mxu0 %v2567
  %4725 = vmatpush.bf16.msra.mxu0 %v2563
  %4726 = vmatpush.bf16.msra.mxu0 %v2559
  %4727 = vmatpush.bf16.msra.mxu0 %v2555
  %4728 = vmatpush.bf16.msra.mxu0 %v2551
  %4729 = vmatpush.bf16.msra.mxu0 %v2547
  %4730 = vmatmul.bf16.gmra.mxu0 %v744
  %v4731 = vpop.f32.mrf.mxu0
  %v4732 = vadd.f32 %v631, %v4731
  %v4733 = vpop.f32.mrf.mxu0
  %v4734 = vadd.f32 %v631, %v4733
  %4735 = vmatmul.bf16.gmra.mxu0 %v762
  %v4736 = vpop.f32.mrf.mxu0
  %v4737 = vadd.f32 %v631, %v4736
  %v4738 = vpop.f32.mrf.mxu0
  %v4739 = vadd.f32 %v631, %v4738
  %4740 = vdwg.mxu0
  %4741 = vmatpush.bf16.msra.mxu0 %v2607
  %4742 = vmatpush.bf16.msra.mxu0 %v2603
  %4743 = vmatpush.bf16.msra.mxu0 %v2599
  %4744 = vmatpush.bf16.msra.mxu0 %v2595
  %4745 = vmatpush.bf16.msra.mxu0 %v2591
  %4746 = vmatpush.bf16.msra.mxu0 %v2587
  %4747 = vmatpush.bf16.msra.mxu0 %v2583
  %4748 = vmatpush.bf16.msra.mxu0 %v2579
  %4749 = vmatmul.bf16.gmra.mxu0 %v745
  %v4750 = vpop.f32.mrf.mxu0
  %v4751 = vadd.f32 %v4732, %v4750
  %v4752 = vpop.f32.mrf.mxu0
  %v4753 = vadd.f32 %v4734, %v4752
  %4754 = vmatmul.bf16.gmra.mxu0 %v763
  %v4755 = vpop.f32.mrf.mxu0
  %v4756 = vadd.f32 %v4737, %v4755
  %v4757 = vpop.f32.mrf.mxu0
  %v4758 = vadd.f32 %v4739, %v4757
  %4759 = vdwg.mxu0
  %4760 = vmatpush.bf16.msra.mxu0 %v2639
  %4761 = vmatpush.bf16.msra.mxu0 %v2635
  %4762 = vmatpush.bf16.msra.mxu0 %v2631
  %4763 = vmatpush.bf16.msra.mxu0 %v2627
  %4764 = vmatpush.bf16.msra.mxu0 %v2623
  %4765 = vmatpush.bf16.msra.mxu0 %v2619
  %4766 = vmatpush.bf16.msra.mxu0 %v2615
  %4767 = vmatpush.bf16.msra.mxu0 %v2611
  %4768 = vmatmul.bf16.gmra.mxu0 %v746
  %v4769 = vpop.f32.mrf.mxu0
  %v4770 = vadd.f32 %v4751, %v4769
  %v4771 = vpop.f32.mrf.mxu0
  %v4772 = vadd.f32 %v4753, %v4771
  %4773 = vmatmul.bf16.gmra.mxu0 %v764
  %v4774 = vpop.f32.mrf.mxu0
  %v4775 = vadd.f32 %v4756, %v4774
  %v4776 = vpop.f32.mrf.mxu0
  %v4777 = vadd.f32 %v4758, %v4776
  %4778 = vdwg.mxu0
  %4779 = vmatpush.bf16.msra.mxu0 %v2671
  %4780 = vmatpush.bf16.msra.mxu0 %v2667
  %4781 = vmatpush.bf16.msra.mxu0 %v2663
  %4782 = vmatpush.bf16.msra.mxu0 %v2659
  %4783 = vmatpush.bf16.msra.mxu0 %v2655
  %4784 = vmatpush.bf16.msra.mxu0 %v2651
  %4785 = vmatpush.bf16.msra.mxu0 %v2647
  %4786 = vmatpush.bf16.msra.mxu0 %v2643
  %4787 = vmatmul.bf16.gmra.mxu0 %v747
  %v4788 = vpop.f32.mrf.mxu0
  %v4789 = vadd.f32 %v4770, %v4788
  %v4790 = vpop.f32.mrf.mxu0
  %v4791 = vadd.f32 %v4772, %v4790
  %4792 = vmatmul.bf16.gmra.mxu0 %v765
  %v4793 = vpop.f32.mrf.mxu0
  %v4794 = vadd.f32 %v4775, %v4793
  %v4795 = vpop.f32.mrf.mxu0
  %v4796 = vadd.f32 %v4777, %v4795
  %4797 = vdwg.mxu0
  %4798 = vmatpush.bf16.msra.mxu0 %v2703
  %4799 = vmatpush.bf16.msra.mxu0 %v2699
  %4800 = vmatpush.bf16.msra.mxu0 %v2695
  %4801 = vmatpush.bf16.msra.mxu0 %v2691
  %4802 = vmatpush.bf16.msra.mxu0 %v2687
  %4803 = vmatpush.bf16.msra.mxu0 %v2683
  %4804 = vmatpush.bf16.msra.mxu0 %v2679
  %4805 = vmatpush.bf16.msra.mxu0 %v2675
  %4806 = vmatmul.bf16.gmra.mxu0 %v748
  %v4807 = vpop.f32.mrf.mxu0
  %v4808 = vadd.f32 %v4789, %v4807
  %v4809 = vpop.f32.mrf.mxu0
  %v4810 = vadd.f32 %v4791, %v4809
  %4811 = vmatmul.bf16.gmra.mxu0 %v766
  %v4812 = vpop.f32.mrf.mxu0
  %v4813 = vadd.f32 %v4794, %v4812
  %v4814 = vpop.f32.mrf.mxu0
  %v4815 = vadd.f32 %v4796, %v4814
  %4816 = vdwg.mxu0
  %4817 = vmatpush.bf16.msra.mxu0 %v2735
  %4818 = vmatpush.bf16.msra.mxu0 %v2731
  %4819 = vmatpush.bf16.msra.mxu0 %v2727
  %4820 = vmatpush.bf16.msra.mxu0 %v2723
  %4821 = vmatpush.bf16.msra.mxu0 %v2719
  %4822 = vmatpush.bf16.msra.mxu0 %v2715
  %4823 = vmatpush.bf16.msra.mxu0 %v2711
  %4824 = vmatpush.bf16.msra.mxu0 %v2707
  %4825 = vmatmul.bf16.gmra.mxu0 %v749
  %v4826 = vpop.f32.mrf.mxu0
  %v4827 = vadd.f32 %v4808, %v4826
  %v4828 = vpop.f32.mrf.mxu0
  %v4829 = vadd.f32 %v4810, %v4828
  %4830 = vmatmul.bf16.gmra.mxu0 %v767
  %v4831 = vpop.f32.mrf.mxu0
  %v4832 = vadd.f32 %v4813, %v4831
  %v4833 = vpop.f32.mrf.mxu0
  %v4834 = vadd.f32 %v4815, %v4833
  %4835 = vdwg.mxu0
  %4836 = vmatpush.bf16.msra.mxu0 %v2767
  %4837 = vmatpush.bf16.msra.mxu0 %v2763
  %4838 = vmatpush.bf16.msra.mxu0 %v2759
  %4839 = vmatpush.bf16.msra.mxu0 %v2755
  %4840 = vmatpush.bf16.msra.mxu0 %v2751
  %4841 = vmatpush.bf16.msra.mxu0 %v2747
  %4842 = vmatpush.bf16.msra.mxu0 %v2743
  %4843 = vmatpush.bf16.msra.mxu0 %v2739
  %4844 = vmatmul.bf16.gmra.mxu0 %v750
  %v4845 = vpop.f32.mrf.mxu0
  %v4846 = vadd.f32 %v4827, %v4845
  %v4847 = vpop.f32.mrf.mxu0
  %v4848 = vadd.f32 %v4829, %v4847
  %4849 = vmatmul.bf16.gmra.mxu0 %v768
  %v4850 = vpop.f32.mrf.mxu0
  %v4851 = vadd.f32 %v4832, %v4850
  %v4852 = vpop.f32.mrf.mxu0
  %v4853 = vadd.f32 %v4834, %v4852
  %4854 = vdwg.mxu0
  %4855 = vmatpush.bf16.msra.mxu0 %v2799
  %4856 = vmatpush.bf16.msra.mxu0 %v2795
  %4857 = vmatpush.bf16.msra.mxu0 %v2791
  %4858 = vmatpush.bf16.msra.mxu0 %v2787
  %4859 = vmatpush.bf16.msra.mxu0 %v2783
  %4860 = vmatpush.bf16.msra.mxu0 %v2779
  %4861 = vmatpush.bf16.msra.mxu0 %v2775
  %4862 = vmatpush.bf16.msra.mxu0 %v2771
  %4863 = vmatmul.bf16.gmra.mxu0 %v751
  %v4864 = vpop.f32.mrf.mxu0
  %v4865 = vadd.f32 %v4846, %v4864
  %v4866 = vpop.f32.mrf.mxu0
  %v4867 = vadd.f32 %v4848, %v4866
  %4868 = vmatmul.bf16.gmra.mxu0 %v769
  %v4869 = vpop.f32.mrf.mxu0
  %v4870 = vadd.f32 %v4851, %v4869
  %v4871 = vpop.f32.mrf.mxu0
  %v4872 = vadd.f32 %v4853, %v4871
  %4873 = vdwg.mxu0
  %4874 = vmatpush.bf16.msra.mxu0 %v2831
  %4875 = vmatpush.bf16.msra.mxu0 %v2827
  %4876 = vmatpush.bf16.msra.mxu0 %v2823
  %4877 = vmatpush.bf16.msra.mxu0 %v2819
  %4878 = vmatpush.bf16.msra.mxu0 %v2815
  %4879 = vmatpush.bf16.msra.mxu0 %v2811
  %4880 = vmatpush.bf16.msra.mxu0 %v2807
  %4881 = vmatpush.bf16.msra.mxu0 %v2803
  %4882 = vmatmul.bf16.gmra.mxu0 %v752
  %v4883 = vpop.f32.mrf.mxu0
  %v4884 = vadd.f32 %v4865, %v4883
  %v4885 = vpop.f32.mrf.mxu0
  %v4886 = vadd.f32 %v4867, %v4885
  %4887 = vmatmul.bf16.gmra.mxu0 %v770
  %v4888 = vpop.f32.mrf.mxu0
  %v4889 = vadd.f32 %v4870, %v4888
  %v4890 = vpop.f32.mrf.mxu0
  %v4891 = vadd.f32 %v4872, %v4890
  %4892 = vdwg.mxu0
  %4893 = vmatpush.bf16.msra.mxu0 %v2863
  %4894 = vmatpush.bf16.msra.mxu0 %v2859
  %4895 = vmatpush.bf16.msra.mxu0 %v2855
  %4896 = vmatpush.bf16.msra.mxu0 %v2851
  %4897 = vmatpush.bf16.msra.mxu0 %v2847
  %4898 = vmatpush.bf16.msra.mxu0 %v2843
  %4899 = vmatpush.bf16.msra.mxu0 %v2839
  %4900 = vmatpush.bf16.msra.mxu0 %v2835
  %4901 = vmatmul.bf16.gmra.mxu0 %v753
  %v4902 = vpop.f32.mrf.mxu0
  %v4903 = vadd.f32 %v4884, %v4902
  %v4904 = vpop.f32.mrf.mxu0
  %v4905 = vadd.f32 %v4886, %v4904
  %4906 = vmatmul.bf16.gmra.mxu0 %v771
  %v4907 = vpop.f32.mrf.mxu0
  %v4908 = vadd.f32 %v4889, %v4907
  %v4909 = vpop.f32.mrf.mxu0
  %v4910 = vadd.f32 %v4891, %v4909
  %4911 = vdwg.mxu0
  %4912 = vmatpush.bf16.msra.mxu0 %v2895
  %4913 = vmatpush.bf16.msra.mxu0 %v2891
  %4914 = vmatpush.bf16.msra.mxu0 %v2887
  %4915 = vmatpush.bf16.msra.mxu0 %v2883
  %4916 = vmatpush.bf16.msra.mxu0 %v2879
  %4917 = vmatpush.bf16.msra.mxu0 %v2875
  %4918 = vmatpush.bf16.msra.mxu0 %v2871
  %4919 = vmatpush.bf16.msra.mxu0 %v2867
  %4920 = vmatmul.bf16.gmra.mxu0 %v754
  %v4921 = vpop.f32.mrf.mxu0
  %v4922 = vadd.f32 %v4903, %v4921
  %v4923 = vpop.f32.mrf.mxu0
  %v4924 = vadd.f32 %v4905, %v4923
  %4925 = vmatmul.bf16.gmra.mxu0 %v772
  %v4926 = vpop.f32.mrf.mxu0
  %v4927 = vadd.f32 %v4908, %v4926
  %v4928 = vpop.f32.mrf.mxu0
  %v4929 = vadd.f32 %v4910, %v4928
  %4930 = vdwg.mxu0
  %4931 = vmatpush.bf16.msra.mxu0 %v2927
  %4932 = vmatpush.bf16.msra.mxu0 %v2923
  %4933 = vmatpush.bf16.msra.mxu0 %v2919
  %4934 = vmatpush.bf16.msra.mxu0 %v2915
  %4935 = vmatpush.bf16.msra.mxu0 %v2911
  %4936 = vmatpush.bf16.msra.mxu0 %v2907
  %4937 = vmatpush.bf16.msra.mxu0 %v2903
  %4938 = vmatpush.bf16.msra.mxu0 %v2899
  %4939 = vmatmul.bf16.gmra.mxu0 %v755
  %v4940 = vpop.f32.mrf.mxu0
  %v4941 = vadd.f32 %v4922, %v4940
  %v4942 = vpop.f32.mrf.mxu0
  %v4943 = vadd.f32 %v4924, %v4942
  %4944 = vmatmul.bf16.gmra.mxu0 %v773
  %v4945 = vpop.f32.mrf.mxu0
  %v4946 = vadd.f32 %v4927, %v4945
  %v4947 = vpop.f32.mrf.mxu0
  %v4948 = vadd.f32 %v4929, %v4947
  %4949 = vdwg.mxu0
  %4950 = vmatpush.bf16.msra.mxu0 %v2959
  %4951 = vmatpush.bf16.msra.mxu0 %v2955
  %4952 = vmatpush.bf16.msra.mxu0 %v2951
  %4953 = vmatpush.bf16.msra.mxu0 %v2947
  %4954 = vmatpush.bf16.msra.mxu0 %v2943
  %4955 = vmatpush.bf16.msra.mxu0 %v2939
  %4956 = vmatpush.bf16.msra.mxu0 %v2935
  %4957 = vmatpush.bf16.msra.mxu0 %v2931
  %4958 = vmatmul.bf16.gmra.mxu0 %v756
  %v4959 = vpop.f32.mrf.mxu0
  %v4960 = vadd.f32 %v4941, %v4959
  %v4961 = vpop.f32.mrf.mxu0
  %v4962 = vadd.f32 %v4943, %v4961
  %4963 = vmatmul.bf16.gmra.mxu0 %v774
  %v4964 = vpop.f32.mrf.mxu0
  %v4965 = vadd.f32 %v4946, %v4964
  %v4966 = vpop.f32.mrf.mxu0
  %v4967 = vadd.f32 %v4948, %v4966
  %4968 = vdwg.mxu0
  %4969 = vmatpush.bf16.msra.mxu0 %v2991
  %4970 = vmatpush.bf16.msra.mxu0 %v2987
  %4971 = vmatpush.bf16.msra.mxu0 %v2983
  %4972 = vmatpush.bf16.msra.mxu0 %v2979
  %4973 = vmatpush.bf16.msra.mxu0 %v2975
  %4974 = vmatpush.bf16.msra.mxu0 %v2971
  %4975 = vmatpush.bf16.msra.mxu0 %v2967
  %4976 = vmatpush.bf16.msra.mxu0 %v2963
  %4977 = vmatmul.bf16.gmra.mxu0 %v757
  %v4978 = vpop.f32.mrf.mxu0
  %v4979 = vadd.f32 %v4960, %v4978
  %v4980 = vpop.f32.mrf.mxu0
  %v4981 = vadd.f32 %v4962, %v4980
  %4982 = vmatmul.bf16.gmra.mxu0 %v775
  %v4983 = vpop.f32.mrf.mxu0
  %v4984 = vadd.f32 %v4965, %v4983
  %v4985 = vpop.f32.mrf.mxu0
  %v4986 = vadd.f32 %v4967, %v4985
  %4987 = vdwg.mxu0
  %4988 = vmatpush.bf16.msra.mxu0 %v3023
  %4989 = vmatpush.bf16.msra.mxu0 %v3019
  %4990 = vmatpush.bf16.msra.mxu0 %v3015
  %4991 = vmatpush.bf16.msra.mxu0 %v3011
  %4992 = vmatpush.bf16.msra.mxu0 %v3007
  %4993 = vmatpush.bf16.msra.mxu0 %v3003
  %4994 = vmatpush.bf16.msra.mxu0 %v2999
  %4995 = vmatpush.bf16.msra.mxu0 %v2995
  %4996 = vmatmul.bf16.gmra.mxu0 %v758
  %v4997 = vpop.f32.mrf.mxu0
  %v4998 = vadd.f32 %v4979, %v4997
  %v4999 = vpop.f32.mrf.mxu0
  %v5000 = vadd.f32 %v4981, %v4999
  %5001 = vmatmul.bf16.gmra.mxu0 %v776
  %v5002 = vpop.f32.mrf.mxu0
  %v5003 = vadd.f32 %v4984, %v5002
  %v5004 = vpop.f32.mrf.mxu0
  %v5005 = vadd.f32 %v4986, %v5004
  %5006 = vdwg.mxu0
  %5007 = vmatpush.bf16.msra.mxu0 %v3055
  %5008 = vmatpush.bf16.msra.mxu0 %v3051
  %5009 = vmatpush.bf16.msra.mxu0 %v3047
  %5010 = vmatpush.bf16.msra.mxu0 %v3043
  %5011 = vmatpush.bf16.msra.mxu0 %v3039
  %5012 = vmatpush.bf16.msra.mxu0 %v3035
  %5013 = vmatpush.bf16.msra.mxu0 %v3031
  %5014 = vmatpush.bf16.msra.mxu0 %v3027
  %5015 = vmatmul.bf16.gmra.mxu0 %v759
  %v5016 = vpop.f32.mrf.mxu0
  %v5017 = vadd.f32 %v4998, %v5016
  %v5018 = vpop.f32.mrf.mxu0
  %v5019 = vadd.f32 %v5000, %v5018
  %5020 = vmatmul.bf16.gmra.mxu0 %v777
  %v5021 = vpop.f32.mrf.mxu0
  %v5022 = vadd.f32 %v5003, %v5021
  %v5023 = vpop.f32.mrf.mxu0
  %v5024 = vadd.f32 %v5005, %v5023
  %5025 = vdwg.mxu0
  %5026 = vmatpush.bf16.msra.mxu0 %v3087
  %5027 = vmatpush.bf16.msra.mxu0 %v3083
  %5028 = vmatpush.bf16.msra.mxu0 %v3079
  %5029 = vmatpush.bf16.msra.mxu0 %v3075
  %5030 = vmatpush.bf16.msra.mxu0 %v3071
  %5031 = vmatpush.bf16.msra.mxu0 %v3067
  %5032 = vmatpush.bf16.msra.mxu0 %v3063
  %5033 = vmatpush.bf16.msra.mxu0 %v3059
  %5034 = vmatmul.bf16.gmra.mxu0 %v760
  %v5035 = vpop.f32.mrf.mxu0
  %v5036 = vadd.f32 %v5017, %v5035
  %v5037 = vpop.f32.mrf.mxu0
  %v5038 = vadd.f32 %v5019, %v5037
  %5039 = vmatmul.bf16.gmra.mxu0 %v778
  %v5040 = vpop.f32.mrf.mxu0
  %v5041 = vadd.f32 %v5022, %v5040
  %v5042 = vpop.f32.mrf.mxu0
  %v5043 = vadd.f32 %v5024, %v5042
  %5044 = vdwg.mxu0
  %5045 = vmatpush.bf16.msra.mxu0 %v3119
  %5046 = vmatpush.bf16.msra.mxu0 %v3115
  %5047 = vmatpush.bf16.msra.mxu0 %v3111
  %5048 = vmatpush.bf16.msra.mxu0 %v3107
  %5049 = vmatpush.bf16.msra.mxu0 %v3103
  %5050 = vmatpush.bf16.msra.mxu0 %v3099
  %5051 = vmatpush.bf16.msra.mxu0 %v3095
  %5052 = vmatpush.bf16.msra.mxu0 %v3091
  %5053 = vmatmul.bf16.gmra.mxu0 %v761
  %v5054 = vpop.f32.mrf.mxu0
  %v5055 = vadd.f32 %v5036, %v5054
  %v5056 = vpop.f32.mrf.mxu0
  %v5057 = vadd.f32 %v5038, %v5056
  %5058 = vmatmul.bf16.gmra.mxu0 %v779
  %v5059 = vpop.f32.mrf.mxu0
  %v5060 = vadd.f32 %v5041, %v5059
  %v5061 = vpop.f32.mrf.mxu0
  %v5062 = vadd.f32 %v5043, %v5061
  %5063 = vdwg.mxu0
  %v5064 = vmul.f32 %v4029, 0.2
  %v5065 = vmul.f32 %v4371, 0.2
  %v5066 = vmul.f32 %v4713, 0.2
  %v5067 = vmul.f32 %v5055, 0.2
  %v5068 = vmul.f32 %v4031, 0.2
  %v5069 = vmul.f32 %v4373, 0.2
  %v5070 = vmul.f32 %v4715, 0.2
  %v5071 = vmul.f32 %v5057, 0.2
  %v5072 = vmul.f32 %v4034, 0.2
  %v5073 = vmul.f32 %v4376, 0.2
  %v5074 = vmul.f32 %v4718, 0.2
  %v5075 = vmul.f32 %v5060, 0.2
  %v5076 = vmul.f32 %v4036, 0.2
  %v5077 = vmul.f32 %v4378, 0.2
  %v5078 = vmul.f32 %v4720, 0.2
  %v5079 = vmul.f32 %v5062, 0.2
  %v5080 = vmax.f32 %v4029, %v5064
  %v5081 = vmax.f32 %v4371, %v5065
  %v5082 = vmax.f32 %v4713, %v5066
  %v5083 = vmax.f32 %v5055, %v5067
  %v5084 = vmax.f32 %v4031, %v5068
  %v5085 = vmax.f32 %v4373, %v5069
  %v5086 = vmax.f32 %v4715, %v5070
  %v5087 = vmax.f32 %v5057, %v5071
  %v5088 = vmax.f32 %v4034, %v5072
  %v5089 = vmax.f32 %v4376, %v5073
  %v5090 = vmax.f32 %v4718, %v5074
  %v5091 = vmax.f32 %v5060, %v5075
  %v5092 = vmax.f32 %v4036, %v5076
  %v5093 = vmax.f32 %v4378, %v5077
  %v5094 = vmax.f32 %v4720, %v5078
  %v5095 = vmax.f32 %v5062, %v5079
  %v5096 = vpack.c.bf16 %v5081, %v5080
  %v5097 = vpack.c.bf16 %v5083, %v5082
  %v5098 = vpack.c.bf16 %v5085, %v5084
  %v5099 = vpack.c.bf16 %v5087, %v5086
  %v5100 = vpack.c.bf16 %v5089, %v5088
  %v5101 = vpack.c.bf16 %v5091, %v5090
  %v5102 = vpack.c.bf16 %v5093, %v5092
  %v5103 = vpack.c.bf16 %v5095, %v5094
  %5104 = vst [vmem:[%s3] sm:$0xff] %v5096
  %5105 = vst [vmem:[%s3 + $0x8] sm:$0xff] %v5097
  %5106 = vst [vmem:[%s3 + $0x10] sm:$0xff] %v5098
  %5107 = vst [vmem:[%s3 + $0x18] sm:$0xff] %v5099
  %5108 = vst [vmem:[%s3 + $0x20] sm:$0xff] %v5100
  %5109 = vst [vmem:[%s3 + $0x28] sm:$0xff] %v5101
  %5110 = vst [vmem:[%s3 + $0x30] sm:$0xff] %v5102
  %5111 = vst [vmem:[%s3 + $0x38] sm:$0xff] %v5103
  // Predicated region
  $region14: #{discriminator_forward.12} parent=0 // pred_check
    _
  $region15: #{discriminator_forward.12} parent=0 // pred_check_branch
    %5113 = sbr.rel (0) target = $region17
  $region16: #{discriminator_forward.12} parent=0 // pred_region
    _
  $region17: #{discriminator_forward.12} parent=0 // pred_fallthru
    _
  // Predicated region
  $region18: #{discriminator_forward.12} parent=0 // pred_check
    _
  $region19: #{discriminator_forward.12} parent=0 // pred_check_branch
    %5115 = sbr.rel (0) target = $region21
  $region20: #{discriminator_forward.12} parent=0 // pred_region
    _
  $region21: #{discriminator_forward.12} parent=0 // pred_fallthru
    _

</llo_original>
